<compile_context>
chip_gen: v7x
topology: tpu7x:2x2x1
jax: 0.10.0
libtpu: 0.0.40
codegen_flags: <defaults>
</compile_context>

<pallas_src>
import functools

import numpy as np

import jax
import jax.numpy as jnp
from jax import lax
from jax.experimental import pallas as pl
from jax.experimental.pallas import tpu as pltpu


LANES = 128   # f32 vreg lane width; all channel-like dims padded to this.
TB = 16       # batch tile per grid step; 16 keeps every bf16 block (16,128)-aligned.


def conv3d_output_size(size, pad, kernel, stride):
    return tuple(
        (size[i] + 2 * pad[i] - kernel[i]) // stride[i] + 1 for i in range(3)
    )


def _cdiv(a, b):
    return (a + b - 1) // b


def _conv2_src_rows(conv1_out, conv2_out, k2, stride2):
    """Static table: src_rows[s2][t] = conv1 spatial index feeding conv2
    output position s2 through kernel offset t."""
    D1, H1, W1 = conv1_out
    D2, H2, W2 = conv2_out
    kd, kh, kw = k2
    sd, sh, sw = stride2
    rows = []
    for d2 in range(D2):
        for h2 in range(H2):
            for w2 in range(W2):
                offs = []
                for dz in range(kd):
                    for dy in range(kh):
                        for dx in range(kw):
                            offs.append(((sd * d2 + dz) * H1 + (sh * h2 + dy)) * W1
                                        + (sw * w2 + dx))
                rows.append(tuple(offs))
    return tuple(rows)


# ----------------------------------------------------------------------------
# Fused whole-network Pallas kernel (one batch tile of TB samples per step).
# ----------------------------------------------------------------------------
def _cnn3dvisco_kernel(p_ref, w1_ref, w2_ref, wfc1_ref, wfc2_ref, wfc3_ref,
                       bias_ref, out_ref, y1_scr, g_scr, *,
                       tb, ch1, ch2, spatial2, n_off2, n_groups, src_rows):
    f32 = jnp.float32
    bf16 = jnp.bfloat16
    per_group = LANES // ch1          # 4 kernel offsets per 128-lane group

    # ---- conv1 (BN1 folded) + ReLU.  Output channels are replicated across
    #      the `per_group` lane groups (w1 columns replicated at init) so the
    #      conv2 patch packing below never needs sub-128-lane stores. --------
    y1 = jnp.dot(p_ref[...], w1_ref[...], preferred_element_type=f32)
    y1_scr[...] = jnp.maximum(y1 + bias_ref[0:1, :], 0.0)

    # ---- pack conv2 patches: for each conv2 spatial position s2 and each
    #      128-lane group, combine `per_group` conv1 row-blocks (one per
    #      kernel offset) with lane selects; all loads/stores are aligned. ---
    lane = lax.broadcasted_iota(jnp.int32, (tb, LANES), 1)
    for s2 in range(spatial2):
        srcs = src_rows[s2]
        for g in range(n_groups):
            v = None
            for q in range(per_group - 1, -1, -1):
                t = g * per_group + q
                if t >= n_off2:
                    continue
                r = srcs[t]
                blk = y1_scr[r * tb:(r + 1) * tb, :]
                v = blk if v is None else jnp.where(lane < (q + 1) * ch1, blk, v)
            g_scr[s2 * tb:(s2 + 1) * tb, g * LANES:(g + 1) * LANES] = v.astype(bf16)

    # ---- conv2 (BN2 folded) + ReLU as ONE large-K MXU dot --------------------
    c2 = jnp.dot(g_scr[...], w2_ref[...], preferred_element_type=f32)
    a2 = jnp.maximum(c2 + bias_ref[1:2, :], 0.0).astype(bf16)   # (spatial2*tb, 128)

    # ---- flatten + fc1 + ReLU (dense ch2-wide contraction per spatial pos) ---
    h1 = jnp.zeros((tb, LANES), f32)
    for s2 in range(spatial2):
        h1 = h1 + jnp.dot(a2[s2 * tb:(s2 + 1) * tb, 0:ch2],
                          wfc1_ref[s2 * ch2:(s2 + 1) * ch2, :],
                          preferred_element_type=f32)
    h1 = jnp.maximum(h1 + bias_ref[2:3, :], 0.0).astype(bf16)

    # ---- fc2 + ReLU, fc3 ------------------------------------------------------
    h2 = jnp.maximum(jnp.dot(h1, wfc2_ref[...], preferred_element_type=f32)
                     + bias_ref[3:4, :], 0.0).astype(bf16)
    out_ref[...] = (jnp.dot(h2, wfc3_ref[...], preferred_element_type=f32)
                    + bias_ref[4:5, :])


# ----------------------------------------------------------------------------
# Jitted forward: lean host-side im2col + the single pallas_call.
# ----------------------------------------------------------------------------
def _cnn3dvisco_forward(x, w1p, w2p, wfc1p, wfc2p, wfc3p, bias_slab, *,
                        k1, s1, conv1_out, ch1, ch2, spatial2, n_off2, n_groups,
                        src_rows, num_classes):
    bf16 = jnp.bfloat16
    batch = x.shape[0]
    D1, H1, W1 = conv1_out
    kd1, kh1, kw1 = k1
    sd1, sh1, sw1 = s1
    spatial1 = D1 * H1 * W1
    kk1 = kd1 * kh1 * kw1

    nt = _cdiv(batch, TB)
    npad = nt * TB

    x0 = x[:, 0].astype(bf16)                         # in_channels == 1
    if npad > batch:
        x0 = jnp.pad(x0, ((0, npad - batch), (0, 0), (0, 0), (0, 0)))

    # conv1 im2col (static-index gathers; conv padding is 0 in this module)
    idx_d = np.arange(D1)[:, None] * sd1 + np.arange(kd1)[None, :]
    idx_h = np.arange(H1)[:, None] * sh1 + np.arange(kh1)[None, :]
    idx_w = np.arange(W1)[:, None] * sw1 + np.arange(kw1)[None, :]
    p = x0[:, idx_d]                                  # (Np, D1, kd, H, W)
    p = p[:, :, :, idx_h]                             # (Np, D1, kd, H1, kh, W)
    p = p[..., idx_w]                                 # (Np, D1, kd, H1, kh, W1, kw)
    p = p.reshape(nt, TB, D1, kd1, H1, kh1, W1, kw1)
    # rows: (tile, d1, h1, w1, sample-in-tile); cols: (kd, kh, kw)
    p = jnp.transpose(p, (0, 2, 4, 6, 1, 3, 5, 7))
    patches = p.reshape(nt * spatial1 * TB, kk1)
    patches = jnp.pad(patches, ((0, 0), (0, LANES - kk1)))

    rows1 = spatial1 * TB
    rows2 = spatial2 * TB

    kernel = functools.partial(
        _cnn3dvisco_kernel, tb=TB, ch1=ch1, ch2=ch2, spatial2=spatial2,
        n_off2=n_off2, n_groups=n_groups, src_rows=src_rows)

    out = pl.pallas_call(
        kernel,
        out_shape=jax.ShapeDtypeStruct((nt * TB, LANES), jnp.float32),
        grid_spec=pltpu.PrefetchScalarGridSpec(
            num_scalar_prefetch=0,
            grid=(nt,),
            in_specs=[
                pl.BlockSpec((rows1, LANES), lambda i: (i, 0)),    # conv1 patches (per tile)
                pl.BlockSpec(w1p.shape, lambda i: (0, 0)),         # conv1 w (BN folded, replicated)
                pl.BlockSpec(w2p.shape, lambda i: (0, 0)),         # conv2 w (dense K, BN folded)
                pl.BlockSpec(wfc1p.shape, lambda i: (0, 0)),       # fc1 w (dense K, permuted)
                pl.BlockSpec(wfc2p.shape, lambda i: (0, 0)),       # fc2 w
                pl.BlockSpec(wfc3p.shape, lambda i: (0, 0)),       # fc3 w
                pl.BlockSpec(bias_slab.shape, lambda i: (0, 0)),   # all biases, one slab
            ],
            out_specs=pl.BlockSpec((TB, LANES), lambda i: (i, 0)),
            scratch_shapes=[
                pltpu.VMEM((rows1, LANES), jnp.float32),               # conv1 activation
                pltpu.VMEM((rows2, n_groups * LANES), jnp.bfloat16),   # packed conv2 patches
            ]),
        compiler_params=pltpu.CompilerParams(
            dimension_semantics=("parallel",)),
    )(patches, w1p, w2p, wfc1p, wfc2p, wfc3p, bias_slab)

    return out[:batch, :num_classes]


# ----------------------------------------------------------------------------
# Model: parameter construction + weight pre-folding / pre-packing at init.
# ----------------------------------------------------------------------------
class CNN3DViscoPallas:
    def __init__(self, t_dim=14, img_x=14, img_y=14, drop_p=0.0,
                 fc_hidden1=32, fc_hidden2=32, num_classes=5, key=None):
        # TODO(synk): dropout p > 0 not implemented (module config uses p=0 -> identity)
        assert drop_p == 0.0
        if key is None:
            key = jax.random.PRNGKey(0)

        self.t_dim, self.img_x, self.img_y = t_dim, img_x, img_y
        self.fc_hidden1, self.fc_hidden2 = fc_hidden1, fc_hidden2
        self.num_classes = num_classes
        self.drop_p = drop_p
        self.ch1, self.ch2 = 32, 48
        self.k1, self.k2 = (5, 5, 5), (3, 3, 3)
        self.s1, self.s2 = (2, 2, 2), (2, 2, 2)
        self.pd1, self.pd2 = (0, 0, 0), (0, 0, 0)
        self.eps = 1e-5
        self.conv1_outshape = conv3d_output_size(
            (t_dim, img_x, img_y), self.pd1, self.k1, self.s1)
        self.conv2_outshape = conv3d_output_size(
            self.conv1_outshape, self.pd2, self.k2, self.s2)

        L = LANES
        assert max(self.ch1, self.ch2, fc_hidden1, fc_hidden2, num_classes) <= L
        assert L % self.ch1 == 0
        kk1 = int(np.prod(self.k1))
        assert kk1 <= L                       # 1 input channel -> 125 patch columns

        spatial1 = int(np.prod(self.conv1_outshape))
        spatial2 = int(np.prod(self.conv2_outshape))
        flat = self.ch2 * spatial2
        n_off2 = int(np.prod(self.k2))
        per_group = L // self.ch1
        n_groups = _cdiv(n_off2, per_group)

        ks = jax.random.split(key, 18)
        f32 = jnp.float32
        bf16 = jnp.bfloat16

        # -------- raw parameters (PyTorch layouts), kept for the reference ----
        self.conv1_w = 0.05 * jax.random.normal(ks[0], (self.ch1, 1) + self.k1, f32)
        self.conv1_b = 0.05 * jax.random.normal(ks[1], (self.ch1,), f32)
        self.conv2_w = 0.05 * jax.random.normal(ks[2], (self.ch2, self.ch1) + self.k2, f32)
        self.conv2_b = 0.05 * jax.random.normal(ks[3], (self.ch2,), f32)

        # Eval-mode BatchNorm params / running stats (non-trivial so the fold
        # is actually exercised; fresh PyTorch init would be 1/0/0/1).
        self.bn1_gamma = 1.0 + 0.1 * jax.random.normal(ks[4], (self.ch1,), f32)
        self.bn1_beta = 0.1 * jax.random.normal(ks[5], (self.ch1,), f32)
        self.bn1_mean = 0.1 * jax.random.normal(ks[6], (self.ch1,), f32)
        self.bn1_var = 1.0 + 0.1 * jnp.abs(jax.random.normal(ks[7], (self.ch1,), f32))
        self.bn2_gamma = 1.0 + 0.1 * jax.random.normal(ks[8], (self.ch2,), f32)
        self.bn2_beta = 0.1 * jax.random.normal(ks[9], (self.ch2,), f32)
        self.bn2_mean = 0.1 * jax.random.normal(ks[10], (self.ch2,), f32)
        self.bn2_var = 1.0 + 0.1 * jnp.abs(jax.random.normal(ks[11], (self.ch2,), f32))

        self.fc1_w = 0.05 * jax.random.normal(ks[12], (fc_hidden1, flat), f32)
        self.fc1_b = 0.05 * jax.random.normal(ks[13], (fc_hidden1,), f32)
        self.fc2_w = 0.05 * jax.random.normal(ks[14], (fc_hidden2, fc_hidden1), f32)
        self.fc2_b = 0.05 * jax.random.normal(ks[15], (fc_hidden2,), f32)
        self.fc3_w = 0.05 * jax.random.normal(ks[16], (num_classes, fc_hidden2), f32)
        self.fc3_b = 0.05 * jax.random.normal(ks[17], (num_classes,), f32)

        # -------- pre-folded / pre-packed kernel weights (bf16, done once) ----
        s1bn = self.bn1_gamma / jnp.sqrt(self.bn1_var + self.eps)
        b1eff = (self.conv1_b - self.bn1_mean) * s1bn + self.bn1_beta
        w1mat = self.conv1_w.reshape(self.ch1, -1).T * s1bn[None, :]   # (kk1, ch1)
        w1rep = jnp.tile(w1mat, (1, per_group))                        # replicate channels
        self._w1p = jnp.zeros((L, L), f32).at[:kk1, :].set(w1rep).astype(bf16)

        s2bn = self.bn2_gamma / jnp.sqrt(self.bn2_var + self.eps)
        b2eff = (self.conv2_b - self.bn2_mean) * s2bn + self.bn2_beta
        w2t = (jnp.transpose(self.conv2_w, (2, 3, 4, 1, 0)) * s2bn)     # (kd,kh,kw,ch1,ch2)
        w2t = w2t.reshape(n_off2, self.ch1, self.ch2)
        w2p = jnp.zeros((n_groups * per_group, self.ch1, L), f32)
        w2p = w2p.at[:n_off2, :, :self.ch2].set(w2t)
        self._w2p = w2p.reshape(n_groups * L, L).astype(bf16)           # (28*32, 128)

        # fc1 weight: PyTorch flatten order is (channel, spatial); permute to
        # (spatial-block, channel) rows so the kernel never transposes.
        wfc1 = self.fc1_w.reshape(fc_hidden1, self.ch2, spatial2)       # (j, c2, s2)
        wfc1 = jnp.transpose(wfc1, (2, 1, 0))                           # (s2, c2, j)
        wfc1p = jnp.zeros((spatial2, self.ch2, L), f32).at[:, :, :fc_hidden1].set(wfc1)
        self._wfc1p = wfc1p.reshape(spatial2 * self.ch2, L).astype(bf16)

        self._wfc2p = (jnp.zeros((L, L), f32)
                       .at[:fc_hidden1, :fc_hidden2].set(self.fc2_w.T).astype(bf16))
        self._wfc3p = (jnp.zeros((L, L), f32)
                       .at[:fc_hidden2, :num_classes].set(self.fc3_w.T).astype(bf16))

        bias_slab = jnp.zeros((8, L), f32)
        bias_slab = bias_slab.at[0, :].set(jnp.tile(b1eff, per_group))
        bias_slab = bias_slab.at[1, :self.ch2].set(b2eff)
        bias_slab = bias_slab.at[2, :fc_hidden1].set(self.fc1_b)
        bias_slab = bias_slab.at[3, :fc_hidden2].set(self.fc2_b)
        bias_slab = bias_slab.at[4, :num_classes].set(self.fc3_b)
        self._bias_slab = bias_slab

        # static, batch-independent conv1->conv2 gather table
        self._src_rows = _conv2_src_rows(self.conv1_outshape, self.conv2_outshape,
                                         self.k2, self.s2)

        self._forward_jit = jax.jit(functools.partial(
            _cnn3dvisco_forward,
            k1=self.k1, s1=self.s1, conv1_out=self.conv1_outshape,
            ch1=self.ch1, ch2=self.ch2, spatial2=spatial2, n_off2=n_off2,
            n_groups=n_groups, src_rows=self._src_rows,
            num_classes=self.num_classes))

    def forward(self, x_3d):
        """x_3d: (N, 1, t_dim, img_x, img_y) float32 (NCDHW)."""
        assert x_3d.ndim == 5 and x_3d.shape[1] == 1
        assert tuple(x_3d.shape[2:]) == (self.t_dim, self.img_x, self.img_y)
        return self._forward_jit(x_3d, self._w1p, self._w2p, self._wfc1p,
                                 self._wfc2p, self._wfc3p, self._bias_slab)

    __call__ = forward


# ----------------------------------------------------------------------------
# Pure-JAX / XLA reference (f32, no Pallas) for a numerical cross-check.
# ----------------------------------------------------------------------------
def reference_forward(model, x):
    dn = ('NCDHW', 'OIDHW', 'NCDHW')
    shape = (1, -1, 1, 1, 1)

    def bn(y, gamma, beta, mean, var):
        return (gamma.reshape(shape) * (y - mean.reshape(shape))
                / jnp.sqrt(var.reshape(shape) + model.eps) + beta.reshape(shape))

    y = lax.conv_general_dilated(x, model.conv1_w, model.s1, 'VALID',
                                 dimension_numbers=dn)
    y = y + model.conv1_b.reshape(shape)
    y = jnp.maximum(bn(y, model.bn1_gamma, model.bn1_beta,
                       model.bn1_mean, model.bn1_var), 0.0)
    y = lax.conv_general_dilated(y, model.conv2_w, model.s2, 'VALID',
                                 dimension_numbers=dn)
    y = y + model.conv2_b.reshape(shape)
    y = jnp.maximum(bn(y, model.bn2_gamma, model.bn2_beta,
                       model.bn2_mean, model.bn2_var), 0.0)
    y = y.reshape(y.shape[0], -1)
    y = jnp.maximum(y @ model.fc1_w.T + model.fc1_b, 0.0)
    y = jnp.maximum(y @ model.fc2_w.T + model.fc2_b, 0.0)
    return y @ model.fc3_w.T + model.fc3_b


if __name__ == "__main__":
    root = jax.random.PRNGKey(0)
    k_in, k_model = jax.random.split(root)

    batch, t_dim, img_x, img_y = 2, 14, 14, 14
    model = CNN3DViscoPallas(t_dim=t_dim, img_x=img_x, img_y=img_y,
                             drop_p=0.0, fc_hidden1=32, fc_hidden2=32,
                             num_classes=5, key=k_model)

    x = jax.random.normal(k_in, (batch, 1, t_dim, img_x, img_y), jnp.float32)

    out = jax.block_until_ready(model.forward(x))
    assert out.shape == (batch, 5), out.shape
    assert bool(jnp.all(jnp.isfinite(out)))

    ref = jax.block_until_ready(reference_forward(model, x))
    max_err = float(jnp.max(jnp.abs(out - ref)))
    assert max_err < 5e-2, f"Pallas vs reference mismatch, max abs err = {max_err}"

    print("KERNEL_OK")
</pallas_src>

<mosaic_0001>
module attributes {stable_mosaic.version = 11 : i64} {
  func.func @_cnn3dvisco_kernel(%arg0: i32, %arg1: memref<2000x128xbf16, #tpu.memory_space<vmem>>, %arg2: memref<128x128xbf16, #tpu.memory_space<vmem>>, %arg3: memref<896x128xbf16, #tpu.memory_space<vmem>>, %arg4: memref<384x128xbf16, #tpu.memory_space<vmem>>, %arg5: memref<128x128xbf16, #tpu.memory_space<vmem>>, %arg6: memref<128x128xbf16, #tpu.memory_space<vmem>>, %arg7: memref<8x128xf32, #tpu.memory_space<vmem>>, %arg8: memref<16x128xf32, #tpu.memory_space<vmem>>, %arg9: memref<2000x128xf32, #tpu.memory_space<vmem>>, %arg10: memref<128x896xbf16, #tpu.memory_space<vmem>>) attributes {dimension_semantics = [#tpu.dimension_semantics<parallel>], iteration_bounds = array<i64: 1>, scalar_prefetch = 0 : i64, scratch_operands = 2 : i64, tpu.core_type = #tpu.core_type<tc>, window_params = [{transform_indices = @transform_0, window_bounds = array<i64: 2000, 128>}, {pipeline_mode = #tpu.pipeline_mode<synchronous>, transform_indices = @transform_1, window_bounds = array<i64: 128, 128>}, {pipeline_mode = #tpu.pipeline_mode<synchronous>, transform_indices = @transform_2, window_bounds = array<i64: 896, 128>}, {pipeline_mode = #tpu.pipeline_mode<synchronous>, transform_indices = @transform_3, window_bounds = array<i64: 384, 128>}, {pipeline_mode = #tpu.pipeline_mode<synchronous>, transform_indices = @transform_4, window_bounds = array<i64: 128, 128>}, {pipeline_mode = #tpu.pipeline_mode<synchronous>, transform_indices = @transform_5, window_bounds = array<i64: 128, 128>}, {pipeline_mode = #tpu.pipeline_mode<synchronous>, transform_indices = @transform_6, window_bounds = array<i64: 8, 128>}, {transform_indices = @transform_7, window_bounds = array<i64: 16, 128>}]} {
    %c0 = arith.constant 0 : index
    %c0_0 = arith.constant 0 : index
    %0 = vector.load %arg1[%c0, %c0_0] : memref<2000x128xbf16, #tpu.memory_space<vmem>>, vector<2000x128xbf16>
    %c0_1 = arith.constant 0 : index
    %c0_2 = arith.constant 0 : index
    %1 = vector.load %arg2[%c0_1, %c0_2] : memref<128x128xbf16, #tpu.memory_space<vmem>>, vector<128x128xbf16>
    %cst = arith.constant dense<0.000000e+00> : vector<2000x128xf32>
    %2 = tpu.matmul %0, %1, %cst {dimension_numbers = #tpu.dot_dimension_numbers<[1], [0], [0], [1], [0, 0, 1, 1], [], []>} : vector<2000x128xbf16>, vector<128x128xbf16>, vector<2000x128xf32> -> vector<2000x128xf32>
    %c0_3 = arith.constant 0 : index
    %c0_4 = arith.constant 0 : index
    %3 = vector.load %arg7[%c0_3, %c0_4] : memref<8x128xf32, #tpu.memory_space<vmem>>, vector<1x128xf32>
    %4 = vector.broadcast %3 : vector<1x128xf32> to vector<2000x128xf32>
    %5 = arith.addf %2, %4 : vector<2000x128xf32>
    %cst_5 = arith.constant 0.000000e+00 : f32
    %6 = vector.broadcast %cst_5 : f32 to vector<2000x128xf32>
    %7 = arith.maximumf %5, %6 : vector<2000x128xf32>
    %c0_6 = arith.constant 0 : index
    %c0_7 = arith.constant 0 : index
    %8 = vector.load %arg9[%c0_6, %c0_7] : memref<2000x128xf32, #tpu.memory_space<vmem>>, vector<2000x128xf32>
    tpu.vector_store %arg9[%c0_6, %c0_7], %7 {strides = array<i32>} : memref<2000x128xf32, #tpu.memory_space<vmem>>, vector<2000x128xf32>,
    %9 = tpu.iota {dimensions = array<i32: 1>} : vector<16x128xi32>
    %c80 = arith.constant 80 : index
    %c0_8 = arith.constant 0 : index
    %10 = vector.load %arg9[%c80, %c0_8] : memref<2000x128xf32, #tpu.memory_space<vmem>>, vector<16x128xf32>
    %c32 = arith.constant 32 : index
    %c0_9 = arith.constant 0 : index
    %11 = vector.load %arg9[%c32, %c0_9] : memref<2000x128xf32, #tpu.memory_space<vmem>>, vector<16x128xf32>
    %c96_i32 = arith.constant 96 : i32
    %12 = vector.broadcast %c96_i32 : i32 to vector<16x128xi32>
    %13 = arith.cmpi slt, %9, %12 : vector<16x128xi32>
    %14 = arith.select %13, %11, %10 : vector<16x128xi1>, vector<16x128xf32>
    %c16 = arith.constant 16 : index
    %c0_10 = arith.constant 0 : index
    %15 = vector.load %arg9[%c16, %c0_10] : memref<2000x128xf32, #tpu.memory_space<vmem>>, vector<16x128xf32>
    %c64_i32 = arith.constant 64 : i32
    %16 = vector.broadcast %c64_i32 : i32 to vector<16x128xi32>
    %17 = arith.cmpi slt, %9, %16 : vector<16x128xi32>
    %18 = arith.select %17, %15, %14 : vector<16x128xi1>, vector<16x128xf32>
    %c0_11 = arith.constant 0 : index
    %c0_12 = arith.constant 0 : index
    %19 = vector.load %arg9[%c0_11, %c0_12] : memref<2000x128xf32, #tpu.memory_space<vmem>>, vector<16x128xf32>
    %c32_i32 = arith.constant 32 : i32
    %20 = vector.broadcast %c32_i32 : i32 to vector<16x128xi32>
    %21 = arith.cmpi slt, %9, %20 : vector<16x128xi32>
    %22 = arith.select %21, %19, %18 : vector<16x128xi1>, vector<16x128xf32>
    %23 = arith.truncf %22 : vector<16x128xf32> to vector<16x128xbf16>
    %c0_13 = arith.constant 0 : index
    %c0_14 = arith.constant 0 : index
    %24 = vector.load %arg10[%c0_13, %c0_14] : memref<128x896xbf16, #tpu.memory_space<vmem>>, vector<16x128xbf16>
    tpu.vector_store %arg10[%c0_13, %c0_14], %23 {strides = array<i32>} : memref<128x896xbf16, #tpu.memory_space<vmem>>, vector<16x128xbf16>,
    %c176 = arith.constant 176 : index
    %c0_15 = arith.constant 0 : index
    %25 = vector.load %arg9[%c176, %c0_15] : memref<2000x128xf32, #tpu.memory_space<vmem>>, vector<16x128xf32>
    %c160 = arith.constant 160 : index
    %c0_16 = arith.constant 0 : index
    %26 = vector.load %arg9[%c160, %c0_16] : memref<2000x128xf32, #tpu.memory_space<vmem>>, vector<16x128xf32>
    %c96_i32_17 = arith.constant 96 : i32
    %27 = vector.broadcast %c96_i32_17 : i32 to vector<16x128xi32>
    %28 = arith.cmpi slt, %9, %27 : vector<16x128xi32>
    %29 = arith.select %28, %26, %25 : vector<16x128xi1>, vector<16x128xf32>
    %c112 = arith.constant 112 : index
    %c0_18 = arith.constant 0 : index
    %30 = vector.load %arg9[%c112, %c0_18] : memref<2000x128xf32, #tpu.memory_space<vmem>>, vector<16x128xf32>
    %c64_i32_19 = arith.constant 64 : i32
    %31 = vector.broadcast %c64_i32_19 : i32 to vector<16x128xi32>
    %32 = arith.cmpi slt, %9, %31 : vector<16x128xi32>
    %33 = arith.select %32, %30, %29 : vector<16x128xi1>, vector<16x128xf32>
    %c96 = arith.constant 96 : index
    %c0_20 = arith.constant 0 : index
    %34 = vector.load %arg9[%c96, %c0_20] : memref<2000x128xf32, #tpu.memory_space<vmem>>, vector<16x128xf32>
    %c32_i32_21 = arith.constant 32 : i32
    %35 = vector.broadcast %c32_i32_21 : i32 to vector<16x128xi32>
    %36 = arith.cmpi slt, %9, %35 : vector<16x128xi32>
    %37 = arith.select %36, %34, %33 : vector<16x128xi1>, vector<16x128xf32>
    %38 = arith.truncf %37 : vector<16x128xf32> to vector<16x128xbf16>
    %c0_22 = arith.constant 0 : index
    %c128 = arith.constant 128 : index
    %39 = vector.load %arg10[%c0_22, %c128] : memref<128x896xbf16, #tpu.memory_space<vmem>>, vector<16x128xbf16>
    tpu.vector_store %arg10[%c0_22, %c128], %38 {strides = array<i32>} : memref<128x896xbf16, #tpu.memory_space<vmem>>, vector<16x128xbf16>,
    %c432 = arith.constant 432 : index
    %c0_23 = arith.constant 0 : index
    %40 = vector.load %arg9[%c432, %c0_23] : memref<2000x128xf32, #tpu.memory_space<vmem>>, vector<16x128xf32>
    %c416 = arith.constant 416 : index
    %c0_24 = arith.constant 0 : index
    %41 = vector.load %arg9[%c416, %c0_24] : memref<2000x128xf32, #tpu.memory_space<vmem>>, vector<16x128xf32>
    %c96_i32_25 = arith.constant 96 : i32
    %42 = vector.broadcast %c96_i32_25 : i32 to vector<16x128xi32>
    %43 = arith.cmpi slt, %9, %42 : vector<16x128xi32>
    %44 = arith.select %43, %41, %40 : vector<16x128xi1>, vector<16x128xf32>
    %c400 = arith.constant 400 : index
    %c0_26 = arith.constant 0 : index
    %45 = vector.load %arg9[%c400, %c0_26] : memref<2000x128xf32, #tpu.memory_space<vmem>>, vector<16x128xf32>
    %c64_i32_27 = arith.constant 64 : i32
    %46 = vector.broadcast %c64_i32_27 : i32 to vector<16x128xi32>
    %47 = arith.cmpi slt, %9, %46 : vector<16x128xi32>
    %48 = arith.select %47, %45, %44 : vector<16x128xi1>, vector<16x128xf32>
    %c192 = arith.constant 192 : index
    %c0_28 = arith.constant 0 : index
    %49 = vector.load %arg9[%c192, %c0_28] : memref<2000x128xf32, #tpu.memory_space<vmem>>, vector<16x128xf32>
    %c32_i32_29 = arith.constant 32 : i32
    %50 = vector.broadcast %c32_i32_29 : i32 to vector<16x128xi32>
    %51 = arith.cmpi slt, %9, %50 : vector<16x128xi32>
    %52 = arith.select %51, %49, %48 : vector<16x128xi1>, vector<16x128xf32>
    %53 = arith.truncf %52 : vector<16x128xf32> to vector<16x128xbf16>
    %c0_30 = arith.constant 0 : index
    %c256 = arith.constant 256 : index
    %54 = vector.load %arg10[%c0_30, %c256] : memref<128x896xbf16, #tpu.memory_space<vmem>>, vector<16x128xbf16>
    tpu.vector_store %arg10[%c0_30, %c256], %53 {strides = array<i32>} : memref<128x896xbf16, #tpu.memory_space<vmem>>, vector<16x128xbf16>,
    %c560 = arith.constant 560 : index
    %c0_31 = arith.constant 0 : index
    %55 = vector.load %arg9[%c560, %c0_31] : memref<2000x128xf32, #tpu.memory_space<vmem>>, vector<16x128xf32>
    %c512 = arith.constant 512 : index
    %c0_32 = arith.constant 0 : index
    %56 = vector.load %arg9[%c512, %c0_32] : memref<2000x128xf32, #tpu.memory_space<vmem>>, vector<16x128xf32>
    %c96_i32_33 = arith.constant 96 : i32
    %57 = vector.broadcast %c96_i32_33 : i32 to vector<16x128xi32>
    %58 = arith.cmpi slt, %9, %57 : vector<16x128xi32>
    %59 = arith.select %58, %56, %55 : vector<16x128xi1>, vector<16x128xf32>
    %c496 = arith.constant 496 : index
    %c0_34 = arith.constant 0 : index
    %60 = vector.load %arg9[%c496, %c0_34] : memref<2000x128xf32, #tpu.memory_space<vmem>>, vector<16x128xf32>
    %c64_i32_35 = arith.constant 64 : i32
    %61 = vector.broadcast %c64_i32_35 : i32 to vector<16x128xi32>
    %62 = arith.cmpi slt, %9, %61 : vector<16x128xi32>
    %63 = arith.select %62, %60, %59 : vector<16x128xi1>, vector<16x128xf32>
    %c480 = arith.constant 480 : index
    %c0_36 = arith.constant 0 : index
    %64 = vector.load %arg9[%c480, %c0_36] : memref<2000x128xf32, #tpu.memory_space<vmem>>, vector<16x128xf32>
    %c32_i32_37 = arith.constant 32 : i32
    %65 = vector.broadcast %c32_i32_37 : i32 to vector<16x128xi32>
    %66 = arith.cmpi slt, %9, %65 : vector<16x128xi32>
    %67 = arith.select %66, %64, %63 : vector<16x128xi1>, vector<16x128xf32>
    %68 = arith.truncf %67 : vector<16x128xf32> to vector<16x128xbf16>
    %c0_38 = arith.constant 0 : index
    %c384 = arith.constant 384 : index
    %69 = vector.load %arg10[%c0_38, %c384] : memref<128x896xbf16, #tpu.memory_space<vmem>>, vector<16x128xbf16>
    tpu.vector_store %arg10[%c0_38, %c384], %68 {strides = array<i32>} : memref<128x896xbf16, #tpu.memory_space<vmem>>, vector<16x128xbf16>,
    %c816 = arith.constant 816 : index
    %c0_39 = arith.constant 0 : index
    %70 = vector.load %arg9[%c816, %c0_39] : memref<2000x128xf32, #tpu.memory_space<vmem>>, vector<16x128xf32>
    %c800 = arith.constant 800 : index
    %c0_40 = arith.constant 0 : index
    %71 = vector.load %arg9[%c800, %c0_40] : memref<2000x128xf32, #tpu.memory_space<vmem>>, vector<16x128xf32>
    %c96_i32_41 = arith.constant 96 : i32
    %72 = vector.broadcast %c96_i32_41 : i32 to vector<16x128xi32>
    %73 = arith.cmpi slt, %9, %72 : vector<16x128xi32>
    %74 = arith.select %73, %71, %70 : vector<16x128xi1>, vector<16x128xf32>
    %c592 = arith.constant 592 : index
    %c0_42 = arith.constant 0 : index
    %75 = vector.load %arg9[%c592, %c0_42] : memref<2000x128xf32, #tpu.memory_space<vmem>>, vector<16x128xf32>
    %c64_i32_43 = arith.constant 64 : i32
    %76 = vector.broadcast %c64_i32_43 : i32 to vector<16x128xi32>
    %77 = arith.cmpi slt, %9, %76 : vector<16x128xi32>
    %78 = arith.select %77, %75, %74 : vector<16x128xi1>, vector<16x128xf32>
    %c576 = arith.constant 576 : index
    %c0_44 = arith.constant 0 : index
    %79 = vector.load %arg9[%c576, %c0_44] : memref<2000x128xf32, #tpu.memory_space<vmem>>, vector<16x128xf32>
    %c32_i32_45 = arith.constant 32 : i32
    %80 = vector.broadcast %c32_i32_45 : i32 to vector<16x128xi32>
    %81 = arith.cmpi slt, %9, %80 : vector<16x128xi32>
    %82 = arith.select %81, %79, %78 : vector<16x128xi1>, vector<16x128xf32>
    %83 = arith.truncf %82 : vector<16x128xf32> to vector<16x128xbf16>
    %c0_46 = arith.constant 0 : index
    %c512_47 = arith.constant 512 : index
    %84 = vector.load %arg10[%c0_46, %c512_47] : memref<128x896xbf16, #tpu.memory_space<vmem>>, vector<16x128xbf16>
    tpu.vector_store %arg10[%c0_46, %c512_47], %83 {strides = array<i32>} : memref<128x896xbf16, #tpu.memory_space<vmem>>, vector<16x128xbf16>,
    %c912 = arith.constant 912 : index
    %c0_48 = arith.constant 0 : index
    %85 = vector.load %arg9[%c912, %c0_48] : memref<2000x128xf32, #tpu.memory_space<vmem>>, vector<16x128xf32>
    %c896 = arith.constant 896 : index
    %c0_49 = arith.constant 0 : index
    %86 = vector.load %arg9[%c896, %c0_49] : memref<2000x128xf32, #tpu.memory_space<vmem>>, vector<16x128xf32>
    %c96_i32_50 = arith.constant 96 : i32
    %87 = vector.broadcast %c96_i32_50 : i32 to vector<16x128xi32>
    %88 = arith.cmpi slt, %9, %87 : vector<16x128xi32>
    %89 = arith.select %88, %86, %85 : vector<16x128xi1>, vector<16x128xf32>
    %c880 = arith.constant 880 : index
    %c0_51 = arith.constant 0 : index
    %90 = vector.load %arg9[%c880, %c0_51] : memref<2000x128xf32, #tpu.memory_space<vmem>>, vector<16x128xf32>
    %c64_i32_52 = arith.constant 64 : i32
    %91 = vector.broadcast %c64_i32_52 : i32 to vector<16x128xi32>
    %92 = arith.cmpi slt, %9, %91 : vector<16x128xi32>
    %93 = arith.select %92, %90, %89 : vector<16x128xi1>, vector<16x128xf32>
    %c832 = arith.constant 832 : index
    %c0_53 = arith.constant 0 : index
    %94 = vector.load %arg9[%c832, %c0_53] : memref<2000x128xf32, #tpu.memory_space<vmem>>, vector<16x128xf32>
    %c32_i32_54 = arith.constant 32 : i32
    %95 = vector.broadcast %c32_i32_54 : i32 to vector<16x128xi32>
    %96 = arith.cmpi slt, %9, %95 : vector<16x128xi32>
    %97 = arith.select %96, %94, %93 : vector<16x128xi1>, vector<16x128xf32>
    %98 = arith.truncf %97 : vector<16x128xf32> to vector<16x128xbf16>
    %c0_55 = arith.constant 0 : index
    %c640 = arith.constant 640 : index
    %99 = vector.load %arg10[%c0_55, %c640] : memref<128x896xbf16, #tpu.memory_space<vmem>>, vector<16x128xbf16>
    tpu.vector_store %arg10[%c0_55, %c640], %98 {strides = array<i32>} : memref<128x896xbf16, #tpu.memory_space<vmem>>, vector<16x128xbf16>,
    %c992 = arith.constant 992 : index
    %c0_56 = arith.constant 0 : index
    %100 = vector.load %arg9[%c992, %c0_56] : memref<2000x128xf32, #tpu.memory_space<vmem>>, vector<16x128xf32>
    %c976 = arith.constant 976 : index
    %c0_57 = arith.constant 0 : index
    %101 = vector.load %arg9[%c976, %c0_57] : memref<2000x128xf32, #tpu.memory_space<vmem>>, vector<16x128xf32>
    %c64_i32_58 = arith.constant 64 : i32
    %102 = vector.broadcast %c64_i32_58 : i32 to vector<16x128xi32>
    %103 = arith.cmpi slt, %9, %102 : vector<16x128xi32>
    %104 = arith.select %103, %101, %100 : vector<16x128xi1>, vector<16x128xf32>
    %c960 = arith.constant 960 : index
    %c0_59 = arith.constant 0 : index
    %105 = vector.load %arg9[%c960, %c0_59] : memref<2000x128xf32, #tpu.memory_space<vmem>>, vector<16x128xf32>
    %c32_i32_60 = arith.constant 32 : i32
    %106 = vector.broadcast %c32_i32_60 : i32 to vector<16x128xi32>
    %107 = arith.cmpi slt, %9, %106 : vector<16x128xi32>
    %108 = arith.select %107, %105, %104 : vector<16x128xi1>, vector<16x128xf32>
    %109 = arith.truncf %108 : vector<16x128xf32> to vector<16x128xbf16>
    %c0_61 = arith.constant 0 : index
    %c768 = arith.constant 768 : index
    %110 = vector.load %arg10[%c0_61, %c768] : memref<128x896xbf16, #tpu.memory_space<vmem>>, vector<16x128xbf16>
    tpu.vector_store %arg10[%c0_61, %c768], %109 {strides = array<i32>} : memref<128x896xbf16, #tpu.memory_space<vmem>>, vector<16x128xbf16>,
    %c112_62 = arith.constant 112 : index
    %c0_63 = arith.constant 0 : index
    %111 = vector.load %arg9[%c112_62, %c0_63] : memref<2000x128xf32, #tpu.memory_space<vmem>>, vector<16x128xf32>
    %c64 = arith.constant 64 : index
    %c0_64 = arith.constant 0 : index
    %112 = vector.load %arg9[%c64, %c0_64] : memref<2000x128xf32, #tpu.memory_space<vmem>>, vector<16x128xf32>
    %c96_i32_65 = arith.constant 96 : i32
    %113 = vector.broadcast %c96_i32_65 : i32 to vector<16x128xi32>
    %114 = arith.cmpi slt, %9, %113 : vector<16x128xi32>
    %115 = arith.select %114, %112, %111 : vector<16x128xi1>, vector<16x128xf32>
    %c48 = arith.constant 48 : index
    %c0_66 = arith.constant 0 : index
    %116 = vector.load %arg9[%c48, %c0_66] : memref<2000x128xf32, #tpu.memory_space<vmem>>, vector<16x128xf32>
    %c64_i32_67 = arith.constant 64 : i32
    %117 = vector.broadcast %c64_i32_67 : i32 to vector<16x128xi32>
    %118 = arith.cmpi slt, %9, %117 : vector<16x128xi32>
    %119 = arith.select %118, %116, %115 : vector<16x128xi1>, vector<16x128xf32>
    %c32_68 = arith.constant 32 : index
    %c0_69 = arith.constant 0 : index
    %120 = vector.load %arg9[%c32_68, %c0_69] : memref<2000x128xf32, #tpu.memory_space<vmem>>, vector<16x128xf32>
    %c32_i32_70 = arith.constant 32 : i32
    %121 = vector.broadcast %c32_i32_70 : i32 to vector<16x128xi32>
    %122 = arith.cmpi slt, %9, %121 : vector<16x128xi32>
    %123 = arith.select %122, %120, %119 : vector<16x128xi1>, vector<16x128xf32>
    %124 = arith.truncf %123 : vector<16x128xf32> to vector<16x128xbf16>
    %c16_71 = arith.constant 16 : index
    %c0_72 = arith.constant 0 : index
    %125 = vector.load %arg10[%c16_71, %c0_72] : memref<128x896xbf16, #tpu.memory_space<vmem>>, vector<16x128xbf16>
    tpu.vector_store %arg10[%c16_71, %c0_72], %124 {strides = array<i32>} : memref<128x896xbf16, #tpu.memory_space<vmem>>, vector<16x128xbf16>,
    %c208 = arith.constant 208 : index
    %c0_73 = arith.constant 0 : index
    %126 = vector.load %arg9[%c208, %c0_73] : memref<2000x128xf32, #tpu.memory_space<vmem>>, vector<16x128xf32>
    %c192_74 = arith.constant 192 : index
    %c0_75 = arith.constant 0 : index
    %127 = vector.load %arg9[%c192_74, %c0_75] : memref<2000x128xf32, #tpu.memory_space<vmem>>, vector<16x128xf32>
    %c96_i32_76 = arith.constant 96 : i32
    %128 = vector.broadcast %c96_i32_76 : i32 to vector<16x128xi32>
    %129 = arith.cmpi slt, %9, %128 : vector<16x128xi32>
    %130 = arith.select %129, %127, %126 : vector<16x128xi1>, vector<16x128xf32>
    %c144 = arith.constant 144 : index
    %c0_77 = arith.constant 0 : index
    %131 = vector.load %arg9[%c144, %c0_77] : memref<2000x128xf32, #tpu.memory_space<vmem>>, vector<16x128xf32>
    %c64_i32_78 = arith.constant 64 : i32
    %132 = vector.broadcast %c64_i32_78 : i32 to vector<16x128xi32>
    %133 = arith.cmpi slt, %9, %132 : vector<16x128xi32>
    %134 = arith.select %133, %131, %130 : vector<16x128xi1>, vector<16x128xf32>
    %c128_79 = arith.constant 128 : index
    %c0_80 = arith.constant 0 : index
    %135 = vector.load %arg9[%c128_79, %c0_80] : memref<2000x128xf32, #tpu.memory_space<vmem>>, vector<16x128xf32>
    %c32_i32_81 = arith.constant 32 : i32
    %136 = vector.broadcast %c32_i32_81 : i32 to vector<16x128xi32>
    %137 = arith.cmpi slt, %9, %136 : vector<16x128xi32>
    %138 = arith.select %137, %135, %134 : vector<16x128xi1>, vector<16x128xf32>
    %139 = arith.truncf %138 : vector<16x128xf32> to vector<16x128xbf16>
    %c16_82 = arith.constant 16 : index
    %c128_83 = arith.constant 128 : index
    %140 = vector.load %arg10[%c16_82, %c128_83] : memref<128x896xbf16, #tpu.memory_space<vmem>>, vector<16x128xbf16>
    tpu.vector_store %arg10[%c16_82, %c128_83], %139 {strides = array<i32>} : memref<128x896xbf16, #tpu.memory_space<vmem>>, vector<16x128xbf16>,
    %c464 = arith.constant 464 : index
    %c0_84 = arith.constant 0 : index
    %141 = vector.load %arg9[%c464, %c0_84] : memref<2000x128xf32, #tpu.memory_space<vmem>>, vector<16x128xf32>
    %c448 = arith.constant 448 : index
    %c0_85 = arith.constant 0 : index
    %142 = vector.load %arg9[%c448, %c0_85] : memref<2000x128xf32, #tpu.memory_space<vmem>>, vector<16x128xf32>
    %c96_i32_86 = arith.constant 96 : i32
    %143 = vector.broadcast %c96_i32_86 : i32 to vector<16x128xi32>
    %144 = arith.cmpi slt, %9, %143 : vector<16x128xi32>
    %145 = arith.select %144, %142, %141 : vector<16x128xi1>, vector<16x128xf32>
    %c432_87 = arith.constant 432 : index
    %c0_88 = arith.constant 0 : index
    %146 = vector.load %arg9[%c432_87, %c0_88] : memref<2000x128xf32, #tpu.memory_space<vmem>>, vector<16x128xf32>
    %c64_i32_89 = arith.constant 64 : i32
    %147 = vector.broadcast %c64_i32_89 : i32 to vector<16x128xi32>
    %148 = arith.cmpi slt, %9, %147 : vector<16x128xi32>
    %149 = arith.select %148, %146, %145 : vector<16x128xi1>, vector<16x128xf32>
    %c224 = arith.constant 224 : index
    %c0_90 = arith.constant 0 : index
    %150 = vector.load %arg9[%c224, %c0_90] : memref<2000x128xf32, #tpu.memory_space<vmem>>, vector<16x128xf32>
    %c32_i32_91 = arith.constant 32 : i32
    %151 = vector.broadcast %c32_i32_91 : i32 to vector<16x128xi32>
    %152 = arith.cmpi slt, %9, %151 : vector<16x128xi32>
    %153 = arith.select %152, %150, %149 : vector<16x128xi1>, vector<16x128xf32>
    %154 = arith.truncf %153 : vector<16x128xf32> to vector<16x128xbf16>
    %c16_92 = arith.constant 16 : index
    %c256_93 = arith.constant 256 : index
    %155 = vector.load %arg10[%c16_92, %c256_93] : memref<128x896xbf16, #tpu.memory_space<vmem>>, vector<16x128xbf16>
    tpu.vector_store %arg10[%c16_92, %c256_93], %154 {strides = array<i32>} : memref<128x896xbf16, #tpu.memory_space<vmem>>, vector<16x128xbf16>,
    %c592_94 = arith.constant 592 : index
    %c0_95 = arith.constant 0 : index
    %156 = vector.load %arg9[%c592_94, %c0_95] : memref<2000x128xf32, #tpu.memory_space<vmem>>, vector<16x128xf32>
    %c544 = arith.constant 544 : index
    %c0_96 = arith.constant 0 : index
    %157 = vector.load %arg9[%c544, %c0_96] : memref<2000x128xf32, #tpu.memory_space<vmem>>, vector<16x128xf32>
    %c96_i32_97 = arith.constant 96 : i32
    %158 = vector.broadcast %c96_i32_97 : i32 to vector<16x128xi32>
    %159 = arith.cmpi slt, %9, %158 : vector<16x128xi32>
    %160 = arith.select %159, %157, %156 : vector<16x128xi1>, vector<16x128xf32>
    %c528 = arith.constant 528 : index
    %c0_98 = arith.constant 0 : index
    %161 = vector.load %arg9[%c528, %c0_98] : memref<2000x128xf32, #tpu.memory_space<vmem>>, vector<16x128xf32>
    %c64_i32_99 = arith.constant 64 : i32
    %162 = vector.broadcast %c64_i32_99 : i32 to vector<16x128xi32>
    %163 = arith.cmpi slt, %9, %162 : vector<16x128xi32>
    %164 = arith.select %163, %161, %160 : vector<16x128xi1>, vector<16x128xf32>
    %c512_100 = arith.constant 512 : index
    %c0_101 = arith.constant 0 : index
    %165 = vector.load %arg9[%c512_100, %c0_101] : memref<2000x128xf32, #tpu.memory_space<vmem>>, vector<16x128xf32>
    %c32_i32_102 = arith.constant 32 : i32
    %166 = vector.broadcast %c32_i32_102 : i32 to vector<16x128xi32>
    %167 = arith.cmpi slt, %9, %166 : vector<16x128xi32>
    %168 = arith.select %167, %165, %164 : vector<16x128xi1>, vector<16x128xf32>
    %169 = arith.truncf %168 : vector<16x128xf32> to vector<16x128xbf16>
    %c16_103 = arith.constant 16 : index
    %c384_104 = arith.constant 384 : index
    %170 = vector.load %arg10[%c16_103, %c384_104] : memref<128x896xbf16, #tpu.memory_space<vmem>>, vector<16x128xbf16>
    tpu.vector_store %arg10[%c16_103, %c384_104], %169 {strides = array<i32>} : memref<128x896xbf16, #tpu.memory_space<vmem>>, vector<16x128xbf16>,
    %c848 = arith.constant 848 : index
    %c0_105 = arith.constant 0 : index
    %171 = vector.load %arg9[%c848, %c0_105] : memref<2000x128xf32, #tpu.memory_space<vmem>>, vector<16x128xf32>
    %c832_106 = arith.constant 832 : index
    %c0_107 = arith.constant 0 : index
    %172 = vector.load %arg9[%c832_106, %c0_107] : memref<2000x128xf32, #tpu.memory_space<vmem>>, vector<16x128xf32>
    %c96_i32_108 = arith.constant 96 : i32
    %173 = vector.broadcast %c96_i32_108 : i32 to vector<16x128xi32>
    %174 = arith.cmpi slt, %9, %173 : vector<16x128xi32>
    %175 = arith.select %174, %172, %171 : vector<16x128xi1>, vector<16x128xf32>
    %c624 = arith.constant 624 : index
    %c0_109 = arith.constant 0 : index
    %176 = vector.load %arg9[%c624, %c0_109] : memref<2000x128xf32, #tpu.memory_space<vmem>>, vector<16x128xf32>
    %c64_i32_110 = arith.constant 64 : i32
    %177 = vector.broadcast %c64_i32_110 : i32 to vector<16x128xi32>
    %178 = arith.cmpi slt, %9, %177 : vector<16x128xi32>
    %179 = arith.select %178, %176, %175 : vector<16x128xi1>, vector<16x128xf32>
    %c608 = arith.constant 608 : index
    %c0_111 = arith.constant 0 : index
    %180 = vector.load %arg9[%c608, %c0_111] : memref<2000x128xf32, #tpu.memory_space<vmem>>, vector<16x128xf32>
    %c32_i32_112 = arith.constant 32 : i32
    %181 = vector.broadcast %c32_i32_112 : i32 to vector<16x128xi32>
    %182 = arith.cmpi slt, %9, %181 : vector<16x128xi32>
    %183 = arith.select %182, %180, %179 : vector<16x128xi1>, vector<16x128xf32>
    %184 = arith.truncf %183 : vector<16x128xf32> to vector<16x128xbf16>
    %c16_113 = arith.constant 16 : index
    %c512_114 = arith.constant 512 : index
    %185 = vector.load %arg10[%c16_113, %c512_114] : memref<128x896xbf16, #tpu.memory_space<vmem>>, vector<16x128xbf16>
    tpu.vector_store %arg10[%c16_113, %c512_114], %184 {strides = array<i32>} : memref<128x896xbf16, #tpu.memory_space<vmem>>, vector<16x128xbf16>,
    %c944 = arith.constant 944 : index
    %c0_115 = arith.constant 0 : index
    %186 = vector.load %arg9[%c944, %c0_115] : memref<2000x128xf32, #tpu.memory_space<vmem>>, vector<16x128xf32>
    %c928 = arith.constant 928 : index
    %c0_116 = arith.constant 0 : index
    %187 = vector.load %arg9[%c928, %c0_116] : memref<2000x128xf32, #tpu.memory_space<vmem>>, vector<16x128xf32>
    %c96_i32_117 = arith.constant 96 : i32
    %188 = vector.broadcast %c96_i32_117 : i32 to vector<16x128xi32>
    %189 = arith.cmpi slt, %9, %188 : vector<16x128xi32>
    %190 = arith.select %189, %187, %186 : vector<16x128xi1>, vector<16x128xf32>
    %c912_118 = arith.constant 912 : index
    %c0_119 = arith.constant 0 : index
    %191 = vector.load %arg9[%c912_118, %c0_119] : memref<2000x128xf32, #tpu.memory_space<vmem>>, vector<16x128xf32>
    %c64_i32_120 = arith.constant 64 : i32
    %192 = vector.broadcast %c64_i32_120 : i32 to vector<16x128xi32>
    %193 = arith.cmpi slt, %9, %192 : vector<16x128xi32>
    %194 = arith.select %193, %191, %190 : vector<16x128xi1>, vector<16x128xf32>
    %c864 = arith.constant 864 : index
    %c0_121 = arith.constant 0 : index
    %195 = vector.load %arg9[%c864, %c0_121] : memref<2000x128xf32, #tpu.memory_space<vmem>>, vector<16x128xf32>
    %c32_i32_122 = arith.constant 32 : i32
    %196 = vector.broadcast %c32_i32_122 : i32 to vector<16x128xi32>
    %197 = arith.cmpi slt, %9, %196 : vector<16x128xi32>
    %198 = arith.select %197, %195, %194 : vector<16x128xi1>, vector<16x128xf32>
    %199 = arith.truncf %198 : vector<16x128xf32> to vector<16x128xbf16>
    %c16_123 = arith.constant 16 : index
    %c640_124 = arith.constant 640 : index
    %200 = vector.load %arg10[%c16_123, %c640_124] : memref<128x896xbf16, #tpu.memory_space<vmem>>, vector<16x128xbf16>
    tpu.vector_store %arg10[%c16_123, %c640_124], %199 {strides = array<i32>} : memref<128x896xbf16, #tpu.memory_space<vmem>>, vector<16x128xbf16>,
    %c1024 = arith.constant 1024 : index
    %c0_125 = arith.constant 0 : index
    %201 = vector.load %arg9[%c1024, %c0_125] : memref<2000x128xf32, #tpu.memory_space<vmem>>, vector<16x128xf32>
    %c1008 = arith.constant 1008 : index
    %c0_126 = arith.constant 0 : index
    %202 = vector.load %arg9[%c1008, %c0_126] : memref<2000x128xf32, #tpu.memory_space<vmem>>, vector<16x128xf32>
    %c64_i32_127 = arith.constant 64 : i32
    %203 = vector.broadcast %c64_i32_127 : i32 to vector<16x128xi32>
    %204 = arith.cmpi slt, %9, %203 : vector<16x128xi32>
    %205 = arith.select %204, %202, %201 : vector<16x128xi1>, vector<16x128xf32>
    %c992_128 = arith.constant 992 : index
    %c0_129 = arith.constant 0 : index
    %206 = vector.load %arg9[%c992_128, %c0_129] : memref<2000x128xf32, #tpu.memory_space<vmem>>, vector<16x128xf32>
    %c32_i32_130 = arith.constant 32 : i32
    %207 = vector.broadcast %c32_i32_130 : i32 to vector<16x128xi32>
    %208 = arith.cmpi slt, %9, %207 : vector<16x128xi32>
    %209 = arith.select %208, %206, %205 : vector<16x128xi1>, vector<16x128xf32>
    %210 = arith.truncf %209 : vector<16x128xf32> to vector<16x128xbf16>
    %c16_131 = arith.constant 16 : index
    %c768_132 = arith.constant 768 : index
    %211 = vector.load %arg10[%c16_131, %c768_132] : memref<128x896xbf16, #tpu.memory_space<vmem>>, vector<16x128xbf16>
    tpu.vector_store %arg10[%c16_131, %c768_132], %210 {strides = array<i32>} : memref<128x896xbf16, #tpu.memory_space<vmem>>, vector<16x128xbf16>,
    %c240 = arith.constant 240 : index
    %c0_133 = arith.constant 0 : index
    %212 = vector.load %arg9[%c240, %c0_133] : memref<2000x128xf32, #tpu.memory_space<vmem>>, vector<16x128xf32>
    %c192_134 = arith.constant 192 : index
    %c0_135 = arith.constant 0 : index
    %213 = vector.load %arg9[%c192_134, %c0_135] : memref<2000x128xf32, #tpu.memory_space<vmem>>, vector<16x128xf32>
    %c96_i32_136 = arith.constant 96 : i32
    %214 = vector.broadcast %c96_i32_136 : i32 to vector<16x128xi32>
    %215 = arith.cmpi slt, %9, %214 : vector<16x128xi32>
    %216 = arith.select %215, %213, %212 : vector<16x128xi1>, vector<16x128xf32>
    %c176_137 = arith.constant 176 : index
    %c0_138 = arith.constant 0 : index
    %217 = vector.load %arg9[%c176_137, %c0_138] : memref<2000x128xf32, #tpu.memory_space<vmem>>, vector<16x128xf32>
    %c64_i32_139 = arith.constant 64 : i32
    %218 = vector.broadcast %c64_i32_139 : i32 to vector<16x128xi32>
    %219 = arith.cmpi slt, %9, %218 : vector<16x128xi32>
    %220 = arith.select %219, %217, %216 : vector<16x128xi1>, vector<16x128xf32>
    %c160_140 = arith.constant 160 : index
    %c0_141 = arith.constant 0 : index
    %221 = vector.load %arg9[%c160_140, %c0_141] : memref<2000x128xf32, #tpu.memory_space<vmem>>, vector<16x128xf32>
    %c32_i32_142 = arith.constant 32 : i32
    %222 = vector.broadcast %c32_i32_142 : i32 to vector<16x128xi32>
    %223 = arith.cmpi slt, %9, %222 : vector<16x128xi32>
    %224 = arith.select %223, %221, %220 : vector<16x128xi1>, vector<16x128xf32>
    %225 = arith.truncf %224 : vector<16x128xf32> to vector<16x128xbf16>
    %c32_143 = arith.constant 32 : index
    %c0_144 = arith.constant 0 : index
    %226 = vector.load %arg10[%c32_143, %c0_144] : memref<128x896xbf16, #tpu.memory_space<vmem>>, vector<16x128xbf16>
    tpu.vector_store %arg10[%c32_143, %c0_144], %225 {strides = array<i32>} : memref<128x896xbf16, #tpu.memory_space<vmem>>, vector<16x128xbf16>,
    %c336 = arith.constant 336 : index
    %c0_145 = arith.constant 0 : index
    %227 = vector.load %arg9[%c336, %c0_145] : memref<2000x128xf32, #tpu.memory_space<vmem>>, vector<16x128xf32>
    %c320 = arith.constant 320 : index
    %c0_146 = arith.constant 0 : index
    %228 = vector.load %arg9[%c320, %c0_146] : memref<2000x128xf32, #tpu.memory_space<vmem>>, vector<16x128xf32>
    %c96_i32_147 = arith.constant 96 : i32
    %229 = vector.broadcast %c96_i32_147 : i32 to vector<16x128xi32>
    %230 = arith.cmpi slt, %9, %229 : vector<16x128xi32>
    %231 = arith.select %230, %228, %227 : vector<16x128xi1>, vector<16x128xf32>
    %c272 = arith.constant 272 : index
    %c0_148 = arith.constant 0 : index
    %232 = vector.load %arg9[%c272, %c0_148] : memref<2000x128xf32, #tpu.memory_space<vmem>>, vector<16x128xf32>
    %c64_i32_149 = arith.constant 64 : i32
    %233 = vector.broadcast %c64_i32_149 : i32 to vector<16x128xi32>
    %234 = arith.cmpi slt, %9, %233 : vector<16x128xi32>
    %235 = arith.select %234, %232, %231 : vector<16x128xi1>, vector<16x128xf32>
    %c256_150 = arith.constant 256 : index
    %c0_151 = arith.constant 0 : index
    %236 = vector.load %arg9[%c256_150, %c0_151] : memref<2000x128xf32, #tpu.memory_space<vmem>>, vector<16x128xf32>
    %c32_i32_152 = arith.constant 32 : i32
    %237 = vector.broadcast %c32_i32_152 : i32 to vector<16x128xi32>
    %238 = arith.cmpi slt, %9, %237 : vector<16x128xi32>
    %239 = arith.select %238, %236, %235 : vector<16x128xi1>, vector<16x128xf32>
    %240 = arith.truncf %239 : vector<16x128xf32> to vector<16x128xbf16>
    %c32_153 = arith.constant 32 : index
    %c128_154 = arith.constant 128 : index
    %241 = vector.load %arg10[%c32_153, %c128_154] : memref<128x896xbf16, #tpu.memory_space<vmem>>, vector<16x128xbf16>
    tpu.vector_store %arg10[%c32_153, %c128_154], %240 {strides = array<i32>} : memref<128x896xbf16, #tpu.memory_space<vmem>>, vector<16x128xbf16>,
    %c592_155 = arith.constant 592 : index
    %c0_156 = arith.constant 0 : index
    %242 = vector.load %arg9[%c592_155, %c0_156] : memref<2000x128xf32, #tpu.memory_space<vmem>>, vector<16x128xf32>
    %c576_157 = arith.constant 576 : index
    %c0_158 = arith.constant 0 : index
    %243 = vector.load %arg9[%c576_157, %c0_158] : memref<2000x128xf32, #tpu.memory_space<vmem>>, vector<16x128xf32>
    %c96_i32_159 = arith.constant 96 : i32
    %244 = vector.broadcast %c96_i32_159 : i32 to vector<16x128xi32>
    %245 = arith.cmpi slt, %9, %244 : vector<16x128xi32>
    %246 = arith.select %245, %243, %242 : vector<16x128xi1>, vector<16x128xf32>
    %c560_160 = arith.constant 560 : index
    %c0_161 = arith.constant 0 : index
    %247 = vector.load %arg9[%c560_160, %c0_161] : memref<2000x128xf32, #tpu.memory_space<vmem>>, vector<16x128xf32>
    %c64_i32_162 = arith.constant 64 : i32
    %248 = vector.broadcast %c64_i32_162 : i32 to vector<16x128xi32>
    %249 = arith.cmpi slt, %9, %248 : vector<16x128xi32>
    %250 = arith.select %249, %247, %246 : vector<16x128xi1>, vector<16x128xf32>
    %c352 = arith.constant 352 : index
    %c0_163 = arith.constant 0 : index
    %251 = vector.load %arg9[%c352, %c0_163] : memref<2000x128xf32, #tpu.memory_space<vmem>>, vector<16x128xf32>
    %c32_i32_164 = arith.constant 32 : i32
    %252 = vector.broadcast %c32_i32_164 : i32 to vector<16x128xi32>
    %253 = arith.cmpi slt, %9, %252 : vector<16x128xi32>
    %254 = arith.select %253, %251, %250 : vector<16x128xi1>, vector<16x128xf32>
    %255 = arith.truncf %254 : vector<16x128xf32> to vector<16x128xbf16>
    %c32_165 = arith.constant 32 : index
    %c256_166 = arith.constant 256 : index
    %256 = vector.load %arg10[%c32_165, %c256_166] : memref<128x896xbf16, #tpu.memory_space<vmem>>, vector<16x128xbf16>
    tpu.vector_store %arg10[%c32_165, %c256_166], %255 {strides = array<i32>} : memref<128x896xbf16, #tpu.memory_space<vmem>>, vector<16x128xbf16>,
    %c720 = arith.constant 720 : index
    %c0_167 = arith.constant 0 : index
    %257 = vector.load %arg9[%c720, %c0_167] : memref<2000x128xf32, #tpu.memory_space<vmem>>, vector<16x128xf32>
    %c672 = arith.constant 672 : index
    %c0_168 = arith.constant 0 : index
    %258 = vector.load %arg9[%c672, %c0_168] : memref<2000x128xf32, #tpu.memory_space<vmem>>, vector<16x128xf32>
    %c96_i32_169 = arith.constant 96 : i32
    %259 = vector.broadcast %c96_i32_169 : i32 to vector<16x128xi32>
    %260 = arith.cmpi slt, %9, %259 : vector<16x128xi32>
    %261 = arith.select %260, %258, %257 : vector<16x128xi1>, vector<16x128xf32>
    %c656 = arith.constant 656 : index
    %c0_170 = arith.constant 0 : index
    %262 = vector.load %arg9[%c656, %c0_170] : memref<2000x128xf32, #tpu.memory_space<vmem>>, vector<16x128xf32>
    %c64_i32_171 = arith.constant 64 : i32
    %263 = vector.broadcast %c64_i32_171 : i32 to vector<16x128xi32>
    %264 = arith.cmpi slt, %9, %263 : vector<16x128xi32>
    %265 = arith.select %264, %262, %261 : vector<16x128xi1>, vector<16x128xf32>
    %c640_172 = arith.constant 640 : index
    %c0_173 = arith.constant 0 : index
    %266 = vector.load %arg9[%c640_172, %c0_173] : memref<2000x128xf32, #tpu.memory_space<vmem>>, vector<16x128xf32>
    %c32_i32_174 = arith.constant 32 : i32
    %267 = vector.broadcast %c32_i32_174 : i32 to vector<16x128xi32>
    %268 = arith.cmpi slt, %9, %267 : vector<16x128xi32>
    %269 = arith.select %268, %266, %265 : vector<16x128xi1>, vector<16x128xf32>
    %270 = arith.truncf %269 : vector<16x128xf32> to vector<16x128xbf16>
    %c32_175 = arith.constant 32 : index
    %c384_176 = arith.constant 384 : index
    %271 = vector.load %arg10[%c32_175, %c384_176] : memref<128x896xbf16, #tpu.memory_space<vmem>>, vector<16x128xbf16>
    tpu.vector_store %arg10[%c32_175, %c384_176], %270 {strides = array<i32>} : memref<128x896xbf16, #tpu.memory_space<vmem>>, vector<16x128xbf16>,
    %c976_177 = arith.constant 976 : index
    %c0_178 = arith.constant 0 : index
    %272 = vector.load %arg9[%c976_177, %c0_178] : memref<2000x128xf32, #tpu.memory_space<vmem>>, vector<16x128xf32>
    %c960_179 = arith.constant 960 : index
    %c0_180 = arith.constant 0 : index
    %273 = vector.load %arg9[%c960_179, %c0_180] : memref<2000x128xf32, #tpu.memory_space<vmem>>, vector<16x128xf32>
    %c96_i32_181 = arith.constant 96 : i32
    %274 = vector.broadcast %c96_i32_181 : i32 to vector<16x128xi32>
    %275 = arith.cmpi slt, %9, %274 : vector<16x128xi32>
    %276 = arith.select %275, %273, %272 : vector<16x128xi1>, vector<16x128xf32>
    %c752 = arith.constant 752 : index
    %c0_182 = arith.constant 0 : index
    %277 = vector.load %arg9[%c752, %c0_182] : memref<2000x128xf32, #tpu.memory_space<vmem>>, vector<16x128xf32>
    %c64_i32_183 = arith.constant 64 : i32
    %278 = vector.broadcast %c64_i32_183 : i32 to vector<16x128xi32>
    %279 = arith.cmpi slt, %9, %278 : vector<16x128xi32>
    %280 = arith.select %279, %277, %276 : vector<16x128xi1>, vector<16x128xf32>
    %c736 = arith.constant 736 : index
    %c0_184 = arith.constant 0 : index
    %281 = vector.load %arg9[%c736, %c0_184] : memref<2000x128xf32, #tpu.memory_space<vmem>>, vector<16x128xf32>
    %c32_i32_185 = arith.constant 32 : i32
    %282 = vector.broadcast %c32_i32_185 : i32 to vector<16x128xi32>
    %283 = arith.cmpi slt, %9, %282 : vector<16x128xi32>
    %284 = arith.select %283, %281, %280 : vector<16x128xi1>, vector<16x128xf32>
    %285 = arith.truncf %284 : vector<16x128xf32> to vector<16x128xbf16>
    %c32_186 = arith.constant 32 : index
    %c512_187 = arith.constant 512 : index
    %286 = vector.load %arg10[%c32_186, %c512_187] : memref<128x896xbf16, #tpu.memory_space<vmem>>, vector<16x128xbf16>
    tpu.vector_store %arg10[%c32_186, %c512_187], %285 {strides = array<i32>} : memref<128x896xbf16, #tpu.memory_space<vmem>>, vector<16x128xbf16>,
    %c1072 = arith.constant 1072 : index
    %c0_188 = arith.constant 0 : index
    %287 = vector.load %arg9[%c1072, %c0_188] : memref<2000x128xf32, #tpu.memory_space<vmem>>, vector<16x128xf32>
    %c1056 = arith.constant 1056 : index
    %c0_189 = arith.constant 0 : index
    %288 = vector.load %arg9[%c1056, %c0_189] : memref<2000x128xf32, #tpu.memory_space<vmem>>, vector<16x128xf32>
    %c96_i32_190 = arith.constant 96 : i32
    %289 = vector.broadcast %c96_i32_190 : i32 to vector<16x128xi32>
    %290 = arith.cmpi slt, %9, %289 : vector<16x128xi32>
    %291 = arith.select %290, %288, %287 : vector<16x128xi1>, vector<16x128xf32>
    %c1040 = arith.constant 1040 : index
    %c0_191 = arith.constant 0 : index
    %292 = vector.load %arg9[%c1040, %c0_191] : memref<2000x128xf32, #tpu.memory_space<vmem>>, vector<16x128xf32>
    %c64_i32_192 = arith.constant 64 : i32
    %293 = vector.broadcast %c64_i32_192 : i32 to vector<16x128xi32>
    %294 = arith.cmpi slt, %9, %293 : vector<16x128xi32>
    %295 = arith.select %294, %292, %291 : vector<16x128xi1>, vector<16x128xf32>
    %c992_193 = arith.constant 992 : index
    %c0_194 = arith.constant 0 : index
    %296 = vector.load %arg9[%c992_193, %c0_194] : memref<2000x128xf32, #tpu.memory_space<vmem>>, vector<16x128xf32>
    %c32_i32_195 = arith.constant 32 : i32
    %297 = vector.broadcast %c32_i32_195 : i32 to vector<16x128xi32>
    %298 = arith.cmpi slt, %9, %297 : vector<16x128xi32>
    %299 = arith.select %298, %296, %295 : vector<16x128xi1>, vector<16x128xf32>
    %300 = arith.truncf %299 : vector<16x128xf32> to vector<16x128xbf16>
    %c32_196 = arith.constant 32 : index
    %c640_197 = arith.constant 640 : index
    %301 = vector.load %arg10[%c32_196, %c640_197] : memref<128x896xbf16, #tpu.memory_space<vmem>>, vector<16x128xbf16>
    tpu.vector_store %arg10[%c32_196, %c640_197], %300 {strides = array<i32>} : memref<128x896xbf16, #tpu.memory_space<vmem>>, vector<16x128xbf16>,
    %c1152 = arith.constant 1152 : index
    %c0_198 = arith.constant 0 : index
    %302 = vector.load %arg9[%c1152, %c0_198] : memref<2000x128xf32, #tpu.memory_space<vmem>>, vector<16x128xf32>
    %c1136 = arith.constant 1136 : index
    %c0_199 = arith.constant 0 : index
    %303 = vector.load %arg9[%c1136, %c0_199] : memref<2000x128xf32, #tpu.memory_space<vmem>>, vector<16x128xf32>
    %c64_i32_200 = arith.constant 64 : i32
    %304 = vector.broadcast %c64_i32_200 : i32 to vector<16x128xi32>
    %305 = arith.cmpi slt, %9, %304 : vector<16x128xi32>
    %306 = arith.select %305, %303, %302 : vector<16x128xi1>, vector<16x128xf32>
    %c1120 = arith.constant 1120 : index
    %c0_201 = arith.constant 0 : index
    %307 = vector.load %arg9[%c1120, %c0_201] : memref<2000x128xf32, #tpu.memory_space<vmem>>, vector<16x128xf32>
    %c32_i32_202 = arith.constant 32 : i32
    %308 = vector.broadcast %c32_i32_202 : i32 to vector<16x128xi32>
    %309 = arith.cmpi slt, %9, %308 : vector<16x128xi32>
    %310 = arith.select %309, %307, %306 : vector<16x128xi1>, vector<16x128xf32>
    %311 = arith.truncf %310 : vector<16x128xf32> to vector<16x128xbf16>
    %c32_203 = arith.constant 32 : index
    %c768_204 = arith.constant 768 : index
    %312 = vector.load %arg10[%c32_203, %c768_204] : memref<128x896xbf16, #tpu.memory_space<vmem>>, vector<16x128xbf16>
    tpu.vector_store %arg10[%c32_203, %c768_204], %311 {strides = array<i32>} : memref<128x896xbf16, #tpu.memory_space<vmem>>, vector<16x128xbf16>,
    %c272_205 = arith.constant 272 : index
    %c0_206 = arith.constant 0 : index
    %313 = vector.load %arg9[%c272_205, %c0_206] : memref<2000x128xf32, #tpu.memory_space<vmem>>, vector<16x128xf32>
    %c224_207 = arith.constant 224 : index
    %c0_208 = arith.constant 0 : index
    %314 = vector.load %arg9[%c224_207, %c0_208] : memref<2000x128xf32, #tpu.memory_space<vmem>>, vector<16x128xf32>
    %c96_i32_209 = arith.constant 96 : i32
    %315 = vector.broadcast %c96_i32_209 : i32 to vector<16x128xi32>
    %316 = arith.cmpi slt, %9, %315 : vector<16x128xi32>
    %317 = arith.select %316, %314, %313 : vector<16x128xi1>, vector<16x128xf32>
    %c208_210 = arith.constant 208 : index
    %c0_211 = arith.constant 0 : index
    %318 = vector.load %arg9[%c208_210, %c0_211] : memref<2000x128xf32, #tpu.memory_space<vmem>>, vector<16x128xf32>
    %c64_i32_212 = arith.constant 64 : i32
    %319 = vector.broadcast %c64_i32_212 : i32 to vector<16x128xi32>
    %320 = arith.cmpi slt, %9, %319 : vector<16x128xi32>
    %321 = arith.select %320, %318, %317 : vector<16x128xi1>, vector<16x128xf32>
    %c192_213 = arith.constant 192 : index
    %c0_214 = arith.constant 0 : index
    %322 = vector.load %arg9[%c192_213, %c0_214] : memref<2000x128xf32, #tpu.memory_space<vmem>>, vector<16x128xf32>
    %c32_i32_215 = arith.constant 32 : i32
    %323 = vector.broadcast %c32_i32_215 : i32 to vector<16x128xi32>
    %324 = arith.cmpi slt, %9, %323 : vector<16x128xi32>
    %325 = arith.select %324, %322, %321 : vector<16x128xi1>, vector<16x128xf32>
    %326 = arith.truncf %325 : vector<16x128xf32> to vector<16x128xbf16>
    %c48_216 = arith.constant 48 : index
    %c0_217 = arith.constant 0 : index
    %327 = vector.load %arg10[%c48_216, %c0_217] : memref<128x896xbf16, #tpu.memory_space<vmem>>, vector<16x128xbf16>
    tpu.vector_store %arg10[%c48_216, %c0_217], %326 {strides = array<i32>} : memref<128x896xbf16, #tpu.memory_space<vmem>>, vector<16x128xbf16>,
    %c368 = arith.constant 368 : index
    %c0_218 = arith.constant 0 : index
    %328 = vector.load %arg9[%c368, %c0_218] : memref<2000x128xf32, #tpu.memory_space<vmem>>, vector<16x128xf32>
    %c352_219 = arith.constant 352 : index
    %c0_220 = arith.constant 0 : index
    %329 = vector.load %arg9[%c352_219, %c0_220] : memref<2000x128xf32, #tpu.memory_space<vmem>>, vector<16x128xf32>
    %c96_i32_221 = arith.constant 96 : i32
    %330 = vector.broadcast %c96_i32_221 : i32 to vector<16x128xi32>
    %331 = arith.cmpi slt, %9, %330 : vector<16x128xi32>
    %332 = arith.select %331, %329, %328 : vector<16x128xi1>, vector<16x128xf32>
    %c304 = arith.constant 304 : index
    %c0_222 = arith.constant 0 : index
    %333 = vector.load %arg9[%c304, %c0_222] : memref<2000x128xf32, #tpu.memory_space<vmem>>, vector<16x128xf32>
    %c64_i32_223 = arith.constant 64 : i32
    %334 = vector.broadcast %c64_i32_223 : i32 to vector<16x128xi32>
    %335 = arith.cmpi slt, %9, %334 : vector<16x128xi32>
    %336 = arith.select %335, %333, %332 : vector<16x128xi1>, vector<16x128xf32>
    %c288 = arith.constant 288 : index
    %c0_224 = arith.constant 0 : index
    %337 = vector.load %arg9[%c288, %c0_224] : memref<2000x128xf32, #tpu.memory_space<vmem>>, vector<16x128xf32>
    %c32_i32_225 = arith.constant 32 : i32
    %338 = vector.broadcast %c32_i32_225 : i32 to vector<16x128xi32>
    %339 = arith.cmpi slt, %9, %338 : vector<16x128xi32>
    %340 = arith.select %339, %337, %336 : vector<16x128xi1>, vector<16x128xf32>
    %341 = arith.truncf %340 : vector<16x128xf32> to vector<16x128xbf16>
    %c48_226 = arith.constant 48 : index
    %c128_227 = arith.constant 128 : index
    %342 = vector.load %arg10[%c48_226, %c128_227] : memref<128x896xbf16, #tpu.memory_space<vmem>>, vector<16x128xbf16>
    tpu.vector_store %arg10[%c48_226, %c128_227], %341 {strides = array<i32>} : memref<128x896xbf16, #tpu.memory_space<vmem>>, vector<16x128xbf16>,
    %c624_228 = arith.constant 624 : index
    %c0_229 = arith.constant 0 : index
    %343 = vector.load %arg9[%c624_228, %c0_229] : memref<2000x128xf32, #tpu.memory_space<vmem>>, vector<16x128xf32>
    %c608_230 = arith.constant 608 : index
    %c0_231 = arith.constant 0 : index
    %344 = vector.load %arg9[%c608_230, %c0_231] : memref<2000x128xf32, #tpu.memory_space<vmem>>, vector<16x128xf32>
    %c96_i32_232 = arith.constant 96 : i32
    %345 = vector.broadcast %c96_i32_232 : i32 to vector<16x128xi32>
    %346 = arith.cmpi slt, %9, %345 : vector<16x128xi32>
    %347 = arith.select %346, %344, %343 : vector<16x128xi1>, vector<16x128xf32>
    %c592_233 = arith.constant 592 : index
    %c0_234 = arith.constant 0 : index
    %348 = vector.load %arg9[%c592_233, %c0_234] : memref<2000x128xf32, #tpu.memory_space<vmem>>, vector<16x128xf32>
    %c64_i32_235 = arith.constant 64 : i32
    %349 = vector.broadcast %c64_i32_235 : i32 to vector<16x128xi32>
    %350 = arith.cmpi slt, %9, %349 : vector<16x128xi32>
    %351 = arith.select %350, %348, %347 : vector<16x128xi1>, vector<16x128xf32>
    %c384_236 = arith.constant 384 : index
    %c0_237 = arith.constant 0 : index
    %352 = vector.load %arg9[%c384_236, %c0_237] : memref<2000x128xf32, #tpu.memory_space<vmem>>, vector<16x128xf32>
    %c32_i32_238 = arith.constant 32 : i32
    %353 = vector.broadcast %c32_i32_238 : i32 to vector<16x128xi32>
    %354 = arith.cmpi slt, %9, %353 : vector<16x128xi32>
    %355 = arith.select %354, %352, %351 : vector<16x128xi1>, vector<16x128xf32>
    %356 = arith.truncf %355 : vector<16x128xf32> to vector<16x128xbf16>
    %c48_239 = arith.constant 48 : index
    %c256_240 = arith.constant 256 : index
    %357 = vector.load %arg10[%c48_239, %c256_240] : memref<128x896xbf16, #tpu.memory_space<vmem>>, vector<16x128xbf16>
    tpu.vector_store %arg10[%c48_239, %c256_240], %356 {strides = array<i32>} : memref<128x896xbf16, #tpu.memory_space<vmem>>, vector<16x128xbf16>,
    %c752_241 = arith.constant 752 : index
    %c0_242 = arith.constant 0 : index
    %358 = vector.load %arg9[%c752_241, %c0_242] : memref<2000x128xf32, #tpu.memory_space<vmem>>, vector<16x128xf32>
    %c704 = arith.constant 704 : index
    %c0_243 = arith.constant 0 : index
    %359 = vector.load %arg9[%c704, %c0_243] : memref<2000x128xf32, #tpu.memory_space<vmem>>, vector<16x128xf32>
    %c96_i32_244 = arith.constant 96 : i32
    %360 = vector.broadcast %c96_i32_244 : i32 to vector<16x128xi32>
    %361 = arith.cmpi slt, %9, %360 : vector<16x128xi32>
    %362 = arith.select %361, %359, %358 : vector<16x128xi1>, vector<16x128xf32>
    %c688 = arith.constant 688 : index
    %c0_245 = arith.constant 0 : index
    %363 = vector.load %arg9[%c688, %c0_245] : memref<2000x128xf32, #tpu.memory_space<vmem>>, vector<16x128xf32>
    %c64_i32_246 = arith.constant 64 : i32
    %364 = vector.broadcast %c64_i32_246 : i32 to vector<16x128xi32>
    %365 = arith.cmpi slt, %9, %364 : vector<16x128xi32>
    %366 = arith.select %365, %363, %362 : vector<16x128xi1>, vector<16x128xf32>
    %c672_247 = arith.constant 672 : index
    %c0_248 = arith.constant 0 : index
    %367 = vector.load %arg9[%c672_247, %c0_248] : memref<2000x128xf32, #tpu.memory_space<vmem>>, vector<16x128xf32>
    %c32_i32_249 = arith.constant 32 : i32
    %368 = vector.broadcast %c32_i32_249 : i32 to vector<16x128xi32>
    %369 = arith.cmpi slt, %9, %368 : vector<16x128xi32>
    %370 = arith.select %369, %367, %366 : vector<16x128xi1>, vector<16x128xf32>
    %371 = arith.truncf %370 : vector<16x128xf32> to vector<16x128xbf16>
    %c48_250 = arith.constant 48 : index
    %c384_251 = arith.constant 384 : index
    %372 = vector.load %arg10[%c48_250, %c384_251] : memref<128x896xbf16, #tpu.memory_space<vmem>>, vector<16x128xbf16>
    tpu.vector_store %arg10[%c48_250, %c384_251], %371 {strides = array<i32>} : memref<128x896xbf16, #tpu.memory_space<vmem>>, vector<16x128xbf16>,
    %c1008_252 = arith.constant 1008 : index
    %c0_253 = arith.constant 0 : index
    %373 = vector.load %arg9[%c1008_252, %c0_253] : memref<2000x128xf32, #tpu.memory_space<vmem>>, vector<16x128xf32>
    %c992_254 = arith.constant 992 : index
    %c0_255 = arith.constant 0 : index
    %374 = vector.load %arg9[%c992_254, %c0_255] : memref<2000x128xf32, #tpu.memory_space<vmem>>, vector<16x128xf32>
    %c96_i32_256 = arith.constant 96 : i32
    %375 = vector.broadcast %c96_i32_256 : i32 to vector<16x128xi32>
    %376 = arith.cmpi slt, %9, %375 : vector<16x128xi32>
    %377 = arith.select %376, %374, %373 : vector<16x128xi1>, vector<16x128xf32>
    %c784 = arith.constant 784 : index
    %c0_257 = arith.constant 0 : index
    %378 = vector.load %arg9[%c784, %c0_257] : memref<2000x128xf32, #tpu.memory_space<vmem>>, vector<16x128xf32>
    %c64_i32_258 = arith.constant 64 : i32
    %379 = vector.broadcast %c64_i32_258 : i32 to vector<16x128xi32>
    %380 = arith.cmpi slt, %9, %379 : vector<16x128xi32>
    %381 = arith.select %380, %378, %377 : vector<16x128xi1>, vector<16x128xf32>
    %c768_259 = arith.constant 768 : index
    %c0_260 = arith.constant 0 : index
    %382 = vector.load %arg9[%c768_259, %c0_260] : memref<2000x128xf32, #tpu.memory_space<vmem>>, vector<16x128xf32>
    %c32_i32_261 = arith.constant 32 : i32
    %383 = vector.broadcast %c32_i32_261 : i32 to vector<16x128xi32>
    %384 = arith.cmpi slt, %9, %383 : vector<16x128xi32>
    %385 = arith.select %384, %382, %381 : vector<16x128xi1>, vector<16x128xf32>
    %386 = arith.truncf %385 : vector<16x128xf32> to vector<16x128xbf16>
    %c48_262 = arith.constant 48 : index
    %c512_263 = arith.constant 512 : index
    %387 = vector.load %arg10[%c48_262, %c512_263] : memref<128x896xbf16, #tpu.memory_space<vmem>>, vector<16x128xbf16>
    tpu.vector_store %arg10[%c48_262, %c512_263], %386 {strides = array<i32>} : memref<128x896xbf16, #tpu.memory_space<vmem>>, vector<16x128xbf16>,
    %c1104 = arith.constant 1104 : index
    %c0_264 = arith.constant 0 : index
    %388 = vector.load %arg9[%c1104, %c0_264] : memref<2000x128xf32, #tpu.memory_space<vmem>>, vector<16x128xf32>
    %c1088 = arith.constant 1088 : index
    %c0_265 = arith.constant 0 : index
    %389 = vector.load %arg9[%c1088, %c0_265] : memref<2000x128xf32, #tpu.memory_space<vmem>>, vector<16x128xf32>
    %c96_i32_266 = arith.constant 96 : i32
    %390 = vector.broadcast %c96_i32_266 : i32 to vector<16x128xi32>
    %391 = arith.cmpi slt, %9, %390 : vector<16x128xi32>
    %392 = arith.select %391, %389, %388 : vector<16x128xi1>, vector<16x128xf32>
    %c1072_267 = arith.constant 1072 : index
    %c0_268 = arith.constant 0 : index
    %393 = vector.load %arg9[%c1072_267, %c0_268] : memref<2000x128xf32, #tpu.memory_space<vmem>>, vector<16x128xf32>
    %c64_i32_269 = arith.constant 64 : i32
    %394 = vector.broadcast %c64_i32_269 : i32 to vector<16x128xi32>
    %395 = arith.cmpi slt, %9, %394 : vector<16x128xi32>
    %396 = arith.select %395, %393, %392 : vector<16x128xi1>, vector<16x128xf32>
    %c1024_270 = arith.constant 1024 : index
    %c0_271 = arith.constant 0 : index
    %397 = vector.load %arg9[%c1024_270, %c0_271] : memref<2000x128xf32, #tpu.memory_space<vmem>>, vector<16x128xf32>
    %c32_i32_272 = arith.constant 32 : i32
    %398 = vector.broadcast %c32_i32_272 : i32 to vector<16x128xi32>
    %399 = arith.cmpi slt, %9, %398 : vector<16x128xi32>
    %400 = arith.select %399, %397, %396 : vector<16x128xi1>, vector<16x128xf32>
    %401 = arith.truncf %400 : vector<16x128xf32> to vector<16x128xbf16>
    %c48_273 = arith.constant 48 : index
    %c640_274 = arith.constant 640 : index
    %402 = vector.load %arg10[%c48_273, %c640_274] : memref<128x896xbf16, #tpu.memory_space<vmem>>, vector<16x128xbf16>
    tpu.vector_store %arg10[%c48_273, %c640_274], %401 {strides = array<i32>} : memref<128x896xbf16, #tpu.memory_space<vmem>>, vector<16x128xbf16>,
    %c1184 = arith.constant 1184 : index
    %c0_275 = arith.constant 0 : index
    %403 = vector.load %arg9[%c1184, %c0_275] : memref<2000x128xf32, #tpu.memory_space<vmem>>, vector<16x128xf32>
    %c1168 = arith.constant 1168 : index
    %c0_276 = arith.constant 0 : index
    %404 = vector.load %arg9[%c1168, %c0_276] : memref<2000x128xf32, #tpu.memory_space<vmem>>, vector<16x128xf32>
    %c64_i32_277 = arith.constant 64 : i32
    %405 = vector.broadcast %c64_i32_277 : i32 to vector<16x128xi32>
    %406 = arith.cmpi slt, %9, %405 : vector<16x128xi32>
    %407 = arith.select %406, %404, %403 : vector<16x128xi1>, vector<16x128xf32>
    %c1152_278 = arith.constant 1152 : index
    %c0_279 = arith.constant 0 : index
    %408 = vector.load %arg9[%c1152_278, %c0_279] : memref<2000x128xf32, #tpu.memory_space<vmem>>, vector<16x128xf32>
    %c32_i32_280 = arith.constant 32 : i32
    %409 = vector.broadcast %c32_i32_280 : i32 to vector<16x128xi32>
    %410 = arith.cmpi slt, %9, %409 : vector<16x128xi32>
    %411 = arith.select %410, %408, %407 : vector<16x128xi1>, vector<16x128xf32>
    %412 = arith.truncf %411 : vector<16x128xf32> to vector<16x128xbf16>
    %c48_281 = arith.constant 48 : index
    %c768_282 = arith.constant 768 : index
    %413 = vector.load %arg10[%c48_281, %c768_282] : memref<128x896xbf16, #tpu.memory_space<vmem>>, vector<16x128xbf16>
    tpu.vector_store %arg10[%c48_281, %c768_282], %412 {strides = array<i32>} : memref<128x896xbf16, #tpu.memory_space<vmem>>, vector<16x128xbf16>,
    %c880_283 = arith.constant 880 : index
    %c0_284 = arith.constant 0 : index
    %414 = vector.load %arg9[%c880_283, %c0_284] : memref<2000x128xf32, #tpu.memory_space<vmem>>, vector<16x128xf32>
    %c832_285 = arith.constant 832 : index
    %c0_286 = arith.constant 0 : index
    %415 = vector.load %arg9[%c832_285, %c0_286] : memref<2000x128xf32, #tpu.memory_space<vmem>>, vector<16x128xf32>
    %c96_i32_287 = arith.constant 96 : i32
    %416 = vector.broadcast %c96_i32_287 : i32 to vector<16x128xi32>
    %417 = arith.cmpi slt, %9, %416 : vector<16x128xi32>
    %418 = arith.select %417, %415, %414 : vector<16x128xi1>, vector<16x128xf32>
    %c816_288 = arith.constant 816 : index
    %c0_289 = arith.constant 0 : index
    %419 = vector.load %arg9[%c816_288, %c0_289] : memref<2000x128xf32, #tpu.memory_space<vmem>>, vector<16x128xf32>
    %c64_i32_290 = arith.constant 64 : i32
    %420 = vector.broadcast %c64_i32_290 : i32 to vector<16x128xi32>
    %421 = arith.cmpi slt, %9, %420 : vector<16x128xi32>
    %422 = arith.select %421, %419, %418 : vector<16x128xi1>, vector<16x128xf32>
    %c800_291 = arith.constant 800 : index
    %c0_292 = arith.constant 0 : index
    %423 = vector.load %arg9[%c800_291, %c0_292] : memref<2000x128xf32, #tpu.memory_space<vmem>>, vector<16x128xf32>
    %c32_i32_293 = arith.constant 32 : i32
    %424 = vector.broadcast %c32_i32_293 : i32 to vector<16x128xi32>
    %425 = arith.cmpi slt, %9, %424 : vector<16x128xi32>
    %426 = arith.select %425, %423, %422 : vector<16x128xi1>, vector<16x128xf32>
    %427 = arith.truncf %426 : vector<16x128xf32> to vector<16x128xbf16>
    %c64_294 = arith.constant 64 : index
    %c0_295 = arith.constant 0 : index
    %428 = vector.load %arg10[%c64_294, %c0_295] : memref<128x896xbf16, #tpu.memory_space<vmem>>, vector<16x128xbf16>
    tpu.vector_store %arg10[%c64_294, %c0_295], %427 {strides = array<i32>} : memref<128x896xbf16, #tpu.memory_space<vmem>>, vector<16x128xbf16>,
    %c976_296 = arith.constant 976 : index
    %c0_297 = arith.constant 0 : index
    %429 = vector.load %arg9[%c976_296, %c0_297] : memref<2000x128xf32, #tpu.memory_space<vmem>>, vector<16x128xf32>
    %c960_298 = arith.constant 960 : index
    %c0_299 = arith.constant 0 : index
    %430 = vector.load %arg9[%c960_298, %c0_299] : memref<2000x128xf32, #tpu.memory_space<vmem>>, vector<16x128xf32>
    %c96_i32_300 = arith.constant 96 : i32
    %431 = vector.broadcast %c96_i32_300 : i32 to vector<16x128xi32>
    %432 = arith.cmpi slt, %9, %431 : vector<16x128xi32>
    %433 = arith.select %432, %430, %429 : vector<16x128xi1>, vector<16x128xf32>
    %c912_301 = arith.constant 912 : index
    %c0_302 = arith.constant 0 : index
    %434 = vector.load %arg9[%c912_301, %c0_302] : memref<2000x128xf32, #tpu.memory_space<vmem>>, vector<16x128xf32>
    %c64_i32_303 = arith.constant 64 : i32
    %435 = vector.broadcast %c64_i32_303 : i32 to vector<16x128xi32>
    %436 = arith.cmpi slt, %9, %435 : vector<16x128xi32>
    %437 = arith.select %436, %434, %433 : vector<16x128xi1>, vector<16x128xf32>
    %c896_304 = arith.constant 896 : index
    %c0_305 = arith.constant 0 : index
    %438 = vector.load %arg9[%c896_304, %c0_305] : memref<2000x128xf32, #tpu.memory_space<vmem>>, vector<16x128xf32>
    %c32_i32_306 = arith.constant 32 : i32
    %439 = vector.broadcast %c32_i32_306 : i32 to vector<16x128xi32>
    %440 = arith.cmpi slt, %9, %439 : vector<16x128xi32>
    %441 = arith.select %440, %438, %437 : vector<16x128xi1>, vector<16x128xf32>
    %442 = arith.truncf %441 : vector<16x128xf32> to vector<16x128xbf16>
    %c64_307 = arith.constant 64 : index
    %c128_308 = arith.constant 128 : index
    %443 = vector.load %arg10[%c64_307, %c128_308] : memref<128x896xbf16, #tpu.memory_space<vmem>>, vector<16x128xbf16>
    tpu.vector_store %arg10[%c64_307, %c128_308], %442 {strides = array<i32>} : memref<128x896xbf16, #tpu.memory_space<vmem>>, vector<16x128xbf16>,
    %c1232 = arith.constant 1232 : index
    %c0_309 = arith.constant 0 : index
    %444 = vector.load %arg9[%c1232, %c0_309] : memref<2000x128xf32, #tpu.memory_space<vmem>>, vector<16x128xf32>
    %c1216 = arith.constant 1216 : index
    %c0_310 = arith.constant 0 : index
    %445 = vector.load %arg9[%c1216, %c0_310] : memref<2000x128xf32, #tpu.memory_space<vmem>>, vector<16x128xf32>
    %c96_i32_311 = arith.constant 96 : i32
    %446 = vector.broadcast %c96_i32_311 : i32 to vector<16x128xi32>
    %447 = arith.cmpi slt, %9, %446 : vector<16x128xi32>
    %448 = arith.select %447, %445, %444 : vector<16x128xi1>, vector<16x128xf32>
    %c1200 = arith.constant 1200 : index
    %c0_312 = arith.constant 0 : index
    %449 = vector.load %arg9[%c1200, %c0_312] : memref<2000x128xf32, #tpu.memory_space<vmem>>, vector<16x128xf32>
    %c64_i32_313 = arith.constant 64 : i32
    %450 = vector.broadcast %c64_i32_313 : i32 to vector<16x128xi32>
    %451 = arith.cmpi slt, %9, %450 : vector<16x128xi32>
    %452 = arith.select %451, %449, %448 : vector<16x128xi1>, vector<16x128xf32>
    %c992_314 = arith.constant 992 : index
    %c0_315 = arith.constant 0 : index
    %453 = vector.load %arg9[%c992_314, %c0_315] : memref<2000x128xf32, #tpu.memory_space<vmem>>, vector<16x128xf32>
    %c32_i32_316 = arith.constant 32 : i32
    %454 = vector.broadcast %c32_i32_316 : i32 to vector<16x128xi32>
    %455 = arith.cmpi slt, %9, %454 : vector<16x128xi32>
    %456 = arith.select %455, %453, %452 : vector<16x128xi1>, vector<16x128xf32>
    %457 = arith.truncf %456 : vector<16x128xf32> to vector<16x128xbf16>
    %c64_317 = arith.constant 64 : index
    %c256_318 = arith.constant 256 : index
    %458 = vector.load %arg10[%c64_317, %c256_318] : memref<128x896xbf16, #tpu.memory_space<vmem>>, vector<16x128xbf16>
    tpu.vector_store %arg10[%c64_317, %c256_318], %457 {strides = array<i32>} : memref<128x896xbf16, #tpu.memory_space<vmem>>, vector<16x128xbf16>,
    %c1360 = arith.constant 1360 : index
    %c0_319 = arith.constant 0 : index
    %459 = vector.load %arg9[%c1360, %c0_319] : memref<2000x128xf32, #tpu.memory_space<vmem>>, vector<16x128xf32>
    %c1312 = arith.constant 1312 : index
    %c0_320 = arith.constant 0 : index
    %460 = vector.load %arg9[%c1312, %c0_320] : memref<2000x128xf32, #tpu.memory_space<vmem>>, vector<16x128xf32>
    %c96_i32_321 = arith.constant 96 : i32
    %461 = vector.broadcast %c96_i32_321 : i32 to vector<16x128xi32>
    %462 = arith.cmpi slt, %9, %461 : vector<16x128xi32>
    %463 = arith.select %462, %460, %459 : vector<16x128xi1>, vector<16x128xf32>
    %c1296 = arith.constant 1296 : index
    %c0_322 = arith.constant 0 : index
    %464 = vector.load %arg9[%c1296, %c0_322] : memref<2000x128xf32, #tpu.memory_space<vmem>>, vector<16x128xf32>
    %c64_i32_323 = arith.constant 64 : i32
    %465 = vector.broadcast %c64_i32_323 : i32 to vector<16x128xi32>
    %466 = arith.cmpi slt, %9, %465 : vector<16x128xi32>
    %467 = arith.select %466, %464, %463 : vector<16x128xi1>, vector<16x128xf32>
    %c1280 = arith.constant 1280 : index
    %c0_324 = arith.constant 0 : index
    %468 = vector.load %arg9[%c1280, %c0_324] : memref<2000x128xf32, #tpu.memory_space<vmem>>, vector<16x128xf32>
    %c32_i32_325 = arith.constant 32 : i32
    %469 = vector.broadcast %c32_i32_325 : i32 to vector<16x128xi32>
    %470 = arith.cmpi slt, %9, %469 : vector<16x128xi32>
    %471 = arith.select %470, %468, %467 : vector<16x128xi1>, vector<16x128xf32>
    %472 = arith.truncf %471 : vector<16x128xf32> to vector<16x128xbf16>
    %c64_326 = arith.constant 64 : index
    %c384_327 = arith.constant 384 : index
    %473 = vector.load %arg10[%c64_326, %c384_327] : memref<128x896xbf16, #tpu.memory_space<vmem>>, vector<16x128xbf16>
    tpu.vector_store %arg10[%c64_326, %c384_327], %472 {strides = array<i32>} : memref<128x896xbf16, #tpu.memory_space<vmem>>, vector<16x128xbf16>,
    %c1616 = arith.constant 1616 : index
    %c0_328 = arith.constant 0 : index
    %474 = vector.load %arg9[%c1616, %c0_328] : memref<2000x128xf32, #tpu.memory_space<vmem>>, vector<16x128xf32>
    %c1600 = arith.constant 1600 : index
    %c0_329 = arith.constant 0 : index
    %475 = vector.load %arg9[%c1600, %c0_329] : memref<2000x128xf32, #tpu.memory_space<vmem>>, vector<16x128xf32>
    %c96_i32_330 = arith.constant 96 : i32
    %476 = vector.broadcast %c96_i32_330 : i32 to vector<16x128xi32>
    %477 = arith.cmpi slt, %9, %476 : vector<16x128xi32>
    %478 = arith.select %477, %475, %474 : vector<16x128xi1>, vector<16x128xf32>
    %c1392 = arith.constant 1392 : index
    %c0_331 = arith.constant 0 : index
    %479 = vector.load %arg9[%c1392, %c0_331] : memref<2000x128xf32, #tpu.memory_space<vmem>>, vector<16x128xf32>
    %c64_i32_332 = arith.constant 64 : i32
    %480 = vector.broadcast %c64_i32_332 : i32 to vector<16x128xi32>
    %481 = arith.cmpi slt, %9, %480 : vector<16x128xi32>
    %482 = arith.select %481, %479, %478 : vector<16x128xi1>, vector<16x128xf32>
    %c1376 = arith.constant 1376 : index
    %c0_333 = arith.constant 0 : index
    %483 = vector.load %arg9[%c1376, %c0_333] : memref<2000x128xf32, #tpu.memory_space<vmem>>, vector<16x128xf32>
    %c32_i32_334 = arith.constant 32 : i32
    %484 = vector.broadcast %c32_i32_334 : i32 to vector<16x128xi32>
    %485 = arith.cmpi slt, %9, %484 : vector<16x128xi32>
    %486 = arith.select %485, %483, %482 : vector<16x128xi1>, vector<16x128xf32>
    %487 = arith.truncf %486 : vector<16x128xf32> to vector<16x128xbf16>
    %c64_335 = arith.constant 64 : index
    %c512_336 = arith.constant 512 : index
    %488 = vector.load %arg10[%c64_335, %c512_336] : memref<128x896xbf16, #tpu.memory_space<vmem>>, vector<16x128xbf16>
    tpu.vector_store %arg10[%c64_335, %c512_336], %487 {strides = array<i32>} : memref<128x896xbf16, #tpu.memory_space<vmem>>, vector<16x128xbf16>,
    %c1712 = arith.constant 1712 : index
    %c0_337 = arith.constant 0 : index
    %489 = vector.load %arg9[%c1712, %c0_337] : memref<2000x128xf32, #tpu.memory_space<vmem>>, vector<16x128xf32>
    %c1696 = arith.constant 1696 : index
    %c0_338 = arith.constant 0 : index
    %490 = vector.load %arg9[%c1696, %c0_338] : memref<2000x128xf32, #tpu.memory_space<vmem>>, vector<16x128xf32>
    %c96_i32_339 = arith.constant 96 : i32
    %491 = vector.broadcast %c96_i32_339 : i32 to vector<16x128xi32>
    %492 = arith.cmpi slt, %9, %491 : vector<16x128xi32>
    %493 = arith.select %492, %490, %489 : vector<16x128xi1>, vector<16x128xf32>
    %c1680 = arith.constant 1680 : index
    %c0_340 = arith.constant 0 : index
    %494 = vector.load %arg9[%c1680, %c0_340] : memref<2000x128xf32, #tpu.memory_space<vmem>>, vector<16x128xf32>
    %c64_i32_341 = arith.constant 64 : i32
    %495 = vector.broadcast %c64_i32_341 : i32 to vector<16x128xi32>
    %496 = arith.cmpi slt, %9, %495 : vector<16x128xi32>
    %497 = arith.select %496, %494, %493 : vector<16x128xi1>, vector<16x128xf32>
    %c1632 = arith.constant 1632 : index
    %c0_342 = arith.constant 0 : index
    %498 = vector.load %arg9[%c1632, %c0_342] : memref<2000x128xf32, #tpu.memory_space<vmem>>, vector<16x128xf32>
    %c32_i32_343 = arith.constant 32 : i32
    %499 = vector.broadcast %c32_i32_343 : i32 to vector<16x128xi32>
    %500 = arith.cmpi slt, %9, %499 : vector<16x128xi32>
    %501 = arith.select %500, %498, %497 : vector<16x128xi1>, vector<16x128xf32>
    %502 = arith.truncf %501 : vector<16x128xf32> to vector<16x128xbf16>
    %c64_344 = arith.constant 64 : index
    %c640_345 = arith.constant 640 : index
    %503 = vector.load %arg10[%c64_344, %c640_345] : memref<128x896xbf16, #tpu.memory_space<vmem>>, vector<16x128xbf16>
    tpu.vector_store %arg10[%c64_344, %c640_345], %502 {strides = array<i32>} : memref<128x896xbf16, #tpu.memory_space<vmem>>, vector<16x128xbf16>,
    %c1792 = arith.constant 1792 : index
    %c0_346 = arith.constant 0 : index
    %504 = vector.load %arg9[%c1792, %c0_346] : memref<2000x128xf32, #tpu.memory_space<vmem>>, vector<16x128xf32>
    %c1776 = arith.constant 1776 : index
    %c0_347 = arith.constant 0 : index
    %505 = vector.load %arg9[%c1776, %c0_347] : memref<2000x128xf32, #tpu.memory_space<vmem>>, vector<16x128xf32>
    %c64_i32_348 = arith.constant 64 : i32
    %506 = vector.broadcast %c64_i32_348 : i32 to vector<16x128xi32>
    %507 = arith.cmpi slt, %9, %506 : vector<16x128xi32>
    %508 = arith.select %507, %505, %504 : vector<16x128xi1>, vector<16x128xf32>
    %c1760 = arith.constant 1760 : index
    %c0_349 = arith.constant 0 : index
    %509 = vector.load %arg9[%c1760, %c0_349] : memref<2000x128xf32, #tpu.memory_space<vmem>>, vector<16x128xf32>
    %c32_i32_350 = arith.constant 32 : i32
    %510 = vector.broadcast %c32_i32_350 : i32 to vector<16x128xi32>
    %511 = arith.cmpi slt, %9, %510 : vector<16x128xi32>
    %512 = arith.select %511, %509, %508 : vector<16x128xi1>, vector<16x128xf32>
    %513 = arith.truncf %512 : vector<16x128xf32> to vector<16x128xbf16>
    %c64_351 = arith.constant 64 : index
    %c768_352 = arith.constant 768 : index
    %514 = vector.load %arg10[%c64_351, %c768_352] : memref<128x896xbf16, #tpu.memory_space<vmem>>, vector<16x128xbf16>
    tpu.vector_store %arg10[%c64_351, %c768_352], %513 {strides = array<i32>} : memref<128x896xbf16, #tpu.memory_space<vmem>>, vector<16x128xbf16>,
    %c912_353 = arith.constant 912 : index
    %c0_354 = arith.constant 0 : index
    %515 = vector.load %arg9[%c912_353, %c0_354] : memref<2000x128xf32, #tpu.memory_space<vmem>>, vector<16x128xf32>
    %c864_355 = arith.constant 864 : index
    %c0_356 = arith.constant 0 : index
    %516 = vector.load %arg9[%c864_355, %c0_356] : memref<2000x128xf32, #tpu.memory_space<vmem>>, vector<16x128xf32>
    %c96_i32_357 = arith.constant 96 : i32
    %517 = vector.broadcast %c96_i32_357 : i32 to vector<16x128xi32>
    %518 = arith.cmpi slt, %9, %517 : vector<16x128xi32>
    %519 = arith.select %518, %516, %515 : vector<16x128xi1>, vector<16x128xf32>
    %c848_358 = arith.constant 848 : index
    %c0_359 = arith.constant 0 : index
    %520 = vector.load %arg9[%c848_358, %c0_359] : memref<2000x128xf32, #tpu.memory_space<vmem>>, vector<16x128xf32>
    %c64_i32_360 = arith.constant 64 : i32
    %521 = vector.broadcast %c64_i32_360 : i32 to vector<16x128xi32>
    %522 = arith.cmpi slt, %9, %521 : vector<16x128xi32>
    %523 = arith.select %522, %520, %519 : vector<16x128xi1>, vector<16x128xf32>
    %c832_361 = arith.constant 832 : index
    %c0_362 = arith.constant 0 : index
    %524 = vector.load %arg9[%c832_361, %c0_362] : memref<2000x128xf32, #tpu.memory_space<vmem>>, vector<16x128xf32>
    %c32_i32_363 = arith.constant 32 : i32
    %525 = vector.broadcast %c32_i32_363 : i32 to vector<16x128xi32>
    %526 = arith.cmpi slt, %9, %525 : vector<16x128xi32>
    %527 = arith.select %526, %524, %523 : vector<16x128xi1>, vector<16x128xf32>
    %528 = arith.truncf %527 : vector<16x128xf32> to vector<16x128xbf16>
    %c80_364 = arith.constant 80 : index
    %c0_365 = arith.constant 0 : index
    %529 = vector.load %arg10[%c80_364, %c0_365] : memref<128x896xbf16, #tpu.memory_space<vmem>>, vector<16x128xbf16>
    tpu.vector_store %arg10[%c80_364, %c0_365], %528 {strides = array<i32>} : memref<128x896xbf16, #tpu.memory_space<vmem>>, vector<16x128xbf16>,
    %c1008_366 = arith.constant 1008 : index
    %c0_367 = arith.constant 0 : index
    %530 = vector.load %arg9[%c1008_366, %c0_367] : memref<2000x128xf32, #tpu.memory_space<vmem>>, vector<16x128xf32>
    %c992_368 = arith.constant 992 : index
    %c0_369 = arith.constant 0 : index
    %531 = vector.load %arg9[%c992_368, %c0_369] : memref<2000x128xf32, #tpu.memory_space<vmem>>, vector<16x128xf32>
    %c96_i32_370 = arith.constant 96 : i32
    %532 = vector.broadcast %c96_i32_370 : i32 to vector<16x128xi32>
    %533 = arith.cmpi slt, %9, %532 : vector<16x128xi32>
    %534 = arith.select %533, %531, %530 : vector<16x128xi1>, vector<16x128xf32>
    %c944_371 = arith.constant 944 : index
    %c0_372 = arith.constant 0 : index
    %535 = vector.load %arg9[%c944_371, %c0_372] : memref<2000x128xf32, #tpu.memory_space<vmem>>, vector<16x128xf32>
    %c64_i32_373 = arith.constant 64 : i32
    %536 = vector.broadcast %c64_i32_373 : i32 to vector<16x128xi32>
    %537 = arith.cmpi slt, %9, %536 : vector<16x128xi32>
    %538 = arith.select %537, %535, %534 : vector<16x128xi1>, vector<16x128xf32>
    %c928_374 = arith.constant 928 : index
    %c0_375 = arith.constant 0 : index
    %539 = vector.load %arg9[%c928_374, %c0_375] : memref<2000x128xf32, #tpu.memory_space<vmem>>, vector<16x128xf32>
    %c32_i32_376 = arith.constant 32 : i32
    %540 = vector.broadcast %c32_i32_376 : i32 to vector<16x128xi32>
    %541 = arith.cmpi slt, %9, %540 : vector<16x128xi32>
    %542 = arith.select %541, %539, %538 : vector<16x128xi1>, vector<16x128xf32>
    %543 = arith.truncf %542 : vector<16x128xf32> to vector<16x128xbf16>
    %c80_377 = arith.constant 80 : index
    %c128_378 = arith.constant 128 : index
    %544 = vector.load %arg10[%c80_377, %c128_378] : memref<128x896xbf16, #tpu.memory_space<vmem>>, vector<16x128xbf16>
    tpu.vector_store %arg10[%c80_377, %c128_378], %543 {strides = array<i32>} : memref<128x896xbf16, #tpu.memory_space<vmem>>, vector<16x128xbf16>,
    %c1264 = arith.constant 1264 : index
    %c0_379 = arith.constant 0 : index
    %545 = vector.load %arg9[%c1264, %c0_379] : memref<2000x128xf32, #tpu.memory_space<vmem>>, vector<16x128xf32>
    %c1248 = arith.constant 1248 : index
    %c0_380 = arith.constant 0 : index
    %546 = vector.load %arg9[%c1248, %c0_380] : memref<2000x128xf32, #tpu.memory_space<vmem>>, vector<16x128xf32>
    %c96_i32_381 = arith.constant 96 : i32
    %547 = vector.broadcast %c96_i32_381 : i32 to vector<16x128xi32>
    %548 = arith.cmpi slt, %9, %547 : vector<16x128xi32>
    %549 = arith.select %548, %546, %545 : vector<16x128xi1>, vector<16x128xf32>
    %c1232_382 = arith.constant 1232 : index
    %c0_383 = arith.constant 0 : index
    %550 = vector.load %arg9[%c1232_382, %c0_383] : memref<2000x128xf32, #tpu.memory_space<vmem>>, vector<16x128xf32>
    %c64_i32_384 = arith.constant 64 : i32
    %551 = vector.broadcast %c64_i32_384 : i32 to vector<16x128xi32>
    %552 = arith.cmpi slt, %9, %551 : vector<16x128xi32>
    %553 = arith.select %552, %550, %549 : vector<16x128xi1>, vector<16x128xf32>
    %c1024_385 = arith.constant 1024 : index
    %c0_386 = arith.constant 0 : index
    %554 = vector.load %arg9[%c1024_385, %c0_386] : memref<2000x128xf32, #tpu.memory_space<vmem>>, vector<16x128xf32>
    %c32_i32_387 = arith.constant 32 : i32
    %555 = vector.broadcast %c32_i32_387 : i32 to vector<16x128xi32>
    %556 = arith.cmpi slt, %9, %555 : vector<16x128xi32>
    %557 = arith.select %556, %554, %553 : vector<16x128xi1>, vector<16x128xf32>
    %558 = arith.truncf %557 : vector<16x128xf32> to vector<16x128xbf16>
    %c80_388 = arith.constant 80 : index
    %c256_389 = arith.constant 256 : index
    %559 = vector.load %arg10[%c80_388, %c256_389] : memref<128x896xbf16, #tpu.memory_space<vmem>>, vector<16x128xbf16>
    tpu.vector_store %arg10[%c80_388, %c256_389], %558 {strides = array<i32>} : memref<128x896xbf16, #tpu.memory_space<vmem>>, vector<16x128xbf16>,
    %c1392_390 = arith.constant 1392 : index
    %c0_391 = arith.constant 0 : index
    %560 = vector.load %arg9[%c1392_390, %c0_391] : memref<2000x128xf32, #tpu.memory_space<vmem>>, vector<16x128xf32>
    %c1344 = arith.constant 1344 : index
    %c0_392 = arith.constant 0 : index
    %561 = vector.load %arg9[%c1344, %c0_392] : memref<2000x128xf32, #tpu.memory_space<vmem>>, vector<16x128xf32>
    %c96_i32_393 = arith.constant 96 : i32
    %562 = vector.broadcast %c96_i32_393 : i32 to vector<16x128xi32>
    %563 = arith.cmpi slt, %9, %562 : vector<16x128xi32>
    %564 = arith.select %563, %561, %560 : vector<16x128xi1>, vector<16x128xf32>
    %c1328 = arith.constant 1328 : index
    %c0_394 = arith.constant 0 : index
    %565 = vector.load %arg9[%c1328, %c0_394] : memref<2000x128xf32, #tpu.memory_space<vmem>>, vector<16x128xf32>
    %c64_i32_395 = arith.constant 64 : i32
    %566 = vector.broadcast %c64_i32_395 : i32 to vector<16x128xi32>
    %567 = arith.cmpi slt, %9, %566 : vector<16x128xi32>
    %568 = arith.select %567, %565, %564 : vector<16x128xi1>, vector<16x128xf32>
    %c1312_396 = arith.constant 1312 : index
    %c0_397 = arith.constant 0 : index
    %569 = vector.load %arg9[%c1312_396, %c0_397] : memref<2000x128xf32, #tpu.memory_space<vmem>>, vector<16x128xf32>
    %c32_i32_398 = arith.constant 32 : i32
    %570 = vector.broadcast %c32_i32_398 : i32 to vector<16x128xi32>
    %571 = arith.cmpi slt, %9, %570 : vector<16x128xi32>
    %572 = arith.select %571, %569, %568 : vector<16x128xi1>, vector<16x128xf32>
    %573 = arith.truncf %572 : vector<16x128xf32> to vector<16x128xbf16>
    %c80_399 = arith.constant 80 : index
    %c384_400 = arith.constant 384 : index
    %574 = vector.load %arg10[%c80_399, %c384_400] : memref<128x896xbf16, #tpu.memory_space<vmem>>, vector<16x128xbf16>
    tpu.vector_store %arg10[%c80_399, %c384_400], %573 {strides = array<i32>} : memref<128x896xbf16, #tpu.memory_space<vmem>>, vector<16x128xbf16>,
    %c1648 = arith.constant 1648 : index
    %c0_401 = arith.constant 0 : index
    %575 = vector.load %arg9[%c1648, %c0_401] : memref<2000x128xf32, #tpu.memory_space<vmem>>, vector<16x128xf32>
    %c1632_402 = arith.constant 1632 : index
    %c0_403 = arith.constant 0 : index
    %576 = vector.load %arg9[%c1632_402, %c0_403] : memref<2000x128xf32, #tpu.memory_space<vmem>>, vector<16x128xf32>
    %c96_i32_404 = arith.constant 96 : i32
    %577 = vector.broadcast %c96_i32_404 : i32 to vector<16x128xi32>
    %578 = arith.cmpi slt, %9, %577 : vector<16x128xi32>
    %579 = arith.select %578, %576, %575 : vector<16x128xi1>, vector<16x128xf32>
    %c1424 = arith.constant 1424 : index
    %c0_405 = arith.constant 0 : index
    %580 = vector.load %arg9[%c1424, %c0_405] : memref<2000x128xf32, #tpu.memory_space<vmem>>, vector<16x128xf32>
    %c64_i32_406 = arith.constant 64 : i32
    %581 = vector.broadcast %c64_i32_406 : i32 to vector<16x128xi32>
    %582 = arith.cmpi slt, %9, %581 : vector<16x128xi32>
    %583 = arith.select %582, %580, %579 : vector<16x128xi1>, vector<16x128xf32>
    %c1408 = arith.constant 1408 : index
    %c0_407 = arith.constant 0 : index
    %584 = vector.load %arg9[%c1408, %c0_407] : memref<2000x128xf32, #tpu.memory_space<vmem>>, vector<16x128xf32>
    %c32_i32_408 = arith.constant 32 : i32
    %585 = vector.broadcast %c32_i32_408 : i32 to vector<16x128xi32>
    %586 = arith.cmpi slt, %9, %585 : vector<16x128xi32>
    %587 = arith.select %586, %584, %583 : vector<16x128xi1>, vector<16x128xf32>
    %588 = arith.truncf %587 : vector<16x128xf32> to vector<16x128xbf16>
    %c80_409 = arith.constant 80 : index
    %c512_410 = arith.constant 512 : index
    %589 = vector.load %arg10[%c80_409, %c512_410] : memref<128x896xbf16, #tpu.memory_space<vmem>>, vector<16x128xbf16>
    tpu.vector_store %arg10[%c80_409, %c512_410], %588 {strides = array<i32>} : memref<128x896xbf16, #tpu.memory_space<vmem>>, vector<16x128xbf16>,
    %c1744 = arith.constant 1744 : index
    %c0_411 = arith.constant 0 : index
    %590 = vector.load %arg9[%c1744, %c0_411] : memref<2000x128xf32, #tpu.memory_space<vmem>>, vector<16x128xf32>
    %c1728 = arith.constant 1728 : index
    %c0_412 = arith.constant 0 : index
    %591 = vector.load %arg9[%c1728, %c0_412] : memref<2000x128xf32, #tpu.memory_space<vmem>>, vector<16x128xf32>
    %c96_i32_413 = arith.constant 96 : i32
    %592 = vector.broadcast %c96_i32_413 : i32 to vector<16x128xi32>
    %593 = arith.cmpi slt, %9, %592 : vector<16x128xi32>
    %594 = arith.select %593, %591, %590 : vector<16x128xi1>, vector<16x128xf32>
    %c1712_414 = arith.constant 1712 : index
    %c0_415 = arith.constant 0 : index
    %595 = vector.load %arg9[%c1712_414, %c0_415] : memref<2000x128xf32, #tpu.memory_space<vmem>>, vector<16x128xf32>
    %c64_i32_416 = arith.constant 64 : i32
    %596 = vector.broadcast %c64_i32_416 : i32 to vector<16x128xi32>
    %597 = arith.cmpi slt, %9, %596 : vector<16x128xi32>
    %598 = arith.select %597, %595, %594 : vector<16x128xi1>, vector<16x128xf32>
    %c1664 = arith.constant 1664 : index
    %c0_417 = arith.constant 0 : index
    %599 = vector.load %arg9[%c1664, %c0_417] : memref<2000x128xf32, #tpu.memory_space<vmem>>, vector<16x128xf32>
    %c32_i32_418 = arith.constant 32 : i32
    %600 = vector.broadcast %c32_i32_418 : i32 to vector<16x128xi32>
    %601 = arith.cmpi slt, %9, %600 : vector<16x128xi32>
    %602 = arith.select %601, %599, %598 : vector<16x128xi1>, vector<16x128xf32>
    %603 = arith.truncf %602 : vector<16x128xf32> to vector<16x128xbf16>
    %c80_419 = arith.constant 80 : index
    %c640_420 = arith.constant 640 : index
    %604 = vector.load %arg10[%c80_419, %c640_420] : memref<128x896xbf16, #tpu.memory_space<vmem>>, vector<16x128xbf16>
    tpu.vector_store %arg10[%c80_419, %c640_420], %603 {strides = array<i32>} : memref<128x896xbf16, #tpu.memory_space<vmem>>, vector<16x128xbf16>,
    %c1824 = arith.constant 1824 : index
    %c0_421 = arith.constant 0 : index
    %605 = vector.load %arg9[%c1824, %c0_421] : memref<2000x128xf32, #tpu.memory_space<vmem>>, vector<16x128xf32>
    %c1808 = arith.constant 1808 : index
    %c0_422 = arith.constant 0 : index
    %606 = vector.load %arg9[%c1808, %c0_422] : memref<2000x128xf32, #tpu.memory_space<vmem>>, vector<16x128xf32>
    %c64_i32_423 = arith.constant 64 : i32
    %607 = vector.broadcast %c64_i32_423 : i32 to vector<16x128xi32>
    %608 = arith.cmpi slt, %9, %607 : vector<16x128xi32>
    %609 = arith.select %608, %606, %605 : vector<16x128xi1>, vector<16x128xf32>
    %c1792_424 = arith.constant 1792 : index
    %c0_425 = arith.constant 0 : index
    %610 = vector.load %arg9[%c1792_424, %c0_425] : memref<2000x128xf32, #tpu.memory_space<vmem>>, vector<16x128xf32>
    %c32_i32_426 = arith.constant 32 : i32
    %611 = vector.broadcast %c32_i32_426 : i32 to vector<16x128xi32>
    %612 = arith.cmpi slt, %9, %611 : vector<16x128xi32>
    %613 = arith.select %612, %610, %609 : vector<16x128xi1>, vector<16x128xf32>
    %614 = arith.truncf %613 : vector<16x128xf32> to vector<16x128xbf16>
    %c80_427 = arith.constant 80 : index
    %c768_428 = arith.constant 768 : index
    %615 = vector.load %arg10[%c80_427, %c768_428] : memref<128x896xbf16, #tpu.memory_space<vmem>>, vector<16x128xbf16>
    tpu.vector_store %arg10[%c80_427, %c768_428], %614 {strides = array<i32>} : memref<128x896xbf16, #tpu.memory_space<vmem>>, vector<16x128xbf16>,
    %c1040_429 = arith.constant 1040 : index
    %c0_430 = arith.constant 0 : index
    %616 = vector.load %arg9[%c1040_429, %c0_430] : memref<2000x128xf32, #tpu.memory_space<vmem>>, vector<16x128xf32>
    %c992_431 = arith.constant 992 : index
    %c0_432 = arith.constant 0 : index
    %617 = vector.load %arg9[%c992_431, %c0_432] : memref<2000x128xf32, #tpu.memory_space<vmem>>, vector<16x128xf32>
    %c96_i32_433 = arith.constant 96 : i32
    %618 = vector.broadcast %c96_i32_433 : i32 to vector<16x128xi32>
    %619 = arith.cmpi slt, %9, %618 : vector<16x128xi32>
    %620 = arith.select %619, %617, %616 : vector<16x128xi1>, vector<16x128xf32>
    %c976_434 = arith.constant 976 : index
    %c0_435 = arith.constant 0 : index
    %621 = vector.load %arg9[%c976_434, %c0_435] : memref<2000x128xf32, #tpu.memory_space<vmem>>, vector<16x128xf32>
    %c64_i32_436 = arith.constant 64 : i32
    %622 = vector.broadcast %c64_i32_436 : i32 to vector<16x128xi32>
    %623 = arith.cmpi slt, %9, %622 : vector<16x128xi32>
    %624 = arith.select %623, %621, %620 : vector<16x128xi1>, vector<16x128xf32>
    %c960_437 = arith.constant 960 : index
    %c0_438 = arith.constant 0 : index
    %625 = vector.load %arg9[%c960_437, %c0_438] : memref<2000x128xf32, #tpu.memory_space<vmem>>, vector<16x128xf32>
    %c32_i32_439 = arith.constant 32 : i32
    %626 = vector.broadcast %c32_i32_439 : i32 to vector<16x128xi32>
    %627 = arith.cmpi slt, %9, %626 : vector<16x128xi32>
    %628 = arith.select %627, %625, %624 : vector<16x128xi1>, vector<16x128xf32>
    %629 = arith.truncf %628 : vector<16x128xf32> to vector<16x128xbf16>
    %c96_440 = arith.constant 96 : index
    %c0_441 = arith.constant 0 : index
    %630 = vector.load %arg10[%c96_440, %c0_441] : memref<128x896xbf16, #tpu.memory_space<vmem>>, vector<16x128xbf16>
    tpu.vector_store %arg10[%c96_440, %c0_441], %629 {strides = array<i32>} : memref<128x896xbf16, #tpu.memory_space<vmem>>, vector<16x128xbf16>,
    %c1136_442 = arith.constant 1136 : index
    %c0_443 = arith.constant 0 : index
    %631 = vector.load %arg9[%c1136_442, %c0_443] : memref<2000x128xf32, #tpu.memory_space<vmem>>, vector<16x128xf32>
    %c1120_444 = arith.constant 1120 : index
    %c0_445 = arith.constant 0 : index
    %632 = vector.load %arg9[%c1120_444, %c0_445] : memref<2000x128xf32, #tpu.memory_space<vmem>>, vector<16x128xf32>
    %c96_i32_446 = arith.constant 96 : i32
    %633 = vector.broadcast %c96_i32_446 : i32 to vector<16x128xi32>
    %634 = arith.cmpi slt, %9, %633 : vector<16x128xi32>
    %635 = arith.select %634, %632, %631 : vector<16x128xi1>, vector<16x128xf32>
    %c1072_447 = arith.constant 1072 : index
    %c0_448 = arith.constant 0 : index
    %636 = vector.load %arg9[%c1072_447, %c0_448] : memref<2000x128xf32, #tpu.memory_space<vmem>>, vector<16x128xf32>
    %c64_i32_449 = arith.constant 64 : i32
    %637 = vector.broadcast %c64_i32_449 : i32 to vector<16x128xi32>
    %638 = arith.cmpi slt, %9, %637 : vector<16x128xi32>
    %639 = arith.select %638, %636, %635 : vector<16x128xi1>, vector<16x128xf32>
    %c1056_450 = arith.constant 1056 : index
    %c0_451 = arith.constant 0 : index
    %640 = vector.load %arg9[%c1056_450, %c0_451] : memref<2000x128xf32, #tpu.memory_space<vmem>>, vector<16x128xf32>
    %c32_i32_452 = arith.constant 32 : i32
    %641 = vector.broadcast %c32_i32_452 : i32 to vector<16x128xi32>
    %642 = arith.cmpi slt, %9, %641 : vector<16x128xi32>
    %643 = arith.select %642, %640, %639 : vector<16x128xi1>, vector<16x128xf32>
    %644 = arith.truncf %643 : vector<16x128xf32> to vector<16x128xbf16>
    %c96_453 = arith.constant 96 : index
    %c128_454 = arith.constant 128 : index
    %645 = vector.load %arg10[%c96_453, %c128_454] : memref<128x896xbf16, #tpu.memory_space<vmem>>, vector<16x128xbf16>
    tpu.vector_store %arg10[%c96_453, %c128_454], %644 {strides = array<i32>} : memref<128x896xbf16, #tpu.memory_space<vmem>>, vector<16x128xbf16>,
    %c1392_455 = arith.constant 1392 : index
    %c0_456 = arith.constant 0 : index
    %646 = vector.load %arg9[%c1392_455, %c0_456] : memref<2000x128xf32, #tpu.memory_space<vmem>>, vector<16x128xf32>
    %c1376_457 = arith.constant 1376 : index
    %c0_458 = arith.constant 0 : index
    %647 = vector.load %arg9[%c1376_457, %c0_458] : memref<2000x128xf32, #tpu.memory_space<vmem>>, vector<16x128xf32>
    %c96_i32_459 = arith.constant 96 : i32
    %648 = vector.broadcast %c96_i32_459 : i32 to vector<16x128xi32>
    %649 = arith.cmpi slt, %9, %648 : vector<16x128xi32>
    %650 = arith.select %649, %647, %646 : vector<16x128xi1>, vector<16x128xf32>
    %c1360_460 = arith.constant 1360 : index
    %c0_461 = arith.constant 0 : index
    %651 = vector.load %arg9[%c1360_460, %c0_461] : memref<2000x128xf32, #tpu.memory_space<vmem>>, vector<16x128xf32>
    %c64_i32_462 = arith.constant 64 : i32
    %652 = vector.broadcast %c64_i32_462 : i32 to vector<16x128xi32>
    %653 = arith.cmpi slt, %9, %652 : vector<16x128xi32>
    %654 = arith.select %653, %651, %650 : vector<16x128xi1>, vector<16x128xf32>
    %c1152_463 = arith.constant 1152 : index
    %c0_464 = arith.constant 0 : index
    %655 = vector.load %arg9[%c1152_463, %c0_464] : memref<2000x128xf32, #tpu.memory_space<vmem>>, vector<16x128xf32>
    %c32_i32_465 = arith.constant 32 : i32
    %656 = vector.broadcast %c32_i32_465 : i32 to vector<16x128xi32>
    %657 = arith.cmpi slt, %9, %656 : vector<16x128xi32>
    %658 = arith.select %657, %655, %654 : vector<16x128xi1>, vector<16x128xf32>
    %659 = arith.truncf %658 : vector<16x128xf32> to vector<16x128xbf16>
    %c96_466 = arith.constant 96 : index
    %c256_467 = arith.constant 256 : index
    %660 = vector.load %arg10[%c96_466, %c256_467] : memref<128x896xbf16, #tpu.memory_space<vmem>>, vector<16x128xbf16>
    tpu.vector_store %arg10[%c96_466, %c256_467], %659 {strides = array<i32>} : memref<128x896xbf16, #tpu.memory_space<vmem>>, vector<16x128xbf16>,
    %c1520 = arith.constant 1520 : index
    %c0_468 = arith.constant 0 : index
    %661 = vector.load %arg9[%c1520, %c0_468] : memref<2000x128xf32, #tpu.memory_space<vmem>>, vector<16x128xf32>
    %c1472 = arith.constant 1472 : index
    %c0_469 = arith.constant 0 : index
    %662 = vector.load %arg9[%c1472, %c0_469] : memref<2000x128xf32, #tpu.memory_space<vmem>>, vector<16x128xf32>
    %c96_i32_470 = arith.constant 96 : i32
    %663 = vector.broadcast %c96_i32_470 : i32 to vector<16x128xi32>
    %664 = arith.cmpi slt, %9, %663 : vector<16x128xi32>
    %665 = arith.select %664, %662, %661 : vector<16x128xi1>, vector<16x128xf32>
    %c1456 = arith.constant 1456 : index
    %c0_471 = arith.constant 0 : index
    %666 = vector.load %arg9[%c1456, %c0_471] : memref<2000x128xf32, #tpu.memory_space<vmem>>, vector<16x128xf32>
    %c64_i32_472 = arith.constant 64 : i32
    %667 = vector.broadcast %c64_i32_472 : i32 to vector<16x128xi32>
    %668 = arith.cmpi slt, %9, %667 : vector<16x128xi32>
    %669 = arith.select %668, %666, %665 : vector<16x128xi1>, vector<16x128xf32>
    %c1440 = arith.constant 1440 : index
    %c0_473 = arith.constant 0 : index
    %670 = vector.load %arg9[%c1440, %c0_473] : memref<2000x128xf32, #tpu.memory_space<vmem>>, vector<16x128xf32>
    %c32_i32_474 = arith.constant 32 : i32
    %671 = vector.broadcast %c32_i32_474 : i32 to vector<16x128xi32>
    %672 = arith.cmpi slt, %9, %671 : vector<16x128xi32>
    %673 = arith.select %672, %670, %669 : vector<16x128xi1>, vector<16x128xf32>
    %674 = arith.truncf %673 : vector<16x128xf32> to vector<16x128xbf16>
    %c96_475 = arith.constant 96 : index
    %c384_476 = arith.constant 384 : index
    %675 = vector.load %arg10[%c96_475, %c384_476] : memref<128x896xbf16, #tpu.memory_space<vmem>>, vector<16x128xbf16>
    tpu.vector_store %arg10[%c96_475, %c384_476], %674 {strides = array<i32>} : memref<128x896xbf16, #tpu.memory_space<vmem>>, vector<16x128xbf16>,
    %c1776_477 = arith.constant 1776 : index
    %c0_478 = arith.constant 0 : index
    %676 = vector.load %arg9[%c1776_477, %c0_478] : memref<2000x128xf32, #tpu.memory_space<vmem>>, vector<16x128xf32>
    %c1760_479 = arith.constant 1760 : index
    %c0_480 = arith.constant 0 : index
    %677 = vector.load %arg9[%c1760_479, %c0_480] : memref<2000x128xf32, #tpu.memory_space<vmem>>, vector<16x128xf32>
    %c96_i32_481 = arith.constant 96 : i32
    %678 = vector.broadcast %c96_i32_481 : i32 to vector<16x128xi32>
    %679 = arith.cmpi slt, %9, %678 : vector<16x128xi32>
    %680 = arith.select %679, %677, %676 : vector<16x128xi1>, vector<16x128xf32>
    %c1552 = arith.constant 1552 : index
    %c0_482 = arith.constant 0 : index
    %681 = vector.load %arg9[%c1552, %c0_482] : memref<2000x128xf32, #tpu.memory_space<vmem>>, vector<16x128xf32>
    %c64_i32_483 = arith.constant 64 : i32
    %682 = vector.broadcast %c64_i32_483 : i32 to vector<16x128xi32>
    %683 = arith.cmpi slt, %9, %682 : vector<16x128xi32>
    %684 = arith.select %683, %681, %680 : vector<16x128xi1>, vector<16x128xf32>
    %c1536 = arith.constant 1536 : index
    %c0_484 = arith.constant 0 : index
    %685 = vector.load %arg9[%c1536, %c0_484] : memref<2000x128xf32, #tpu.memory_space<vmem>>, vector<16x128xf32>
    %c32_i32_485 = arith.constant 32 : i32
    %686 = vector.broadcast %c32_i32_485 : i32 to vector<16x128xi32>
    %687 = arith.cmpi slt, %9, %686 : vector<16x128xi32>
    %688 = arith.select %687, %685, %684 : vector<16x128xi1>, vector<16x128xf32>
    %689 = arith.truncf %688 : vector<16x128xf32> to vector<16x128xbf16>
    %c96_486 = arith.constant 96 : index
    %c512_487 = arith.constant 512 : index
    %690 = vector.load %arg10[%c96_486, %c512_487] : memref<128x896xbf16, #tpu.memory_space<vmem>>, vector<16x128xbf16>
    tpu.vector_store %arg10[%c96_486, %c512_487], %689 {strides = array<i32>} : memref<128x896xbf16, #tpu.memory_space<vmem>>, vector<16x128xbf16>,
    %c1872 = arith.constant 1872 : index
    %c0_488 = arith.constant 0 : index
    %691 = vector.load %arg9[%c1872, %c0_488] : memref<2000x128xf32, #tpu.memory_space<vmem>>, vector<16x128xf32>
    %c1856 = arith.constant 1856 : index
    %c0_489 = arith.constant 0 : index
    %692 = vector.load %arg9[%c1856, %c0_489] : memref<2000x128xf32, #tpu.memory_space<vmem>>, vector<16x128xf32>
    %c96_i32_490 = arith.constant 96 : i32
    %693 = vector.broadcast %c96_i32_490 : i32 to vector<16x128xi32>
    %694 = arith.cmpi slt, %9, %693 : vector<16x128xi32>
    %695 = arith.select %694, %692, %691 : vector<16x128xi1>, vector<16x128xf32>
    %c1840 = arith.constant 1840 : index
    %c0_491 = arith.constant 0 : index
    %696 = vector.load %arg9[%c1840, %c0_491] : memref<2000x128xf32, #tpu.memory_space<vmem>>, vector<16x128xf32>
    %c64_i32_492 = arith.constant 64 : i32
    %697 = vector.broadcast %c64_i32_492 : i32 to vector<16x128xi32>
    %698 = arith.cmpi slt, %9, %697 : vector<16x128xi32>
    %699 = arith.select %698, %696, %695 : vector<16x128xi1>, vector<16x128xf32>
    %c1792_493 = arith.constant 1792 : index
    %c0_494 = arith.constant 0 : index
    %700 = vector.load %arg9[%c1792_493, %c0_494] : memref<2000x128xf32, #tpu.memory_space<vmem>>, vector<16x128xf32>
    %c32_i32_495 = arith.constant 32 : i32
    %701 = vector.broadcast %c32_i32_495 : i32 to vector<16x128xi32>
    %702 = arith.cmpi slt, %9, %701 : vector<16x128xi32>
    %703 = arith.select %702, %700, %699 : vector<16x128xi1>, vector<16x128xf32>
    %704 = arith.truncf %703 : vector<16x128xf32> to vector<16x128xbf16>
    %c96_496 = arith.constant 96 : index
    %c640_497 = arith.constant 640 : index
    %705 = vector.load %arg10[%c96_496, %c640_497] : memref<128x896xbf16, #tpu.memory_space<vmem>>, vector<16x128xbf16>
    tpu.vector_store %arg10[%c96_496, %c640_497], %704 {strides = array<i32>} : memref<128x896xbf16, #tpu.memory_space<vmem>>, vector<16x128xbf16>,
    %c1952 = arith.constant 1952 : index
    %c0_498 = arith.constant 0 : index
    %706 = vector.load %arg9[%c1952, %c0_498] : memref<2000x128xf32, #tpu.memory_space<vmem>>, vector<16x128xf32>
    %c1936 = arith.constant 1936 : index
    %c0_499 = arith.constant 0 : index
    %707 = vector.load %arg9[%c1936, %c0_499] : memref<2000x128xf32, #tpu.memory_space<vmem>>, vector<16x128xf32>
    %c64_i32_500 = arith.constant 64 : i32
    %708 = vector.broadcast %c64_i32_500 : i32 to vector<16x128xi32>
    %709 = arith.cmpi slt, %9, %708 : vector<16x128xi32>
    %710 = arith.select %709, %707, %706 : vector<16x128xi1>, vector<16x128xf32>
    %c1920 = arith.constant 1920 : index
    %c0_501 = arith.constant 0 : index
    %711 = vector.load %arg9[%c1920, %c0_501] : memref<2000x128xf32, #tpu.memory_space<vmem>>, vector<16x128xf32>
    %c32_i32_502 = arith.constant 32 : i32
    %712 = vector.broadcast %c32_i32_502 : i32 to vector<16x128xi32>
    %713 = arith.cmpi slt, %9, %712 : vector<16x128xi32>
    %714 = arith.select %713, %711, %710 : vector<16x128xi1>, vector<16x128xf32>
    %715 = arith.truncf %714 : vector<16x128xf32> to vector<16x128xbf16>
    %c96_503 = arith.constant 96 : index
    %c768_504 = arith.constant 768 : index
    %716 = vector.load %arg10[%c96_503, %c768_504] : memref<128x896xbf16, #tpu.memory_space<vmem>>, vector<16x128xbf16>
    tpu.vector_store %arg10[%c96_503, %c768_504], %715 {strides = array<i32>} : memref<128x896xbf16, #tpu.memory_space<vmem>>, vector<16x128xbf16>,
    %c1072_505 = arith.constant 1072 : index
    %c0_506 = arith.constant 0 : index
    %717 = vector.load %arg9[%c1072_505, %c0_506] : memref<2000x128xf32, #tpu.memory_space<vmem>>, vector<16x128xf32>
    %c1024_507 = arith.constant 1024 : index
    %c0_508 = arith.constant 0 : index
    %718 = vector.load %arg9[%c1024_507, %c0_508] : memref<2000x128xf32, #tpu.memory_space<vmem>>, vector<16x128xf32>
    %c96_i32_509 = arith.constant 96 : i32
    %719 = vector.broadcast %c96_i32_509 : i32 to vector<16x128xi32>
    %720 = arith.cmpi slt, %9, %719 : vector<16x128xi32>
    %721 = arith.select %720, %718, %717 : vector<16x128xi1>, vector<16x128xf32>
    %c1008_510 = arith.constant 1008 : index
    %c0_511 = arith.constant 0 : index
    %722 = vector.load %arg9[%c1008_510, %c0_511] : memref<2000x128xf32, #tpu.memory_space<vmem>>, vector<16x128xf32>
    %c64_i32_512 = arith.constant 64 : i32
    %723 = vector.broadcast %c64_i32_512 : i32 to vector<16x128xi32>
    %724 = arith.cmpi slt, %9, %723 : vector<16x128xi32>
    %725 = arith.select %724, %722, %721 : vector<16x128xi1>, vector<16x128xf32>
    %c992_513 = arith.constant 992 : index
    %c0_514 = arith.constant 0 : index
    %726 = vector.load %arg9[%c992_513, %c0_514] : memref<2000x128xf32, #tpu.memory_space<vmem>>, vector<16x128xf32>
    %c32_i32_515 = arith.constant 32 : i32
    %727 = vector.broadcast %c32_i32_515 : i32 to vector<16x128xi32>
    %728 = arith.cmpi slt, %9, %727 : vector<16x128xi32>
    %729 = arith.select %728, %726, %725 : vector<16x128xi1>, vector<16x128xf32>
    %730 = arith.truncf %729 : vector<16x128xf32> to vector<16x128xbf16>
    %c112_516 = arith.constant 112 : index
    %c0_517 = arith.constant 0 : index
    %731 = vector.load %arg10[%c112_516, %c0_517] : memref<128x896xbf16, #tpu.memory_space<vmem>>, vector<16x128xbf16>
    tpu.vector_store %arg10[%c112_516, %c0_517], %730 {strides = array<i32>} : memref<128x896xbf16, #tpu.memory_space<vmem>>, vector<16x128xbf16>,
    %c1168_518 = arith.constant 1168 : index
    %c0_519 = arith.constant 0 : index
    %732 = vector.load %arg9[%c1168_518, %c0_519] : memref<2000x128xf32, #tpu.memory_space<vmem>>, vector<16x128xf32>
    %c1152_520 = arith.constant 1152 : index
    %c0_521 = arith.constant 0 : index
    %733 = vector.load %arg9[%c1152_520, %c0_521] : memref<2000x128xf32, #tpu.memory_space<vmem>>, vector<16x128xf32>
    %c96_i32_522 = arith.constant 96 : i32
    %734 = vector.broadcast %c96_i32_522 : i32 to vector<16x128xi32>
    %735 = arith.cmpi slt, %9, %734 : vector<16x128xi32>
    %736 = arith.select %735, %733, %732 : vector<16x128xi1>, vector<16x128xf32>
    %c1104_523 = arith.constant 1104 : index
    %c0_524 = arith.constant 0 : index
    %737 = vector.load %arg9[%c1104_523, %c0_524] : memref<2000x128xf32, #tpu.memory_space<vmem>>, vector<16x128xf32>
    %c64_i32_525 = arith.constant 64 : i32
    %738 = vector.broadcast %c64_i32_525 : i32 to vector<16x128xi32>
    %739 = arith.cmpi slt, %9, %738 : vector<16x128xi32>
    %740 = arith.select %739, %737, %736 : vector<16x128xi1>, vector<16x128xf32>
    %c1088_526 = arith.constant 1088 : index
    %c0_527 = arith.constant 0 : index
    %741 = vector.load %arg9[%c1088_526, %c0_527] : memref<2000x128xf32, #tpu.memory_space<vmem>>, vector<16x128xf32>
    %c32_i32_528 = arith.constant 32 : i32
    %742 = vector.broadcast %c32_i32_528 : i32 to vector<16x128xi32>
    %743 = arith.cmpi slt, %9, %742 : vector<16x128xi32>
    %744 = arith.select %743, %741, %740 : vector<16x128xi1>, vector<16x128xf32>
    %745 = arith.truncf %744 : vector<16x128xf32> to vector<16x128xbf16>
    %c112_529 = arith.constant 112 : index
    %c128_530 = arith.constant 128 : index
    %746 = vector.load %arg10[%c112_529, %c128_530] : memref<128x896xbf16, #tpu.memory_space<vmem>>, vector<16x128xbf16>
    tpu.vector_store %arg10[%c112_529, %c128_530], %745 {strides = array<i32>} : memref<128x896xbf16, #tpu.memory_space<vmem>>, vector<16x128xbf16>,
    %c1424_531 = arith.constant 1424 : index
    %c0_532 = arith.constant 0 : index
    %747 = vector.load %arg9[%c1424_531, %c0_532] : memref<2000x128xf32, #tpu.memory_space<vmem>>, vector<16x128xf32>
    %c1408_533 = arith.constant 1408 : index
    %c0_534 = arith.constant 0 : index
    %748 = vector.load %arg9[%c1408_533, %c0_534] : memref<2000x128xf32, #tpu.memory_space<vmem>>, vector<16x128xf32>
    %c96_i32_535 = arith.constant 96 : i32
    %749 = vector.broadcast %c96_i32_535 : i32 to vector<16x128xi32>
    %750 = arith.cmpi slt, %9, %749 : vector<16x128xi32>
    %751 = arith.select %750, %748, %747 : vector<16x128xi1>, vector<16x128xf32>
    %c1392_536 = arith.constant 1392 : index
    %c0_537 = arith.constant 0 : index
    %752 = vector.load %arg9[%c1392_536, %c0_537] : memref<2000x128xf32, #tpu.memory_space<vmem>>, vector<16x128xf32>
    %c64_i32_538 = arith.constant 64 : i32
    %753 = vector.broadcast %c64_i32_538 : i32 to vector<16x128xi32>
    %754 = arith.cmpi slt, %9, %753 : vector<16x128xi32>
    %755 = arith.select %754, %752, %751 : vector<16x128xi1>, vector<16x128xf32>
    %c1184_539 = arith.constant 1184 : index
    %c0_540 = arith.constant 0 : index
    %756 = vector.load %arg9[%c1184_539, %c0_540] : memref<2000x128xf32, #tpu.memory_space<vmem>>, vector<16x128xf32>
    %c32_i32_541 = arith.constant 32 : i32
    %757 = vector.broadcast %c32_i32_541 : i32 to vector<16x128xi32>
    %758 = arith.cmpi slt, %9, %757 : vector<16x128xi32>
    %759 = arith.select %758, %756, %755 : vector<16x128xi1>, vector<16x128xf32>
    %760 = arith.truncf %759 : vector<16x128xf32> to vector<16x128xbf16>
    %c112_542 = arith.constant 112 : index
    %c256_543 = arith.constant 256 : index
    %761 = vector.load %arg10[%c112_542, %c256_543] : memref<128x896xbf16, #tpu.memory_space<vmem>>, vector<16x128xbf16>
    tpu.vector_store %arg10[%c112_542, %c256_543], %760 {strides = array<i32>} : memref<128x896xbf16, #tpu.memory_space<vmem>>, vector<16x128xbf16>,
    %c1552_544 = arith.constant 1552 : index
    %c0_545 = arith.constant 0 : index
    %762 = vector.load %arg9[%c1552_544, %c0_545] : memref<2000x128xf32, #tpu.memory_space<vmem>>, vector<16x128xf32>
    %c1504 = arith.constant 1504 : index
    %c0_546 = arith.constant 0 : index
    %763 = vector.load %arg9[%c1504, %c0_546] : memref<2000x128xf32, #tpu.memory_space<vmem>>, vector<16x128xf32>
    %c96_i32_547 = arith.constant 96 : i32
    %764 = vector.broadcast %c96_i32_547 : i32 to vector<16x128xi32>
    %765 = arith.cmpi slt, %9, %764 : vector<16x128xi32>
    %766 = arith.select %765, %763, %762 : vector<16x128xi1>, vector<16x128xf32>
    %c1488 = arith.constant 1488 : index
    %c0_548 = arith.constant 0 : index
    %767 = vector.load %arg9[%c1488, %c0_548] : memref<2000x128xf32, #tpu.memory_space<vmem>>, vector<16x128xf32>
    %c64_i32_549 = arith.constant 64 : i32
    %768 = vector.broadcast %c64_i32_549 : i32 to vector<16x128xi32>
    %769 = arith.cmpi slt, %9, %768 : vector<16x128xi32>
    %770 = arith.select %769, %767, %766 : vector<16x128xi1>, vector<16x128xf32>
    %c1472_550 = arith.constant 1472 : index
    %c0_551 = arith.constant 0 : index
    %771 = vector.load %arg9[%c1472_550, %c0_551] : memref<2000x128xf32, #tpu.memory_space<vmem>>, vector<16x128xf32>
    %c32_i32_552 = arith.constant 32 : i32
    %772 = vector.broadcast %c32_i32_552 : i32 to vector<16x128xi32>
    %773 = arith.cmpi slt, %9, %772 : vector<16x128xi32>
    %774 = arith.select %773, %771, %770 : vector<16x128xi1>, vector<16x128xf32>
    %775 = arith.truncf %774 : vector<16x128xf32> to vector<16x128xbf16>
    %c112_553 = arith.constant 112 : index
    %c384_554 = arith.constant 384 : index
    %776 = vector.load %arg10[%c112_553, %c384_554] : memref<128x896xbf16, #tpu.memory_space<vmem>>, vector<16x128xbf16>
    tpu.vector_store %arg10[%c112_553, %c384_554], %775 {strides = array<i32>} : memref<128x896xbf16, #tpu.memory_space<vmem>>, vector<16x128xbf16>,
    %c1808_555 = arith.constant 1808 : index
    %c0_556 = arith.constant 0 : index
    %777 = vector.load %arg9[%c1808_555, %c0_556] : memref<2000x128xf32, #tpu.memory_space<vmem>>, vector<16x128xf32>
    %c1792_557 = arith.constant 1792 : index
    %c0_558 = arith.constant 0 : index
    %778 = vector.load %arg9[%c1792_557, %c0_558] : memref<2000x128xf32, #tpu.memory_space<vmem>>, vector<16x128xf32>
    %c96_i32_559 = arith.constant 96 : i32
    %779 = vector.broadcast %c96_i32_559 : i32 to vector<16x128xi32>
    %780 = arith.cmpi slt, %9, %779 : vector<16x128xi32>
    %781 = arith.select %780, %778, %777 : vector<16x128xi1>, vector<16x128xf32>
    %c1584 = arith.constant 1584 : index
    %c0_560 = arith.constant 0 : index
    %782 = vector.load %arg9[%c1584, %c0_560] : memref<2000x128xf32, #tpu.memory_space<vmem>>, vector<16x128xf32>
    %c64_i32_561 = arith.constant 64 : i32
    %783 = vector.broadcast %c64_i32_561 : i32 to vector<16x128xi32>
    %784 = arith.cmpi slt, %9, %783 : vector<16x128xi32>
    %785 = arith.select %784, %782, %781 : vector<16x128xi1>, vector<16x128xf32>
    %c1568 = arith.constant 1568 : index
    %c0_562 = arith.constant 0 : index
    %786 = vector.load %arg9[%c1568, %c0_562] : memref<2000x128xf32, #tpu.memory_space<vmem>>, vector<16x128xf32>
    %c32_i32_563 = arith.constant 32 : i32
    %787 = vector.broadcast %c32_i32_563 : i32 to vector<16x128xi32>
    %788 = arith.cmpi slt, %9, %787 : vector<16x128xi32>
    %789 = arith.select %788, %786, %785 : vector<16x128xi1>, vector<16x128xf32>
    %790 = arith.truncf %789 : vector<16x128xf32> to vector<16x128xbf16>
    %c112_564 = arith.constant 112 : index
    %c512_565 = arith.constant 512 : index
    %791 = vector.load %arg10[%c112_564, %c512_565] : memref<128x896xbf16, #tpu.memory_space<vmem>>, vector<16x128xbf16>
    tpu.vector_store %arg10[%c112_564, %c512_565], %790 {strides = array<i32>} : memref<128x896xbf16, #tpu.memory_space<vmem>>, vector<16x128xbf16>,
    %c1904 = arith.constant 1904 : index
    %c0_566 = arith.constant 0 : index
    %792 = vector.load %arg9[%c1904, %c0_566] : memref<2000x128xf32, #tpu.memory_space<vmem>>, vector<16x128xf32>
    %c1888 = arith.constant 1888 : index
    %c0_567 = arith.constant 0 : index
    %793 = vector.load %arg9[%c1888, %c0_567] : memref<2000x128xf32, #tpu.memory_space<vmem>>, vector<16x128xf32>
    %c96_i32_568 = arith.constant 96 : i32
    %794 = vector.broadcast %c96_i32_568 : i32 to vector<16x128xi32>
    %795 = arith.cmpi slt, %9, %794 : vector<16x128xi32>
    %796 = arith.select %795, %793, %792 : vector<16x128xi1>, vector<16x128xf32>
    %c1872_569 = arith.constant 1872 : index
    %c0_570 = arith.constant 0 : index
    %797 = vector.load %arg9[%c1872_569, %c0_570] : memref<2000x128xf32, #tpu.memory_space<vmem>>, vector<16x128xf32>
    %c64_i32_571 = arith.constant 64 : i32
    %798 = vector.broadcast %c64_i32_571 : i32 to vector<16x128xi32>
    %799 = arith.cmpi slt, %9, %798 : vector<16x128xi32>
    %800 = arith.select %799, %797, %796 : vector<16x128xi1>, vector<16x128xf32>
    %c1824_572 = arith.constant 1824 : index
    %c0_573 = arith.constant 0 : index
    %801 = vector.load %arg9[%c1824_572, %c0_573] : memref<2000x128xf32, #tpu.memory_space<vmem>>, vector<16x128xf32>
    %c32_i32_574 = arith.constant 32 : i32
    %802 = vector.broadcast %c32_i32_574 : i32 to vector<16x128xi32>
    %803 = arith.cmpi slt, %9, %802 : vector<16x128xi32>
    %804 = arith.select %803, %801, %800 : vector<16x128xi1>, vector<16x128xf32>
    %805 = arith.truncf %804 : vector<16x128xf32> to vector<16x128xbf16>
    %c112_575 = arith.constant 112 : index
    %c640_576 = arith.constant 640 : index
    %806 = vector.load %arg10[%c112_575, %c640_576] : memref<128x896xbf16, #tpu.memory_space<vmem>>, vector<16x128xbf16>
    tpu.vector_store %arg10[%c112_575, %c640_576], %805 {strides = array<i32>} : memref<128x896xbf16, #tpu.memory_space<vmem>>, vector<16x128xbf16>,
    %c1984 = arith.constant 1984 : index
    %c0_577 = arith.constant 0 : index
    %807 = vector.load %arg9[%c1984, %c0_577] : memref<2000x128xf32, #tpu.memory_space<vmem>>, vector<16x128xf32>
    %c1968 = arith.constant 1968 : index
    %c0_578 = arith.constant 0 : index
    %808 = vector.load %arg9[%c1968, %c0_578] : memref<2000x128xf32, #tpu.memory_space<vmem>>, vector<16x128xf32>
    %c64_i32_579 = arith.constant 64 : i32
    %809 = vector.broadcast %c64_i32_579 : i32 to vector<16x128xi32>
    %810 = arith.cmpi slt, %9, %809 : vector<16x128xi32>
    %811 = arith.select %810, %808, %807 : vector<16x128xi1>, vector<16x128xf32>
    %c1952_580 = arith.constant 1952 : index
    %c0_581 = arith.constant 0 : index
    %812 = vector.load %arg9[%c1952_580, %c0_581] : memref<2000x128xf32, #tpu.memory_space<vmem>>, vector<16x128xf32>
    %c32_i32_582 = arith.constant 32 : i32
    %813 = vector.broadcast %c32_i32_582 : i32 to vector<16x128xi32>
    %814 = arith.cmpi slt, %9, %813 : vector<16x128xi32>
    %815 = arith.select %814, %812, %811 : vector<16x128xi1>, vector<16x128xf32>
    %816 = arith.truncf %815 : vector<16x128xf32> to vector<16x128xbf16>
    %c112_583 = arith.constant 112 : index
    %c768_584 = arith.constant 768 : index
    %817 = vector.load %arg10[%c112_583, %c768_584] : memref<128x896xbf16, #tpu.memory_space<vmem>>, vector<16x128xbf16>
    tpu.vector_store %arg10[%c112_583, %c768_584], %816 {strides = array<i32>} : memref<128x896xbf16, #tpu.memory_space<vmem>>, vector<16x128xbf16>,
    %c0_585 = arith.constant 0 : index
    %c0_586 = arith.constant 0 : index
    %818 = vector.load %arg10[%c0_585, %c0_586] : memref<128x896xbf16, #tpu.memory_space<vmem>>, vector<128x896xbf16>
    %c0_587 = arith.constant 0 : index
    %c0_588 = arith.constant 0 : index
    %819 = vector.load %arg3[%c0_587, %c0_588] : memref<896x128xbf16, #tpu.memory_space<vmem>>, vector<896x128xbf16>
    %cst_589 = arith.constant dense<0.000000e+00> : vector<128x128xf32>
    %820 = tpu.matmul %818, %819, %cst_589 {dimension_numbers = #tpu.dot_dimension_numbers<[1], [0], [0], [1], [0, 0, 1, 1], [], []>} : vector<128x896xbf16>, vector<896x128xbf16>, vector<128x128xf32> -> vector<128x128xf32>
    %c1 = arith.constant 1 : index
    %c0_590 = arith.constant 0 : index
    %821 = vector.load %arg7[%c1, %c0_590] : memref<8x128xf32, #tpu.memory_space<vmem>>, vector<1x128xf32>
    %822 = vector.broadcast %821 : vector<1x128xf32> to vector<128x128xf32>
    %823 = arith.addf %820, %822 : vector<128x128xf32>
    %cst_591 = arith.constant 0.000000e+00 : f32
    %824 = vector.broadcast %cst_591 : f32 to vector<128x128xf32>
    %825 = arith.maximumf %823, %824 : vector<128x128xf32>
    %826 = arith.truncf %825 : vector<128x128xf32> to vector<128x128xbf16>
    %cst_592 = arith.constant 0.000000e+00 : f32
    %827 = vector.broadcast %cst_592 : f32 to vector<16x128xf32>
    %828 = vector.extract_strided_slice %826 {offsets = [0, 0], sizes = [16, 48], strides = [1, 1]} : vector<128x128xbf16> to vector<16x48xbf16>
    %c0_593 = arith.constant 0 : index
    %c0_594 = arith.constant 0 : index
    %829 = vector.load %arg4[%c0_593, %c0_594] : memref<384x128xbf16, #tpu.memory_space<vmem>>, vector<48x128xbf16>
    %cst_595 = arith.constant dense<0.000000e+00> : vector<16x128xf32>
    %830 = tpu.matmul %828, %829, %cst_595 {dimension_numbers = #tpu.dot_dimension_numbers<[1], [0], [0], [1], [0, 0, 1, 1], [], []>} : vector<16x48xbf16>, vector<48x128xbf16>, vector<16x128xf32> -> vector<16x128xf32>
    %831 = arith.addf %827, %830 : vector<16x128xf32>
    %832 = vector.extract_strided_slice %826 {offsets = [16, 0], sizes = [16, 48], strides = [1, 1]} : vector<128x128xbf16> to vector<16x48xbf16>
    %c48_596 = arith.constant 48 : index
    %c0_597 = arith.constant 0 : index
    %833 = vector.load %arg4[%c48_596, %c0_597] : memref<384x128xbf16, #tpu.memory_space<vmem>>, vector<48x128xbf16>
    %cst_598 = arith.constant dense<0.000000e+00> : vector<16x128xf32>
    %834 = tpu.matmul %832, %833, %cst_598 {dimension_numbers = #tpu.dot_dimension_numbers<[1], [0], [0], [1], [0, 0, 1, 1], [], []>} : vector<16x48xbf16>, vector<48x128xbf16>, vector<16x128xf32> -> vector<16x128xf32>
    %835 = arith.addf %831, %834 : vector<16x128xf32>
    %836 = vector.extract_strided_slice %826 {offsets = [32, 0], sizes = [16, 48], strides = [1, 1]} : vector<128x128xbf16> to vector<16x48xbf16>
    %c96_599 = arith.constant 96 : index
    %c0_600 = arith.constant 0 : index
    %837 = vector.load %arg4[%c96_599, %c0_600] : memref<384x128xbf16, #tpu.memory_space<vmem>>, vector<48x128xbf16>
    %cst_601 = arith.constant dense<0.000000e+00> : vector<16x128xf32>
    %838 = tpu.matmul %836, %837, %cst_601 {dimension_numbers = #tpu.dot_dimension_numbers<[1], [0], [0], [1], [0, 0, 1, 1], [], []>} : vector<16x48xbf16>, vector<48x128xbf16>, vector<16x128xf32> -> vector<16x128xf32>
    %839 = arith.addf %835, %838 : vector<16x128xf32>
    %840 = vector.extract_strided_slice %826 {offsets = [48, 0], sizes = [16, 48], strides = [1, 1]} : vector<128x128xbf16> to vector<16x48xbf16>
    %c144_602 = arith.constant 144 : index
    %c0_603 = arith.constant 0 : index
    %841 = vector.load %arg4[%c144_602, %c0_603] : memref<384x128xbf16, #tpu.memory_space<vmem>>, vector<48x128xbf16>
    %cst_604 = arith.constant dense<0.000000e+00> : vector<16x128xf32>
    %842 = tpu.matmul %840, %841, %cst_604 {dimension_numbers = #tpu.dot_dimension_numbers<[1], [0], [0], [1], [0, 0, 1, 1], [], []>} : vector<16x48xbf16>, vector<48x128xbf16>, vector<16x128xf32> -> vector<16x128xf32>
    %843 = arith.addf %839, %842 : vector<16x128xf32>
    %844 = vector.extract_strided_slice %826 {offsets = [64, 0], sizes = [16, 48], strides = [1, 1]} : vector<128x128xbf16> to vector<16x48xbf16>
    %c192_605 = arith.constant 192 : index
    %c0_606 = arith.constant 0 : index
    %845 = vector.load %arg4[%c192_605, %c0_606] : memref<384x128xbf16, #tpu.memory_space<vmem>>, vector<48x128xbf16>
    %cst_607 = arith.constant dense<0.000000e+00> : vector<16x128xf32>
    %846 = tpu.matmul %844, %845, %cst_607 {dimension_numbers = #tpu.dot_dimension_numbers<[1], [0], [0], [1], [0, 0, 1, 1], [], []>} : vector<16x48xbf16>, vector<48x128xbf16>, vector<16x128xf32> -> vector<16x128xf32>
    %847 = arith.addf %843, %846 : vector<16x128xf32>
    %848 = vector.extract_strided_slice %826 {offsets = [80, 0], sizes = [16, 48], strides = [1, 1]} : vector<128x128xbf16> to vector<16x48xbf16>
    %c240_608 = arith.constant 240 : index
    %c0_609 = arith.constant 0 : index
    %849 = vector.load %arg4[%c240_608, %c0_609] : memref<384x128xbf16, #tpu.memory_space<vmem>>, vector<48x128xbf16>
    %cst_610 = arith.constant dense<0.000000e+00> : vector<16x128xf32>
    %850 = tpu.matmul %848, %849, %cst_610 {dimension_numbers = #tpu.dot_dimension_numbers<[1], [0], [0], [1], [0, 0, 1, 1], [], []>} : vector<16x48xbf16>, vector<48x128xbf16>, vector<16x128xf32> -> vector<16x128xf32>
    %851 = arith.addf %847, %850 : vector<16x128xf32>
    %852 = vector.extract_strided_slice %826 {offsets = [96, 0], sizes = [16, 48], strides = [1, 1]} : vector<128x128xbf16> to vector<16x48xbf16>
    %c288_611 = arith.constant 288 : index
    %c0_612 = arith.constant 0 : index
    %853 = vector.load %arg4[%c288_611, %c0_612] : memref<384x128xbf16, #tpu.memory_space<vmem>>, vector<48x128xbf16>
    %cst_613 = arith.constant dense<0.000000e+00> : vector<16x128xf32>
    %854 = tpu.matmul %852, %853, %cst_613 {dimension_numbers = #tpu.dot_dimension_numbers<[1], [0], [0], [1], [0, 0, 1, 1], [], []>} : vector<16x48xbf16>, vector<48x128xbf16>, vector<16x128xf32> -> vector<16x128xf32>
    %855 = arith.addf %851, %854 : vector<16x128xf32>
    %856 = vector.extract_strided_slice %826 {offsets = [112, 0], sizes = [16, 48], strides = [1, 1]} : vector<128x128xbf16> to vector<16x48xbf16>
    %c336_614 = arith.constant 336 : index
    %c0_615 = arith.constant 0 : index
    %857 = vector.load %arg4[%c336_614, %c0_615] : memref<384x128xbf16, #tpu.memory_space<vmem>>, vector<48x128xbf16>
    %cst_616 = arith.constant dense<0.000000e+00> : vector<16x128xf32>
    %858 = tpu.matmul %856, %857, %cst_616 {dimension_numbers = #tpu.dot_dimension_numbers<[1], [0], [0], [1], [0, 0, 1, 1], [], []>} : vector<16x48xbf16>, vector<48x128xbf16>, vector<16x128xf32> -> vector<16x128xf32>
    %859 = arith.addf %855, %858 : vector<16x128xf32>
    %c2 = arith.constant 2 : index
    %c0_617 = arith.constant 0 : index
    %860 = vector.load %arg7[%c2, %c0_617] : memref<8x128xf32, #tpu.memory_space<vmem>>, vector<1x128xf32>
    %861 = vector.broadcast %860 : vector<1x128xf32> to vector<16x128xf32>
    %862 = arith.addf %859, %861 : vector<16x128xf32>
    %cst_618 = arith.constant 0.000000e+00 : f32
    %863 = vector.broadcast %cst_618 : f32 to vector<16x128xf32>
    %864 = arith.maximumf %862, %863 : vector<16x128xf32>
    %865 = arith.truncf %864 : vector<16x128xf32> to vector<16x128xbf16>
    %c0_619 = arith.constant 0 : index
    %c0_620 = arith.constant 0 : index
    %866 = vector.load %arg5[%c0_619, %c0_620] : memref<128x128xbf16, #tpu.memory_space<vmem>>, vector<128x128xbf16>
    %cst_621 = arith.constant dense<0.000000e+00> : vector<16x128xf32>
    %867 = tpu.matmul %865, %866, %cst_621 {dimension_numbers = #tpu.dot_dimension_numbers<[1], [0], [0], [1], [0, 0, 1, 1], [], []>} : vector<16x128xbf16>, vector<128x128xbf16>, vector<16x128xf32> -> vector<16x128xf32>
    %c3 = arith.constant 3 : index
    %c0_622 = arith.constant 0 : index
    %868 = vector.load %arg7[%c3, %c0_622] : memref<8x128xf32, #tpu.memory_space<vmem>>, vector<1x128xf32>
    %869 = vector.broadcast %868 : vector<1x128xf32> to vector<16x128xf32>
    %870 = arith.addf %867, %869 : vector<16x128xf32>
    %cst_623 = arith.constant 0.000000e+00 : f32
    %871 = vector.broadcast %cst_623 : f32 to vector<16x128xf32>
    %872 = arith.maximumf %870, %871 : vector<16x128xf32>
    %873 = arith.truncf %872 : vector<16x128xf32> to vector<16x128xbf16>
    %c0_624 = arith.constant 0 : index
    %c0_625 = arith.constant 0 : index
    %874 = vector.load %arg6[%c0_624, %c0_625] : memref<128x128xbf16, #tpu.memory_space<vmem>>, vector<128x128xbf16>
    %cst_626 = arith.constant dense<0.000000e+00> : vector<16x128xf32>
    %875 = tpu.matmul %873, %874, %cst_626 {dimension_numbers = #tpu.dot_dimension_numbers<[1], [0], [0], [1], [0, 0, 1, 1], [], []>} : vector<16x128xbf16>, vector<128x128xbf16>, vector<16x128xf32> -> vector<16x128xf32>
    %c4 = arith.constant 4 : index
    %c0_627 = arith.constant 0 : index
    %876 = vector.load %arg7[%c4, %c0_627] : memref<8x128xf32, #tpu.memory_space<vmem>>, vector<1x128xf32>
    %877 = vector.broadcast %876 : vector<1x128xf32> to vector<16x128xf32>
    %878 = arith.addf %875, %877 : vector<16x128xf32>
    %c0_628 = arith.constant 0 : index
    %c0_629 = arith.constant 0 : index
    %879 = vector.load %arg8[%c0_628, %c0_629] : memref<16x128xf32, #tpu.memory_space<vmem>>, vector<16x128xf32>
    tpu.vector_store %arg8[%c0_628, %c0_629], %878 {strides = array<i32>} : memref<16x128xf32, #tpu.memory_space<vmem>>, vector<16x128xf32>,
    return
  }
  func.func @transform_0(%arg0: i32) -> (i32, i32) {
    %c0_i32 = arith.constant 0 : i32
    %c0_i32_0 = arith.constant 0 : i32
    return %arg0, %c0_i32 : i32, i32
  }
  func.func @transform_1(%arg0: i32) -> (i32, i32) {
    %c0_i32 = arith.constant 0 : i32
    %c0_i32_0 = arith.constant 0 : i32
    %c0_i32_1 = arith.constant 0 : i32
    return %c0_i32, %c0_i32_0 : i32, i32
  }
  func.func @transform_2(%arg0: i32) -> (i32, i32) {
    %c0_i32 = arith.constant 0 : i32
    %c0_i32_0 = arith.constant 0 : i32
    %c0_i32_1 = arith.constant 0 : i32
    return %c0_i32, %c0_i32_0 : i32, i32
  }
  func.func @transform_3(%arg0: i32) -> (i32, i32) {
    %c0_i32 = arith.constant 0 : i32
    %c0_i32_0 = arith.constant 0 : i32
    %c0_i32_1 = arith.constant 0 : i32
    return %c0_i32, %c0_i32_0 : i32, i32
  }
  func.func @transform_4(%arg0: i32) -> (i32, i32) {
    %c0_i32 = arith.constant 0 : i32
    %c0_i32_0 = arith.constant 0 : i32
    %c0_i32_1 = arith.constant 0 : i32
    return %c0_i32, %c0_i32_0 : i32, i32
  }
  func.func @transform_5(%arg0: i32) -> (i32, i32) {
    %c0_i32 = arith.constant 0 : i32
    %c0_i32_0 = arith.constant 0 : i32
    %c0_i32_1 = arith.constant 0 : i32
    return %c0_i32, %c0_i32_0 : i32, i32
  }
  func.func @transform_6(%arg0: i32) -> (i32, i32) {
    %c0_i32 = arith.constant 0 : i32
    %c0_i32_0 = arith.constant 0 : i32
    %c0_i32_1 = arith.constant 0 : i32
    return %c0_i32, %c0_i32_0 : i32, i32
  }
  func.func @transform_7(%arg0: i32) -> (i32, i32) {
    %c0_i32 = arith.constant 0 : i32
    %c0_i32_0 = arith.constant 0 : i32
    return %arg0, %c0_i32 : i32, i32
  }
}

</mosaic_0001>

<llo_original>
// kernel: _cnn3dvisco_forward.1
$region0: #{_cnn3dvisco_forward.1}
  #allocation0 [shape = 'u32[]', space=smem, size = 0x4, offset = 0x4, fixed_abs, tag = 'smem constant byte address 0x4 - core index']
  #allocation1 [shape = 'u32[144,128]{1,0:T(1,128)}', space=vmem, size = 0x12000, scoped, tag = 'internal scratch']
  #allocation2 [shape = 'f32[2000,128]{1,0:T(8,128)}', space=vmem, size = 0xfa000, scoped, tag = 'scratch operand']
  #allocation3 [shape = 'bf16[128,896]{1,0:T(16,128)(2,1)}', space=vmem, size = 0x38000, scoped, tag = 'scratch operand']
  %s0 = inlined_call_operand.vmem [shape: bf16[2000,128], index: 0, kind: input, shape index: {}]
  %s1 = inlined_call_operand.vmem [shape: bf16[128,128], index: 1, kind: input, shape index: {}]
  %s2 = inlined_call_operand.vmem [shape: bf16[896,128], index: 2, kind: input, shape index: {}]
  %s3 = inlined_call_operand.vmem [shape: bf16[384,128], index: 3, kind: input, shape index: {}]
  %s4 = inlined_call_operand.vmem [shape: bf16[128,128], index: 4, kind: input, shape index: {}]
  %s5 = inlined_call_operand.vmem [shape: bf16[128,128], index: 5, kind: input, shape index: {}]
  %s6 = inlined_call_operand.vmem [shape: f32[8,128], index: 6, kind: input, shape index: {}]
  %s7 = inlined_call_operand.vmem [shape: f32[16,128], index: 7, kind: output, shape index: {}]
  %s8 = sld [smem:[#allocation0]]
  $region38: #{_cnn3dvisco_forward.1} parent=0
    _
  %s10 = ssub.s32 1, %s8
  %s11 = scalar_select 0, %s10, %s8
  // Predicated region
  $region2: #{_cnn3dvisco_forward.1} parent=0 // pred_check
    _
  $region3: #{_cnn3dvisco_forward.1} parent=0 // pred_check_branch
    %13 = sbr.rel (0) target = $region5
  $region4: #{_cnn3dvisco_forward.1} parent=0 // pred_region
    _
  $region5: #{_cnn3dvisco_forward.1} parent=0 // pred_fallthru
    _
  // Predicated region
  $region6: #{_cnn3dvisco_forward.1} parent=0 // pred_check
    _
  $region7: #{_cnn3dvisco_forward.1} parent=0 // pred_check_branch
    %15 = sbr.rel (0) target = $region9
  $region8: #{_cnn3dvisco_forward.1} parent=0 // pred_region
    _
  $region9: #{_cnn3dvisco_forward.1} parent=0 // pred_fallthru
    _
  // Predicated region
  $region10: #{_cnn3dvisco_forward.1} parent=0 // pred_check
    _
  $region11: #{_cnn3dvisco_forward.1} parent=0 // pred_check_branch
    %17 = sbr.rel (0) target = $region13
  $region12: #{_cnn3dvisco_forward.1} parent=0 // pred_region
    _
  $region13: #{_cnn3dvisco_forward.1} parent=0 // pred_fallthru
    _
  // Predicated region
  $region14: #{_cnn3dvisco_forward.1} parent=0 // pred_check
    _
  $region15: #{_cnn3dvisco_forward.1} parent=0 // pred_check_branch
    %19 = sbr.rel (0) target = $region17
  $region16: #{_cnn3dvisco_forward.1} parent=0 // pred_region
    _
  $region17: #{_cnn3dvisco_forward.1} parent=0 // pred_fallthru
    _
  // Predicated region
  $region18: #{_cnn3dvisco_forward.1} parent=0 // pred_check
    _
  $region19: #{_cnn3dvisco_forward.1} parent=0 // pred_check_branch
    %21 = sbr.rel (0) target = $region21
  $region20: #{_cnn3dvisco_forward.1} parent=0 // pred_region
    _
  $region21: #{_cnn3dvisco_forward.1} parent=0 // pred_fallthru
    _
  // Predicated region
  $region22: #{_cnn3dvisco_forward.1} parent=0 // pred_check
    _
  $region23: #{_cnn3dvisco_forward.1} parent=0 // pred_check_branch
    %23 = sbr.rel (0) target = $region25
  $region24: #{_cnn3dvisco_forward.1} parent=0 // pred_region
    _
  $region25: #{_cnn3dvisco_forward.1} parent=0 // pred_fallthru
    _
  // Predicated region
  $region26: #{_cnn3dvisco_forward.1} parent=0 // pred_check
    _
  $region27: #{_cnn3dvisco_forward.1} parent=0 // pred_check_branch
    %25 = sbr.rel (0) target = $region29
  $region28: #{_cnn3dvisco_forward.1} parent=0 // pred_region
    _
  $region29: #{_cnn3dvisco_forward.1} parent=0 // pred_fallthru
    _
  %v27 = vld [vmem:[%s0] sm:$0xf]
  %v28 = vld [vmem:[%s0 + $0x4] sm:$0xf]
  %v29 = vld [vmem:[%s0 + $0x8] sm:$0xf]
  %v30 = vld [vmem:[%s0 + $0xc] sm:$0xf]
  %v31 = vld [vmem:[%s0 + $0x10] sm:$0xf]
  %v32 = vld [vmem:[%s0 + $0x14] sm:$0xf]
  %v33 = vld [vmem:[%s0 + $0x18] sm:$0xf]
  %v34 = vld [vmem:[%s0 + $0x1c] sm:$0xf]
  %v35 = vld [vmem:[%s0 + $0x20] sm:$0xf]
  %v36 = vld [vmem:[%s0 + $0x24] sm:$0xf]
  %v37 = vld [vmem:[%s0 + $0x28] sm:$0xf]
  %v38 = vld [vmem:[%s0 + $0x2c] sm:$0xf]
  %v39 = vld [vmem:[%s0 + $0x30] sm:$0xf]
  %v40 = vld [vmem:[%s0 + $0x34] sm:$0xf]
  %v41 = vld [vmem:[%s0 + $0x38] sm:$0xf]
  %v42 = vld [vmem:[%s0 + $0x3c] sm:$0xf]
  %v43 = vld [vmem:[%s0 + $0x40] sm:$0xf]
  %v44 = vld [vmem:[%s0 + $0x44] sm:$0xf]
  %v45 = vld [vmem:[%s0 + $0x48] sm:$0xf]
  %v46 = vld [vmem:[%s0 + $0x4c] sm:$0xf]
  %v47 = vld [vmem:[%s0 + $0x50] sm:$0xf]
  %v48 = vld [vmem:[%s0 + $0x54] sm:$0xf]
  %v49 = vld [vmem:[%s0 + $0x58] sm:$0xf]
  %v50 = vld [vmem:[%s0 + $0x5c] sm:$0xf]
  %v51 = vld [vmem:[%s0 + $0x60] sm:$0xf]
  %v52 = vld [vmem:[%s0 + $0x64] sm:$0xf]
  %v53 = vld [vmem:[%s0 + $0x68] sm:$0xf]
  %v54 = vld [vmem:[%s0 + $0x6c] sm:$0xf]
  %v55 = vld [vmem:[%s0 + $0x70] sm:$0xf]
  %v56 = vld [vmem:[%s0 + $0x74] sm:$0xf]
  %v57 = vld [vmem:[%s0 + $0x78] sm:$0xf]
  %v58 = vld [vmem:[%s0 + $0x7c] sm:$0xf]
  %v59 = vld [vmem:[%s0 + $0x80] sm:$0xf]
  %v60 = vld [vmem:[%s0 + $0x84] sm:$0xf]
  %v61 = vld [vmem:[%s0 + $0x88] sm:$0xf]
  %v62 = vld [vmem:[%s0 + $0x8c] sm:$0xf]
  %v63 = vld [vmem:[%s0 + $0x90] sm:$0xf]
  %v64 = vld [vmem:[%s0 + $0x94] sm:$0xf]
  %v65 = vld [vmem:[%s0 + $0x98] sm:$0xf]
  %v66 = vld [vmem:[%s0 + $0x9c] sm:$0xf]
  %v67 = vld [vmem:[%s0 + $0xa0] sm:$0xf]
  %v68 = vld [vmem:[%s0 + $0xa4] sm:$0xf]
  %v69 = vld [vmem:[%s0 + $0xa8] sm:$0xf]
  %v70 = vld [vmem:[%s0 + $0xac] sm:$0xf]
  %v71 = vld [vmem:[%s0 + $0xb0] sm:$0xf]
  %v72 = vld [vmem:[%s0 + $0xb4] sm:$0xf]
  %v73 = vld [vmem:[%s0 + $0xb8] sm:$0xf]
  %v74 = vld [vmem:[%s0 + $0xbc] sm:$0xf]
  %v75 = vld [vmem:[%s0 + $0xc0] sm:$0xf]
  %v76 = vld [vmem:[%s0 + $0xc4] sm:$0xf]
  %v77 = vld [vmem:[%s0 + $0xc8] sm:$0xf]
  %v78 = vld [vmem:[%s0 + $0xcc] sm:$0xf]
  %v79 = vld [vmem:[%s0 + $0xd0] sm:$0xf]
  %v80 = vld [vmem:[%s0 + $0xd4] sm:$0xf]
  %v81 = vld [vmem:[%s0 + $0xd8] sm:$0xf]
  %v82 = vld [vmem:[%s0 + $0xdc] sm:$0xf]
  %v83 = vld [vmem:[%s0 + $0xe0] sm:$0xf]
  %v84 = vld [vmem:[%s0 + $0xe4] sm:$0xf]
  %v85 = vld [vmem:[%s0 + $0xe8] sm:$0xf]
  %v86 = vld [vmem:[%s0 + $0xec] sm:$0xf]
  %v87 = vld [vmem:[%s0 + $0xf0] sm:$0xf]
  %v88 = vld [vmem:[%s0 + $0xf4] sm:$0xf]
  %v89 = vld [vmem:[%s0 + $0xf8] sm:$0xf]
  %v90 = vld [vmem:[%s0 + $0xfc] sm:$0xf]
  %v91 = vld [vmem:[%s0 + $0x100] sm:$0xf]
  %v92 = vld [vmem:[%s0 + $0x104] sm:$0xf]
  %v93 = vld [vmem:[%s0 + $0x108] sm:$0xf]
  %v94 = vld [vmem:[%s0 + $0x10c] sm:$0xf]
  %v95 = vld [vmem:[%s0 + $0x110] sm:$0xf]
  %v96 = vld [vmem:[%s0 + $0x114] sm:$0xf]
  %v97 = vld [vmem:[%s0 + $0x118] sm:$0xf]
  %v98 = vld [vmem:[%s0 + $0x11c] sm:$0xf]
  %v99 = vld [vmem:[%s0 + $0x120] sm:$0xf]
  %v100 = vld [vmem:[%s0 + $0x124] sm:$0xf]
  %v101 = vld [vmem:[%s0 + $0x128] sm:$0xf]
  %v102 = vld [vmem:[%s0 + $0x12c] sm:$0xf]
  %v103 = vld [vmem:[%s0 + $0x130] sm:$0xf]
  %v104 = vld [vmem:[%s0 + $0x134] sm:$0xf]
  %v105 = vld [vmem:[%s0 + $0x138] sm:$0xf]
  %v106 = vld [vmem:[%s0 + $0x13c] sm:$0xf]
  %v107 = vld [vmem:[%s0 + $0x140] sm:$0xf]
  %v108 = vld [vmem:[%s0 + $0x144] sm:$0xf]
  %v109 = vld [vmem:[%s0 + $0x148] sm:$0xf]
  %v110 = vld [vmem:[%s0 + $0x14c] sm:$0xf]
  %v111 = vld [vmem:[%s0 + $0x150] sm:$0xf]
  %v112 = vld [vmem:[%s0 + $0x154] sm:$0xf]
  %v113 = vld [vmem:[%s0 + $0x158] sm:$0xf]
  %v114 = vld [vmem:[%s0 + $0x15c] sm:$0xf]
  %v115 = vld [vmem:[%s0 + $0x160] sm:$0xf]
  %v116 = vld [vmem:[%s0 + $0x164] sm:$0xf]
  %v117 = vld [vmem:[%s0 + $0x168] sm:$0xf]
  %v118 = vld [vmem:[%s0 + $0x16c] sm:$0xf]
  %v119 = vld [vmem:[%s0 + $0x170] sm:$0xf]
  %v120 = vld [vmem:[%s0 + $0x174] sm:$0xf]
  %v121 = vld [vmem:[%s0 + $0x178] sm:$0xf]
  %v122 = vld [vmem:[%s0 + $0x17c] sm:$0xf]
  %v123 = vld [vmem:[%s0 + $0x180] sm:$0xf]
  %v124 = vld [vmem:[%s0 + $0x184] sm:$0xf]
  %v125 = vld [vmem:[%s0 + $0x188] sm:$0xf]
  %v126 = vld [vmem:[%s0 + $0x18c] sm:$0xf]
  %v127 = vld [vmem:[%s0 + $0x190] sm:$0xf]
  %v128 = vld [vmem:[%s0 + $0x194] sm:$0xf]
  %v129 = vld [vmem:[%s0 + $0x198] sm:$0xf]
  %v130 = vld [vmem:[%s0 + $0x19c] sm:$0xf]
  %v131 = vld [vmem:[%s0 + $0x1a0] sm:$0xf]
  %v132 = vld [vmem:[%s0 + $0x1a4] sm:$0xf]
  %v133 = vld [vmem:[%s0 + $0x1a8] sm:$0xf]
  %v134 = vld [vmem:[%s0 + $0x1ac] sm:$0xf]
  %v135 = vld [vmem:[%s0 + $0x1b0] sm:$0xf]
  %v136 = vld [vmem:[%s0 + $0x1b4] sm:$0xf]
  %v137 = vld [vmem:[%s0 + $0x1b8] sm:$0xf]
  %v138 = vld [vmem:[%s0 + $0x1bc] sm:$0xf]
  %v139 = vld [vmem:[%s0 + $0x1c0] sm:$0xf]
  %v140 = vld [vmem:[%s0 + $0x1c4] sm:$0xf]
  %v141 = vld [vmem:[%s0 + $0x1c8] sm:$0xf]
  %v142 = vld [vmem:[%s0 + $0x1cc] sm:$0xf]
  %v143 = vld [vmem:[%s0 + $0x1d0] sm:$0xf]
  %v144 = vld [vmem:[%s0 + $0x1d4] sm:$0xf]
  %v145 = vld [vmem:[%s0 + $0x1d8] sm:$0xf]
  %v146 = vld [vmem:[%s0 + $0x1dc] sm:$0xf]
  %v147 = vld [vmem:[%s0 + $0x1e0] sm:$0xf]
  %v148 = vld [vmem:[%s0 + $0x1e4] sm:$0xf]
  %v149 = vld [vmem:[%s0 + $0x1e8] sm:$0xf]
  %v150 = vld [vmem:[%s0 + $0x1ec] sm:$0xf]
  %v151 = vld [vmem:[%s0 + $0x1f0] sm:$0xf]
  %v152 = vld [vmem:[%s0 + $0x1f4] sm:$0xf]
  %v153 = vld [vmem:[%s0 + $0x1f8] sm:$0xf]
  %v154 = vld [vmem:[%s0 + $0x1fc] sm:$0xf]
  %v155 = vld [vmem:[%s0 + $0x200] sm:$0xf]
  %v156 = vld [vmem:[%s0 + $0x204] sm:$0xf]
  %v157 = vld [vmem:[%s0 + $0x208] sm:$0xf]
  %v158 = vld [vmem:[%s0 + $0x20c] sm:$0xf]
  %v159 = vld [vmem:[%s0 + $0x210] sm:$0xf]
  %v160 = vld [vmem:[%s0 + $0x214] sm:$0xf]
  %v161 = vld [vmem:[%s0 + $0x218] sm:$0xf]
  %v162 = vld [vmem:[%s0 + $0x21c] sm:$0xf]
  %v163 = vld [vmem:[%s0 + $0x220] sm:$0xf]
  %v164 = vld [vmem:[%s0 + $0x224] sm:$0xf]
  %v165 = vld [vmem:[%s0 + $0x228] sm:$0xf]
  %v166 = vld [vmem:[%s0 + $0x22c] sm:$0xf]
  %v167 = vld [vmem:[%s0 + $0x230] sm:$0xf]
  %v168 = vld [vmem:[%s0 + $0x234] sm:$0xf]
  %v169 = vld [vmem:[%s0 + $0x238] sm:$0xf]
  %v170 = vld [vmem:[%s0 + $0x23c] sm:$0xf]
  %v171 = vld [vmem:[%s0 + $0x240] sm:$0xf]
  %v172 = vld [vmem:[%s0 + $0x244] sm:$0xf]
  %v173 = vld [vmem:[%s0 + $0x248] sm:$0xf]
  %v174 = vld [vmem:[%s0 + $0x24c] sm:$0xf]
  %v175 = vld [vmem:[%s0 + $0x250] sm:$0xf]
  %v176 = vld [vmem:[%s0 + $0x254] sm:$0xf]
  %v177 = vld [vmem:[%s0 + $0x258] sm:$0xf]
  %v178 = vld [vmem:[%s0 + $0x25c] sm:$0xf]
  %v179 = vld [vmem:[%s0 + $0x260] sm:$0xf]
  %v180 = vld [vmem:[%s0 + $0x264] sm:$0xf]
  %v181 = vld [vmem:[%s0 + $0x268] sm:$0xf]
  %v182 = vld [vmem:[%s0 + $0x26c] sm:$0xf]
  %v183 = vld [vmem:[%s0 + $0x270] sm:$0xf]
  %v184 = vld [vmem:[%s0 + $0x274] sm:$0xf]
  %v185 = vld [vmem:[%s0 + $0x278] sm:$0xf]
  %v186 = vld [vmem:[%s0 + $0x27c] sm:$0xf]
  %v187 = vld [vmem:[%s0 + $0x280] sm:$0xf]
  %v188 = vld [vmem:[%s0 + $0x284] sm:$0xf]
  %v189 = vld [vmem:[%s0 + $0x288] sm:$0xf]
  %v190 = vld [vmem:[%s0 + $0x28c] sm:$0xf]
  %v191 = vld [vmem:[%s0 + $0x290] sm:$0xf]
  %v192 = vld [vmem:[%s0 + $0x294] sm:$0xf]
  %v193 = vld [vmem:[%s0 + $0x298] sm:$0xf]
  %v194 = vld [vmem:[%s0 + $0x29c] sm:$0xf]
  %v195 = vld [vmem:[%s0 + $0x2a0] sm:$0xf]
  %v196 = vld [vmem:[%s0 + $0x2a4] sm:$0xf]
  %v197 = vld [vmem:[%s0 + $0x2a8] sm:$0xf]
  %v198 = vld [vmem:[%s0 + $0x2ac] sm:$0xf]
  %v199 = vld [vmem:[%s0 + $0x2b0] sm:$0xf]
  %v200 = vld [vmem:[%s0 + $0x2b4] sm:$0xf]
  %v201 = vld [vmem:[%s0 + $0x2b8] sm:$0xf]
  %v202 = vld [vmem:[%s0 + $0x2bc] sm:$0xf]
  %v203 = vld [vmem:[%s0 + $0x2c0] sm:$0xf]
  %v204 = vld [vmem:[%s0 + $0x2c4] sm:$0xf]
  %v205 = vld [vmem:[%s0 + $0x2c8] sm:$0xf]
  %v206 = vld [vmem:[%s0 + $0x2cc] sm:$0xf]
  %v207 = vld [vmem:[%s0 + $0x2d0] sm:$0xf]
  %v208 = vld [vmem:[%s0 + $0x2d4] sm:$0xf]
  %v209 = vld [vmem:[%s0 + $0x2d8] sm:$0xf]
  %v210 = vld [vmem:[%s0 + $0x2dc] sm:$0xf]
  %v211 = vld [vmem:[%s0 + $0x2e0] sm:$0xf]
  %v212 = vld [vmem:[%s0 + $0x2e4] sm:$0xf]
  %v213 = vld [vmem:[%s0 + $0x2e8] sm:$0xf]
  %v214 = vld [vmem:[%s0 + $0x2ec] sm:$0xf]
  %v215 = vld [vmem:[%s0 + $0x2f0] sm:$0xf]
  %v216 = vld [vmem:[%s0 + $0x2f4] sm:$0xf]
  %v217 = vld [vmem:[%s0 + $0x2f8] sm:$0xf]
  %v218 = vld [vmem:[%s0 + $0x2fc] sm:$0xf]
  %v219 = vld [vmem:[%s0 + $0x300] sm:$0xf]
  %v220 = vld [vmem:[%s0 + $0x304] sm:$0xf]
  %v221 = vld [vmem:[%s0 + $0x308] sm:$0xf]
  %v222 = vld [vmem:[%s0 + $0x30c] sm:$0xf]
  %v223 = vld [vmem:[%s0 + $0x310] sm:$0xf]
  %v224 = vld [vmem:[%s0 + $0x314] sm:$0xf]
  %v225 = vld [vmem:[%s0 + $0x318] sm:$0xf]
  %v226 = vld [vmem:[%s0 + $0x31c] sm:$0xf]
  %v227 = vld [vmem:[%s0 + $0x320] sm:$0xf]
  %v228 = vld [vmem:[%s0 + $0x324] sm:$0xf]
  %v229 = vld [vmem:[%s0 + $0x328] sm:$0xf]
  %v230 = vld [vmem:[%s0 + $0x32c] sm:$0xf]
  %v231 = vld [vmem:[%s0 + $0x330] sm:$0xf]
  %v232 = vld [vmem:[%s0 + $0x334] sm:$0xf]
  %v233 = vld [vmem:[%s0 + $0x338] sm:$0xf]
  %v234 = vld [vmem:[%s0 + $0x33c] sm:$0xf]
  %v235 = vld [vmem:[%s0 + $0x340] sm:$0xf]
  %v236 = vld [vmem:[%s0 + $0x344] sm:$0xf]
  %v237 = vld [vmem:[%s0 + $0x348] sm:$0xf]
  %v238 = vld [vmem:[%s0 + $0x34c] sm:$0xf]
  %v239 = vld [vmem:[%s0 + $0x350] sm:$0xf]
  %v240 = vld [vmem:[%s0 + $0x354] sm:$0xf]
  %v241 = vld [vmem:[%s0 + $0x358] sm:$0xf]
  %v242 = vld [vmem:[%s0 + $0x35c] sm:$0xf]
  %v243 = vld [vmem:[%s0 + $0x360] sm:$0xf]
  %v244 = vld [vmem:[%s0 + $0x364] sm:$0xf]
  %v245 = vld [vmem:[%s0 + $0x368] sm:$0xf]
  %v246 = vld [vmem:[%s0 + $0x36c] sm:$0xf]
  %v247 = vld [vmem:[%s0 + $0x370] sm:$0xf]
  %v248 = vld [vmem:[%s0 + $0x374] sm:$0xf]
  %v249 = vld [vmem:[%s0 + $0x378] sm:$0xf]
  %v250 = vld [vmem:[%s0 + $0x37c] sm:$0xf]
  %v251 = vld [vmem:[%s0 + $0x380] sm:$0xf]
  %v252 = vld [vmem:[%s0 + $0x384] sm:$0xf]
  %v253 = vld [vmem:[%s0 + $0x388] sm:$0xf]
  %v254 = vld [vmem:[%s0 + $0x38c] sm:$0xf]
  %v255 = vld [vmem:[%s0 + $0x390] sm:$0xf]
  %v256 = vld [vmem:[%s0 + $0x394] sm:$0xf]
  %v257 = vld [vmem:[%s0 + $0x398] sm:$0xf]
  %v258 = vld [vmem:[%s0 + $0x39c] sm:$0xf]
  %v259 = vld [vmem:[%s0 + $0x3a0] sm:$0xf]
  %v260 = vld [vmem:[%s0 + $0x3a4] sm:$0xf]
  %v261 = vld [vmem:[%s0 + $0x3a8] sm:$0xf]
  %v262 = vld [vmem:[%s0 + $0x3ac] sm:$0xf]
  %v263 = vld [vmem:[%s0 + $0x3b0] sm:$0xf]
  %v264 = vld [vmem:[%s0 + $0x3b4] sm:$0xf]
  %v265 = vld [vmem:[%s0 + $0x3b8] sm:$0xf]
  %v266 = vld [vmem:[%s0 + $0x3bc] sm:$0xf]
  %v267 = vld [vmem:[%s0 + $0x3c0] sm:$0xf]
  %v268 = vld [vmem:[%s0 + $0x3c4] sm:$0xf]
  %v269 = vld [vmem:[%s0 + $0x3c8] sm:$0xf]
  %v270 = vld [vmem:[%s0 + $0x3cc] sm:$0xf]
  %v271 = vld [vmem:[%s0 + $0x3d0] sm:$0xf]
  %v272 = vld [vmem:[%s0 + $0x3d4] sm:$0xf]
  %v273 = vld [vmem:[%s0 + $0x3d8] sm:$0xf]
  %v274 = vld [vmem:[%s0 + $0x3dc] sm:$0xf]
  %v275 = vld [vmem:[%s0 + $0x3e0] sm:$0xf]
  %v276 = vld [vmem:[%s0 + $0x3e4] sm:$0xf]
  %v277 = vld [vmem:[%s1] sm:$0xf]
  %v278 = vld [vmem:[%s1 + $0x4] sm:$0xf]
  %v279 = vld [vmem:[%s1 + $0x8] sm:$0xf]
  %v280 = vld [vmem:[%s1 + $0xc] sm:$0xf]
  %v281 = vld [vmem:[%s1 + $0x10] sm:$0xf]
  %v282 = vld [vmem:[%s1 + $0x14] sm:$0xf]
  %v283 = vld [vmem:[%s1 + $0x18] sm:$0xf]
  %v284 = vld [vmem:[%s1 + $0x1c] sm:$0xf]
  %v285 = vld [vmem:[%s1 + $0x20] sm:$0xf]
  %v286 = vld [vmem:[%s1 + $0x24] sm:$0xf]
  %v287 = vld [vmem:[%s1 + $0x28] sm:$0xf]
  %v288 = vld [vmem:[%s1 + $0x2c] sm:$0xf]
  %v289 = vld [vmem:[%s1 + $0x30] sm:$0xf]
  %v290 = vld [vmem:[%s1 + $0x34] sm:$0xf]
  %v291 = vld [vmem:[%s1 + $0x38] sm:$0xf]
  %v292 = vld [vmem:[%s1 + $0x3c] sm:$0xf]
  %v293 = vld [vmem:[%s6] sm:$0x1]
  %v294 = vlaneseq
  %v295 = vshrl.u32 %v294, 7
  %v296 = vsub.s32 0, %v295
  %v297 = vrot.slane %v293, %v296
  %v548 = vunpack.c.l.b16 %v27
  %v549 = vunpack.c.l.b16 %v28
  %v550 = vunpack.c.l.b16 %v29
  %v551 = vunpack.c.l.b16 %v30
  %v552 = vunpack.c.l.b16 %v31
  %v553 = vunpack.c.l.b16 %v32
  %v554 = vunpack.c.l.b16 %v33
  %v555 = vunpack.c.l.b16 %v34
  %v556 = vunpack.c.l.b16 %v35
  %v557 = vunpack.c.l.b16 %v36
  %v558 = vunpack.c.l.b16 %v37
  %v559 = vunpack.c.l.b16 %v38
  %v560 = vunpack.c.l.b16 %v39
  %v561 = vunpack.c.l.b16 %v40
  %v562 = vunpack.c.l.b16 %v41
  %v563 = vunpack.c.l.b16 %v42
  %v564 = vunpack.c.l.b16 %v43
  %v565 = vunpack.c.l.b16 %v44
  %v566 = vunpack.c.l.b16 %v45
  %v567 = vunpack.c.l.b16 %v46
  %v568 = vunpack.c.l.b16 %v47
  %v569 = vunpack.c.l.b16 %v48
  %v570 = vunpack.c.l.b16 %v49
  %v571 = vunpack.c.l.b16 %v50
  %v572 = vunpack.c.l.b16 %v51
  %v573 = vunpack.c.l.b16 %v52
  %v574 = vunpack.c.l.b16 %v53
  %v575 = vunpack.c.l.b16 %v54
  %v576 = vunpack.c.l.b16 %v55
  %v577 = vunpack.c.l.b16 %v56
  %v578 = vunpack.c.l.b16 %v57
  %v579 = vunpack.c.l.b16 %v58
  %v580 = vunpack.c.l.b16 %v59
  %v581 = vunpack.c.l.b16 %v60
  %v582 = vunpack.c.l.b16 %v61
  %v583 = vunpack.c.l.b16 %v62
  %v584 = vunpack.c.l.b16 %v63
  %v585 = vunpack.c.l.b16 %v64
  %v586 = vunpack.c.l.b16 %v65
  %v587 = vunpack.c.l.b16 %v66
  %v588 = vunpack.c.l.b16 %v67
  %v589 = vunpack.c.l.b16 %v68
  %v590 = vunpack.c.l.b16 %v69
  %v591 = vunpack.c.l.b16 %v70
  %v592 = vunpack.c.l.b16 %v71
  %v593 = vunpack.c.l.b16 %v72
  %v594 = vunpack.c.l.b16 %v73
  %v595 = vunpack.c.l.b16 %v74
  %v596 = vunpack.c.l.b16 %v75
  %v597 = vunpack.c.l.b16 %v76
  %v598 = vunpack.c.l.b16 %v77
  %v599 = vunpack.c.l.b16 %v78
  %v600 = vunpack.c.l.b16 %v79
  %v601 = vunpack.c.l.b16 %v80
  %v602 = vunpack.c.l.b16 %v81
  %v603 = vunpack.c.l.b16 %v82
  %v604 = vunpack.c.l.b16 %v83
  %v605 = vunpack.c.l.b16 %v84
  %v606 = vunpack.c.l.b16 %v85
  %v607 = vunpack.c.l.b16 %v86
  %v608 = vunpack.c.l.b16 %v87
  %v609 = vunpack.c.l.b16 %v88
  %v610 = vunpack.c.l.b16 %v89
  %v611 = vunpack.c.l.b16 %v90
  %v612 = vunpack.c.l.b16 %v91
  %v613 = vunpack.c.l.b16 %v92
  %v614 = vunpack.c.l.b16 %v93
  %v615 = vunpack.c.l.b16 %v94
  %v616 = vunpack.c.l.b16 %v95
  %v617 = vunpack.c.l.b16 %v96
  %v618 = vunpack.c.l.b16 %v97
  %v619 = vunpack.c.l.b16 %v98
  %v620 = vunpack.c.l.b16 %v99
  %v621 = vunpack.c.l.b16 %v100
  %v622 = vunpack.c.l.b16 %v101
  %v623 = vunpack.c.l.b16 %v102
  %v624 = vunpack.c.l.b16 %v103
  %v625 = vunpack.c.l.b16 %v104
  %v626 = vunpack.c.l.b16 %v105
  %v627 = vunpack.c.l.b16 %v106
  %v628 = vunpack.c.l.b16 %v107
  %v629 = vunpack.c.l.b16 %v108
  %v630 = vunpack.c.l.b16 %v109
  %v631 = vunpack.c.l.b16 %v110
  %v632 = vunpack.c.l.b16 %v111
  %v633 = vunpack.c.l.b16 %v112
  %v634 = vunpack.c.l.b16 %v113
  %v635 = vunpack.c.l.b16 %v114
  %v636 = vunpack.c.l.b16 %v115
  %v637 = vunpack.c.l.b16 %v116
  %v638 = vunpack.c.l.b16 %v117
  %v639 = vunpack.c.l.b16 %v118
  %v640 = vunpack.c.l.b16 %v119
  %v641 = vunpack.c.l.b16 %v120
  %v642 = vunpack.c.l.b16 %v121
  %v643 = vunpack.c.l.b16 %v122
  %v644 = vunpack.c.l.b16 %v123
  %v645 = vunpack.c.l.b16 %v124
  %v646 = vunpack.c.l.b16 %v125
  %v647 = vunpack.c.l.b16 %v126
  %v648 = vunpack.c.l.b16 %v127
  %v649 = vunpack.c.l.b16 %v128
  %v650 = vunpack.c.l.b16 %v129
  %v651 = vunpack.c.l.b16 %v130
  %v652 = vunpack.c.l.b16 %v131
  %v653 = vunpack.c.l.b16 %v132
  %v654 = vunpack.c.l.b16 %v133
  %v655 = vunpack.c.l.b16 %v134
  %v656 = vunpack.c.l.b16 %v135
  %v657 = vunpack.c.l.b16 %v136
  %v658 = vunpack.c.l.b16 %v137
  %v659 = vunpack.c.l.b16 %v138
  %v660 = vunpack.c.l.b16 %v139
  %v661 = vunpack.c.l.b16 %v140
  %v662 = vunpack.c.l.b16 %v141
  %v663 = vunpack.c.l.b16 %v142
  %v664 = vunpack.c.l.b16 %v143
  %v665 = vunpack.c.l.b16 %v144
  %v666 = vunpack.c.l.b16 %v145
  %v667 = vunpack.c.l.b16 %v146
  %v668 = vunpack.c.l.b16 %v147
  %v669 = vunpack.c.l.b16 %v148
  %v670 = vunpack.c.l.b16 %v149
  %v671 = vunpack.c.l.b16 %v150
  %v672 = vunpack.c.l.b16 %v151
  %v673 = vunpack.c.l.b16 %v152
  %v674 = vunpack.c.l.b16 %v153
  %v675 = vunpack.c.l.b16 %v154
  %v676 = vunpack.c.l.b16 %v155
  %v677 = vunpack.c.l.b16 %v156
  %v678 = vunpack.c.l.b16 %v157
  %v679 = vunpack.c.l.b16 %v158
  %v680 = vunpack.c.l.b16 %v159
  %v681 = vunpack.c.l.b16 %v160
  %v682 = vunpack.c.l.b16 %v161
  %v683 = vunpack.c.l.b16 %v162
  %v684 = vunpack.c.l.b16 %v163
  %v685 = vunpack.c.l.b16 %v164
  %v686 = vunpack.c.l.b16 %v165
  %v687 = vunpack.c.l.b16 %v166
  %v688 = vunpack.c.l.b16 %v167
  %v689 = vunpack.c.l.b16 %v168
  %v690 = vunpack.c.l.b16 %v169
  %v691 = vunpack.c.l.b16 %v170
  %v692 = vunpack.c.l.b16 %v171
  %v693 = vunpack.c.l.b16 %v172
  %v694 = vunpack.c.l.b16 %v173
  %v695 = vunpack.c.l.b16 %v174
  %v696 = vunpack.c.l.b16 %v175
  %v697 = vunpack.c.l.b16 %v176
  %v698 = vunpack.c.l.b16 %v177
  %v699 = vunpack.c.l.b16 %v178
  %v700 = vunpack.c.l.b16 %v179
  %v701 = vunpack.c.l.b16 %v180
  %v702 = vunpack.c.l.b16 %v181
  %v703 = vunpack.c.l.b16 %v182
  %v704 = vunpack.c.l.b16 %v183
  %v705 = vunpack.c.l.b16 %v184
  %v706 = vunpack.c.l.b16 %v185
  %v707 = vunpack.c.l.b16 %v186
  %v708 = vunpack.c.l.b16 %v187
  %v709 = vunpack.c.l.b16 %v188
  %v710 = vunpack.c.l.b16 %v189
  %v711 = vunpack.c.l.b16 %v190
  %v712 = vunpack.c.l.b16 %v191
  %v713 = vunpack.c.l.b16 %v192
  %v714 = vunpack.c.l.b16 %v193
  %v715 = vunpack.c.l.b16 %v194
  %v716 = vunpack.c.l.b16 %v195
  %v717 = vunpack.c.l.b16 %v196
  %v718 = vunpack.c.l.b16 %v197
  %v719 = vunpack.c.l.b16 %v198
  %v720 = vunpack.c.l.b16 %v199
  %v721 = vunpack.c.l.b16 %v200
  %v722 = vunpack.c.l.b16 %v201
  %v723 = vunpack.c.l.b16 %v202
  %v724 = vunpack.c.l.b16 %v203
  %v725 = vunpack.c.l.b16 %v204
  %v726 = vunpack.c.l.b16 %v205
  %v727 = vunpack.c.l.b16 %v206
  %v728 = vunpack.c.l.b16 %v207
  %v729 = vunpack.c.l.b16 %v208
  %v730 = vunpack.c.l.b16 %v209
  %v731 = vunpack.c.l.b16 %v210
  %v732 = vunpack.c.l.b16 %v211
  %v733 = vunpack.c.l.b16 %v212
  %v734 = vunpack.c.l.b16 %v213
  %v735 = vunpack.c.l.b16 %v214
  %v736 = vunpack.c.l.b16 %v215
  %v737 = vunpack.c.l.b16 %v216
  %v738 = vunpack.c.l.b16 %v217
  %v739 = vunpack.c.l.b16 %v218
  %v740 = vunpack.c.l.b16 %v219
  %v741 = vunpack.c.l.b16 %v220
  %v742 = vunpack.c.l.b16 %v221
  %v743 = vunpack.c.l.b16 %v222
  %v744 = vunpack.c.l.b16 %v223
  %v745 = vunpack.c.l.b16 %v224
  %v746 = vunpack.c.l.b16 %v225
  %v747 = vunpack.c.l.b16 %v226
  %v748 = vunpack.c.l.b16 %v227
  %v749 = vunpack.c.l.b16 %v228
  %v750 = vunpack.c.l.b16 %v229
  %v751 = vunpack.c.l.b16 %v230
  %v752 = vunpack.c.l.b16 %v231
  %v753 = vunpack.c.l.b16 %v232
  %v754 = vunpack.c.l.b16 %v233
  %v755 = vunpack.c.l.b16 %v234
  %v756 = vunpack.c.l.b16 %v235
  %v757 = vunpack.c.l.b16 %v236
  %v758 = vunpack.c.l.b16 %v237
  %v759 = vunpack.c.l.b16 %v238
  %v760 = vunpack.c.l.b16 %v239
  %v761 = vunpack.c.l.b16 %v240
  %v762 = vunpack.c.l.b16 %v241
  %v763 = vunpack.c.l.b16 %v242
  %v764 = vunpack.c.l.b16 %v243
  %v765 = vunpack.c.l.b16 %v244
  %v766 = vunpack.c.l.b16 %v245
  %v767 = vunpack.c.l.b16 %v246
  %v768 = vunpack.c.l.b16 %v247
  %v769 = vunpack.c.l.b16 %v248
  %v770 = vunpack.c.l.b16 %v249
  %v771 = vunpack.c.l.b16 %v250
  %v772 = vunpack.c.l.b16 %v251
  %v773 = vunpack.c.l.b16 %v252
  %v774 = vunpack.c.l.b16 %v253
  %v775 = vunpack.c.l.b16 %v254
  %v776 = vunpack.c.l.b16 %v255
  %v777 = vunpack.c.l.b16 %v256
  %v778 = vunpack.c.l.b16 %v257
  %v779 = vunpack.c.l.b16 %v258
  %v780 = vunpack.c.l.b16 %v259
  %v781 = vunpack.c.l.b16 %v260
  %v782 = vunpack.c.l.b16 %v261
  %v783 = vunpack.c.l.b16 %v262
  %v784 = vunpack.c.l.b16 %v263
  %v785 = vunpack.c.l.b16 %v264
  %v786 = vunpack.c.l.b16 %v265
  %v787 = vunpack.c.l.b16 %v266
  %v788 = vunpack.c.l.b16 %v267
  %v789 = vunpack.c.l.b16 %v268
  %v790 = vunpack.c.l.b16 %v269
  %v791 = vunpack.c.l.b16 %v270
  %v792 = vunpack.c.l.b16 %v271
  %v793 = vunpack.c.l.b16 %v272
  %v794 = vunpack.c.l.b16 %v273
  %v795 = vunpack.c.l.b16 %v274
  %v796 = vunpack.c.l.b16 %v275
  %v797 = vunpack.c.l.b16 %v276
  %v798 = vpack.c.b16 %v549, %v548
  %v799 = vpack.c.b16 %v551, %v550
  %v800 = vpack.c.b16 %v553, %v552
  %v801 = vpack.c.b16 %v555, %v554
  %v802 = vpack.c.b16 %v557, %v556
  %v803 = vpack.c.b16 %v559, %v558
  %v804 = vpack.c.b16 %v561, %v560
  %v805 = vpack.c.b16 %v563, %v562
  %v806 = vpack.c.b16 %v565, %v564
  %v807 = vpack.c.b16 %v567, %v566
  %v808 = vpack.c.b16 %v569, %v568
  %v809 = vpack.c.b16 %v571, %v570
  %v810 = vpack.c.b16 %v573, %v572
  %v811 = vpack.c.b16 %v575, %v574
  %v812 = vpack.c.b16 %v577, %v576
  %v813 = vpack.c.b16 %v579, %v578
  %v814 = vpack.c.b16 %v581, %v580
  %v815 = vpack.c.b16 %v583, %v582
  %v816 = vpack.c.b16 %v585, %v584
  %v817 = vpack.c.b16 %v587, %v586
  %v818 = vpack.c.b16 %v589, %v588
  %v819 = vpack.c.b16 %v591, %v590
  %v820 = vpack.c.b16 %v593, %v592
  %v821 = vpack.c.b16 %v595, %v594
  %v822 = vpack.c.b16 %v597, %v596
  %v823 = vpack.c.b16 %v599, %v598
  %v824 = vpack.c.b16 %v601, %v600
  %v825 = vpack.c.b16 %v603, %v602
  %v826 = vpack.c.b16 %v605, %v604
  %v827 = vpack.c.b16 %v607, %v606
  %v828 = vpack.c.b16 %v609, %v608
  %v829 = vpack.c.b16 %v611, %v610
  %v830 = vpack.c.b16 %v613, %v612
  %v831 = vpack.c.b16 %v615, %v614
  %v832 = vpack.c.b16 %v617, %v616
  %v833 = vpack.c.b16 %v619, %v618
  %v834 = vpack.c.b16 %v621, %v620
  %v835 = vpack.c.b16 %v623, %v622
  %v836 = vpack.c.b16 %v625, %v624
  %v837 = vpack.c.b16 %v627, %v626
  %v838 = vpack.c.b16 %v629, %v628
  %v839 = vpack.c.b16 %v631, %v630
  %v840 = vpack.c.b16 %v633, %v632
  %v841 = vpack.c.b16 %v635, %v634
  %v842 = vpack.c.b16 %v637, %v636
  %v843 = vpack.c.b16 %v639, %v638
  %v844 = vpack.c.b16 %v641, %v640
  %v845 = vpack.c.b16 %v643, %v642
  %v846 = vpack.c.b16 %v645, %v644
  %v847 = vpack.c.b16 %v647, %v646
  %v848 = vpack.c.b16 %v649, %v648
  %v849 = vpack.c.b16 %v651, %v650
  %v850 = vpack.c.b16 %v653, %v652
  %v851 = vpack.c.b16 %v655, %v654
  %v852 = vpack.c.b16 %v657, %v656
  %v853 = vpack.c.b16 %v659, %v658
  %v854 = vpack.c.b16 %v661, %v660
  %v855 = vpack.c.b16 %v663, %v662
  %v856 = vpack.c.b16 %v665, %v664
  %v857 = vpack.c.b16 %v667, %v666
  %v858 = vpack.c.b16 %v669, %v668
  %v859 = vpack.c.b16 %v671, %v670
  %v860 = vpack.c.b16 %v673, %v672
  %v861 = vpack.c.b16 %v675, %v674
  %v862 = vpack.c.b16 %v677, %v676
  %v863 = vpack.c.b16 %v679, %v678
  %v864 = vpack.c.b16 %v681, %v680
  %v865 = vpack.c.b16 %v683, %v682
  %v866 = vpack.c.b16 %v685, %v684
  %v867 = vpack.c.b16 %v687, %v686
  %v868 = vpack.c.b16 %v689, %v688
  %v869 = vpack.c.b16 %v691, %v690
  %v870 = vpack.c.b16 %v693, %v692
  %v871 = vpack.c.b16 %v695, %v694
  %v872 = vpack.c.b16 %v697, %v696
  %v873 = vpack.c.b16 %v699, %v698
  %v874 = vpack.c.b16 %v701, %v700
  %v875 = vpack.c.b16 %v703, %v702
  %v876 = vpack.c.b16 %v705, %v704
  %v877 = vpack.c.b16 %v707, %v706
  %v878 = vpack.c.b16 %v709, %v708
  %v879 = vpack.c.b16 %v711, %v710
  %v880 = vpack.c.b16 %v713, %v712
  %v881 = vpack.c.b16 %v715, %v714
  %v882 = vpack.c.b16 %v717, %v716
  %v883 = vpack.c.b16 %v719, %v718
  %v884 = vpack.c.b16 %v721, %v720
  %v885 = vpack.c.b16 %v723, %v722
  %v886 = vpack.c.b16 %v725, %v724
  %v887 = vpack.c.b16 %v727, %v726
  %v888 = vpack.c.b16 %v729, %v728
  %v889 = vpack.c.b16 %v731, %v730
  %v890 = vpack.c.b16 %v733, %v732
  %v891 = vpack.c.b16 %v735, %v734
  %v892 = vpack.c.b16 %v737, %v736
  %v893 = vpack.c.b16 %v739, %v738
  %v894 = vpack.c.b16 %v741, %v740
  %v895 = vpack.c.b16 %v743, %v742
  %v896 = vpack.c.b16 %v745, %v744
  %v897 = vpack.c.b16 %v747, %v746
  %v898 = vpack.c.b16 %v749, %v748
  %v899 = vpack.c.b16 %v751, %v750
  %v900 = vpack.c.b16 %v753, %v752
  %v901 = vpack.c.b16 %v755, %v754
  %v902 = vpack.c.b16 %v757, %v756
  %v903 = vpack.c.b16 %v759, %v758
  %v904 = vpack.c.b16 %v761, %v760
  %v905 = vpack.c.b16 %v763, %v762
  %v906 = vpack.c.b16 %v765, %v764
  %v907 = vpack.c.b16 %v767, %v766
  %v908 = vpack.c.b16 %v769, %v768
  %v909 = vpack.c.b16 %v771, %v770
  %v910 = vpack.c.b16 %v773, %v772
  %v911 = vpack.c.b16 %v775, %v774
  %v912 = vpack.c.b16 %v777, %v776
  %v913 = vpack.c.b16 %v779, %v778
  %v914 = vpack.c.b16 %v781, %v780
  %v915 = vpack.c.b16 %v783, %v782
  %v916 = vpack.c.b16 %v785, %v784
  %v917 = vpack.c.b16 %v787, %v786
  %v918 = vpack.c.b16 %v789, %v788
  %v919 = vpack.c.b16 %v791, %v790
  %v920 = vpack.c.b16 %v793, %v792
  %v921 = vpack.c.b16 %v795, %v794
  %v922 = vpack.c.b16 %v797, %v796
  %v1064 = vunpack.c.l.b16 %v277
  %v1065 = vunpack.c.l.b16 %v278
  %v1066 = vunpack.c.l.b16 %v279
  %v1067 = vunpack.c.l.b16 %v280
  %v1068 = vunpack.c.l.b16 %v281
  %v1069 = vunpack.c.l.b16 %v282
  %v1070 = vunpack.c.l.b16 %v283
  %v1071 = vunpack.c.l.b16 %v284
  %v1072 = vunpack.c.l.b16 %v285
  %v1073 = vunpack.c.l.b16 %v286
  %v1074 = vunpack.c.l.b16 %v287
  %v1075 = vunpack.c.l.b16 %v288
  %v1076 = vunpack.c.l.b16 %v289
  %v1077 = vunpack.c.l.b16 %v290
  %v1078 = vunpack.c.l.b16 %v291
  %v1079 = vunpack.c.l.b16 %v292
  %v1080 = vpack.c.b16 %v1065, %v1064
  %v1081 = vpack.c.b16 %v1067, %v1066
  %v1082 = vpack.c.b16 %v1069, %v1068
  %v1083 = vpack.c.b16 %v1071, %v1070
  %v1084 = vpack.c.b16 %v1073, %v1072
  %v1085 = vpack.c.b16 %v1075, %v1074
  %v1086 = vpack.c.b16 %v1077, %v1076
  %v1087 = vpack.c.b16 %v1079, %v1078
  %1096 = vmatprep.subr.bf16.mxu0 0
  %1097 = vmatpush1.bf16.msra.mxu0 %v1080
  %1098 = vmatprep.subr.bf16.mxu0 0
  %1099 = vmatpush1.bf16.msra.mxu0 %v1081
  %1100 = vmatprep.subr.bf16.mxu0 0
  %1101 = vmatpush1.bf16.msra.mxu0 %v1082
  %1102 = vmatprep.subr.bf16.mxu0 0
  %1103 = vmatpush1.bf16.msra.mxu0 %v1083
  %1104 = vmatprep.subr.bf16.mxu0 0
  %1105 = vmatpush1.bf16.msra.mxu0 %v1084
  %1106 = vmatprep.subr.bf16.mxu0 0
  %1107 = vmatpush1.bf16.msra.mxu0 %v1085
  %1108 = vmatprep.subr.bf16.mxu0 0
  %1109 = vmatpush1.bf16.msra.mxu0 %v1086
  %1110 = vmatprep.subr.bf16.mxu0 0
  %1111 = vmatpush1.bf16.msra.mxu0 %v1087
  %1112 = vmatprep.subr.bf16.mxu0 0
  %1113 = vmatpush1.bf16.msra.mxu0 0
  %1114 = vmatprep.subr.bf16.mxu0 0
  %1115 = vmatpush1.bf16.msra.mxu0 0
  %1116 = vmatprep.subr.bf16.mxu0 0
  %1117 = vmatpush1.bf16.msra.mxu0 0
  %1118 = vmatprep.subr.bf16.mxu0 0
  %1119 = vmatpush1.bf16.msra.mxu0 0
  %1120 = vmatprep.subr.bf16.mxu0 0
  %1121 = vmatpush1.bf16.msra.mxu0 0
  %1122 = vmatprep.subr.bf16.mxu0 0
  %1123 = vmatpush1.bf16.msra.mxu0 0
  %1124 = vmatprep.subr.bf16.mxu0 0
  %1125 = vmatpush1.bf16.msra.mxu0 0
  %1126 = vmatprep.subr.bf16.mxu0 0
  %1127 = vmatpush1.bf16.msra.mxu0 0
  %1128 = vmatprep.mubr.bf16.mxu0 0
  %1129 = vmatmul.mubr.bf16.gmra.mrb[0].mxu0 %v798
  %v1130 = vpop.f32.mrb[0].mxu0
  %v1131 = vadd.f32 %v297, %v1130
  %v1132 = vpop.f32.mrb[0].mxu0
  %v1133 = vpop.f32.mrb[0].mxu0
  %v1134 = vadd.f32 %v297, %v1133
  %v1135 = vpop.f32.mrb[0].mxu0
  %1136 = vmatprep.mubr.bf16.mxu0 0
  %1137 = vmatmul.mubr.bf16.gmra.mrb[0].mxu0 %v799
  %v1138 = vpop.f32.mrb[0].mxu0
  %v1139 = vadd.f32 %v297, %v1138
  %v1140 = vpop.f32.mrb[0].mxu0
  %v1141 = vpop.f32.mrb[0].mxu0
  %v1142 = vadd.f32 %v297, %v1141
  %v1143 = vpop.f32.mrb[0].mxu0
  %1144 = vmatprep.mubr.bf16.mxu0 0
  %1145 = vmatmul.mubr.bf16.gmra.mrb[0].mxu0 %v800
  %v1146 = vpop.f32.mrb[0].mxu0
  %v1147 = vadd.f32 %v297, %v1146
  %v1148 = vpop.f32.mrb[0].mxu0
  %v1149 = vpop.f32.mrb[0].mxu0
  %v1150 = vadd.f32 %v297, %v1149
  %v1151 = vpop.f32.mrb[0].mxu0
  %1152 = vmatprep.mubr.bf16.mxu0 0
  %1153 = vmatmul.mubr.bf16.gmra.mrb[0].mxu0 %v801
  %v1154 = vpop.f32.mrb[0].mxu0
  %v1155 = vadd.f32 %v297, %v1154
  %v1156 = vpop.f32.mrb[0].mxu0
  %v1157 = vpop.f32.mrb[0].mxu0
  %v1158 = vadd.f32 %v297, %v1157
  %v1159 = vpop.f32.mrb[0].mxu0
  %1160 = vmatprep.mubr.bf16.mxu0 0
  %1161 = vmatmul.mubr.bf16.gmra.mrb[0].mxu0 %v802
  %v1162 = vpop.f32.mrb[0].mxu0
  %v1163 = vadd.f32 %v297, %v1162
  %v1164 = vpop.f32.mrb[0].mxu0
  %v1165 = vpop.f32.mrb[0].mxu0
  %v1166 = vadd.f32 %v297, %v1165
  %v1167 = vpop.f32.mrb[0].mxu0
  %1168 = vmatprep.mubr.bf16.mxu0 0
  %1169 = vmatmul.mubr.bf16.gmra.mrb[0].mxu0 %v803
  %v1170 = vpop.f32.mrb[0].mxu0
  %v1171 = vadd.f32 %v297, %v1170
  %v1172 = vpop.f32.mrb[0].mxu0
  %v1173 = vpop.f32.mrb[0].mxu0
  %v1174 = vadd.f32 %v297, %v1173
  %v1175 = vpop.f32.mrb[0].mxu0
  %1176 = vmatprep.mubr.bf16.mxu0 0
  %1177 = vmatmul.mubr.bf16.gmra.mrb[0].mxu0 %v804
  %v1178 = vpop.f32.mrb[0].mxu0
  %v1179 = vadd.f32 %v297, %v1178
  %v1180 = vpop.f32.mrb[0].mxu0
  %v1181 = vpop.f32.mrb[0].mxu0
  %v1182 = vadd.f32 %v297, %v1181
  %v1183 = vpop.f32.mrb[0].mxu0
  %1184 = vmatprep.mubr.bf16.mxu0 0
  %1185 = vmatmul.mubr.bf16.gmra.mrb[0].mxu0 %v805
  %v1186 = vpop.f32.mrb[0].mxu0
  %v1187 = vadd.f32 %v297, %v1186
  %v1188 = vpop.f32.mrb[0].mxu0
  %v1189 = vpop.f32.mrb[0].mxu0
  %v1190 = vadd.f32 %v297, %v1189
  %v1191 = vpop.f32.mrb[0].mxu0
  %1192 = vmatprep.mubr.bf16.mxu0 0
  %1193 = vmatmul.mubr.bf16.gmra.mrb[0].mxu0 %v806
  %v1194 = vpop.f32.mrb[0].mxu0
  %v1195 = vadd.f32 %v297, %v1194
  %v1196 = vpop.f32.mrb[0].mxu0
  %v1197 = vpop.f32.mrb[0].mxu0
  %v1198 = vadd.f32 %v297, %v1197
  %v1199 = vpop.f32.mrb[0].mxu0
  %1200 = vmatprep.mubr.bf16.mxu0 0
  %1201 = vmatmul.mubr.bf16.gmra.mrb[0].mxu0 %v807
  %v1202 = vpop.f32.mrb[0].mxu0
  %v1203 = vadd.f32 %v297, %v1202
  %v1204 = vpop.f32.mrb[0].mxu0
  %v1205 = vpop.f32.mrb[0].mxu0
  %v1206 = vadd.f32 %v297, %v1205
  %v1207 = vpop.f32.mrb[0].mxu0
  %1208 = vmatprep.mubr.bf16.mxu0 0
  %1209 = vmatmul.mubr.bf16.gmra.mrb[0].mxu0 %v808
  %v1210 = vpop.f32.mrb[0].mxu0
  %v1211 = vadd.f32 %v297, %v1210
  %v1212 = vpop.f32.mrb[0].mxu0
  %v1213 = vpop.f32.mrb[0].mxu0
  %v1214 = vadd.f32 %v297, %v1213
  %v1215 = vpop.f32.mrb[0].mxu0
  %1216 = vmatprep.mubr.bf16.mxu0 0
  %1217 = vmatmul.mubr.bf16.gmra.mrb[0].mxu0 %v809
  %v1218 = vpop.f32.mrb[0].mxu0
  %v1219 = vadd.f32 %v297, %v1218
  %v1220 = vpop.f32.mrb[0].mxu0
  %v1221 = vpop.f32.mrb[0].mxu0
  %v1222 = vadd.f32 %v297, %v1221
  %v1223 = vpop.f32.mrb[0].mxu0
  %1224 = vmatprep.mubr.bf16.mxu0 0
  %1225 = vmatmul.mubr.bf16.gmra.mrb[0].mxu0 %v810
  %v1226 = vpop.f32.mrb[0].mxu0
  %v1227 = vadd.f32 %v297, %v1226
  %v1228 = vpop.f32.mrb[0].mxu0
  %v1229 = vpop.f32.mrb[0].mxu0
  %v1230 = vadd.f32 %v297, %v1229
  %v1231 = vpop.f32.mrb[0].mxu0
  %1232 = vmatprep.mubr.bf16.mxu0 0
  %1233 = vmatmul.mubr.bf16.gmra.mrb[0].mxu0 %v811
  %v1234 = vpop.f32.mrb[0].mxu0
  %v1235 = vadd.f32 %v297, %v1234
  %v1236 = vpop.f32.mrb[0].mxu0
  %v1237 = vpop.f32.mrb[0].mxu0
  %v1238 = vadd.f32 %v297, %v1237
  %v1239 = vpop.f32.mrb[0].mxu0
  %1240 = vmatprep.mubr.bf16.mxu0 0
  %1241 = vmatmul.mubr.bf16.gmra.mrb[0].mxu0 %v812
  %v1242 = vpop.f32.mrb[0].mxu0
  %v1243 = vadd.f32 %v297, %v1242
  %v1244 = vpop.f32.mrb[0].mxu0
  %v1245 = vpop.f32.mrb[0].mxu0
  %v1246 = vadd.f32 %v297, %v1245
  %v1247 = vpop.f32.mrb[0].mxu0
  %1248 = vmatprep.mubr.bf16.mxu0 0
  %1249 = vmatmul.mubr.bf16.gmra.mrb[0].mxu0 %v813
  %v1250 = vpop.f32.mrb[0].mxu0
  %v1251 = vadd.f32 %v297, %v1250
  %v1252 = vpop.f32.mrb[0].mxu0
  %v1253 = vpop.f32.mrb[0].mxu0
  %v1254 = vadd.f32 %v297, %v1253
  %v1255 = vpop.f32.mrb[0].mxu0
  %1256 = vmatprep.mubr.bf16.mxu0 0
  %1257 = vmatmul.mubr.bf16.gmra.mrb[0].mxu0 %v814
  %v1258 = vpop.f32.mrb[0].mxu0
  %v1259 = vadd.f32 %v297, %v1258
  %v1260 = vpop.f32.mrb[0].mxu0
  %v1261 = vpop.f32.mrb[0].mxu0
  %v1262 = vadd.f32 %v297, %v1261
  %v1263 = vpop.f32.mrb[0].mxu0
  %1264 = vmatprep.mubr.bf16.mxu0 0
  %1265 = vmatmul.mubr.bf16.gmra.mrb[0].mxu0 %v815
  %v1266 = vpop.f32.mrb[0].mxu0
  %v1267 = vadd.f32 %v297, %v1266
  %v1268 = vpop.f32.mrb[0].mxu0
  %v1269 = vpop.f32.mrb[0].mxu0
  %v1270 = vadd.f32 %v297, %v1269
  %v1271 = vpop.f32.mrb[0].mxu0
  %1272 = vmatprep.mubr.bf16.mxu0 0
  %1273 = vmatmul.mubr.bf16.gmra.mrb[0].mxu0 %v816
  %v1274 = vpop.f32.mrb[0].mxu0
  %v1275 = vadd.f32 %v297, %v1274
  %v1276 = vpop.f32.mrb[0].mxu0
  %v1277 = vpop.f32.mrb[0].mxu0
  %v1278 = vadd.f32 %v297, %v1277
  %v1279 = vpop.f32.mrb[0].mxu0
  %1280 = vmatprep.mubr.bf16.mxu0 0
  %1281 = vmatmul.mubr.bf16.gmra.mrb[0].mxu0 %v817
  %v1282 = vpop.f32.mrb[0].mxu0
  %v1283 = vadd.f32 %v297, %v1282
  %v1284 = vpop.f32.mrb[0].mxu0
  %v1285 = vpop.f32.mrb[0].mxu0
  %v1286 = vadd.f32 %v297, %v1285
  %v1287 = vpop.f32.mrb[0].mxu0
  %1288 = vmatprep.mubr.bf16.mxu0 0
  %1289 = vmatmul.mubr.bf16.gmra.mrb[0].mxu0 %v818
  %v1290 = vpop.f32.mrb[0].mxu0
  %v1291 = vadd.f32 %v297, %v1290
  %v1292 = vpop.f32.mrb[0].mxu0
  %v1293 = vpop.f32.mrb[0].mxu0
  %v1294 = vadd.f32 %v297, %v1293
  %v1295 = vpop.f32.mrb[0].mxu0
  %1296 = vmatprep.mubr.bf16.mxu0 0
  %1297 = vmatmul.mubr.bf16.gmra.mrb[0].mxu0 %v819
  %v1298 = vpop.f32.mrb[0].mxu0
  %v1299 = vadd.f32 %v297, %v1298
  %v1300 = vpop.f32.mrb[0].mxu0
  %v1301 = vpop.f32.mrb[0].mxu0
  %v1302 = vadd.f32 %v297, %v1301
  %v1303 = vpop.f32.mrb[0].mxu0
  %1304 = vmatprep.mubr.bf16.mxu0 0
  %1305 = vmatmul.mubr.bf16.gmra.mrb[0].mxu0 %v820
  %v1306 = vpop.f32.mrb[0].mxu0
  %v1307 = vadd.f32 %v297, %v1306
  %v1308 = vpop.f32.mrb[0].mxu0
  %v1309 = vpop.f32.mrb[0].mxu0
  %v1310 = vadd.f32 %v297, %v1309
  %v1311 = vpop.f32.mrb[0].mxu0
  %1312 = vmatprep.mubr.bf16.mxu0 0
  %1313 = vmatmul.mubr.bf16.gmra.mrb[0].mxu0 %v821
  %v1314 = vpop.f32.mrb[0].mxu0
  %v1315 = vadd.f32 %v297, %v1314
  %v1316 = vpop.f32.mrb[0].mxu0
  %v1317 = vpop.f32.mrb[0].mxu0
  %v1318 = vadd.f32 %v297, %v1317
  %v1319 = vpop.f32.mrb[0].mxu0
  %1320 = vmatprep.mubr.bf16.mxu0 0
  %1321 = vmatmul.mubr.bf16.gmra.mrb[0].mxu0 %v822
  %v1322 = vpop.f32.mrb[0].mxu0
  %v1323 = vadd.f32 %v297, %v1322
  %v1324 = vpop.f32.mrb[0].mxu0
  %v1325 = vpop.f32.mrb[0].mxu0
  %v1326 = vadd.f32 %v297, %v1325
  %v1327 = vpop.f32.mrb[0].mxu0
  %1328 = vmatprep.mubr.bf16.mxu0 0
  %1329 = vmatmul.mubr.bf16.gmra.mrb[0].mxu0 %v823
  %v1330 = vpop.f32.mrb[0].mxu0
  %v1331 = vadd.f32 %v297, %v1330
  %v1332 = vpop.f32.mrb[0].mxu0
  %v1333 = vpop.f32.mrb[0].mxu0
  %v1334 = vadd.f32 %v297, %v1333
  %v1335 = vpop.f32.mrb[0].mxu0
  %1336 = vmatprep.mubr.bf16.mxu0 0
  %1337 = vmatmul.mubr.bf16.gmra.mrb[0].mxu0 %v824
  %v1338 = vpop.f32.mrb[0].mxu0
  %v1339 = vadd.f32 %v297, %v1338
  %v1340 = vpop.f32.mrb[0].mxu0
  %v1341 = vpop.f32.mrb[0].mxu0
  %v1342 = vadd.f32 %v297, %v1341
  %v1343 = vpop.f32.mrb[0].mxu0
  %1344 = vmatprep.mubr.bf16.mxu0 0
  %1345 = vmatmul.mubr.bf16.gmra.mrb[0].mxu0 %v825
  %v1346 = vpop.f32.mrb[0].mxu0
  %v1347 = vadd.f32 %v297, %v1346
  %v1348 = vpop.f32.mrb[0].mxu0
  %v1349 = vpop.f32.mrb[0].mxu0
  %v1350 = vadd.f32 %v297, %v1349
  %v1351 = vpop.f32.mrb[0].mxu0
  %1352 = vmatprep.mubr.bf16.mxu0 0
  %1353 = vmatmul.mubr.bf16.gmra.mrb[0].mxu0 %v826
  %v1354 = vpop.f32.mrb[0].mxu0
  %v1355 = vadd.f32 %v297, %v1354
  %v1356 = vpop.f32.mrb[0].mxu0
  %v1357 = vpop.f32.mrb[0].mxu0
  %v1358 = vadd.f32 %v297, %v1357
  %v1359 = vpop.f32.mrb[0].mxu0
  %1360 = vmatprep.mubr.bf16.mxu0 0
  %1361 = vmatmul.mubr.bf16.gmra.mrb[0].mxu0 %v827
  %v1362 = vpop.f32.mrb[0].mxu0
  %v1363 = vadd.f32 %v297, %v1362
  %v1364 = vpop.f32.mrb[0].mxu0
  %v1365 = vpop.f32.mrb[0].mxu0
  %v1366 = vadd.f32 %v297, %v1365
  %v1367 = vpop.f32.mrb[0].mxu0
  %1368 = vmatprep.mubr.bf16.mxu0 0
  %1369 = vmatmul.mubr.bf16.gmra.mrb[0].mxu0 %v828
  %v1370 = vpop.f32.mrb[0].mxu0
  %v1371 = vadd.f32 %v297, %v1370
  %v1372 = vpop.f32.mrb[0].mxu0
  %v1373 = vpop.f32.mrb[0].mxu0
  %v1374 = vadd.f32 %v297, %v1373
  %v1375 = vpop.f32.mrb[0].mxu0
  %1376 = vmatprep.mubr.bf16.mxu0 0
  %1377 = vmatmul.mubr.bf16.gmra.mrb[0].mxu0 %v829
  %v1378 = vpop.f32.mrb[0].mxu0
  %v1379 = vadd.f32 %v297, %v1378
  %v1380 = vpop.f32.mrb[0].mxu0
  %v1381 = vpop.f32.mrb[0].mxu0
  %v1382 = vadd.f32 %v297, %v1381
  %v1383 = vpop.f32.mrb[0].mxu0
  %1384 = vmatprep.mubr.bf16.mxu0 0
  %1385 = vmatmul.mubr.bf16.gmra.mrb[0].mxu0 %v830
  %v1386 = vpop.f32.mrb[0].mxu0
  %v1387 = vadd.f32 %v297, %v1386
  %v1388 = vpop.f32.mrb[0].mxu0
  %v1389 = vpop.f32.mrb[0].mxu0
  %v1390 = vadd.f32 %v297, %v1389
  %v1391 = vpop.f32.mrb[0].mxu0
  %1392 = vmatprep.mubr.bf16.mxu0 0
  %1393 = vmatmul.mubr.bf16.gmra.mrb[0].mxu0 %v831
  %v1394 = vpop.f32.mrb[0].mxu0
  %v1395 = vadd.f32 %v297, %v1394
  %v1396 = vpop.f32.mrb[0].mxu0
  %v1397 = vpop.f32.mrb[0].mxu0
  %v1398 = vadd.f32 %v297, %v1397
  %v1399 = vpop.f32.mrb[0].mxu0
  %1400 = vmatprep.mubr.bf16.mxu0 0
  %1401 = vmatmul.mubr.bf16.gmra.mrb[0].mxu0 %v832
  %v1402 = vpop.f32.mrb[0].mxu0
  %v1403 = vadd.f32 %v297, %v1402
  %v1404 = vpop.f32.mrb[0].mxu0
  %v1405 = vpop.f32.mrb[0].mxu0
  %v1406 = vadd.f32 %v297, %v1405
  %v1407 = vpop.f32.mrb[0].mxu0
  %1408 = vmatprep.mubr.bf16.mxu0 0
  %1409 = vmatmul.mubr.bf16.gmra.mrb[0].mxu0 %v833
  %v1410 = vpop.f32.mrb[0].mxu0
  %v1411 = vadd.f32 %v297, %v1410
  %v1412 = vpop.f32.mrb[0].mxu0
  %v1413 = vpop.f32.mrb[0].mxu0
  %v1414 = vadd.f32 %v297, %v1413
  %v1415 = vpop.f32.mrb[0].mxu0
  %1416 = vmatprep.mubr.bf16.mxu0 0
  %1417 = vmatmul.mubr.bf16.gmra.mrb[0].mxu0 %v834
  %v1418 = vpop.f32.mrb[0].mxu0
  %v1419 = vadd.f32 %v297, %v1418
  %v1420 = vpop.f32.mrb[0].mxu0
  %v1421 = vpop.f32.mrb[0].mxu0
  %v1422 = vadd.f32 %v297, %v1421
  %v1423 = vpop.f32.mrb[0].mxu0
  %1424 = vmatprep.mubr.bf16.mxu0 0
  %1425 = vmatmul.mubr.bf16.gmra.mrb[0].mxu0 %v835
  %v1426 = vpop.f32.mrb[0].mxu0
  %v1427 = vadd.f32 %v297, %v1426
  %v1428 = vpop.f32.mrb[0].mxu0
  %v1429 = vpop.f32.mrb[0].mxu0
  %v1430 = vadd.f32 %v297, %v1429
  %v1431 = vpop.f32.mrb[0].mxu0
  %1432 = vmatprep.mubr.bf16.mxu0 0
  %1433 = vmatmul.mubr.bf16.gmra.mrb[0].mxu0 %v836
  %v1434 = vpop.f32.mrb[0].mxu0
  %v1435 = vadd.f32 %v297, %v1434
  %v1436 = vpop.f32.mrb[0].mxu0
  %v1437 = vpop.f32.mrb[0].mxu0
  %v1438 = vadd.f32 %v297, %v1437
  %v1439 = vpop.f32.mrb[0].mxu0
  %1440 = vmatprep.mubr.bf16.mxu0 0
  %1441 = vmatmul.mubr.bf16.gmra.mrb[0].mxu0 %v837
  %v1442 = vpop.f32.mrb[0].mxu0
  %v1443 = vadd.f32 %v297, %v1442
  %v1444 = vpop.f32.mrb[0].mxu0
  %v1445 = vpop.f32.mrb[0].mxu0
  %v1446 = vadd.f32 %v297, %v1445
  %v1447 = vpop.f32.mrb[0].mxu0
  %1448 = vmatprep.mubr.bf16.mxu0 0
  %1449 = vmatmul.mubr.bf16.gmra.mrb[0].mxu0 %v838
  %v1450 = vpop.f32.mrb[0].mxu0
  %v1451 = vadd.f32 %v297, %v1450
  %v1452 = vpop.f32.mrb[0].mxu0
  %v1453 = vpop.f32.mrb[0].mxu0
  %v1454 = vadd.f32 %v297, %v1453
  %v1455 = vpop.f32.mrb[0].mxu0
  %1456 = vmatprep.mubr.bf16.mxu0 0
  %1457 = vmatmul.mubr.bf16.gmra.mrb[0].mxu0 %v839
  %v1458 = vpop.f32.mrb[0].mxu0
  %v1459 = vadd.f32 %v297, %v1458
  %v1460 = vpop.f32.mrb[0].mxu0
  %v1461 = vpop.f32.mrb[0].mxu0
  %v1462 = vadd.f32 %v297, %v1461
  %v1463 = vpop.f32.mrb[0].mxu0
  %1464 = vmatprep.mubr.bf16.mxu0 0
  %1465 = vmatmul.mubr.bf16.gmra.mrb[0].mxu0 %v840
  %v1466 = vpop.f32.mrb[0].mxu0
  %v1467 = vadd.f32 %v297, %v1466
  %v1468 = vpop.f32.mrb[0].mxu0
  %v1469 = vpop.f32.mrb[0].mxu0
  %v1470 = vadd.f32 %v297, %v1469
  %v1471 = vpop.f32.mrb[0].mxu0
  %1472 = vmatprep.mubr.bf16.mxu0 0
  %1473 = vmatmul.mubr.bf16.gmra.mrb[0].mxu0 %v841
  %v1474 = vpop.f32.mrb[0].mxu0
  %v1475 = vadd.f32 %v297, %v1474
  %v1476 = vpop.f32.mrb[0].mxu0
  %v1477 = vpop.f32.mrb[0].mxu0
  %v1478 = vadd.f32 %v297, %v1477
  %v1479 = vpop.f32.mrb[0].mxu0
  %1480 = vmatprep.mubr.bf16.mxu0 0
  %1481 = vmatmul.mubr.bf16.gmra.mrb[0].mxu0 %v842
  %v1482 = vpop.f32.mrb[0].mxu0
  %v1483 = vadd.f32 %v297, %v1482
  %v1484 = vpop.f32.mrb[0].mxu0
  %v1485 = vpop.f32.mrb[0].mxu0
  %v1486 = vadd.f32 %v297, %v1485
  %v1487 = vpop.f32.mrb[0].mxu0
  %1488 = vmatprep.mubr.bf16.mxu0 0
  %1489 = vmatmul.mubr.bf16.gmra.mrb[0].mxu0 %v843
  %v1490 = vpop.f32.mrb[0].mxu0
  %v1491 = vadd.f32 %v297, %v1490
  %v1492 = vpop.f32.mrb[0].mxu0
  %v1493 = vpop.f32.mrb[0].mxu0
  %v1494 = vadd.f32 %v297, %v1493
  %v1495 = vpop.f32.mrb[0].mxu0
  %1496 = vmatprep.mubr.bf16.mxu0 0
  %1497 = vmatmul.mubr.bf16.gmra.mrb[0].mxu0 %v844
  %v1498 = vpop.f32.mrb[0].mxu0
  %v1499 = vadd.f32 %v297, %v1498
  %v1500 = vpop.f32.mrb[0].mxu0
  %v1501 = vpop.f32.mrb[0].mxu0
  %v1502 = vadd.f32 %v297, %v1501
  %v1503 = vpop.f32.mrb[0].mxu0
  %1504 = vmatprep.mubr.bf16.mxu0 0
  %1505 = vmatmul.mubr.bf16.gmra.mrb[0].mxu0 %v845
  %v1506 = vpop.f32.mrb[0].mxu0
  %v1507 = vadd.f32 %v297, %v1506
  %v1508 = vpop.f32.mrb[0].mxu0
  %v1509 = vpop.f32.mrb[0].mxu0
  %v1510 = vadd.f32 %v297, %v1509
  %v1511 = vpop.f32.mrb[0].mxu0
  %1512 = vmatprep.mubr.bf16.mxu0 0
  %1513 = vmatmul.mubr.bf16.gmra.mrb[0].mxu0 %v846
  %v1514 = vpop.f32.mrb[0].mxu0
  %v1515 = vadd.f32 %v297, %v1514
  %v1516 = vpop.f32.mrb[0].mxu0
  %v1517 = vpop.f32.mrb[0].mxu0
  %v1518 = vadd.f32 %v297, %v1517
  %v1519 = vpop.f32.mrb[0].mxu0
  %1520 = vmatprep.mubr.bf16.mxu0 0
  %1521 = vmatmul.mubr.bf16.gmra.mrb[0].mxu0 %v847
  %v1522 = vpop.f32.mrb[0].mxu0
  %v1523 = vadd.f32 %v297, %v1522
  %v1524 = vpop.f32.mrb[0].mxu0
  %v1525 = vpop.f32.mrb[0].mxu0
  %v1526 = vadd.f32 %v297, %v1525
  %v1527 = vpop.f32.mrb[0].mxu0
  %1528 = vmatprep.mubr.bf16.mxu0 0
  %1529 = vmatmul.mubr.bf16.gmra.mrb[0].mxu0 %v848
  %v1530 = vpop.f32.mrb[0].mxu0
  %v1531 = vadd.f32 %v297, %v1530
  %v1532 = vpop.f32.mrb[0].mxu0
  %v1533 = vpop.f32.mrb[0].mxu0
  %v1534 = vadd.f32 %v297, %v1533
  %v1535 = vpop.f32.mrb[0].mxu0
  %1536 = vmatprep.mubr.bf16.mxu0 0
  %1537 = vmatmul.mubr.bf16.gmra.mrb[0].mxu0 %v849
  %v1538 = vpop.f32.mrb[0].mxu0
  %v1539 = vadd.f32 %v297, %v1538
  %v1540 = vpop.f32.mrb[0].mxu0
  %v1541 = vpop.f32.mrb[0].mxu0
  %v1542 = vadd.f32 %v297, %v1541
  %v1543 = vpop.f32.mrb[0].mxu0
  %1544 = vmatprep.mubr.bf16.mxu0 0
  %1545 = vmatmul.mubr.bf16.gmra.mrb[0].mxu0 %v850
  %v1546 = vpop.f32.mrb[0].mxu0
  %v1547 = vadd.f32 %v297, %v1546
  %v1548 = vpop.f32.mrb[0].mxu0
  %v1549 = vpop.f32.mrb[0].mxu0
  %v1550 = vadd.f32 %v297, %v1549
  %v1551 = vpop.f32.mrb[0].mxu0
  %1552 = vmatprep.mubr.bf16.mxu0 0
  %1553 = vmatmul.mubr.bf16.gmra.mrb[0].mxu0 %v851
  %v1554 = vpop.f32.mrb[0].mxu0
  %v1555 = vadd.f32 %v297, %v1554
  %v1556 = vpop.f32.mrb[0].mxu0
  %v1557 = vpop.f32.mrb[0].mxu0
  %v1558 = vadd.f32 %v297, %v1557
  %v1559 = vpop.f32.mrb[0].mxu0
  %1560 = vmatprep.mubr.bf16.mxu0 0
  %1561 = vmatmul.mubr.bf16.gmra.mrb[0].mxu0 %v852
  %v1562 = vpop.f32.mrb[0].mxu0
  %v1563 = vadd.f32 %v297, %v1562
  %v1564 = vpop.f32.mrb[0].mxu0
  %v1565 = vpop.f32.mrb[0].mxu0
  %v1566 = vadd.f32 %v297, %v1565
  %v1567 = vpop.f32.mrb[0].mxu0
  %1568 = vmatprep.mubr.bf16.mxu0 0
  %1569 = vmatmul.mubr.bf16.gmra.mrb[0].mxu0 %v853
  %v1570 = vpop.f32.mrb[0].mxu0
  %v1571 = vadd.f32 %v297, %v1570
  %v1572 = vpop.f32.mrb[0].mxu0
  %v1573 = vpop.f32.mrb[0].mxu0
  %v1574 = vadd.f32 %v297, %v1573
  %v1575 = vpop.f32.mrb[0].mxu0
  %1576 = vmatprep.mubr.bf16.mxu0 0
  %1577 = vmatmul.mubr.bf16.gmra.mrb[0].mxu0 %v854
  %v1578 = vpop.f32.mrb[0].mxu0
  %v1579 = vadd.f32 %v297, %v1578
  %v1580 = vpop.f32.mrb[0].mxu0
  %v1581 = vpop.f32.mrb[0].mxu0
  %v1582 = vadd.f32 %v297, %v1581
  %v1583 = vpop.f32.mrb[0].mxu0
  %1584 = vmatprep.mubr.bf16.mxu0 0
  %1585 = vmatmul.mubr.bf16.gmra.mrb[0].mxu0 %v855
  %v1586 = vpop.f32.mrb[0].mxu0
  %v1587 = vadd.f32 %v297, %v1586
  %v1588 = vpop.f32.mrb[0].mxu0
  %v1589 = vpop.f32.mrb[0].mxu0
  %v1590 = vadd.f32 %v297, %v1589
  %v1591 = vpop.f32.mrb[0].mxu0
  %1592 = vmatprep.mubr.bf16.mxu0 0
  %1593 = vmatmul.mubr.bf16.gmra.mrb[0].mxu0 %v856
  %v1594 = vpop.f32.mrb[0].mxu0
  %v1595 = vadd.f32 %v297, %v1594
  %v1596 = vpop.f32.mrb[0].mxu0
  %v1597 = vpop.f32.mrb[0].mxu0
  %v1598 = vadd.f32 %v297, %v1597
  %v1599 = vpop.f32.mrb[0].mxu0
  %1600 = vmatprep.mubr.bf16.mxu0 0
  %1601 = vmatmul.mubr.bf16.gmra.mrb[0].mxu0 %v857
  %v1602 = vpop.f32.mrb[0].mxu0
  %v1603 = vadd.f32 %v297, %v1602
  %v1604 = vpop.f32.mrb[0].mxu0
  %v1605 = vpop.f32.mrb[0].mxu0
  %v1606 = vadd.f32 %v297, %v1605
  %v1607 = vpop.f32.mrb[0].mxu0
  %1608 = vmatprep.mubr.bf16.mxu0 0
  %1609 = vmatmul.mubr.bf16.gmra.mrb[0].mxu0 %v858
  %v1610 = vpop.f32.mrb[0].mxu0
  %v1611 = vadd.f32 %v297, %v1610
  %v1612 = vpop.f32.mrb[0].mxu0
  %v1613 = vpop.f32.mrb[0].mxu0
  %v1614 = vadd.f32 %v297, %v1613
  %v1615 = vpop.f32.mrb[0].mxu0
  %1616 = vmatprep.mubr.bf16.mxu0 0
  %1617 = vmatmul.mubr.bf16.gmra.mrb[0].mxu0 %v859
  %v1618 = vpop.f32.mrb[0].mxu0
  %v1619 = vadd.f32 %v297, %v1618
  %v1620 = vpop.f32.mrb[0].mxu0
  %v1621 = vpop.f32.mrb[0].mxu0
  %v1622 = vadd.f32 %v297, %v1621
  %v1623 = vpop.f32.mrb[0].mxu0
  %1624 = vmatprep.mubr.bf16.mxu0 0
  %1625 = vmatmul.mubr.bf16.gmra.mrb[0].mxu0 %v860
  %v1626 = vpop.f32.mrb[0].mxu0
  %v1627 = vadd.f32 %v297, %v1626
  %v1628 = vpop.f32.mrb[0].mxu0
  %v1629 = vpop.f32.mrb[0].mxu0
  %v1630 = vadd.f32 %v297, %v1629
  %v1631 = vpop.f32.mrb[0].mxu0
  %1632 = vmatprep.mubr.bf16.mxu0 0
  %1633 = vmatmul.mubr.bf16.gmra.mrb[0].mxu0 %v861
  %v1634 = vpop.f32.mrb[0].mxu0
  %v1635 = vadd.f32 %v297, %v1634
  %v1636 = vpop.f32.mrb[0].mxu0
  %v1637 = vpop.f32.mrb[0].mxu0
  %v1638 = vadd.f32 %v297, %v1637
  %v1639 = vpop.f32.mrb[0].mxu0
  %1640 = vmatprep.mubr.bf16.mxu0 0
  %1641 = vmatmul.mubr.bf16.gmra.mrb[0].mxu0 %v862
  %v1642 = vpop.f32.mrb[0].mxu0
  %v1643 = vadd.f32 %v297, %v1642
  %v1644 = vpop.f32.mrb[0].mxu0
  %v1645 = vpop.f32.mrb[0].mxu0
  %v1646 = vadd.f32 %v297, %v1645
  %v1647 = vpop.f32.mrb[0].mxu0
  %1648 = vmatprep.mubr.bf16.mxu0 0
  %1649 = vmatmul.mubr.bf16.gmra.mrb[0].mxu0 %v863
  %v1650 = vpop.f32.mrb[0].mxu0
  %v1651 = vadd.f32 %v297, %v1650
  %v1652 = vpop.f32.mrb[0].mxu0
  %v1653 = vpop.f32.mrb[0].mxu0
  %v1654 = vadd.f32 %v297, %v1653
  %v1655 = vpop.f32.mrb[0].mxu0
  %1656 = vmatprep.mubr.bf16.mxu0 0
  %1657 = vmatmul.mubr.bf16.gmra.mrb[0].mxu0 %v864
  %v1658 = vpop.f32.mrb[0].mxu0
  %v1659 = vadd.f32 %v297, %v1658
  %v1660 = vpop.f32.mrb[0].mxu0
  %v1661 = vpop.f32.mrb[0].mxu0
  %v1662 = vadd.f32 %v297, %v1661
  %v1663 = vpop.f32.mrb[0].mxu0
  %1664 = vmatprep.mubr.bf16.mxu0 0
  %1665 = vmatmul.mubr.bf16.gmra.mrb[0].mxu0 %v865
  %v1666 = vpop.f32.mrb[0].mxu0
  %v1667 = vadd.f32 %v297, %v1666
  %v1668 = vpop.f32.mrb[0].mxu0
  %v1669 = vpop.f32.mrb[0].mxu0
  %v1670 = vadd.f32 %v297, %v1669
  %v1671 = vpop.f32.mrb[0].mxu0
  %1672 = vmatprep.mubr.bf16.mxu0 0
  %1673 = vmatmul.mubr.bf16.gmra.mrb[0].mxu0 %v866
  %v1674 = vpop.f32.mrb[0].mxu0
  %v1675 = vadd.f32 %v297, %v1674
  %v1676 = vpop.f32.mrb[0].mxu0
  %v1677 = vpop.f32.mrb[0].mxu0
  %v1678 = vadd.f32 %v297, %v1677
  %v1679 = vpop.f32.mrb[0].mxu0
  %1680 = vmatprep.mubr.bf16.mxu0 0
  %1681 = vmatmul.mubr.bf16.gmra.mrb[0].mxu0 %v867
  %v1682 = vpop.f32.mrb[0].mxu0
  %v1683 = vadd.f32 %v297, %v1682
  %v1684 = vpop.f32.mrb[0].mxu0
  %v1685 = vpop.f32.mrb[0].mxu0
  %v1686 = vadd.f32 %v297, %v1685
  %v1687 = vpop.f32.mrb[0].mxu0
  %1688 = vmatprep.mubr.bf16.mxu0 0
  %1689 = vmatmul.mubr.bf16.gmra.mrb[0].mxu0 %v868
  %v1690 = vpop.f32.mrb[0].mxu0
  %v1691 = vadd.f32 %v297, %v1690
  %v1692 = vpop.f32.mrb[0].mxu0
  %v1693 = vpop.f32.mrb[0].mxu0
  %v1694 = vadd.f32 %v297, %v1693
  %v1695 = vpop.f32.mrb[0].mxu0
  %1696 = vmatprep.mubr.bf16.mxu0 0
  %1697 = vmatmul.mubr.bf16.gmra.mrb[0].mxu0 %v869
  %v1698 = vpop.f32.mrb[0].mxu0
  %v1699 = vadd.f32 %v297, %v1698
  %v1700 = vpop.f32.mrb[0].mxu0
  %v1701 = vpop.f32.mrb[0].mxu0
  %v1702 = vadd.f32 %v297, %v1701
  %v1703 = vpop.f32.mrb[0].mxu0
  %1704 = vmatprep.mubr.bf16.mxu0 0
  %1705 = vmatmul.mubr.bf16.gmra.mrb[0].mxu0 %v870
  %v1706 = vpop.f32.mrb[0].mxu0
  %v1707 = vadd.f32 %v297, %v1706
  %v1708 = vpop.f32.mrb[0].mxu0
  %v1709 = vpop.f32.mrb[0].mxu0
  %v1710 = vadd.f32 %v297, %v1709
  %v1711 = vpop.f32.mrb[0].mxu0
  %1712 = vmatprep.mubr.bf16.mxu0 0
  %1713 = vmatmul.mubr.bf16.gmra.mrb[0].mxu0 %v871
  %v1714 = vpop.f32.mrb[0].mxu0
  %v1715 = vadd.f32 %v297, %v1714
  %v1716 = vpop.f32.mrb[0].mxu0
  %v1717 = vpop.f32.mrb[0].mxu0
  %v1718 = vadd.f32 %v297, %v1717
  %v1719 = vpop.f32.mrb[0].mxu0
  %1720 = vmatprep.mubr.bf16.mxu0 0
  %1721 = vmatmul.mubr.bf16.gmra.mrb[0].mxu0 %v872
  %v1722 = vpop.f32.mrb[0].mxu0
  %v1723 = vadd.f32 %v297, %v1722
  %v1724 = vpop.f32.mrb[0].mxu0
  %v1725 = vpop.f32.mrb[0].mxu0
  %v1726 = vadd.f32 %v297, %v1725
  %v1727 = vpop.f32.mrb[0].mxu0
  %1728 = vmatprep.mubr.bf16.mxu0 0
  %1729 = vmatmul.mubr.bf16.gmra.mrb[0].mxu0 %v873
  %v1730 = vpop.f32.mrb[0].mxu0
  %v1731 = vadd.f32 %v297, %v1730
  %v1732 = vpop.f32.mrb[0].mxu0
  %v1733 = vpop.f32.mrb[0].mxu0
  %v1734 = vadd.f32 %v297, %v1733
  %v1735 = vpop.f32.mrb[0].mxu0
  %1736 = vmatprep.mubr.bf16.mxu0 0
  %1737 = vmatmul.mubr.bf16.gmra.mrb[0].mxu0 %v874
  %v1738 = vpop.f32.mrb[0].mxu0
  %v1739 = vadd.f32 %v297, %v1738
  %v1740 = vpop.f32.mrb[0].mxu0
  %v1741 = vpop.f32.mrb[0].mxu0
  %v1742 = vadd.f32 %v297, %v1741
  %v1743 = vpop.f32.mrb[0].mxu0
  %1744 = vmatprep.mubr.bf16.mxu0 0
  %1745 = vmatmul.mubr.bf16.gmra.mrb[0].mxu0 %v875
  %v1746 = vpop.f32.mrb[0].mxu0
  %v1747 = vadd.f32 %v297, %v1746
  %v1748 = vpop.f32.mrb[0].mxu0
  %v1749 = vpop.f32.mrb[0].mxu0
  %v1750 = vadd.f32 %v297, %v1749
  %v1751 = vpop.f32.mrb[0].mxu0
  %1752 = vmatprep.mubr.bf16.mxu0 0
  %1753 = vmatmul.mubr.bf16.gmra.mrb[0].mxu0 %v876
  %v1754 = vpop.f32.mrb[0].mxu0
  %v1755 = vadd.f32 %v297, %v1754
  %v1756 = vpop.f32.mrb[0].mxu0
  %v1757 = vpop.f32.mrb[0].mxu0
  %v1758 = vadd.f32 %v297, %v1757
  %v1759 = vpop.f32.mrb[0].mxu0
  %1760 = vmatprep.mubr.bf16.mxu0 0
  %1761 = vmatmul.mubr.bf16.gmra.mrb[0].mxu0 %v877
  %v1762 = vpop.f32.mrb[0].mxu0
  %v1763 = vadd.f32 %v297, %v1762
  %v1764 = vpop.f32.mrb[0].mxu0
  %v1765 = vpop.f32.mrb[0].mxu0
  %v1766 = vadd.f32 %v297, %v1765
  %v1767 = vpop.f32.mrb[0].mxu0
  %1768 = vmatprep.mubr.bf16.mxu0 0
  %1769 = vmatmul.mubr.bf16.gmra.mrb[0].mxu0 %v878
  %v1770 = vpop.f32.mrb[0].mxu0
  %v1771 = vadd.f32 %v297, %v1770
  %v1772 = vpop.f32.mrb[0].mxu0
  %v1773 = vpop.f32.mrb[0].mxu0
  %v1774 = vadd.f32 %v297, %v1773
  %v1775 = vpop.f32.mrb[0].mxu0
  %1776 = vmatprep.mubr.bf16.mxu0 0
  %1777 = vmatmul.mubr.bf16.gmra.mrb[0].mxu0 %v879
  %v1778 = vpop.f32.mrb[0].mxu0
  %v1779 = vadd.f32 %v297, %v1778
  %v1780 = vpop.f32.mrb[0].mxu0
  %v1781 = vpop.f32.mrb[0].mxu0
  %v1782 = vadd.f32 %v297, %v1781
  %v1783 = vpop.f32.mrb[0].mxu0
  %1784 = vmatprep.mubr.bf16.mxu0 0
  %1785 = vmatmul.mubr.bf16.gmra.mrb[0].mxu0 %v880
  %v1786 = vpop.f32.mrb[0].mxu0
  %v1787 = vadd.f32 %v297, %v1786
  %v1788 = vpop.f32.mrb[0].mxu0
  %v1789 = vpop.f32.mrb[0].mxu0
  %v1790 = vadd.f32 %v297, %v1789
  %v1791 = vpop.f32.mrb[0].mxu0
  %1792 = vmatprep.mubr.bf16.mxu0 0
  %1793 = vmatmul.mubr.bf16.gmra.mrb[0].mxu0 %v881
  %v1794 = vpop.f32.mrb[0].mxu0
  %v1795 = vadd.f32 %v297, %v1794
  %v1796 = vpop.f32.mrb[0].mxu0
  %v1797 = vpop.f32.mrb[0].mxu0
  %v1798 = vadd.f32 %v297, %v1797
  %v1799 = vpop.f32.mrb[0].mxu0
  %1800 = vmatprep.mubr.bf16.mxu0 0
  %1801 = vmatmul.mubr.bf16.gmra.mrb[0].mxu0 %v882
  %v1802 = vpop.f32.mrb[0].mxu0
  %v1803 = vadd.f32 %v297, %v1802
  %v1804 = vpop.f32.mrb[0].mxu0
  %v1805 = vpop.f32.mrb[0].mxu0
  %v1806 = vadd.f32 %v297, %v1805
  %v1807 = vpop.f32.mrb[0].mxu0
  %1808 = vmatprep.mubr.bf16.mxu0 0
  %1809 = vmatmul.mubr.bf16.gmra.mrb[0].mxu0 %v883
  %v1810 = vpop.f32.mrb[0].mxu0
  %v1811 = vadd.f32 %v297, %v1810
  %v1812 = vpop.f32.mrb[0].mxu0
  %v1813 = vpop.f32.mrb[0].mxu0
  %v1814 = vadd.f32 %v297, %v1813
  %v1815 = vpop.f32.mrb[0].mxu0
  %1816 = vmatprep.mubr.bf16.mxu0 0
  %1817 = vmatmul.mubr.bf16.gmra.mrb[0].mxu0 %v884
  %v1818 = vpop.f32.mrb[0].mxu0
  %v1819 = vadd.f32 %v297, %v1818
  %v1820 = vpop.f32.mrb[0].mxu0
  %v1821 = vpop.f32.mrb[0].mxu0
  %v1822 = vadd.f32 %v297, %v1821
  %v1823 = vpop.f32.mrb[0].mxu0
  %1824 = vmatprep.mubr.bf16.mxu0 0
  %1825 = vmatmul.mubr.bf16.gmra.mrb[0].mxu0 %v885
  %v1826 = vpop.f32.mrb[0].mxu0
  %v1827 = vadd.f32 %v297, %v1826
  %v1828 = vpop.f32.mrb[0].mxu0
  %v1829 = vpop.f32.mrb[0].mxu0
  %v1830 = vadd.f32 %v297, %v1829
  %v1831 = vpop.f32.mrb[0].mxu0
  %1832 = vmatprep.mubr.bf16.mxu0 0
  %1833 = vmatmul.mubr.bf16.gmra.mrb[0].mxu0 %v886
  %v1834 = vpop.f32.mrb[0].mxu0
  %v1835 = vadd.f32 %v297, %v1834
  %v1836 = vpop.f32.mrb[0].mxu0
  %v1837 = vpop.f32.mrb[0].mxu0
  %v1838 = vadd.f32 %v297, %v1837
  %v1839 = vpop.f32.mrb[0].mxu0
  %1840 = vmatprep.mubr.bf16.mxu0 0
  %1841 = vmatmul.mubr.bf16.gmra.mrb[0].mxu0 %v887
  %v1842 = vpop.f32.mrb[0].mxu0
  %v1843 = vadd.f32 %v297, %v1842
  %v1844 = vpop.f32.mrb[0].mxu0
  %v1845 = vpop.f32.mrb[0].mxu0
  %v1846 = vadd.f32 %v297, %v1845
  %v1847 = vpop.f32.mrb[0].mxu0
  %1848 = vmatprep.mubr.bf16.mxu0 0
  %1849 = vmatmul.mubr.bf16.gmra.mrb[0].mxu0 %v888
  %v1850 = vpop.f32.mrb[0].mxu0
  %v1851 = vadd.f32 %v297, %v1850
  %v1852 = vpop.f32.mrb[0].mxu0
  %v1853 = vpop.f32.mrb[0].mxu0
  %v1854 = vadd.f32 %v297, %v1853
  %v1855 = vpop.f32.mrb[0].mxu0
  %1856 = vmatprep.mubr.bf16.mxu0 0
  %1857 = vmatmul.mubr.bf16.gmra.mrb[0].mxu0 %v889
  %v1858 = vpop.f32.mrb[0].mxu0
  %v1859 = vadd.f32 %v297, %v1858
  %v1860 = vpop.f32.mrb[0].mxu0
  %v1861 = vpop.f32.mrb[0].mxu0
  %v1862 = vadd.f32 %v297, %v1861
  %v1863 = vpop.f32.mrb[0].mxu0
  %1864 = vmatprep.mubr.bf16.mxu0 0
  %1865 = vmatmul.mubr.bf16.gmra.mrb[0].mxu0 %v890
  %v1866 = vpop.f32.mrb[0].mxu0
  %v1867 = vadd.f32 %v297, %v1866
  %v1868 = vpop.f32.mrb[0].mxu0
  %v1869 = vpop.f32.mrb[0].mxu0
  %v1870 = vadd.f32 %v297, %v1869
  %v1871 = vpop.f32.mrb[0].mxu0
  %1872 = vmatprep.mubr.bf16.mxu0 0
  %1873 = vmatmul.mubr.bf16.gmra.mrb[0].mxu0 %v891
  %v1874 = vpop.f32.mrb[0].mxu0
  %v1875 = vadd.f32 %v297, %v1874
  %v1876 = vpop.f32.mrb[0].mxu0
  %v1877 = vpop.f32.mrb[0].mxu0
  %v1878 = vadd.f32 %v297, %v1877
  %v1879 = vpop.f32.mrb[0].mxu0
  %1880 = vmatprep.mubr.bf16.mxu0 0
  %1881 = vmatmul.mubr.bf16.gmra.mrb[0].mxu0 %v892
  %v1882 = vpop.f32.mrb[0].mxu0
  %v1883 = vadd.f32 %v297, %v1882
  %v1884 = vpop.f32.mrb[0].mxu0
  %v1885 = vpop.f32.mrb[0].mxu0
  %v1886 = vadd.f32 %v297, %v1885
  %v1887 = vpop.f32.mrb[0].mxu0
  %1888 = vmatprep.mubr.bf16.mxu0 0
  %1889 = vmatmul.mubr.bf16.gmra.mrb[0].mxu0 %v893
  %v1890 = vpop.f32.mrb[0].mxu0
  %v1891 = vadd.f32 %v297, %v1890
  %v1892 = vpop.f32.mrb[0].mxu0
  %v1893 = vpop.f32.mrb[0].mxu0
  %v1894 = vadd.f32 %v297, %v1893
  %v1895 = vpop.f32.mrb[0].mxu0
  %1896 = vmatprep.mubr.bf16.mxu0 0
  %1897 = vmatmul.mubr.bf16.gmra.mrb[0].mxu0 %v894
  %v1898 = vpop.f32.mrb[0].mxu0
  %v1899 = vadd.f32 %v297, %v1898
  %v1900 = vpop.f32.mrb[0].mxu0
  %v1901 = vpop.f32.mrb[0].mxu0
  %v1902 = vadd.f32 %v297, %v1901
  %v1903 = vpop.f32.mrb[0].mxu0
  %1904 = vmatprep.mubr.bf16.mxu0 0
  %1905 = vmatmul.mubr.bf16.gmra.mrb[0].mxu0 %v895
  %v1906 = vpop.f32.mrb[0].mxu0
  %v1907 = vadd.f32 %v297, %v1906
  %v1908 = vpop.f32.mrb[0].mxu0
  %v1909 = vpop.f32.mrb[0].mxu0
  %v1910 = vadd.f32 %v297, %v1909
  %v1911 = vpop.f32.mrb[0].mxu0
  %1912 = vmatprep.mubr.bf16.mxu0 0
  %1913 = vmatmul.mubr.bf16.gmra.mrb[0].mxu0 %v896
  %v1914 = vpop.f32.mrb[0].mxu0
  %v1915 = vadd.f32 %v297, %v1914
  %v1916 = vpop.f32.mrb[0].mxu0
  %v1917 = vpop.f32.mrb[0].mxu0
  %v1918 = vadd.f32 %v297, %v1917
  %v1919 = vpop.f32.mrb[0].mxu0
  %1920 = vmatprep.mubr.bf16.mxu0 0
  %1921 = vmatmul.mubr.bf16.gmra.mrb[0].mxu0 %v897
  %v1922 = vpop.f32.mrb[0].mxu0
  %v1923 = vadd.f32 %v297, %v1922
  %v1924 = vpop.f32.mrb[0].mxu0
  %v1925 = vpop.f32.mrb[0].mxu0
  %v1926 = vadd.f32 %v297, %v1925
  %v1927 = vpop.f32.mrb[0].mxu0
  %1928 = vmatprep.mubr.bf16.mxu0 0
  %1929 = vmatmul.mubr.bf16.gmra.mrb[0].mxu0 %v898
  %v1930 = vpop.f32.mrb[0].mxu0
  %v1931 = vadd.f32 %v297, %v1930
  %v1932 = vpop.f32.mrb[0].mxu0
  %v1933 = vpop.f32.mrb[0].mxu0
  %v1934 = vadd.f32 %v297, %v1933
  %v1935 = vpop.f32.mrb[0].mxu0
  %1936 = vmatprep.mubr.bf16.mxu0 0
  %1937 = vmatmul.mubr.bf16.gmra.mrb[0].mxu0 %v899
  %v1938 = vpop.f32.mrb[0].mxu0
  %v1939 = vadd.f32 %v297, %v1938
  %v1940 = vpop.f32.mrb[0].mxu0
  %v1941 = vpop.f32.mrb[0].mxu0
  %v1942 = vadd.f32 %v297, %v1941
  %v1943 = vpop.f32.mrb[0].mxu0
  %1944 = vmatprep.mubr.bf16.mxu0 0
  %1945 = vmatmul.mubr.bf16.gmra.mrb[0].mxu0 %v900
  %v1946 = vpop.f32.mrb[0].mxu0
  %v1947 = vadd.f32 %v297, %v1946
  %v1948 = vpop.f32.mrb[0].mxu0
  %v1949 = vpop.f32.mrb[0].mxu0
  %v1950 = vadd.f32 %v297, %v1949
  %v1951 = vpop.f32.mrb[0].mxu0
  %1952 = vmatprep.mubr.bf16.mxu0 0
  %1953 = vmatmul.mubr.bf16.gmra.mrb[0].mxu0 %v901
  %v1954 = vpop.f32.mrb[0].mxu0
  %v1955 = vadd.f32 %v297, %v1954
  %v1956 = vpop.f32.mrb[0].mxu0
  %v1957 = vpop.f32.mrb[0].mxu0
  %v1958 = vadd.f32 %v297, %v1957
  %v1959 = vpop.f32.mrb[0].mxu0
  %1960 = vmatprep.mubr.bf16.mxu0 0
  %1961 = vmatmul.mubr.bf16.gmra.mrb[0].mxu0 %v902
  %v1962 = vpop.f32.mrb[0].mxu0
  %v1963 = vadd.f32 %v297, %v1962
  %v1964 = vpop.f32.mrb[0].mxu0
  %v1965 = vpop.f32.mrb[0].mxu0
  %v1966 = vadd.f32 %v297, %v1965
  %v1967 = vpop.f32.mrb[0].mxu0
  %1968 = vmatprep.mubr.bf16.mxu0 0
  %1969 = vmatmul.mubr.bf16.gmra.mrb[0].mxu0 %v903
  %v1970 = vpop.f32.mrb[0].mxu0
  %v1971 = vadd.f32 %v297, %v1970
  %v1972 = vpop.f32.mrb[0].mxu0
  %v1973 = vpop.f32.mrb[0].mxu0
  %v1974 = vadd.f32 %v297, %v1973
  %v1975 = vpop.f32.mrb[0].mxu0
  %1976 = vmatprep.mubr.bf16.mxu0 0
  %1977 = vmatmul.mubr.bf16.gmra.mrb[0].mxu0 %v904
  %v1978 = vpop.f32.mrb[0].mxu0
  %v1979 = vadd.f32 %v297, %v1978
  %v1980 = vpop.f32.mrb[0].mxu0
  %v1981 = vpop.f32.mrb[0].mxu0
  %v1982 = vadd.f32 %v297, %v1981
  %v1983 = vpop.f32.mrb[0].mxu0
  %1984 = vmatprep.mubr.bf16.mxu0 0
  %1985 = vmatmul.mubr.bf16.gmra.mrb[0].mxu0 %v905
  %v1986 = vpop.f32.mrb[0].mxu0
  %v1987 = vadd.f32 %v297, %v1986
  %v1988 = vpop.f32.mrb[0].mxu0
  %v1989 = vpop.f32.mrb[0].mxu0
  %v1990 = vadd.f32 %v297, %v1989
  %v1991 = vpop.f32.mrb[0].mxu0
  %1992 = vmatprep.mubr.bf16.mxu0 0
  %1993 = vmatmul.mubr.bf16.gmra.mrb[0].mxu0 %v906
  %v1994 = vpop.f32.mrb[0].mxu0
  %v1995 = vadd.f32 %v297, %v1994
  %v1996 = vpop.f32.mrb[0].mxu0
  %v1997 = vpop.f32.mrb[0].mxu0
  %v1998 = vadd.f32 %v297, %v1997
  %v1999 = vpop.f32.mrb[0].mxu0
  %2000 = vmatprep.mubr.bf16.mxu0 0
  %2001 = vmatmul.mubr.bf16.gmra.mrb[0].mxu0 %v907
  %v2002 = vpop.f32.mrb[0].mxu0
  %v2003 = vadd.f32 %v297, %v2002
  %v2004 = vpop.f32.mrb[0].mxu0
  %v2005 = vpop.f32.mrb[0].mxu0
  %v2006 = vadd.f32 %v297, %v2005
  %v2007 = vpop.f32.mrb[0].mxu0
  %2008 = vmatprep.mubr.bf16.mxu0 0
  %2009 = vmatmul.mubr.bf16.gmra.mrb[0].mxu0 %v908
  %v2010 = vpop.f32.mrb[0].mxu0
  %v2011 = vadd.f32 %v297, %v2010
  %v2012 = vpop.f32.mrb[0].mxu0
  %v2013 = vpop.f32.mrb[0].mxu0
  %v2014 = vadd.f32 %v297, %v2013
  %v2015 = vpop.f32.mrb[0].mxu0
  %2016 = vmatprep.mubr.bf16.mxu0 0
  %2017 = vmatmul.mubr.bf16.gmra.mrb[0].mxu0 %v909
  %v2018 = vpop.f32.mrb[0].mxu0
  %v2019 = vadd.f32 %v297, %v2018
  %v2020 = vpop.f32.mrb[0].mxu0
  %v2021 = vpop.f32.mrb[0].mxu0
  %v2022 = vadd.f32 %v297, %v2021
  %v2023 = vpop.f32.mrb[0].mxu0
  %2024 = vmatprep.mubr.bf16.mxu0 0
  %2025 = vmatmul.mubr.bf16.gmra.mrb[0].mxu0 %v910
  %v2026 = vpop.f32.mrb[0].mxu0
  %v2027 = vadd.f32 %v297, %v2026
  %v2028 = vpop.f32.mrb[0].mxu0
  %v2029 = vpop.f32.mrb[0].mxu0
  %v2030 = vadd.f32 %v297, %v2029
  %v2031 = vpop.f32.mrb[0].mxu0
  %2032 = vmatprep.mubr.bf16.mxu0 0
  %2033 = vmatmul.mubr.bf16.gmra.mrb[0].mxu0 %v911
  %v2034 = vpop.f32.mrb[0].mxu0
  %v2035 = vadd.f32 %v297, %v2034
  %v2036 = vpop.f32.mrb[0].mxu0
  %v2037 = vpop.f32.mrb[0].mxu0
  %v2038 = vadd.f32 %v297, %v2037
  %v2039 = vpop.f32.mrb[0].mxu0
  %2040 = vmatprep.mubr.bf16.mxu0 0
  %2041 = vmatmul.mubr.bf16.gmra.mrb[0].mxu0 %v912
  %v2042 = vpop.f32.mrb[0].mxu0
  %v2043 = vadd.f32 %v297, %v2042
  %v2044 = vpop.f32.mrb[0].mxu0
  %v2045 = vpop.f32.mrb[0].mxu0
  %v2046 = vadd.f32 %v297, %v2045
  %v2047 = vpop.f32.mrb[0].mxu0
  %2048 = vmatprep.mubr.bf16.mxu0 0
  %2049 = vmatmul.mubr.bf16.gmra.mrb[0].mxu0 %v913
  %v2050 = vpop.f32.mrb[0].mxu0
  %v2051 = vadd.f32 %v297, %v2050
  %v2052 = vpop.f32.mrb[0].mxu0
  %v2053 = vpop.f32.mrb[0].mxu0
  %v2054 = vadd.f32 %v297, %v2053
  %v2055 = vpop.f32.mrb[0].mxu0
  %2056 = vmatprep.mubr.bf16.mxu0 0
  %2057 = vmatmul.mubr.bf16.gmra.mrb[0].mxu0 %v914
  %v2058 = vpop.f32.mrb[0].mxu0
  %v2059 = vadd.f32 %v297, %v2058
  %v2060 = vpop.f32.mrb[0].mxu0
  %v2061 = vpop.f32.mrb[0].mxu0
  %v2062 = vadd.f32 %v297, %v2061
  %v2063 = vpop.f32.mrb[0].mxu0
  %2064 = vmatprep.mubr.bf16.mxu0 0
  %2065 = vmatmul.mubr.bf16.gmra.mrb[0].mxu0 %v915
  %v2066 = vpop.f32.mrb[0].mxu0
  %v2067 = vadd.f32 %v297, %v2066
  %v2068 = vpop.f32.mrb[0].mxu0
  %v2069 = vpop.f32.mrb[0].mxu0
  %v2070 = vadd.f32 %v297, %v2069
  %v2071 = vpop.f32.mrb[0].mxu0
  %2072 = vmatprep.mubr.bf16.mxu0 0
  %2073 = vmatmul.mubr.bf16.gmra.mrb[0].mxu0 %v916
  %v2074 = vpop.f32.mrb[0].mxu0
  %v2075 = vadd.f32 %v297, %v2074
  %v2076 = vpop.f32.mrb[0].mxu0
  %v2077 = vpop.f32.mrb[0].mxu0
  %v2078 = vadd.f32 %v297, %v2077
  %v2079 = vpop.f32.mrb[0].mxu0
  %2080 = vmatprep.mubr.bf16.mxu0 0
  %2081 = vmatmul.mubr.bf16.gmra.mrb[0].mxu0 %v917
  %v2082 = vpop.f32.mrb[0].mxu0
  %v2083 = vadd.f32 %v297, %v2082
  %v2084 = vpop.f32.mrb[0].mxu0
  %v2085 = vpop.f32.mrb[0].mxu0
  %v2086 = vadd.f32 %v297, %v2085
  %v2087 = vpop.f32.mrb[0].mxu0
  %2088 = vmatprep.mubr.bf16.mxu0 0
  %2089 = vmatmul.mubr.bf16.gmra.mrb[0].mxu0 %v918
  %v2090 = vpop.f32.mrb[0].mxu0
  %v2091 = vadd.f32 %v297, %v2090
  %v2092 = vpop.f32.mrb[0].mxu0
  %v2093 = vpop.f32.mrb[0].mxu0
  %v2094 = vadd.f32 %v297, %v2093
  %v2095 = vpop.f32.mrb[0].mxu0
  %2096 = vmatprep.mubr.bf16.mxu0 0
  %2097 = vmatmul.mubr.bf16.gmra.mrb[0].mxu0 %v919
  %v2098 = vpop.f32.mrb[0].mxu0
  %v2099 = vadd.f32 %v297, %v2098
  %v2100 = vpop.f32.mrb[0].mxu0
  %v2101 = vpop.f32.mrb[0].mxu0
  %v2102 = vadd.f32 %v297, %v2101
  %v2103 = vpop.f32.mrb[0].mxu0
  %2104 = vmatprep.mubr.bf16.mxu0 0
  %2105 = vmatmul.mubr.bf16.gmra.mrb[0].mxu0 %v920
  %v2106 = vpop.f32.mrb[0].mxu0
  %v2107 = vadd.f32 %v297, %v2106
  %v2108 = vpop.f32.mrb[0].mxu0
  %v2109 = vpop.f32.mrb[0].mxu0
  %v2110 = vadd.f32 %v297, %v2109
  %v2111 = vpop.f32.mrb[0].mxu0
  %2112 = vmatprep.mubr.bf16.mxu0 0
  %2113 = vmatmul.mubr.bf16.gmra.mrb[0].mxu0 %v921
  %v2114 = vpop.f32.mrb[0].mxu0
  %v2115 = vadd.f32 %v297, %v2114
  %v2116 = vpop.f32.mrb[0].mxu0
  %v2117 = vpop.f32.mrb[0].mxu0
  %v2118 = vadd.f32 %v297, %v2117
  %v2119 = vpop.f32.mrb[0].mxu0
  %2120 = vmatprep.mubr.bf16.mxu0 0
  %2121 = vmatmul.mubr.bf16.gmra.mrb[0].mxu0 %v922
  %v2122 = vpop.f32.mrb[0].mxu0
  %v2123 = vadd.f32 %v297, %v2122
  %v2124 = vpop.f32.mrb[0].mxu0
  %v2125 = vpop.f32.mrb[0].mxu0
  %v2126 = vadd.f32 %v297, %v2125
  %v2127 = vpop.f32.mrb[0].mxu0
  %2128 = vdwg.mxu0
  %v2129 = vmax.f32 %v1131, 0.0
  %v2130 = vmax.f32 %v1134, 0.0
  %v2131 = vmax.f32 %v1139, 0.0
  %v2132 = vmax.f32 %v1142, 0.0
  %v2133 = vmax.f32 %v1147, 0.0
  %v2134 = vmax.f32 %v1150, 0.0
  %v2135 = vmax.f32 %v1155, 0.0
  %v2136 = vmax.f32 %v1158, 0.0
  %v2137 = vmax.f32 %v1163, 0.0
  %v2138 = vmax.f32 %v1166, 0.0
  %v2139 = vmax.f32 %v1171, 0.0
  %v2140 = vmax.f32 %v1174, 0.0
  %v2141 = vmax.f32 %v1179, 0.0
  %v2142 = vmax.f32 %v1182, 0.0
  %v2143 = vmax.f32 %v1187, 0.0
  %v2144 = vmax.f32 %v1190, 0.0
  %v2145 = vmax.f32 %v1195, 0.0
  %v2146 = vmax.f32 %v1198, 0.0
  %v2147 = vmax.f32 %v1203, 0.0
  %v2148 = vmax.f32 %v1206, 0.0
  %v2149 = vmax.f32 %v1211, 0.0
  %v2150 = vmax.f32 %v1214, 0.0
  %v2151 = vmax.f32 %v1219, 0.0
  %v2152 = vmax.f32 %v1222, 0.0
  %v2153 = vmax.f32 %v1227, 0.0
  %v2154 = vmax.f32 %v1230, 0.0
  %v2155 = vmax.f32 %v1235, 0.0
  %v2156 = vmax.f32 %v1238, 0.0
  %v2157 = vmax.f32 %v1243, 0.0
  %v2158 = vmax.f32 %v1246, 0.0
  %v2159 = vmax.f32 %v1251, 0.0
  %v2160 = vmax.f32 %v1254, 0.0
  %v2161 = vmax.f32 %v1259, 0.0
  %v2162 = vmax.f32 %v1262, 0.0
  %v2163 = vmax.f32 %v1267, 0.0
  %v2164 = vmax.f32 %v1270, 0.0
  %v2165 = vmax.f32 %v1275, 0.0
  %v2166 = vmax.f32 %v1278, 0.0
  %v2167 = vmax.f32 %v1283, 0.0
  %v2168 = vmax.f32 %v1286, 0.0
  %v2169 = vmax.f32 %v1291, 0.0
  %v2170 = vmax.f32 %v1294, 0.0
  %v2171 = vmax.f32 %v1299, 0.0
  %v2172 = vmax.f32 %v1302, 0.0
  %v2173 = vmax.f32 %v1307, 0.0
  %v2174 = vmax.f32 %v1310, 0.0
  %v2175 = vmax.f32 %v1315, 0.0
  %v2176 = vmax.f32 %v1318, 0.0
  %v2177 = vmax.f32 %v1323, 0.0
  %v2178 = vmax.f32 %v1326, 0.0
  %v2179 = vmax.f32 %v1331, 0.0
  %v2180 = vmax.f32 %v1334, 0.0
  %v2181 = vmax.f32 %v1339, 0.0
  %v2182 = vmax.f32 %v1342, 0.0
  %v2183 = vmax.f32 %v1347, 0.0
  %v2184 = vmax.f32 %v1350, 0.0
  %v2185 = vmax.f32 %v1355, 0.0
  %v2186 = vmax.f32 %v1358, 0.0
  %v2187 = vmax.f32 %v1363, 0.0
  %v2188 = vmax.f32 %v1366, 0.0
  %v2189 = vmax.f32 %v1371, 0.0
  %v2190 = vmax.f32 %v1374, 0.0
  %v2191 = vmax.f32 %v1379, 0.0
  %v2192 = vmax.f32 %v1382, 0.0
  %v2193 = vmax.f32 %v1387, 0.0
  %v2194 = vmax.f32 %v1390, 0.0
  %v2195 = vmax.f32 %v1395, 0.0
  %v2196 = vmax.f32 %v1398, 0.0
  %v2197 = vmax.f32 %v1403, 0.0
  %v2198 = vmax.f32 %v1406, 0.0
  %v2199 = vmax.f32 %v1411, 0.0
  %v2200 = vmax.f32 %v1414, 0.0
  %v2201 = vmax.f32 %v1419, 0.0
  %v2202 = vmax.f32 %v1422, 0.0
  %v2203 = vmax.f32 %v1427, 0.0
  %v2204 = vmax.f32 %v1430, 0.0
  %v2205 = vmax.f32 %v1435, 0.0
  %v2206 = vmax.f32 %v1438, 0.0
  %v2207 = vmax.f32 %v1443, 0.0
  %v2208 = vmax.f32 %v1446, 0.0
  %v2209 = vmax.f32 %v1451, 0.0
  %v2210 = vmax.f32 %v1454, 0.0
  %v2211 = vmax.f32 %v1459, 0.0
  %v2212 = vmax.f32 %v1462, 0.0
  %v2213 = vmax.f32 %v1467, 0.0
  %v2214 = vmax.f32 %v1470, 0.0
  %v2215 = vmax.f32 %v1475, 0.0
  %v2216 = vmax.f32 %v1478, 0.0
  %v2217 = vmax.f32 %v1483, 0.0
  %v2218 = vmax.f32 %v1486, 0.0
  %v2219 = vmax.f32 %v1491, 0.0
  %v2220 = vmax.f32 %v1494, 0.0
  %v2221 = vmax.f32 %v1499, 0.0
  %v2222 = vmax.f32 %v1502, 0.0
  %v2223 = vmax.f32 %v1507, 0.0
  %v2224 = vmax.f32 %v1510, 0.0
  %v2225 = vmax.f32 %v1515, 0.0
  %v2226 = vmax.f32 %v1518, 0.0
  %v2227 = vmax.f32 %v1523, 0.0
  %v2228 = vmax.f32 %v1526, 0.0
  %v2229 = vmax.f32 %v1531, 0.0
  %v2230 = vmax.f32 %v1534, 0.0
  %v2231 = vmax.f32 %v1539, 0.0
  %v2232 = vmax.f32 %v1542, 0.0
  %v2233 = vmax.f32 %v1547, 0.0
  %v2234 = vmax.f32 %v1550, 0.0
  %v2235 = vmax.f32 %v1555, 0.0
  %v2236 = vmax.f32 %v1558, 0.0
  %v2237 = vmax.f32 %v1563, 0.0
  %v2238 = vmax.f32 %v1566, 0.0
  %v2239 = vmax.f32 %v1571, 0.0
  %v2240 = vmax.f32 %v1574, 0.0
  %v2241 = vmax.f32 %v1579, 0.0
  %v2242 = vmax.f32 %v1582, 0.0
  %v2243 = vmax.f32 %v1587, 0.0
  %v2244 = vmax.f32 %v1590, 0.0
  %v2245 = vmax.f32 %v1595, 0.0
  %v2246 = vmax.f32 %v1598, 0.0
  %v2247 = vmax.f32 %v1603, 0.0
  %v2248 = vmax.f32 %v1606, 0.0
  %v2249 = vmax.f32 %v1611, 0.0
  %v2250 = vmax.f32 %v1614, 0.0
  %v2251 = vmax.f32 %v1619, 0.0
  %v2252 = vmax.f32 %v1622, 0.0
  %v2253 = vmax.f32 %v1627, 0.0
  %v2254 = vmax.f32 %v1630, 0.0
  %v2255 = vmax.f32 %v1635, 0.0
  %v2256 = vmax.f32 %v1638, 0.0
  %v2257 = vmax.f32 %v1643, 0.0
  %v2258 = vmax.f32 %v1646, 0.0
  %v2259 = vmax.f32 %v1651, 0.0
  %v2260 = vmax.f32 %v1654, 0.0
  %v2261 = vmax.f32 %v1659, 0.0
  %v2262 = vmax.f32 %v1662, 0.0
  %v2263 = vmax.f32 %v1667, 0.0
  %v2264 = vmax.f32 %v1670, 0.0
  %v2265 = vmax.f32 %v1675, 0.0
  %v2266 = vmax.f32 %v1678, 0.0
  %v2267 = vmax.f32 %v1683, 0.0
  %v2268 = vmax.f32 %v1686, 0.0
  %v2269 = vmax.f32 %v1691, 0.0
  %v2270 = vmax.f32 %v1694, 0.0
  %v2271 = vmax.f32 %v1699, 0.0
  %v2272 = vmax.f32 %v1702, 0.0
  %v2273 = vmax.f32 %v1707, 0.0
  %v2274 = vmax.f32 %v1710, 0.0
  %v2275 = vmax.f32 %v1715, 0.0
  %v2276 = vmax.f32 %v1718, 0.0
  %v2277 = vmax.f32 %v1723, 0.0
  %v2278 = vmax.f32 %v1726, 0.0
  %v2279 = vmax.f32 %v1731, 0.0
  %v2280 = vmax.f32 %v1734, 0.0
  %v2281 = vmax.f32 %v1739, 0.0
  %v2282 = vmax.f32 %v1742, 0.0
  %v2283 = vmax.f32 %v1747, 0.0
  %v2284 = vmax.f32 %v1750, 0.0
  %v2285 = vmax.f32 %v1755, 0.0
  %v2286 = vmax.f32 %v1758, 0.0
  %v2287 = vmax.f32 %v1763, 0.0
  %v2288 = vmax.f32 %v1766, 0.0
  %v2289 = vmax.f32 %v1771, 0.0
  %v2290 = vmax.f32 %v1774, 0.0
  %v2291 = vmax.f32 %v1779, 0.0
  %v2292 = vmax.f32 %v1782, 0.0
  %v2293 = vmax.f32 %v1787, 0.0
  %v2294 = vmax.f32 %v1790, 0.0
  %v2295 = vmax.f32 %v1795, 0.0
  %v2296 = vmax.f32 %v1798, 0.0
  %v2297 = vmax.f32 %v1803, 0.0
  %v2298 = vmax.f32 %v1806, 0.0
  %v2299 = vmax.f32 %v1811, 0.0
  %v2300 = vmax.f32 %v1814, 0.0
  %v2301 = vmax.f32 %v1819, 0.0
  %v2302 = vmax.f32 %v1822, 0.0
  %v2303 = vmax.f32 %v1827, 0.0
  %v2304 = vmax.f32 %v1830, 0.0
  %v2305 = vmax.f32 %v1835, 0.0
  %v2306 = vmax.f32 %v1838, 0.0
  %v2307 = vmax.f32 %v1843, 0.0
  %v2308 = vmax.f32 %v1846, 0.0
  %v2309 = vmax.f32 %v1851, 0.0
  %v2310 = vmax.f32 %v1854, 0.0
  %v2311 = vmax.f32 %v1859, 0.0
  %v2312 = vmax.f32 %v1862, 0.0
  %v2313 = vmax.f32 %v1867, 0.0
  %v2314 = vmax.f32 %v1870, 0.0
  %v2315 = vmax.f32 %v1875, 0.0
  %v2316 = vmax.f32 %v1878, 0.0
  %v2317 = vmax.f32 %v1883, 0.0
  %v2318 = vmax.f32 %v1886, 0.0
  %v2319 = vmax.f32 %v1891, 0.0
  %v2320 = vmax.f32 %v1894, 0.0
  %v2321 = vmax.f32 %v1899, 0.0
  %v2322 = vmax.f32 %v1902, 0.0
  %v2323 = vmax.f32 %v1907, 0.0
  %v2324 = vmax.f32 %v1910, 0.0
  %v2325 = vmax.f32 %v1915, 0.0
  %v2326 = vmax.f32 %v1918, 0.0
  %v2327 = vmax.f32 %v1923, 0.0
  %v2328 = vmax.f32 %v1926, 0.0
  %v2329 = vmax.f32 %v1931, 0.0
  %v2330 = vmax.f32 %v1934, 0.0
  %v2331 = vmax.f32 %v1939, 0.0
  %v2332 = vmax.f32 %v1942, 0.0
  %v2333 = vmax.f32 %v1947, 0.0
  %v2334 = vmax.f32 %v1950, 0.0
  %v2335 = vmax.f32 %v1955, 0.0
  %v2336 = vmax.f32 %v1958, 0.0
  %v2337 = vmax.f32 %v1963, 0.0
  %v2338 = vmax.f32 %v1966, 0.0
  %v2339 = vmax.f32 %v1971, 0.0
  %v2340 = vmax.f32 %v1974, 0.0
  %v2341 = vmax.f32 %v1979, 0.0
  %v2342 = vmax.f32 %v1982, 0.0
  %v2343 = vmax.f32 %v1987, 0.0
  %v2344 = vmax.f32 %v1990, 0.0
  %v2345 = vmax.f32 %v1995, 0.0
  %v2346 = vmax.f32 %v1998, 0.0
  %v2347 = vmax.f32 %v2003, 0.0
  %v2348 = vmax.f32 %v2006, 0.0
  %v2349 = vmax.f32 %v2011, 0.0
  %v2350 = vmax.f32 %v2014, 0.0
  %v2351 = vmax.f32 %v2019, 0.0
  %v2352 = vmax.f32 %v2022, 0.0
  %v2353 = vmax.f32 %v2027, 0.0
  %v2354 = vmax.f32 %v2030, 0.0
  %v2355 = vmax.f32 %v2035, 0.0
  %v2356 = vmax.f32 %v2038, 0.0
  %v2357 = vmax.f32 %v2043, 0.0
  %v2358 = vmax.f32 %v2046, 0.0
  %v2359 = vmax.f32 %v2051, 0.0
  %v2360 = vmax.f32 %v2054, 0.0
  %v2361 = vmax.f32 %v2059, 0.0
  %v2362 = vmax.f32 %v2062, 0.0
  %v2363 = vmax.f32 %v2067, 0.0
  %v2364 = vmax.f32 %v2070, 0.0
  %v2365 = vmax.f32 %v2075, 0.0
  %v2366 = vmax.f32 %v2078, 0.0
  %v2367 = vmax.f32 %v2083, 0.0
  %v2368 = vmax.f32 %v2086, 0.0
  %v2369 = vmax.f32 %v2091, 0.0
  %v2370 = vmax.f32 %v2094, 0.0
  %v2371 = vmax.f32 %v2099, 0.0
  %v2372 = vmax.f32 %v2102, 0.0
  %v2373 = vmax.f32 %v2107, 0.0
  %v2374 = vmax.f32 %v2110, 0.0
  %v2375 = vmax.f32 %v2115, 0.0
  %v2376 = vmax.f32 %v2118, 0.0
  %v2377 = vmax.f32 %v2123, 0.0
  %v2378 = vmax.f32 %v2126, 0.0
  %2379 = vst [vmem:[#allocation2] sm:$0xff] %v2129
  %2380 = vst [vmem:[#allocation2 + $0x8] sm:$0xff] %v2130
  %2381 = vst [vmem:[#allocation2 + $0x10] sm:$0xff] %v2131
  %2382 = vst [vmem:[#allocation2 + $0x18] sm:$0xff] %v2132
  %2383 = vst [vmem:[#allocation2 + $0x20] sm:$0xff] %v2133
  %2384 = vst [vmem:[#allocation2 + $0x28] sm:$0xff] %v2134
  %2385 = vst [vmem:[#allocation2 + $0x30] sm:$0xff] %v2135
  %2386 = vst [vmem:[#allocation2 + $0x38] sm:$0xff] %v2136
  %2387 = vst [vmem:[#allocation2 + $0x40] sm:$0xff] %v2137
  %2388 = vst [vmem:[#allocation2 + $0x48] sm:$0xff] %v2138
  %2389 = vst [vmem:[#allocation2 + $0x50] sm:$0xff] %v2139
  %2390 = vst [vmem:[#allocation2 + $0x58] sm:$0xff] %v2140
  %2391 = vst [vmem:[#allocation2 + $0x60] sm:$0xff] %v2141
  %2392 = vst [vmem:[#allocation2 + $0x68] sm:$0xff] %v2142
  %2393 = vst [vmem:[#allocation2 + $0x70] sm:$0xff] %v2143
  %2394 = vst [vmem:[#allocation2 + $0x78] sm:$0xff] %v2144
  %2395 = vst [vmem:[#allocation2 + $0x80] sm:$0xff] %v2145
  %2396 = vst [vmem:[#allocation2 + $0x88] sm:$0xff] %v2146
  %2397 = vst [vmem:[#allocation2 + $0x90] sm:$0xff] %v2147
  %2398 = vst [vmem:[#allocation2 + $0x98] sm:$0xff] %v2148
  %2399 = vst [vmem:[#allocation2 + $0xa0] sm:$0xff] %v2149
  %2400 = vst [vmem:[#allocation2 + $0xa8] sm:$0xff] %v2150
  %2401 = vst [vmem:[#allocation2 + $0xb0] sm:$0xff] %v2151
  %2402 = vst [vmem:[#allocation2 + $0xb8] sm:$0xff] %v2152
  %2403 = vst [vmem:[#allocation2 + $0xc0] sm:$0xff] %v2153
  %2404 = vst [vmem:[#allocation2 + $0xc8] sm:$0xff] %v2154
  %2405 = vst [vmem:[#allocation2 + $0xd0] sm:$0xff] %v2155
  %2406 = vst [vmem:[#allocation2 + $0xd8] sm:$0xff] %v2156
  %2407 = vst [vmem:[#allocation2 + $0xe0] sm:$0xff] %v2157
  %2408 = vst [vmem:[#allocation2 + $0xe8] sm:$0xff] %v2158
  %2409 = vst [vmem:[#allocation2 + $0xf0] sm:$0xff] %v2159
  %2410 = vst [vmem:[#allocation2 + $0xf8] sm:$0xff] %v2160
  %2411 = vst [vmem:[#allocation2 + $0x100] sm:$0xff] %v2161
  %2412 = vst [vmem:[#allocation2 + $0x108] sm:$0xff] %v2162
  %2413 = vst [vmem:[#allocation2 + $0x110] sm:$0xff] %v2163
  %2414 = vst [vmem:[#allocation2 + $0x118] sm:$0xff] %v2164
  %2415 = vst [vmem:[#allocation2 + $0x120] sm:$0xff] %v2165
  %2416 = vst [vmem:[#allocation2 + $0x128] sm:$0xff] %v2166
  %2417 = vst [vmem:[#allocation2 + $0x130] sm:$0xff] %v2167
  %2418 = vst [vmem:[#allocation2 + $0x138] sm:$0xff] %v2168
  %2419 = vst [vmem:[#allocation2 + $0x140] sm:$0xff] %v2169
  %2420 = vst [vmem:[#allocation2 + $0x148] sm:$0xff] %v2170
  %2421 = vst [vmem:[#allocation2 + $0x150] sm:$0xff] %v2171
  %2422 = vst [vmem:[#allocation2 + $0x158] sm:$0xff] %v2172
  %2423 = vst [vmem:[#allocation2 + $0x160] sm:$0xff] %v2173
  %2424 = vst [vmem:[#allocation2 + $0x168] sm:$0xff] %v2174
  %2425 = vst [vmem:[#allocation2 + $0x170] sm:$0xff] %v2175
  %2426 = vst [vmem:[#allocation2 + $0x178] sm:$0xff] %v2176
  %2427 = vst [vmem:[#allocation2 + $0x180] sm:$0xff] %v2177
  %2428 = vst [vmem:[#allocation2 + $0x188] sm:$0xff] %v2178
  %2429 = vst [vmem:[#allocation2 + $0x190] sm:$0xff] %v2179
  %2430 = vst [vmem:[#allocation2 + $0x198] sm:$0xff] %v2180
  %2431 = vst [vmem:[#allocation2 + $0x1a0] sm:$0xff] %v2181
  %2432 = vst [vmem:[#allocation2 + $0x1a8] sm:$0xff] %v2182
  %2433 = vst [vmem:[#allocation2 + $0x1b0] sm:$0xff] %v2183
  %2434 = vst [vmem:[#allocation2 + $0x1b8] sm:$0xff] %v2184
  %2435 = vst [vmem:[#allocation2 + $0x1c0] sm:$0xff] %v2185
  %2436 = vst [vmem:[#allocation2 + $0x1c8] sm:$0xff] %v2186
  %2437 = vst [vmem:[#allocation2 + $0x1d0] sm:$0xff] %v2187
  %2438 = vst [vmem:[#allocation2 + $0x1d8] sm:$0xff] %v2188
  %2439 = vst [vmem:[#allocation2 + $0x1e0] sm:$0xff] %v2189
  %2440 = vst [vmem:[#allocation2 + $0x1e8] sm:$0xff] %v2190
  %2441 = vst [vmem:[#allocation2 + $0x1f0] sm:$0xff] %v2191
  %2442 = vst [vmem:[#allocation2 + $0x1f8] sm:$0xff] %v2192
  %2443 = vst [vmem:[#allocation2 + $0x200] sm:$0xff] %v2193
  %2444 = vst [vmem:[#allocation2 + $0x208] sm:$0xff] %v2194
  %2445 = vst [vmem:[#allocation2 + $0x210] sm:$0xff] %v2195
  %2446 = vst [vmem:[#allocation2 + $0x218] sm:$0xff] %v2196
  %2447 = vst [vmem:[#allocation2 + $0x220] sm:$0xff] %v2197
  %2448 = vst [vmem:[#allocation2 + $0x228] sm:$0xff] %v2198
  %2449 = vst [vmem:[#allocation2 + $0x230] sm:$0xff] %v2199
  %2450 = vst [vmem:[#allocation2 + $0x238] sm:$0xff] %v2200
  %2451 = vst [vmem:[#allocation2 + $0x240] sm:$0xff] %v2201
  %2452 = vst [vmem:[#allocation2 + $0x248] sm:$0xff] %v2202
  %2453 = vst [vmem:[#allocation2 + $0x250] sm:$0xff] %v2203
  %2454 = vst [vmem:[#allocation2 + $0x258] sm:$0xff] %v2204
  %2455 = vst [vmem:[#allocation2 + $0x260] sm:$0xff] %v2205
  %2456 = vst [vmem:[#allocation2 + $0x268] sm:$0xff] %v2206
  %2457 = vst [vmem:[#allocation2 + $0x270] sm:$0xff] %v2207
  %2458 = vst [vmem:[#allocation2 + $0x278] sm:$0xff] %v2208
  %2459 = vst [vmem:[#allocation2 + $0x280] sm:$0xff] %v2209
  %2460 = vst [vmem:[#allocation2 + $0x288] sm:$0xff] %v2210
  %2461 = vst [vmem:[#allocation2 + $0x290] sm:$0xff] %v2211
  %2462 = vst [vmem:[#allocation2 + $0x298] sm:$0xff] %v2212
  %2463 = vst [vmem:[#allocation2 + $0x2a0] sm:$0xff] %v2213
  %2464 = vst [vmem:[#allocation2 + $0x2a8] sm:$0xff] %v2214
  %2465 = vst [vmem:[#allocation2 + $0x2b0] sm:$0xff] %v2215
  %2466 = vst [vmem:[#allocation2 + $0x2b8] sm:$0xff] %v2216
  %2467 = vst [vmem:[#allocation2 + $0x2c0] sm:$0xff] %v2217
  %2468 = vst [vmem:[#allocation2 + $0x2c8] sm:$0xff] %v2218
  %2469 = vst [vmem:[#allocation2 + $0x2d0] sm:$0xff] %v2219
  %2470 = vst [vmem:[#allocation2 + $0x2d8] sm:$0xff] %v2220
  %2471 = vst [vmem:[#allocation2 + $0x2e0] sm:$0xff] %v2221
  %2472 = vst [vmem:[#allocation2 + $0x2e8] sm:$0xff] %v2222
  %2473 = vst [vmem:[#allocation2 + $0x2f0] sm:$0xff] %v2223
  %2474 = vst [vmem:[#allocation2 + $0x2f8] sm:$0xff] %v2224
  %2475 = vst [vmem:[#allocation2 + $0x300] sm:$0xff] %v2225
  %2476 = vst [vmem:[#allocation2 + $0x308] sm:$0xff] %v2226
  %2477 = vst [vmem:[#allocation2 + $0x310] sm:$0xff] %v2227
  %2478 = vst [vmem:[#allocation2 + $0x318] sm:$0xff] %v2228
  %2479 = vst [vmem:[#allocation2 + $0x320] sm:$0xff] %v2229
  %2480 = vst [vmem:[#allocation2 + $0x328] sm:$0xff] %v2230
  %2481 = vst [vmem:[#allocation2 + $0x330] sm:$0xff] %v2231
  %2482 = vst [vmem:[#allocation2 + $0x338] sm:$0xff] %v2232
  %2483 = vst [vmem:[#allocation2 + $0x340] sm:$0xff] %v2233
  %2484 = vst [vmem:[#allocation2 + $0x348] sm:$0xff] %v2234
  %2485 = vst [vmem:[#allocation2 + $0x350] sm:$0xff] %v2235
  %2486 = vst [vmem:[#allocation2 + $0x358] sm:$0xff] %v2236
  %2487 = vst [vmem:[#allocation2 + $0x360] sm:$0xff] %v2237
  %2488 = vst [vmem:[#allocation2 + $0x368] sm:$0xff] %v2238
  %2489 = vst [vmem:[#allocation2 + $0x370] sm:$0xff] %v2239
  %2490 = vst [vmem:[#allocation2 + $0x378] sm:$0xff] %v2240
  %2491 = vst [vmem:[#allocation2 + $0x380] sm:$0xff] %v2241
  %2492 = vst [vmem:[#allocation2 + $0x388] sm:$0xff] %v2242
  %2493 = vst [vmem:[#allocation2 + $0x390] sm:$0xff] %v2243
  %2494 = vst [vmem:[#allocation2 + $0x398] sm:$0xff] %v2244
  %2495 = vst [vmem:[#allocation2 + $0x3a0] sm:$0xff] %v2245
  %2496 = vst [vmem:[#allocation2 + $0x3a8] sm:$0xff] %v2246
  %2497 = vst [vmem:[#allocation2 + $0x3b0] sm:$0xff] %v2247
  %2498 = vst [vmem:[#allocation2 + $0x3b8] sm:$0xff] %v2248
  %2499 = vst [vmem:[#allocation2 + $0x3c0] sm:$0xff] %v2249
  %2500 = vst [vmem:[#allocation2 + $0x3c8] sm:$0xff] %v2250
  %2501 = vst [vmem:[#allocation2 + $0x3d0] sm:$0xff] %v2251
  %2502 = vst [vmem:[#allocation2 + $0x3d8] sm:$0xff] %v2252
  %2503 = vst [vmem:[#allocation2 + $0x3e0] sm:$0xff] %v2253
  %2504 = vst [vmem:[#allocation2 + $0x3e8] sm:$0xff] %v2254
  %2505 = vst [vmem:[#allocation2 + $0x3f0] sm:$0xff] %v2255
  %2506 = vst [vmem:[#allocation2 + $0x3f8] sm:$0xff] %v2256
  %2507 = vst [vmem:[#allocation2 + $0x400] sm:$0xff] %v2257
  %2508 = vst [vmem:[#allocation2 + $0x408] sm:$0xff] %v2258
  %2509 = vst [vmem:[#allocation2 + $0x410] sm:$0xff] %v2259
  %2510 = vst [vmem:[#allocation2 + $0x418] sm:$0xff] %v2260
  %2511 = vst [vmem:[#allocation2 + $0x420] sm:$0xff] %v2261
  %2512 = vst [vmem:[#allocation2 + $0x428] sm:$0xff] %v2262
  %2513 = vst [vmem:[#allocation2 + $0x430] sm:$0xff] %v2263
  %2514 = vst [vmem:[#allocation2 + $0x438] sm:$0xff] %v2264
  %2515 = vst [vmem:[#allocation2 + $0x440] sm:$0xff] %v2265
  %2516 = vst [vmem:[#allocation2 + $0x448] sm:$0xff] %v2266
  %2517 = vst [vmem:[#allocation2 + $0x450] sm:$0xff] %v2267
  %2518 = vst [vmem:[#allocation2 + $0x458] sm:$0xff] %v2268
  %2519 = vst [vmem:[#allocation2 + $0x460] sm:$0xff] %v2269
  %2520 = vst [vmem:[#allocation2 + $0x468] sm:$0xff] %v2270
  %2521 = vst [vmem:[#allocation2 + $0x470] sm:$0xff] %v2271
  %2522 = vst [vmem:[#allocation2 + $0x478] sm:$0xff] %v2272
  %2523 = vst [vmem:[#allocation2 + $0x480] sm:$0xff] %v2273
  %2524 = vst [vmem:[#allocation2 + $0x488] sm:$0xff] %v2274
  %2525 = vst [vmem:[#allocation2 + $0x490] sm:$0xff] %v2275
  %2526 = vst [vmem:[#allocation2 + $0x498] sm:$0xff] %v2276
  %2527 = vst [vmem:[#allocation2 + $0x4a0] sm:$0xff] %v2277
  %2528 = vst [vmem:[#allocation2 + $0x4a8] sm:$0xff] %v2278
  %2529 = vst [vmem:[#allocation2 + $0x4b0] sm:$0xff] %v2279
  %2530 = vst [vmem:[#allocation2 + $0x4b8] sm:$0xff] %v2280
  %2531 = vst [vmem:[#allocation2 + $0x4c0] sm:$0xff] %v2281
  %2532 = vst [vmem:[#allocation2 + $0x4c8] sm:$0xff] %v2282
  %2533 = vst [vmem:[#allocation2 + $0x4d0] sm:$0xff] %v2283
  %2534 = vst [vmem:[#allocation2 + $0x4d8] sm:$0xff] %v2284
  %2535 = vst [vmem:[#allocation2 + $0x4e0] sm:$0xff] %v2285
  %2536 = vst [vmem:[#allocation2 + $0x4e8] sm:$0xff] %v2286
  %2537 = vst [vmem:[#allocation2 + $0x4f0] sm:$0xff] %v2287
  %2538 = vst [vmem:[#allocation2 + $0x4f8] sm:$0xff] %v2288
  %2539 = vst [vmem:[#allocation2 + $0x500] sm:$0xff] %v2289
  %2540 = vst [vmem:[#allocation2 + $0x508] sm:$0xff] %v2290
  %2541 = vst [vmem:[#allocation2 + $0x510] sm:$0xff] %v2291
  %2542 = vst [vmem:[#allocation2 + $0x518] sm:$0xff] %v2292
  %2543 = vst [vmem:[#allocation2 + $0x520] sm:$0xff] %v2293
  %2544 = vst [vmem:[#allocation2 + $0x528] sm:$0xff] %v2294
  %2545 = vst [vmem:[#allocation2 + $0x530] sm:$0xff] %v2295
  %2546 = vst [vmem:[#allocation2 + $0x538] sm:$0xff] %v2296
  %2547 = vst [vmem:[#allocation2 + $0x540] sm:$0xff] %v2297
  %2548 = vst [vmem:[#allocation2 + $0x548] sm:$0xff] %v2298
  %2549 = vst [vmem:[#allocation2 + $0x550] sm:$0xff] %v2299
  %2550 = vst [vmem:[#allocation2 + $0x558] sm:$0xff] %v2300
  %2551 = vst [vmem:[#allocation2 + $0x560] sm:$0xff] %v2301
  %2552 = vst [vmem:[#allocation2 + $0x568] sm:$0xff] %v2302
  %2553 = vst [vmem:[#allocation2 + $0x570] sm:$0xff] %v2303
  %2554 = vst [vmem:[#allocation2 + $0x578] sm:$0xff] %v2304
  %2555 = vst [vmem:[#allocation2 + $0x580] sm:$0xff] %v2305
  %2556 = vst [vmem:[#allocation2 + $0x588] sm:$0xff] %v2306
  %2557 = vst [vmem:[#allocation2 + $0x590] sm:$0xff] %v2307
  %2558 = vst [vmem:[#allocation2 + $0x598] sm:$0xff] %v2308
  %2559 = vst [vmem:[#allocation2 + $0x5a0] sm:$0xff] %v2309
  %2560 = vst [vmem:[#allocation2 + $0x5a8] sm:$0xff] %v2310
  %2561 = vst [vmem:[#allocation2 + $0x5b0] sm:$0xff] %v2311
  %2562 = vst [vmem:[#allocation2 + $0x5b8] sm:$0xff] %v2312
  %2563 = vst [vmem:[#allocation2 + $0x5c0] sm:$0xff] %v2313
  %2564 = vst [vmem:[#allocation2 + $0x5c8] sm:$0xff] %v2314
  %2565 = vst [vmem:[#allocation2 + $0x5d0] sm:$0xff] %v2315
  %2566 = vst [vmem:[#allocation2 + $0x5d8] sm:$0xff] %v2316
  %2567 = vst [vmem:[#allocation2 + $0x5e0] sm:$0xff] %v2317
  %2568 = vst [vmem:[#allocation2 + $0x5e8] sm:$0xff] %v2318
  %2569 = vst [vmem:[#allocation2 + $0x5f0] sm:$0xff] %v2319
  %2570 = vst [vmem:[#allocation2 + $0x5f8] sm:$0xff] %v2320
  %2571 = vst [vmem:[#allocation2 + $0x600] sm:$0xff] %v2321
  %2572 = vst [vmem:[#allocation2 + $0x608] sm:$0xff] %v2322
  %2573 = vst [vmem:[#allocation2 + $0x610] sm:$0xff] %v2323
  %2574 = vst [vmem:[#allocation2 + $0x618] sm:$0xff] %v2324
  %2575 = vst [vmem:[#allocation2 + $0x620] sm:$0xff] %v2325
  %2576 = vst [vmem:[#allocation2 + $0x628] sm:$0xff] %v2326
  %2577 = vst [vmem:[#allocation2 + $0x630] sm:$0xff] %v2327
  %2578 = vst [vmem:[#allocation2 + $0x638] sm:$0xff] %v2328
  %2579 = vst [vmem:[#allocation2 + $0x640] sm:$0xff] %v2329
  %2580 = vst [vmem:[#allocation2 + $0x648] sm:$0xff] %v2330
  %2581 = vst [vmem:[#allocation2 + $0x650] sm:$0xff] %v2331
  %2582 = vst [vmem:[#allocation2 + $0x658] sm:$0xff] %v2332
  %2583 = vst [vmem:[#allocation2 + $0x660] sm:$0xff] %v2333
  %2584 = vst [vmem:[#allocation2 + $0x668] sm:$0xff] %v2334
  %2585 = vst [vmem:[#allocation2 + $0x670] sm:$0xff] %v2335
  %2586 = vst [vmem:[#allocation2 + $0x678] sm:$0xff] %v2336
  %2587 = vst [vmem:[#allocation2 + $0x680] sm:$0xff] %v2337
  %2588 = vst [vmem:[#allocation2 + $0x688] sm:$0xff] %v2338
  %2589 = vst [vmem:[#allocation2 + $0x690] sm:$0xff] %v2339
  %2590 = vst [vmem:[#allocation2 + $0x698] sm:$0xff] %v2340
  %2591 = vst [vmem:[#allocation2 + $0x6a0] sm:$0xff] %v2341
  %2592 = vst [vmem:[#allocation2 + $0x6a8] sm:$0xff] %v2342
  %2593 = vst [vmem:[#allocation2 + $0x6b0] sm:$0xff] %v2343
  %2594 = vst [vmem:[#allocation2 + $0x6b8] sm:$0xff] %v2344
  %2595 = vst [vmem:[#allocation2 + $0x6c0] sm:$0xff] %v2345
  %2596 = vst [vmem:[#allocation2 + $0x6c8] sm:$0xff] %v2346
  %2597 = vst [vmem:[#allocation2 + $0x6d0] sm:$0xff] %v2347
  %2598 = vst [vmem:[#allocation2 + $0x6d8] sm:$0xff] %v2348
  %2599 = vst [vmem:[#allocation2 + $0x6e0] sm:$0xff] %v2349
  %2600 = vst [vmem:[#allocation2 + $0x6e8] sm:$0xff] %v2350
  %2601 = vst [vmem:[#allocation2 + $0x6f0] sm:$0xff] %v2351
  %2602 = vst [vmem:[#allocation2 + $0x6f8] sm:$0xff] %v2352
  %2603 = vst [vmem:[#allocation2 + $0x700] sm:$0xff] %v2353
  %2604 = vst [vmem:[#allocation2 + $0x708] sm:$0xff] %v2354
  %2605 = vst [vmem:[#allocation2 + $0x710] sm:$0xff] %v2355
  %2606 = vst [vmem:[#allocation2 + $0x718] sm:$0xff] %v2356
  %2607 = vst [vmem:[#allocation2 + $0x720] sm:$0xff] %v2357
  %2608 = vst [vmem:[#allocation2 + $0x728] sm:$0xff] %v2358
  %2609 = vst [vmem:[#allocation2 + $0x730] sm:$0xff] %v2359
  %2610 = vst [vmem:[#allocation2 + $0x738] sm:$0xff] %v2360
  %2611 = vst [vmem:[#allocation2 + $0x740] sm:$0xff] %v2361
  %2612 = vst [vmem:[#allocation2 + $0x748] sm:$0xff] %v2362
  %2613 = vst [vmem:[#allocation2 + $0x750] sm:$0xff] %v2363
  %2614 = vst [vmem:[#allocation2 + $0x758] sm:$0xff] %v2364
  %2615 = vst [vmem:[#allocation2 + $0x760] sm:$0xff] %v2365
  %2616 = vst [vmem:[#allocation2 + $0x768] sm:$0xff] %v2366
  %2617 = vst [vmem:[#allocation2 + $0x770] sm:$0xff] %v2367
  %2618 = vst [vmem:[#allocation2 + $0x778] sm:$0xff] %v2368
  %2619 = vst [vmem:[#allocation2 + $0x780] sm:$0xff] %v2369
  %2620 = vst [vmem:[#allocation2 + $0x788] sm:$0xff] %v2370
  %2621 = vst [vmem:[#allocation2 + $0x790] sm:$0xff] %v2371
  %2622 = vst [vmem:[#allocation2 + $0x798] sm:$0xff] %v2372
  %2623 = vst [vmem:[#allocation2 + $0x7a0] sm:$0xff] %v2373
  %2624 = vst [vmem:[#allocation2 + $0x7a8] sm:$0xff] %v2374
  %2625 = vst [vmem:[#allocation2 + $0x7b0] sm:$0xff] %v2375
  %2626 = vst [vmem:[#allocation2 + $0x7b8] sm:$0xff] %v2376
  %2627 = vst [vmem:[#allocation2 + $0x7c0] sm:$0xff] %v2377
  %2628 = vst [vmem:[#allocation2 + $0x7c8] sm:$0xff] %v2378
  %v2629 = vlaneseq
  %v2630 = vand.u32 %v2629, 127
  %v2631 = vld [vmem:[#allocation2 + $0x50] sm:$0xff]
  %v2632 = vld [vmem:[#allocation2 + $0x58] sm:$0xff]
  %v2633 = vld [vmem:[#allocation2 + $0x20] sm:$0xff]
  %v2634 = vld [vmem:[#allocation2 + $0x28] sm:$0xff]
  %vm2635 = vcmp.lt.s32.totalorder %v2630, 96
  %v2636 = vsel %vm2635, %v2633, %v2631
  %v2637 = vsel %vm2635, %v2634, %v2632
  %v2638 = vld [vmem:[#allocation2 + $0x10] sm:$0xff]
  %v2639 = vld [vmem:[#allocation2 + $0x18] sm:$0xff]
  %vm2640 = vcmp.lt.s32.totalorder %v2630, 64
  %v2641 = vsel %vm2640, %v2638, %v2636
  %v2642 = vsel %vm2640, %v2639, %v2637
  %v2643 = vld [vmem:[#allocation2] sm:$0xff]
  %v2644 = vld [vmem:[#allocation2 + $0x8] sm:$0xff]
  %vm2645 = vcmp.lt.s32.totalorder %v2630, 32
  %v2646 = vsel %vm2645, %v2643, %v2641
  %v2647 = vsel %vm2645, %v2644, %v2642
  %v2648 = vpack.c.bf16 %v2647, %v2646
  %2649 = vst [vmem:[#allocation3] sm:$0xff] %v2648
  %v2650 = vld [vmem:[#allocation2 + $0xb0] sm:$0xff]
  %v2651 = vld [vmem:[#allocation2 + $0xb8] sm:$0xff]
  %v2652 = vld [vmem:[#allocation2 + $0xa0] sm:$0xff]
  %v2653 = vld [vmem:[#allocation2 + $0xa8] sm:$0xff]
  %v2654 = vsel %vm2635, %v2652, %v2650
  %v2655 = vsel %vm2635, %v2653, %v2651
  %v2656 = vld [vmem:[#allocation2 + $0x70] sm:$0xff]
  %v2657 = vld [vmem:[#allocation2 + $0x78] sm:$0xff]
  %v2658 = vsel %vm2640, %v2656, %v2654
  %v2659 = vsel %vm2640, %v2657, %v2655
  %v2660 = vld [vmem:[#allocation2 + $0x60] sm:$0xff]
  %v2661 = vld [vmem:[#allocation2 + $0x68] sm:$0xff]
  %v2662 = vsel %vm2645, %v2660, %v2658
  %v2663 = vsel %vm2645, %v2661, %v2659
  %v2664 = vpack.c.bf16 %v2663, %v2662
  %2665 = vst [vmem:[#allocation3 + $0x8] sm:$0xff] %v2664
  %v2666 = vld [vmem:[#allocation2 + $0x1b0] sm:$0xff]
  %v2667 = vld [vmem:[#allocation2 + $0x1b8] sm:$0xff]
  %v2668 = vld [vmem:[#allocation2 + $0x1a0] sm:$0xff]
  %v2669 = vld [vmem:[#allocation2 + $0x1a8] sm:$0xff]
  %v2670 = vsel %vm2635, %v2668, %v2666
  %v2671 = vsel %vm2635, %v2669, %v2667
  %v2672 = vld [vmem:[#allocation2 + $0x190] sm:$0xff]
  %v2673 = vld [vmem:[#allocation2 + $0x198] sm:$0xff]
  %v2674 = vsel %vm2640, %v2672, %v2670
  %v2675 = vsel %vm2640, %v2673, %v2671
  %v2676 = vld [vmem:[#allocation2 + $0xc0] sm:$0xff]
  %v2677 = vld [vmem:[#allocation2 + $0xc8] sm:$0xff]
  %v2678 = vsel %vm2645, %v2676, %v2674
  %v2679 = vsel %vm2645, %v2677, %v2675
  %v2680 = vpack.c.bf16 %v2679, %v2678
  %2681 = vst [vmem:[#allocation3 + $0x10] sm:$0xff] %v2680
  %v2682 = vld [vmem:[#allocation2 + $0x230] sm:$0xff]
  %v2683 = vld [vmem:[#allocation2 + $0x238] sm:$0xff]
  %v2684 = vld [vmem:[#allocation2 + $0x200] sm:$0xff]
  %v2685 = vld [vmem:[#allocation2 + $0x208] sm:$0xff]
  %v2686 = vsel %vm2635, %v2684, %v2682
  %v2687 = vsel %vm2635, %v2685, %v2683
  %v2688 = vld [vmem:[#allocation2 + $0x1f0] sm:$0xff]
  %v2689 = vld [vmem:[#allocation2 + $0x1f8] sm:$0xff]
  %v2690 = vsel %vm2640, %v2688, %v2686
  %v2691 = vsel %vm2640, %v2689, %v2687
  %v2692 = vld [vmem:[#allocation2 + $0x1e0] sm:$0xff]
  %v2693 = vld [vmem:[#allocation2 + $0x1e8] sm:$0xff]
  %v2694 = vsel %vm2645, %v2692, %v2690
  %v2695 = vsel %vm2645, %v2693, %v2691
  %v2696 = vpack.c.bf16 %v2695, %v2694
  %2697 = vst [vmem:[#allocation3 + $0x18] sm:$0xff] %v2696
  %v2698 = vld [vmem:[#allocation2 + $0x330] sm:$0xff]
  %v2699 = vld [vmem:[#allocation2 + $0x338] sm:$0xff]
  %v2700 = vld [vmem:[#allocation2 + $0x320] sm:$0xff]
  %v2701 = vld [vmem:[#allocation2 + $0x328] sm:$0xff]
  %v2702 = vsel %vm2635, %v2700, %v2698
  %v2703 = vsel %vm2635, %v2701, %v2699
  %v2704 = vld [vmem:[#allocation2 + $0x250] sm:$0xff]
  %v2705 = vld [vmem:[#allocation2 + $0x258] sm:$0xff]
  %v2706 = vsel %vm2640, %v2704, %v2702
  %v2707 = vsel %vm2640, %v2705, %v2703
  %v2708 = vld [vmem:[#allocation2 + $0x240] sm:$0xff]
  %v2709 = vld [vmem:[#allocation2 + $0x248] sm:$0xff]
  %v2710 = vsel %vm2645, %v2708, %v2706
  %v2711 = vsel %vm2645, %v2709, %v2707
  %v2712 = vpack.c.bf16 %v2711, %v2710
  %2713 = vst [vmem:[#allocation3 + $0x20] sm:$0xff] %v2712
  %v2714 = vld [vmem:[#allocation2 + $0x390] sm:$0xff]
  %v2715 = vld [vmem:[#allocation2 + $0x398] sm:$0xff]
  %v2716 = vld [vmem:[#allocation2 + $0x380] sm:$0xff]
  %v2717 = vld [vmem:[#allocation2 + $0x388] sm:$0xff]
  %v2718 = vsel %vm2635, %v2716, %v2714
  %v2719 = vsel %vm2635, %v2717, %v2715
  %v2720 = vld [vmem:[#allocation2 + $0x370] sm:$0xff]
  %v2721 = vld [vmem:[#allocation2 + $0x378] sm:$0xff]
  %v2722 = vsel %vm2640, %v2720, %v2718
  %v2723 = vsel %vm2640, %v2721, %v2719
  %v2724 = vld [vmem:[#allocation2 + $0x340] sm:$0xff]
  %v2725 = vld [vmem:[#allocation2 + $0x348] sm:$0xff]
  %v2726 = vsel %vm2645, %v2724, %v2722
  %v2727 = vsel %vm2645, %v2725, %v2723
  %v2728 = vpack.c.bf16 %v2727, %v2726
  %2729 = vst [vmem:[#allocation3 + $0x28] sm:$0xff] %v2728
  %v2730 = vld [vmem:[#allocation2 + $0x3e0] sm:$0xff]
  %v2731 = vld [vmem:[#allocation2 + $0x3e8] sm:$0xff]
  %v2732 = vld [vmem:[#allocation2 + $0x3d0] sm:$0xff]
  %v2733 = vld [vmem:[#allocation2 + $0x3d8] sm:$0xff]
  %v2734 = vsel %vm2640, %v2732, %v2730
  %v2735 = vsel %vm2640, %v2733, %v2731
  %v2736 = vld [vmem:[#allocation2 + $0x3c0] sm:$0xff]
  %v2737 = vld [vmem:[#allocation2 + $0x3c8] sm:$0xff]
  %v2738 = vsel %vm2645, %v2736, %v2734
  %v2739 = vsel %vm2645, %v2737, %v2735
  %v2740 = vpack.c.bf16 %v2739, %v2738
  %2741 = vst [vmem:[#allocation3 + $0x30] sm:$0xff] %v2740
  %v2742 = vld [vmem:[#allocation2 + $0x70] sm:$0xff]
  %v2743 = vld [vmem:[#allocation2 + $0x78] sm:$0xff]
  %v2744 = vld [vmem:[#allocation2 + $0x40] sm:$0xff]
  %v2745 = vld [vmem:[#allocation2 + $0x48] sm:$0xff]
  %v2746 = vsel %vm2635, %v2744, %v2742
  %v2747 = vsel %vm2635, %v2745, %v2743
  %v2748 = vld [vmem:[#allocation2 + $0x30] sm:$0xff]
  %v2749 = vld [vmem:[#allocation2 + $0x38] sm:$0xff]
  %v2750 = vsel %vm2640, %v2748, %v2746
  %v2751 = vsel %vm2640, %v2749, %v2747
  %v2752 = vld [vmem:[#allocation2 + $0x20] sm:$0xff]
  %v2753 = vld [vmem:[#allocation2 + $0x28] sm:$0xff]
  %v2754 = vsel %vm2645, %v2752, %v2750
  %v2755 = vsel %vm2645, %v2753, %v2751
  %v2756 = vpack.c.bf16 %v2755, %v2754
  %2757 = vst [vmem:[#allocation3 + $0x38] sm:$0xff] %v2756
  %v2758 = vld [vmem:[#allocation2 + $0xd0] sm:$0xff]
  %v2759 = vld [vmem:[#allocation2 + $0xd8] sm:$0xff]
  %v2760 = vld [vmem:[#allocation2 + $0xc0] sm:$0xff]
  %v2761 = vld [vmem:[#allocation2 + $0xc8] sm:$0xff]
  %v2762 = vsel %vm2635, %v2760, %v2758
  %v2763 = vsel %vm2635, %v2761, %v2759
  %v2764 = vld [vmem:[#allocation2 + $0x90] sm:$0xff]
  %v2765 = vld [vmem:[#allocation2 + $0x98] sm:$0xff]
  %v2766 = vsel %vm2640, %v2764, %v2762
  %v2767 = vsel %vm2640, %v2765, %v2763
  %v2768 = vld [vmem:[#allocation2 + $0x80] sm:$0xff]
  %v2769 = vld [vmem:[#allocation2 + $0x88] sm:$0xff]
  %v2770 = vsel %vm2645, %v2768, %v2766
  %v2771 = vsel %vm2645, %v2769, %v2767
  %v2772 = vpack.c.bf16 %v2771, %v2770
  %2773 = vst [vmem:[#allocation3 + $0x40] sm:$0xff] %v2772
  %v2774 = vld [vmem:[#allocation2 + $0x1d0] sm:$0xff]
  %v2775 = vld [vmem:[#allocation2 + $0x1d8] sm:$0xff]
  %v2776 = vld [vmem:[#allocation2 + $0x1c0] sm:$0xff]
  %v2777 = vld [vmem:[#allocation2 + $0x1c8] sm:$0xff]
  %v2778 = vsel %vm2635, %v2776, %v2774
  %v2779 = vsel %vm2635, %v2777, %v2775
  %v2780 = vld [vmem:[#allocation2 + $0x1b0] sm:$0xff]
  %v2781 = vld [vmem:[#allocation2 + $0x1b8] sm:$0xff]
  %v2782 = vsel %vm2640, %v2780, %v2778
  %v2783 = vsel %vm2640, %v2781, %v2779
  %v2784 = vld [vmem:[#allocation2 + $0xe0] sm:$0xff]
  %v2785 = vld [vmem:[#allocation2 + $0xe8] sm:$0xff]
  %v2786 = vsel %vm2645, %v2784, %v2782
  %v2787 = vsel %vm2645, %v2785, %v2783
  %v2788 = vpack.c.bf16 %v2787, %v2786
  %2789 = vst [vmem:[#allocation3 + $0x48] sm:$0xff] %v2788
  %v2790 = vld [vmem:[#allocation2 + $0x250] sm:$0xff]
  %v2791 = vld [vmem:[#allocation2 + $0x258] sm:$0xff]
  %v2792 = vld [vmem:[#allocation2 + $0x220] sm:$0xff]
  %v2793 = vld [vmem:[#allocation2 + $0x228] sm:$0xff]
  %v2794 = vsel %vm2635, %v2792, %v2790
  %v2795 = vsel %vm2635, %v2793, %v2791
  %v2796 = vld [vmem:[#allocation2 + $0x210] sm:$0xff]
  %v2797 = vld [vmem:[#allocation2 + $0x218] sm:$0xff]
  %v2798 = vsel %vm2640, %v2796, %v2794
  %v2799 = vsel %vm2640, %v2797, %v2795
  %v2800 = vld [vmem:[#allocation2 + $0x200] sm:$0xff]
  %v2801 = vld [vmem:[#allocation2 + $0x208] sm:$0xff]
  %v2802 = vsel %vm2645, %v2800, %v2798
  %v2803 = vsel %vm2645, %v2801, %v2799
  %v2804 = vpack.c.bf16 %v2803, %v2802
  %2805 = vst [vmem:[#allocation3 + $0x50] sm:$0xff] %v2804
  %v2806 = vld [vmem:[#allocation2 + $0x350] sm:$0xff]
  %v2807 = vld [vmem:[#allocation2 + $0x358] sm:$0xff]
  %v2808 = vld [vmem:[#allocation2 + $0x340] sm:$0xff]
  %v2809 = vld [vmem:[#allocation2 + $0x348] sm:$0xff]
  %v2810 = vsel %vm2635, %v2808, %v2806
  %v2811 = vsel %vm2635, %v2809, %v2807
  %v2812 = vld [vmem:[#allocation2 + $0x270] sm:$0xff]
  %v2813 = vld [vmem:[#allocation2 + $0x278] sm:$0xff]
  %v2814 = vsel %vm2640, %v2812, %v2810
  %v2815 = vsel %vm2640, %v2813, %v2811
  %v2816 = vld [vmem:[#allocation2 + $0x260] sm:$0xff]
  %v2817 = vld [vmem:[#allocation2 + $0x268] sm:$0xff]
  %v2818 = vsel %vm2645, %v2816, %v2814
  %v2819 = vsel %vm2645, %v2817, %v2815
  %v2820 = vpack.c.bf16 %v2819, %v2818
  %2821 = vst [vmem:[#allocation3 + $0x58] sm:$0xff] %v2820
  %v2822 = vld [vmem:[#allocation2 + $0x3b0] sm:$0xff]
  %v2823 = vld [vmem:[#allocation2 + $0x3b8] sm:$0xff]
  %v2824 = vld [vmem:[#allocation2 + $0x3a0] sm:$0xff]
  %v2825 = vld [vmem:[#allocation2 + $0x3a8] sm:$0xff]
  %v2826 = vsel %vm2635, %v2824, %v2822
  %v2827 = vsel %vm2635, %v2825, %v2823
  %v2828 = vld [vmem:[#allocation2 + $0x390] sm:$0xff]
  %v2829 = vld [vmem:[#allocation2 + $0x398] sm:$0xff]
  %v2830 = vsel %vm2640, %v2828, %v2826
  %v2831 = vsel %vm2640, %v2829, %v2827
  %v2832 = vld [vmem:[#allocation2 + $0x360] sm:$0xff]
  %v2833 = vld [vmem:[#allocation2 + $0x368] sm:$0xff]
  %v2834 = vsel %vm2645, %v2832, %v2830
  %v2835 = vsel %vm2645, %v2833, %v2831
  %v2836 = vpack.c.bf16 %v2835, %v2834
  %2837 = vst [vmem:[#allocation3 + $0x60] sm:$0xff] %v2836
  %v2838 = vld [vmem:[#allocation2 + $0x400] sm:$0xff]
  %v2839 = vld [vmem:[#allocation2 + $0x408] sm:$0xff]
  %v2840 = vld [vmem:[#allocation2 + $0x3f0] sm:$0xff]
  %v2841 = vld [vmem:[#allocation2 + $0x3f8] sm:$0xff]
  %v2842 = vsel %vm2640, %v2840, %v2838
  %v2843 = vsel %vm2640, %v2841, %v2839
  %v2844 = vld [vmem:[#allocation2 + $0x3e0] sm:$0xff]
  %v2845 = vld [vmem:[#allocation2 + $0x3e8] sm:$0xff]
  %v2846 = vsel %vm2645, %v2844, %v2842
  %v2847 = vsel %vm2645, %v2845, %v2843
  %v2848 = vpack.c.bf16 %v2847, %v2846
  %2849 = vst [vmem:[#allocation3 + $0x68] sm:$0xff] %v2848
  %v2850 = vld [vmem:[#allocation2 + $0xf0] sm:$0xff]
  %v2851 = vld [vmem:[#allocation2 + $0xf8] sm:$0xff]
  %v2852 = vld [vmem:[#allocation2 + $0xc0] sm:$0xff]
  %v2853 = vld [vmem:[#allocation2 + $0xc8] sm:$0xff]
  %v2854 = vsel %vm2635, %v2852, %v2850
  %v2855 = vsel %vm2635, %v2853, %v2851
  %v2856 = vld [vmem:[#allocation2 + $0xb0] sm:$0xff]
  %v2857 = vld [vmem:[#allocation2 + $0xb8] sm:$0xff]
  %v2858 = vsel %vm2640, %v2856, %v2854
  %v2859 = vsel %vm2640, %v2857, %v2855
  %v2860 = vld [vmem:[#allocation2 + $0xa0] sm:$0xff]
  %v2861 = vld [vmem:[#allocation2 + $0xa8] sm:$0xff]
  %v2862 = vsel %vm2645, %v2860, %v2858
  %v2863 = vsel %vm2645, %v2861, %v2859
  %v2864 = vpack.c.bf16 %v2863, %v2862
  %2865 = vst [vmem:[#allocation3 + $0x70] sm:$0xff] %v2864
  %v2866 = vld [vmem:[#allocation2 + $0x150] sm:$0xff]
  %v2867 = vld [vmem:[#allocation2 + $0x158] sm:$0xff]
  %v2868 = vld [vmem:[#allocation2 + $0x140] sm:$0xff]
  %v2869 = vld [vmem:[#allocation2 + $0x148] sm:$0xff]
  %v2870 = vsel %vm2635, %v2868, %v2866
  %v2871 = vsel %vm2635, %v2869, %v2867
  %v2872 = vld [vmem:[#allocation2 + $0x110] sm:$0xff]
  %v2873 = vld [vmem:[#allocation2 + $0x118] sm:$0xff]
  %v2874 = vsel %vm2640, %v2872, %v2870
  %v2875 = vsel %vm2640, %v2873, %v2871
  %v2876 = vld [vmem:[#allocation2 + $0x100] sm:$0xff]
  %v2877 = vld [vmem:[#allocation2 + $0x108] sm:$0xff]
  %v2878 = vsel %vm2645, %v2876, %v2874
  %v2879 = vsel %vm2645, %v2877, %v2875
  %v2880 = vpack.c.bf16 %v2879, %v2878
  %2881 = vst [vmem:[#allocation3 + $0x78] sm:$0xff] %v2880
  %v2882 = vld [vmem:[#allocation2 + $0x250] sm:$0xff]
  %v2883 = vld [vmem:[#allocation2 + $0x258] sm:$0xff]
  %v2884 = vld [vmem:[#allocation2 + $0x240] sm:$0xff]
  %v2885 = vld [vmem:[#allocation2 + $0x248] sm:$0xff]
  %v2886 = vsel %vm2635, %v2884, %v2882
  %v2887 = vsel %vm2635, %v2885, %v2883
  %v2888 = vld [vmem:[#allocation2 + $0x230] sm:$0xff]
  %v2889 = vld [vmem:[#allocation2 + $0x238] sm:$0xff]
  %v2890 = vsel %vm2640, %v2888, %v2886
  %v2891 = vsel %vm2640, %v2889, %v2887
  %v2892 = vld [vmem:[#allocation2 + $0x160] sm:$0xff]
  %v2893 = vld [vmem:[#allocation2 + $0x168] sm:$0xff]
  %v2894 = vsel %vm2645, %v2892, %v2890
  %v2895 = vsel %vm2645, %v2893, %v2891
  %v2896 = vpack.c.bf16 %v2895, %v2894
  %2897 = vst [vmem:[#allocation3 + $0x80] sm:$0xff] %v2896
  %v2898 = vld [vmem:[#allocation2 + $0x2d0] sm:$0xff]
  %v2899 = vld [vmem:[#allocation2 + $0x2d8] sm:$0xff]
  %v2900 = vld [vmem:[#allocation2 + $0x2a0] sm:$0xff]
  %v2901 = vld [vmem:[#allocation2 + $0x2a8] sm:$0xff]
  %v2902 = vsel %vm2635, %v2900, %v2898
  %v2903 = vsel %vm2635, %v2901, %v2899
  %v2904 = vld [vmem:[#allocation2 + $0x290] sm:$0xff]
  %v2905 = vld [vmem:[#allocation2 + $0x298] sm:$0xff]
  %v2906 = vsel %vm2640, %v2904, %v2902
  %v2907 = vsel %vm2640, %v2905, %v2903
  %v2908 = vld [vmem:[#allocation2 + $0x280] sm:$0xff]
  %v2909 = vld [vmem:[#allocation2 + $0x288] sm:$0xff]
  %v2910 = vsel %vm2645, %v2908, %v2906
  %v2911 = vsel %vm2645, %v2909, %v2907
  %v2912 = vpack.c.bf16 %v2911, %v2910
  %2913 = vst [vmem:[#allocation3 + $0x88] sm:$0xff] %v2912
  %v2914 = vld [vmem:[#allocation2 + $0x3d0] sm:$0xff]
  %v2915 = vld [vmem:[#allocation2 + $0x3d8] sm:$0xff]
  %v2916 = vld [vmem:[#allocation2 + $0x3c0] sm:$0xff]
  %v2917 = vld [vmem:[#allocation2 + $0x3c8] sm:$0xff]
  %v2918 = vsel %vm2635, %v2916, %v2914
  %v2919 = vsel %vm2635, %v2917, %v2915
  %v2920 = vld [vmem:[#allocation2 + $0x2f0] sm:$0xff]
  %v2921 = vld [vmem:[#allocation2 + $0x2f8] sm:$0xff]
  %v2922 = vsel %vm2640, %v2920, %v2918
  %v2923 = vsel %vm2640, %v2921, %v2919
  %v2924 = vld [vmem:[#allocation2 + $0x2e0] sm:$0xff]
  %v2925 = vld [vmem:[#allocation2 + $0x2e8] sm:$0xff]
  %v2926 = vsel %vm2645, %v2924, %v2922
  %v2927 = vsel %vm2645, %v2925, %v2923
  %v2928 = vpack.c.bf16 %v2927, %v2926
  %2929 = vst [vmem:[#allocation3 + $0x90] sm:$0xff] %v2928
  %v2930 = vld [vmem:[#allocation2 + $0x430] sm:$0xff]
  %v2931 = vld [vmem:[#allocation2 + $0x438] sm:$0xff]
  %v2932 = vld [vmem:[#allocation2 + $0x420] sm:$0xff]
  %v2933 = vld [vmem:[#allocation2 + $0x428] sm:$0xff]
  %v2934 = vsel %vm2635, %v2932, %v2930
  %v2935 = vsel %vm2635, %v2933, %v2931
  %v2936 = vld [vmem:[#allocation2 + $0x410] sm:$0xff]
  %v2937 = vld [vmem:[#allocation2 + $0x418] sm:$0xff]
  %v2938 = vsel %vm2640, %v2936, %v2934
  %v2939 = vsel %vm2640, %v2937, %v2935
  %v2940 = vld [vmem:[#allocation2 + $0x3e0] sm:$0xff]
  %v2941 = vld [vmem:[#allocation2 + $0x3e8] sm:$0xff]
  %v2942 = vsel %vm2645, %v2940, %v2938
  %v2943 = vsel %vm2645, %v2941, %v2939
  %v2944 = vpack.c.bf16 %v2943, %v2942
  %2945 = vst [vmem:[#allocation3 + $0x98] sm:$0xff] %v2944
  %v2946 = vld [vmem:[#allocation2 + $0x480] sm:$0xff]
  %v2947 = vld [vmem:[#allocation2 + $0x488] sm:$0xff]
  %v2948 = vld [vmem:[#allocation2 + $0x470] sm:$0xff]
  %v2949 = vld [vmem:[#allocation2 + $0x478] sm:$0xff]
  %v2950 = vsel %vm2640, %v2948, %v2946
  %v2951 = vsel %vm2640, %v2949, %v2947
  %v2952 = vld [vmem:[#allocation2 + $0x460] sm:$0xff]
  %v2953 = vld [vmem:[#allocation2 + $0x468] sm:$0xff]
  %v2954 = vsel %vm2645, %v2952, %v2950
  %v2955 = vsel %vm2645, %v2953, %v2951
  %v2956 = vpack.c.bf16 %v2955, %v2954
  %2957 = vst [vmem:[#allocation3 + $0xa0] sm:$0xff] %v2956
  %v2958 = vld [vmem:[#allocation2 + $0x110] sm:$0xff]
  %v2959 = vld [vmem:[#allocation2 + $0x118] sm:$0xff]
  %v2960 = vld [vmem:[#allocation2 + $0xe0] sm:$0xff]
  %v2961 = vld [vmem:[#allocation2 + $0xe8] sm:$0xff]
  %v2962 = vsel %vm2635, %v2960, %v2958
  %v2963 = vsel %vm2635, %v2961, %v2959
  %v2964 = vld [vmem:[#allocation2 + $0xd0] sm:$0xff]
  %v2965 = vld [vmem:[#allocation2 + $0xd8] sm:$0xff]
  %v2966 = vsel %vm2640, %v2964, %v2962
  %v2967 = vsel %vm2640, %v2965, %v2963
  %v2968 = vld [vmem:[#allocation2 + $0xc0] sm:$0xff]
  %v2969 = vld [vmem:[#allocation2 + $0xc8] sm:$0xff]
  %v2970 = vsel %vm2645, %v2968, %v2966
  %v2971 = vsel %vm2645, %v2969, %v2967
  %v2972 = vpack.c.bf16 %v2971, %v2970
  %2973 = vst [vmem:[#allocation3 + $0xa8] sm:$0xff] %v2972
  %v2974 = vld [vmem:[#allocation2 + $0x170] sm:$0xff]
  %v2975 = vld [vmem:[#allocation2 + $0x178] sm:$0xff]
  %v2976 = vld [vmem:[#allocation2 + $0x160] sm:$0xff]
  %v2977 = vld [vmem:[#allocation2 + $0x168] sm:$0xff]
  %v2978 = vsel %vm2635, %v2976, %v2974
  %v2979 = vsel %vm2635, %v2977, %v2975
  %v2980 = vld [vmem:[#allocation2 + $0x130] sm:$0xff]
  %v2981 = vld [vmem:[#allocation2 + $0x138] sm:$0xff]
  %v2982 = vsel %vm2640, %v2980, %v2978
  %v2983 = vsel %vm2640, %v2981, %v2979
  %v2984 = vld [vmem:[#allocation2 + $0x120] sm:$0xff]
  %v2985 = vld [vmem:[#allocation2 + $0x128] sm:$0xff]
  %v2986 = vsel %vm2645, %v2984, %v2982
  %v2987 = vsel %vm2645, %v2985, %v2983
  %v2988 = vpack.c.bf16 %v2987, %v2986
  %2989 = vst [vmem:[#allocation3 + $0xb0] sm:$0xff] %v2988
  %v2990 = vld [vmem:[#allocation2 + $0x270] sm:$0xff]
  %v2991 = vld [vmem:[#allocation2 + $0x278] sm:$0xff]
  %v2992 = vld [vmem:[#allocation2 + $0x260] sm:$0xff]
  %v2993 = vld [vmem:[#allocation2 + $0x268] sm:$0xff]
  %v2994 = vsel %vm2635, %v2992, %v2990
  %v2995 = vsel %vm2635, %v2993, %v2991
  %v2996 = vld [vmem:[#allocation2 + $0x250] sm:$0xff]
  %v2997 = vld [vmem:[#allocation2 + $0x258] sm:$0xff]
  %v2998 = vsel %vm2640, %v2996, %v2994
  %v2999 = vsel %vm2640, %v2997, %v2995
  %v3000 = vld [vmem:[#allocation2 + $0x180] sm:$0xff]
  %v3001 = vld [vmem:[#allocation2 + $0x188] sm:$0xff]
  %v3002 = vsel %vm2645, %v3000, %v2998
  %v3003 = vsel %vm2645, %v3001, %v2999
  %v3004 = vpack.c.bf16 %v3003, %v3002
  %3005 = vst [vmem:[#allocation3 + $0xb8] sm:$0xff] %v3004
  %v3006 = vld [vmem:[#allocation2 + $0x2f0] sm:$0xff]
  %v3007 = vld [vmem:[#allocation2 + $0x2f8] sm:$0xff]
  %v3008 = vld [vmem:[#allocation2 + $0x2c0] sm:$0xff]
  %v3009 = vld [vmem:[#allocation2 + $0x2c8] sm:$0xff]
  %v3010 = vsel %vm2635, %v3008, %v3006
  %v3011 = vsel %vm2635, %v3009, %v3007
  %v3012 = vld [vmem:[#allocation2 + $0x2b0] sm:$0xff]
  %v3013 = vld [vmem:[#allocation2 + $0x2b8] sm:$0xff]
  %v3014 = vsel %vm2640, %v3012, %v3010
  %v3015 = vsel %vm2640, %v3013, %v3011
  %v3016 = vld [vmem:[#allocation2 + $0x2a0] sm:$0xff]
  %v3017 = vld [vmem:[#allocation2 + $0x2a8] sm:$0xff]
  %v3018 = vsel %vm2645, %v3016, %v3014
  %v3019 = vsel %vm2645, %v3017, %v3015
  %v3020 = vpack.c.bf16 %v3019, %v3018
  %3021 = vst [vmem:[#allocation3 + $0xc0] sm:$0xff] %v3020
  %v3022 = vld [vmem:[#allocation2 + $0x3f0] sm:$0xff]
  %v3023 = vld [vmem:[#allocation2 + $0x3f8] sm:$0xff]
  %v3024 = vld [vmem:[#allocation2 + $0x3e0] sm:$0xff]
  %v3025 = vld [vmem:[#allocation2 + $0x3e8] sm:$0xff]
  %v3026 = vsel %vm2635, %v3024, %v3022
  %v3027 = vsel %vm2635, %v3025, %v3023
  %v3028 = vld [vmem:[#allocation2 + $0x310] sm:$0xff]
  %v3029 = vld [vmem:[#allocation2 + $0x318] sm:$0xff]
  %v3030 = vsel %vm2640, %v3028, %v3026
  %v3031 = vsel %vm2640, %v3029, %v3027
  %v3032 = vld [vmem:[#allocation2 + $0x300] sm:$0xff]
  %v3033 = vld [vmem:[#allocation2 + $0x308] sm:$0xff]
  %v3034 = vsel %vm2645, %v3032, %v3030
  %v3035 = vsel %vm2645, %v3033, %v3031
  %v3036 = vpack.c.bf16 %v3035, %v3034
  %3037 = vst [vmem:[#allocation3 + $0xc8] sm:$0xff] %v3036
  %v3038 = vld [vmem:[#allocation2 + $0x450] sm:$0xff]
  %v3039 = vld [vmem:[#allocation2 + $0x458] sm:$0xff]
  %v3040 = vld [vmem:[#allocation2 + $0x440] sm:$0xff]
  %v3041 = vld [vmem:[#allocation2 + $0x448] sm:$0xff]
  %v3042 = vsel %vm2635, %v3040, %v3038
  %v3043 = vsel %vm2635, %v3041, %v3039
  %v3044 = vld [vmem:[#allocation2 + $0x430] sm:$0xff]
  %v3045 = vld [vmem:[#allocation2 + $0x438] sm:$0xff]
  %v3046 = vsel %vm2640, %v3044, %v3042
  %v3047 = vsel %vm2640, %v3045, %v3043
  %v3048 = vld [vmem:[#allocation2 + $0x400] sm:$0xff]
  %v3049 = vld [vmem:[#allocation2 + $0x408] sm:$0xff]
  %v3050 = vsel %vm2645, %v3048, %v3046
  %v3051 = vsel %vm2645, %v3049, %v3047
  %v3052 = vpack.c.bf16 %v3051, %v3050
  %3053 = vst [vmem:[#allocation3 + $0xd0] sm:$0xff] %v3052
  %v3054 = vld [vmem:[#allocation2 + $0x4a0] sm:$0xff]
  %v3055 = vld [vmem:[#allocation2 + $0x4a8] sm:$0xff]
  %v3056 = vld [vmem:[#allocation2 + $0x490] sm:$0xff]
  %v3057 = vld [vmem:[#allocation2 + $0x498] sm:$0xff]
  %v3058 = vsel %vm2640, %v3056, %v3054
  %v3059 = vsel %vm2640, %v3057, %v3055
  %v3060 = vld [vmem:[#allocation2 + $0x480] sm:$0xff]
  %v3061 = vld [vmem:[#allocation2 + $0x488] sm:$0xff]
  %v3062 = vsel %vm2645, %v3060, %v3058
  %v3063 = vsel %vm2645, %v3061, %v3059
  %v3064 = vpack.c.bf16 %v3063, %v3062
  %3065 = vst [vmem:[#allocation3 + $0xd8] sm:$0xff] %v3064
  %v3066 = vld [vmem:[#allocation2 + $0x370] sm:$0xff]
  %v3067 = vld [vmem:[#allocation2 + $0x378] sm:$0xff]
  %v3068 = vld [vmem:[#allocation2 + $0x340] sm:$0xff]
  %v3069 = vld [vmem:[#allocation2 + $0x348] sm:$0xff]
  %v3070 = vsel %vm2635, %v3068, %v3066
  %v3071 = vsel %vm2635, %v3069, %v3067
  %v3072 = vld [vmem:[#allocation2 + $0x330] sm:$0xff]
  %v3073 = vld [vmem:[#allocation2 + $0x338] sm:$0xff]
  %v3074 = vsel %vm2640, %v3072, %v3070
  %v3075 = vsel %vm2640, %v3073, %v3071
  %v3076 = vld [vmem:[#allocation2 + $0x320] sm:$0xff]
  %v3077 = vld [vmem:[#allocation2 + $0x328] sm:$0xff]
  %v3078 = vsel %vm2645, %v3076, %v3074
  %v3079 = vsel %vm2645, %v3077, %v3075
  %v3080 = vpack.c.bf16 %v3079, %v3078
  %3081 = vst [vmem:[#allocation3 + $0xe0] sm:$0xff] %v3080
  %v3082 = vld [vmem:[#allocation2 + $0x3d0] sm:$0xff]
  %v3083 = vld [vmem:[#allocation2 + $0x3d8] sm:$0xff]
  %v3084 = vld [vmem:[#allocation2 + $0x3c0] sm:$0xff]
  %v3085 = vld [vmem:[#allocation2 + $0x3c8] sm:$0xff]
  %v3086 = vsel %vm2635, %v3084, %v3082
  %v3087 = vsel %vm2635, %v3085, %v3083
  %v3088 = vld [vmem:[#allocation2 + $0x390] sm:$0xff]
  %v3089 = vld [vmem:[#allocation2 + $0x398] sm:$0xff]
  %v3090 = vsel %vm2640, %v3088, %v3086
  %v3091 = vsel %vm2640, %v3089, %v3087
  %v3092 = vld [vmem:[#allocation2 + $0x380] sm:$0xff]
  %v3093 = vld [vmem:[#allocation2 + $0x388] sm:$0xff]
  %v3094 = vsel %vm2645, %v3092, %v3090
  %v3095 = vsel %vm2645, %v3093, %v3091
  %v3096 = vpack.c.bf16 %v3095, %v3094
  %3097 = vst [vmem:[#allocation3 + $0xe8] sm:$0xff] %v3096
  %v3098 = vld [vmem:[#allocation2 + $0x4d0] sm:$0xff]
  %v3099 = vld [vmem:[#allocation2 + $0x4d8] sm:$0xff]
  %v3100 = vld [vmem:[#allocation2 + $0x4c0] sm:$0xff]
  %v3101 = vld [vmem:[#allocation2 + $0x4c8] sm:$0xff]
  %v3102 = vsel %vm2635, %v3100, %v3098
  %v3103 = vsel %vm2635, %v3101, %v3099
  %v3104 = vld [vmem:[#allocation2 + $0x4b0] sm:$0xff]
  %v3105 = vld [vmem:[#allocation2 + $0x4b8] sm:$0xff]
  %v3106 = vsel %vm2640, %v3104, %v3102
  %v3107 = vsel %vm2640, %v3105, %v3103
  %v3108 = vld [vmem:[#allocation2 + $0x3e0] sm:$0xff]
  %v3109 = vld [vmem:[#allocation2 + $0x3e8] sm:$0xff]
  %v3110 = vsel %vm2645, %v3108, %v3106
  %v3111 = vsel %vm2645, %v3109, %v3107
  %v3112 = vpack.c.bf16 %v3111, %v3110
  %3113 = vst [vmem:[#allocation3 + $0xf0] sm:$0xff] %v3112
  %v3114 = vld [vmem:[#allocation2 + $0x550] sm:$0xff]
  %v3115 = vld [vmem:[#allocation2 + $0x558] sm:$0xff]
  %v3116 = vld [vmem:[#allocation2 + $0x520] sm:$0xff]
  %v3117 = vld [vmem:[#allocation2 + $0x528] sm:$0xff]
  %v3118 = vsel %vm2635, %v3116, %v3114
  %v3119 = vsel %vm2635, %v3117, %v3115
  %v3120 = vld [vmem:[#allocation2 + $0x510] sm:$0xff]
  %v3121 = vld [vmem:[#allocation2 + $0x518] sm:$0xff]
  %v3122 = vsel %vm2640, %v3120, %v3118
  %v3123 = vsel %vm2640, %v3121, %v3119
  %v3124 = vld [vmem:[#allocation2 + $0x500] sm:$0xff]
  %v3125 = vld [vmem:[#allocation2 + $0x508] sm:$0xff]
  %v3126 = vsel %vm2645, %v3124, %v3122
  %v3127 = vsel %vm2645, %v3125, %v3123
  %v3128 = vpack.c.bf16 %v3127, %v3126
  %3129 = vst [vmem:[#allocation3 + $0xf8] sm:$0xff] %v3128
  %v3130 = vld [vmem:[#allocation2 + $0x650] sm:$0xff]
  %v3131 = vld [vmem:[#allocation2 + $0x658] sm:$0xff]
  %v3132 = vld [vmem:[#allocation2 + $0x640] sm:$0xff]
  %v3133 = vld [vmem:[#allocation2 + $0x648] sm:$0xff]
  %v3134 = vsel %vm2635, %v3132, %v3130
  %v3135 = vsel %vm2635, %v3133, %v3131
  %v3136 = vld [vmem:[#allocation2 + $0x570] sm:$0xff]
  %v3137 = vld [vmem:[#allocation2 + $0x578] sm:$0xff]
  %v3138 = vsel %vm2640, %v3136, %v3134
  %v3139 = vsel %vm2640, %v3137, %v3135
  %v3140 = vld [vmem:[#allocation2 + $0x560] sm:$0xff]
  %v3141 = vld [vmem:[#allocation2 + $0x568] sm:$0xff]
  %v3142 = vsel %vm2645, %v3140, %v3138
  %v3143 = vsel %vm2645, %v3141, %v3139
  %v3144 = vpack.c.bf16 %v3143, %v3142
  %3145 = vst [vmem:[#allocation3 + $0x100] sm:$0xff] %v3144
  %v3146 = vld [vmem:[#allocation2 + $0x6b0] sm:$0xff]
  %v3147 = vld [vmem:[#allocation2 + $0x6b8] sm:$0xff]
  %v3148 = vld [vmem:[#allocation2 + $0x6a0] sm:$0xff]
  %v3149 = vld [vmem:[#allocation2 + $0x6a8] sm:$0xff]
  %v3150 = vsel %vm2635, %v3148, %v3146
  %v3151 = vsel %vm2635, %v3149, %v3147
  %v3152 = vld [vmem:[#allocation2 + $0x690] sm:$0xff]
  %v3153 = vld [vmem:[#allocation2 + $0x698] sm:$0xff]
  %v3154 = vsel %vm2640, %v3152, %v3150
  %v3155 = vsel %vm2640, %v3153, %v3151
  %v3156 = vld [vmem:[#allocation2 + $0x660] sm:$0xff]
  %v3157 = vld [vmem:[#allocation2 + $0x668] sm:$0xff]
  %v3158 = vsel %vm2645, %v3156, %v3154
  %v3159 = vsel %vm2645, %v3157, %v3155
  %v3160 = vpack.c.bf16 %v3159, %v3158
  %3161 = vst [vmem:[#allocation3 + $0x108] sm:$0xff] %v3160
  %v3162 = vld [vmem:[#allocation2 + $0x700] sm:$0xff]
  %v3163 = vld [vmem:[#allocation2 + $0x708] sm:$0xff]
  %v3164 = vld [vmem:[#allocation2 + $0x6f0] sm:$0xff]
  %v3165 = vld [vmem:[#allocation2 + $0x6f8] sm:$0xff]
  %v3166 = vsel %vm2640, %v3164, %v3162
  %v3167 = vsel %vm2640, %v3165, %v3163
  %v3168 = vld [vmem:[#allocation2 + $0x6e0] sm:$0xff]
  %v3169 = vld [vmem:[#allocation2 + $0x6e8] sm:$0xff]
  %v3170 = vsel %vm2645, %v3168, %v3166
  %v3171 = vsel %vm2645, %v3169, %v3167
  %v3172 = vpack.c.bf16 %v3171, %v3170
  %3173 = vst [vmem:[#allocation3 + $0x110] sm:$0xff] %v3172
  %v3174 = vld [vmem:[#allocation2 + $0x390] sm:$0xff]
  %v3175 = vld [vmem:[#allocation2 + $0x398] sm:$0xff]
  %v3176 = vld [vmem:[#allocation2 + $0x360] sm:$0xff]
  %v3177 = vld [vmem:[#allocation2 + $0x368] sm:$0xff]
  %v3178 = vsel %vm2635, %v3176, %v3174
  %v3179 = vsel %vm2635, %v3177, %v3175
  %v3180 = vld [vmem:[#allocation2 + $0x350] sm:$0xff]
  %v3181 = vld [vmem:[#allocation2 + $0x358] sm:$0xff]
  %v3182 = vsel %vm2640, %v3180, %v3178
  %v3183 = vsel %vm2640, %v3181, %v3179
  %v3184 = vld [vmem:[#allocation2 + $0x340] sm:$0xff]
  %v3185 = vld [vmem:[#allocation2 + $0x348] sm:$0xff]
  %v3186 = vsel %vm2645, %v3184, %v3182
  %v3187 = vsel %vm2645, %v3185, %v3183
  %v3188 = vpack.c.bf16 %v3187, %v3186
  %3189 = vst [vmem:[#allocation3 + $0x118] sm:$0xff] %v3188
  %v3190 = vld [vmem:[#allocation2 + $0x3f0] sm:$0xff]
  %v3191 = vld [vmem:[#allocation2 + $0x3f8] sm:$0xff]
  %v3192 = vld [vmem:[#allocation2 + $0x3e0] sm:$0xff]
  %v3193 = vld [vmem:[#allocation2 + $0x3e8] sm:$0xff]
  %v3194 = vsel %vm2635, %v3192, %v3190
  %v3195 = vsel %vm2635, %v3193, %v3191
  %v3196 = vld [vmem:[#allocation2 + $0x3b0] sm:$0xff]
  %v3197 = vld [vmem:[#allocation2 + $0x3b8] sm:$0xff]
  %v3198 = vsel %vm2640, %v3196, %v3194
  %v3199 = vsel %vm2640, %v3197, %v3195
  %v3200 = vld [vmem:[#allocation2 + $0x3a0] sm:$0xff]
  %v3201 = vld [vmem:[#allocation2 + $0x3a8] sm:$0xff]
  %v3202 = vsel %vm2645, %v3200, %v3198
  %v3203 = vsel %vm2645, %v3201, %v3199
  %v3204 = vpack.c.bf16 %v3203, %v3202
  %3205 = vst [vmem:[#allocation3 + $0x120] sm:$0xff] %v3204
  %v3206 = vld [vmem:[#allocation2 + $0x4f0] sm:$0xff]
  %v3207 = vld [vmem:[#allocation2 + $0x4f8] sm:$0xff]
  %v3208 = vld [vmem:[#allocation2 + $0x4e0] sm:$0xff]
  %v3209 = vld [vmem:[#allocation2 + $0x4e8] sm:$0xff]
  %v3210 = vsel %vm2635, %v3208, %v3206
  %v3211 = vsel %vm2635, %v3209, %v3207
  %v3212 = vld [vmem:[#allocation2 + $0x4d0] sm:$0xff]
  %v3213 = vld [vmem:[#allocation2 + $0x4d8] sm:$0xff]
  %v3214 = vsel %vm2640, %v3212, %v3210
  %v3215 = vsel %vm2640, %v3213, %v3211
  %v3216 = vld [vmem:[#allocation2 + $0x400] sm:$0xff]
  %v3217 = vld [vmem:[#allocation2 + $0x408] sm:$0xff]
  %v3218 = vsel %vm2645, %v3216, %v3214
  %v3219 = vsel %vm2645, %v3217, %v3215
  %v3220 = vpack.c.bf16 %v3219, %v3218
  %3221 = vst [vmem:[#allocation3 + $0x128] sm:$0xff] %v3220
  %v3222 = vld [vmem:[#allocation2 + $0x570] sm:$0xff]
  %v3223 = vld [vmem:[#allocation2 + $0x578] sm:$0xff]
  %v3224 = vld [vmem:[#allocation2 + $0x540] sm:$0xff]
  %v3225 = vld [vmem:[#allocation2 + $0x548] sm:$0xff]
  %v3226 = vsel %vm2635, %v3224, %v3222
  %v3227 = vsel %vm2635, %v3225, %v3223
  %v3228 = vld [vmem:[#allocation2 + $0x530] sm:$0xff]
  %v3229 = vld [vmem:[#allocation2 + $0x538] sm:$0xff]
  %v3230 = vsel %vm2640, %v3228, %v3226
  %v3231 = vsel %vm2640, %v3229, %v3227
  %v3232 = vld [vmem:[#allocation2 + $0x520] sm:$0xff]
  %v3233 = vld [vmem:[#allocation2 + $0x528] sm:$0xff]
  %v3234 = vsel %vm2645, %v3232, %v3230
  %v3235 = vsel %vm2645, %v3233, %v3231
  %v3236 = vpack.c.bf16 %v3235, %v3234
  %3237 = vst [vmem:[#allocation3 + $0x130] sm:$0xff] %v3236
  %v3238 = vld [vmem:[#allocation2 + $0x670] sm:$0xff]
  %v3239 = vld [vmem:[#allocation2 + $0x678] sm:$0xff]
  %v3240 = vld [vmem:[#allocation2 + $0x660] sm:$0xff]
  %v3241 = vld [vmem:[#allocation2 + $0x668] sm:$0xff]
  %v3242 = vsel %vm2635, %v3240, %v3238
  %v3243 = vsel %vm2635, %v3241, %v3239
  %v3244 = vld [vmem:[#allocation2 + $0x590] sm:$0xff]
  %v3245 = vld [vmem:[#allocation2 + $0x598] sm:$0xff]
  %v3246 = vsel %vm2640, %v3244, %v3242
  %v3247 = vsel %vm2640, %v3245, %v3243
  %v3248 = vld [vmem:[#allocation2 + $0x580] sm:$0xff]
  %v3249 = vld [vmem:[#allocation2 + $0x588] sm:$0xff]
  %v3250 = vsel %vm2645, %v3248, %v3246
  %v3251 = vsel %vm2645, %v3249, %v3247
  %v3252 = vpack.c.bf16 %v3251, %v3250
  %3253 = vst [vmem:[#allocation3 + $0x138] sm:$0xff] %v3252
  %v3254 = vld [vmem:[#allocation2 + $0x6d0] sm:$0xff]
  %v3255 = vld [vmem:[#allocation2 + $0x6d8] sm:$0xff]
  %v3256 = vld [vmem:[#allocation2 + $0x6c0] sm:$0xff]
  %v3257 = vld [vmem:[#allocation2 + $0x6c8] sm:$0xff]
  %v3258 = vsel %vm2635, %v3256, %v3254
  %v3259 = vsel %vm2635, %v3257, %v3255
  %v3260 = vld [vmem:[#allocation2 + $0x6b0] sm:$0xff]
  %v3261 = vld [vmem:[#allocation2 + $0x6b8] sm:$0xff]
  %v3262 = vsel %vm2640, %v3260, %v3258
  %v3263 = vsel %vm2640, %v3261, %v3259
  %v3264 = vld [vmem:[#allocation2 + $0x680] sm:$0xff]
  %v3265 = vld [vmem:[#allocation2 + $0x688] sm:$0xff]
  %v3266 = vsel %vm2645, %v3264, %v3262
  %v3267 = vsel %vm2645, %v3265, %v3263
  %v3268 = vpack.c.bf16 %v3267, %v3266
  %3269 = vst [vmem:[#allocation3 + $0x140] sm:$0xff] %v3268
  %v3270 = vld [vmem:[#allocation2 + $0x720] sm:$0xff]
  %v3271 = vld [vmem:[#allocation2 + $0x728] sm:$0xff]
  %v3272 = vld [vmem:[#allocation2 + $0x710] sm:$0xff]
  %v3273 = vld [vmem:[#allocation2 + $0x718] sm:$0xff]
  %v3274 = vsel %vm2640, %v3272, %v3270
  %v3275 = vsel %vm2640, %v3273, %v3271
  %v3276 = vld [vmem:[#allocation2 + $0x700] sm:$0xff]
  %v3277 = vld [vmem:[#allocation2 + $0x708] sm:$0xff]
  %v3278 = vsel %vm2645, %v3276, %v3274
  %v3279 = vsel %vm2645, %v3277, %v3275
  %v3280 = vpack.c.bf16 %v3279, %v3278
  %3281 = vst [vmem:[#allocation3 + $0x148] sm:$0xff] %v3280
  %v3282 = vld [vmem:[#allocation2 + $0x410] sm:$0xff]
  %v3283 = vld [vmem:[#allocation2 + $0x418] sm:$0xff]
  %v3284 = vld [vmem:[#allocation2 + $0x3e0] sm:$0xff]
  %v3285 = vld [vmem:[#allocation2 + $0x3e8] sm:$0xff]
  %v3286 = vsel %vm2635, %v3284, %v3282
  %v3287 = vsel %vm2635, %v3285, %v3283
  %v3288 = vld [vmem:[#allocation2 + $0x3d0] sm:$0xff]
  %v3289 = vld [vmem:[#allocation2 + $0x3d8] sm:$0xff]
  %v3290 = vsel %vm2640, %v3288, %v3286
  %v3291 = vsel %vm2640, %v3289, %v3287
  %v3292 = vld [vmem:[#allocation2 + $0x3c0] sm:$0xff]
  %v3293 = vld [vmem:[#allocation2 + $0x3c8] sm:$0xff]
  %v3294 = vsel %vm2645, %v3292, %v3290
  %v3295 = vsel %vm2645, %v3293, %v3291
  %v3296 = vpack.c.bf16 %v3295, %v3294
  %3297 = vst [vmem:[#allocation3 + $0x150] sm:$0xff] %v3296
  %v3298 = vld [vmem:[#allocation2 + $0x470] sm:$0xff]
  %v3299 = vld [vmem:[#allocation2 + $0x478] sm:$0xff]
  %v3300 = vld [vmem:[#allocation2 + $0x460] sm:$0xff]
  %v3301 = vld [vmem:[#allocation2 + $0x468] sm:$0xff]
  %v3302 = vsel %vm2635, %v3300, %v3298
  %v3303 = vsel %vm2635, %v3301, %v3299
  %v3304 = vld [vmem:[#allocation2 + $0x430] sm:$0xff]
  %v3305 = vld [vmem:[#allocation2 + $0x438] sm:$0xff]
  %v3306 = vsel %vm2640, %v3304, %v3302
  %v3307 = vsel %vm2640, %v3305, %v3303
  %v3308 = vld [vmem:[#allocation2 + $0x420] sm:$0xff]
  %v3309 = vld [vmem:[#allocation2 + $0x428] sm:$0xff]
  %v3310 = vsel %vm2645, %v3308, %v3306
  %v3311 = vsel %vm2645, %v3309, %v3307
  %v3312 = vpack.c.bf16 %v3311, %v3310
  %3313 = vst [vmem:[#allocation3 + $0x158] sm:$0xff] %v3312
  %v3314 = vld [vmem:[#allocation2 + $0x570] sm:$0xff]
  %v3315 = vld [vmem:[#allocation2 + $0x578] sm:$0xff]
  %v3316 = vld [vmem:[#allocation2 + $0x560] sm:$0xff]
  %v3317 = vld [vmem:[#allocation2 + $0x568] sm:$0xff]
  %v3318 = vsel %vm2635, %v3316, %v3314
  %v3319 = vsel %vm2635, %v3317, %v3315
  %v3320 = vld [vmem:[#allocation2 + $0x550] sm:$0xff]
  %v3321 = vld [vmem:[#allocation2 + $0x558] sm:$0xff]
  %v3322 = vsel %vm2640, %v3320, %v3318
  %v3323 = vsel %vm2640, %v3321, %v3319
  %v3324 = vld [vmem:[#allocation2 + $0x480] sm:$0xff]
  %v3325 = vld [vmem:[#allocation2 + $0x488] sm:$0xff]
  %v3326 = vsel %vm2645, %v3324, %v3322
  %v3327 = vsel %vm2645, %v3325, %v3323
  %v3328 = vpack.c.bf16 %v3327, %v3326
  %3329 = vst [vmem:[#allocation3 + $0x160] sm:$0xff] %v3328
  %v3330 = vld [vmem:[#allocation2 + $0x5f0] sm:$0xff]
  %v3331 = vld [vmem:[#allocation2 + $0x5f8] sm:$0xff]
  %v3332 = vld [vmem:[#allocation2 + $0x5c0] sm:$0xff]
  %v3333 = vld [vmem:[#allocation2 + $0x5c8] sm:$0xff]
  %v3334 = vsel %vm2635, %v3332, %v3330
  %v3335 = vsel %vm2635, %v3333, %v3331
  %v3336 = vld [vmem:[#allocation2 + $0x5b0] sm:$0xff]
  %v3337 = vld [vmem:[#allocation2 + $0x5b8] sm:$0xff]
  %v3338 = vsel %vm2640, %v3336, %v3334
  %v3339 = vsel %vm2640, %v3337, %v3335
  %v3340 = vld [vmem:[#allocation2 + $0x5a0] sm:$0xff]
  %v3341 = vld [vmem:[#allocation2 + $0x5a8] sm:$0xff]
  %v3342 = vsel %vm2645, %v3340, %v3338
  %v3343 = vsel %vm2645, %v3341, %v3339
  %v3344 = vpack.c.bf16 %v3343, %v3342
  %3345 = vst [vmem:[#allocation3 + $0x168] sm:$0xff] %v3344
  %v3346 = vld [vmem:[#allocation2 + $0x6f0] sm:$0xff]
  %v3347 = vld [vmem:[#allocation2 + $0x6f8] sm:$0xff]
  %v3348 = vld [vmem:[#allocation2 + $0x6e0] sm:$0xff]
  %v3349 = vld [vmem:[#allocation2 + $0x6e8] sm:$0xff]
  %v3350 = vsel %vm2635, %v3348, %v3346
  %v3351 = vsel %vm2635, %v3349, %v3347
  %v3352 = vld [vmem:[#allocation2 + $0x610] sm:$0xff]
  %v3353 = vld [vmem:[#allocation2 + $0x618] sm:$0xff]
  %v3354 = vsel %vm2640, %v3352, %v3350
  %v3355 = vsel %vm2640, %v3353, %v3351
  %v3356 = vld [vmem:[#allocation2 + $0x600] sm:$0xff]
  %v3357 = vld [vmem:[#allocation2 + $0x608] sm:$0xff]
  %v3358 = vsel %vm2645, %v3356, %v3354
  %v3359 = vsel %vm2645, %v3357, %v3355
  %v3360 = vpack.c.bf16 %v3359, %v3358
  %3361 = vst [vmem:[#allocation3 + $0x170] sm:$0xff] %v3360
  %v3362 = vld [vmem:[#allocation2 + $0x750] sm:$0xff]
  %v3363 = vld [vmem:[#allocation2 + $0x758] sm:$0xff]
  %v3364 = vld [vmem:[#allocation2 + $0x740] sm:$0xff]
  %v3365 = vld [vmem:[#allocation2 + $0x748] sm:$0xff]
  %v3366 = vsel %vm2635, %v3364, %v3362
  %v3367 = vsel %vm2635, %v3365, %v3363
  %v3368 = vld [vmem:[#allocation2 + $0x730] sm:$0xff]
  %v3369 = vld [vmem:[#allocation2 + $0x738] sm:$0xff]
  %v3370 = vsel %vm2640, %v3368, %v3366
  %v3371 = vsel %vm2640, %v3369, %v3367
  %v3372 = vld [vmem:[#allocation2 + $0x700] sm:$0xff]
  %v3373 = vld [vmem:[#allocation2 + $0x708] sm:$0xff]
  %v3374 = vsel %vm2645, %v3372, %v3370
  %v3375 = vsel %vm2645, %v3373, %v3371
  %v3376 = vpack.c.bf16 %v3375, %v3374
  %3377 = vst [vmem:[#allocation3 + $0x178] sm:$0xff] %v3376
  %v3378 = vld [vmem:[#allocation2 + $0x7a0] sm:$0xff]
  %v3379 = vld [vmem:[#allocation2 + $0x7a8] sm:$0xff]
  %v3380 = vld [vmem:[#allocation2 + $0x790] sm:$0xff]
  %v3381 = vld [vmem:[#allocation2 + $0x798] sm:$0xff]
  %v3382 = vsel %vm2640, %v3380, %v3378
  %v3383 = vsel %vm2640, %v3381, %v3379
  %v3384 = vld [vmem:[#allocation2 + $0x780] sm:$0xff]
  %v3385 = vld [vmem:[#allocation2 + $0x788] sm:$0xff]
  %v3386 = vsel %vm2645, %v3384, %v3382
  %v3387 = vsel %vm2645, %v3385, %v3383
  %v3388 = vpack.c.bf16 %v3387, %v3386
  %3389 = vst [vmem:[#allocation3 + $0x180] sm:$0xff] %v3388
  %v3390 = vld [vmem:[#allocation2 + $0x430] sm:$0xff]
  %v3391 = vld [vmem:[#allocation2 + $0x438] sm:$0xff]
  %v3392 = vld [vmem:[#allocation2 + $0x400] sm:$0xff]
  %v3393 = vld [vmem:[#allocation2 + $0x408] sm:$0xff]
  %v3394 = vsel %vm2635, %v3392, %v3390
  %v3395 = vsel %vm2635, %v3393, %v3391
  %v3396 = vld [vmem:[#allocation2 + $0x3f0] sm:$0xff]
  %v3397 = vld [vmem:[#allocation2 + $0x3f8] sm:$0xff]
  %v3398 = vsel %vm2640, %v3396, %v3394
  %v3399 = vsel %vm2640, %v3397, %v3395
  %v3400 = vld [vmem:[#allocation2 + $0x3e0] sm:$0xff]
  %v3401 = vld [vmem:[#allocation2 + $0x3e8] sm:$0xff]
  %v3402 = vsel %vm2645, %v3400, %v3398
  %v3403 = vsel %vm2645, %v3401, %v3399
  %v3404 = vpack.c.bf16 %v3403, %v3402
  %3405 = vst [vmem:[#allocation3 + $0x188] sm:$0xff] %v3404
  %v3406 = vld [vmem:[#allocation2 + $0x490] sm:$0xff]
  %v3407 = vld [vmem:[#allocation2 + $0x498] sm:$0xff]
  %v3408 = vld [vmem:[#allocation2 + $0x480] sm:$0xff]
  %v3409 = vld [vmem:[#allocation2 + $0x488] sm:$0xff]
  %v3410 = vsel %vm2635, %v3408, %v3406
  %v3411 = vsel %vm2635, %v3409, %v3407
  %v3412 = vld [vmem:[#allocation2 + $0x450] sm:$0xff]
  %v3413 = vld [vmem:[#allocation2 + $0x458] sm:$0xff]
  %v3414 = vsel %vm2640, %v3412, %v3410
  %v3415 = vsel %vm2640, %v3413, %v3411
  %v3416 = vld [vmem:[#allocation2 + $0x440] sm:$0xff]
  %v3417 = vld [vmem:[#allocation2 + $0x448] sm:$0xff]
  %v3418 = vsel %vm2645, %v3416, %v3414
  %v3419 = vsel %vm2645, %v3417, %v3415
  %v3420 = vpack.c.bf16 %v3419, %v3418
  %3421 = vst [vmem:[#allocation3 + $0x190] sm:$0xff] %v3420
  %v3422 = vld [vmem:[#allocation2 + $0x590] sm:$0xff]
  %v3423 = vld [vmem:[#allocation2 + $0x598] sm:$0xff]
  %v3424 = vld [vmem:[#allocation2 + $0x580] sm:$0xff]
  %v3425 = vld [vmem:[#allocation2 + $0x588] sm:$0xff]
  %v3426 = vsel %vm2635, %v3424, %v3422
  %v3427 = vsel %vm2635, %v3425, %v3423
  %v3428 = vld [vmem:[#allocation2 + $0x570] sm:$0xff]
  %v3429 = vld [vmem:[#allocation2 + $0x578] sm:$0xff]
  %v3430 = vsel %vm2640, %v3428, %v3426
  %v3431 = vsel %vm2640, %v3429, %v3427
  %v3432 = vld [vmem:[#allocation2 + $0x4a0] sm:$0xff]
  %v3433 = vld [vmem:[#allocation2 + $0x4a8] sm:$0xff]
  %v3434 = vsel %vm2645, %v3432, %v3430
  %v3435 = vsel %vm2645, %v3433, %v3431
  %v3436 = vpack.c.bf16 %v3435, %v3434
  %3437 = vst [vmem:[#allocation3 + $0x198] sm:$0xff] %v3436
  %v3438 = vld [vmem:[#allocation2 + $0x610] sm:$0xff]
  %v3439 = vld [vmem:[#allocation2 + $0x618] sm:$0xff]
  %v3440 = vld [vmem:[#allocation2 + $0x5e0] sm:$0xff]
  %v3441 = vld [vmem:[#allocation2 + $0x5e8] sm:$0xff]
  %v3442 = vsel %vm2635, %v3440, %v3438
  %v3443 = vsel %vm2635, %v3441, %v3439
  %v3444 = vld [vmem:[#allocation2 + $0x5d0] sm:$0xff]
  %v3445 = vld [vmem:[#allocation2 + $0x5d8] sm:$0xff]
  %v3446 = vsel %vm2640, %v3444, %v3442
  %v3447 = vsel %vm2640, %v3445, %v3443
  %v3448 = vld [vmem:[#allocation2 + $0x5c0] sm:$0xff]
  %v3449 = vld [vmem:[#allocation2 + $0x5c8] sm:$0xff]
  %v3450 = vsel %vm2645, %v3448, %v3446
  %v3451 = vsel %vm2645, %v3449, %v3447
  %v3452 = vpack.c.bf16 %v3451, %v3450
  %3453 = vst [vmem:[#allocation3 + $0x1a0] sm:$0xff] %v3452
  %v3454 = vld [vmem:[#allocation2 + $0x710] sm:$0xff]
  %v3455 = vld [vmem:[#allocation2 + $0x718] sm:$0xff]
  %v3456 = vld [vmem:[#allocation2 + $0x700] sm:$0xff]
  %v3457 = vld [vmem:[#allocation2 + $0x708] sm:$0xff]
  %v3458 = vsel %vm2635, %v3456, %v3454
  %v3459 = vsel %vm2635, %v3457, %v3455
  %v3460 = vld [vmem:[#allocation2 + $0x630] sm:$0xff]
  %v3461 = vld [vmem:[#allocation2 + $0x638] sm:$0xff]
  %v3462 = vsel %vm2640, %v3460, %v3458
  %v3463 = vsel %vm2640, %v3461, %v3459
  %v3464 = vld [vmem:[#allocation2 + $0x620] sm:$0xff]
  %v3465 = vld [vmem:[#allocation2 + $0x628] sm:$0xff]
  %v3466 = vsel %vm2645, %v3464, %v3462
  %v3467 = vsel %vm2645, %v3465, %v3463
  %v3468 = vpack.c.bf16 %v3467, %v3466
  %3469 = vst [vmem:[#allocation3 + $0x1a8] sm:$0xff] %v3468
  %v3470 = vld [vmem:[#allocation2 + $0x770] sm:$0xff]
  %v3471 = vld [vmem:[#allocation2 + $0x778] sm:$0xff]
  %v3472 = vld [vmem:[#allocation2 + $0x760] sm:$0xff]
  %v3473 = vld [vmem:[#allocation2 + $0x768] sm:$0xff]
  %v3474 = vsel %vm2635, %v3472, %v3470
  %v3475 = vsel %vm2635, %v3473, %v3471
  %v3476 = vld [vmem:[#allocation2 + $0x750] sm:$0xff]
  %v3477 = vld [vmem:[#allocation2 + $0x758] sm:$0xff]
  %v3478 = vsel %vm2640, %v3476, %v3474
  %v3479 = vsel %vm2640, %v3477, %v3475
  %v3480 = vld [vmem:[#allocation2 + $0x720] sm:$0xff]
  %v3481 = vld [vmem:[#allocation2 + $0x728] sm:$0xff]
  %v3482 = vsel %vm2645, %v3480, %v3478
  %v3483 = vsel %vm2645, %v3481, %v3479
  %v3484 = vpack.c.bf16 %v3483, %v3482
  %3485 = vst [vmem:[#allocation3 + $0x1b0] sm:$0xff] %v3484
  %v3486 = vld [vmem:[#allocation2 + $0x7c0] sm:$0xff]
  %v3487 = vld [vmem:[#allocation2 + $0x7c8] sm:$0xff]
  %v3488 = vld [vmem:[#allocation2 + $0x7b0] sm:$0xff]
  %v3489 = vld [vmem:[#allocation2 + $0x7b8] sm:$0xff]
  %v3490 = vsel %vm2640, %v3488, %v3486
  %v3491 = vsel %vm2640, %v3489, %v3487
  %v3492 = vld [vmem:[#allocation2 + $0x7a0] sm:$0xff]
  %v3493 = vld [vmem:[#allocation2 + $0x7a8] sm:$0xff]
  %v3494 = vsel %vm2645, %v3492, %v3490
  %v3495 = vsel %vm2645, %v3493, %v3491
  %v3496 = vpack.c.bf16 %v3495, %v3494
  %3497 = vst [vmem:[#allocation3 + $0x1b8] sm:$0xff] %v3496
  %v3498 = vld [vmem:[#allocation3] sm:$0xff]
  %v3499 = vld [vmem:[#allocation3 + $0x8] sm:$0xff]
  %v3500 = vld [vmem:[#allocation3 + $0x10] sm:$0xff]
  %v3501 = vld [vmem:[#allocation3 + $0x18] sm:$0xff]
  %v3502 = vld [vmem:[#allocation3 + $0x20] sm:$0xff]
  %v3503 = vld [vmem:[#allocation3 + $0x28] sm:$0xff]
  %v3504 = vld [vmem:[#allocation3 + $0x30] sm:$0xff]
  %v3505 = vld [vmem:[#allocation3 + $0x38] sm:$0xff]
  %v3506 = vld [vmem:[#allocation3 + $0x40] sm:$0xff]
  %v3507 = vld [vmem:[#allocation3 + $0x48] sm:$0xff]
  %v3508 = vld [vmem:[#allocation3 + $0x50] sm:$0xff]
  %v3509 = vld [vmem:[#allocation3 + $0x58] sm:$0xff]
  %v3510 = vld [vmem:[#allocation3 + $0x60] sm:$0xff]
  %v3511 = vld [vmem:[#allocation3 + $0x68] sm:$0xff]
  %v3512 = vld [vmem:[#allocation3 + $0x70] sm:$0xff]
  %v3513 = vld [vmem:[#allocation3 + $0x78] sm:$0xff]
  %v3514 = vld [vmem:[#allocation3 + $0x80] sm:$0xff]
  %v3515 = vld [vmem:[#allocation3 + $0x88] sm:$0xff]
  %v3516 = vld [vmem:[#allocation3 + $0x90] sm:$0xff]
  %v3517 = vld [vmem:[#allocation3 + $0x98] sm:$0xff]
  %v3518 = vld [vmem:[#allocation3 + $0xa0] sm:$0xff]
  %v3519 = vld [vmem:[#allocation3 + $0xa8] sm:$0xff]
  %v3520 = vld [vmem:[#allocation3 + $0xb0] sm:$0xff]
  %v3521 = vld [vmem:[#allocation3 + $0xb8] sm:$0xff]
  %v3522 = vld [vmem:[#allocation3 + $0xc0] sm:$0xff]
  %v3523 = vld [vmem:[#allocation3 + $0xc8] sm:$0xff]
  %v3524 = vld [vmem:[#allocation3 + $0xd0] sm:$0xff]
  %v3525 = vld [vmem:[#allocation3 + $0xd8] sm:$0xff]
  %v3526 = vld [vmem:[#allocation3 + $0xe0] sm:$0xff]
  %v3527 = vld [vmem:[#allocation3 + $0xe8] sm:$0xff]
  %v3528 = vld [vmem:[#allocation3 + $0xf0] sm:$0xff]
  %v3529 = vld [vmem:[#allocation3 + $0xf8] sm:$0xff]
  %v3530 = vld [vmem:[#allocation3 + $0x100] sm:$0xff]
  %v3531 = vld [vmem:[#allocation3 + $0x108] sm:$0xff]
  %v3532 = vld [vmem:[#allocation3 + $0x110] sm:$0xff]
  %v3533 = vld [vmem:[#allocation3 + $0x118] sm:$0xff]
  %v3534 = vld [vmem:[#allocation3 + $0x120] sm:$0xff]
  %v3535 = vld [vmem:[#allocation3 + $0x128] sm:$0xff]
  %v3536 = vld [vmem:[#allocation3 + $0x130] sm:$0xff]
  %v3537 = vld [vmem:[#allocation3 + $0x138] sm:$0xff]
  %v3538 = vld [vmem:[#allocation3 + $0x140] sm:$0xff]
  %v3539 = vld [vmem:[#allocation3 + $0x148] sm:$0xff]
  %v3540 = vld [vmem:[#allocation3 + $0x150] sm:$0xff]
  %v3541 = vld [vmem:[#allocation3 + $0x158] sm:$0xff]
  %v3542 = vld [vmem:[#allocation3 + $0x160] sm:$0xff]
  %v3543 = vld [vmem:[#allocation3 + $0x168] sm:$0xff]
  %v3544 = vld [vmem:[#allocation3 + $0x170] sm:$0xff]
  %v3545 = vld [vmem:[#allocation3 + $0x178] sm:$0xff]
  %v3546 = vld [vmem:[#allocation3 + $0x180] sm:$0xff]
  %v3547 = vld [vmem:[#allocation3 + $0x188] sm:$0xff]
  %v3548 = vld [vmem:[#allocation3 + $0x190] sm:$0xff]
  %v3549 = vld [vmem:[#allocation3 + $0x198] sm:$0xff]
  %v3550 = vld [vmem:[#allocation3 + $0x1a0] sm:$0xff]
  %v3551 = vld [vmem:[#allocation3 + $0x1a8] sm:$0xff]
  %v3552 = vld [vmem:[#allocation3 + $0x1b0] sm:$0xff]
  %v3553 = vld [vmem:[#allocation3 + $0x1b8] sm:$0xff]
  %v3554 = vld [vmem:[%s2] sm:$0xf]
  %v3555 = vld [vmem:[%s2 + $0x4] sm:$0xf]
  %v3556 = vld [vmem:[%s2 + $0x8] sm:$0xf]
  %v3557 = vld [vmem:[%s2 + $0xc] sm:$0xf]
  %v3558 = vld [vmem:[%s2 + $0x10] sm:$0xf]
  %v3559 = vld [vmem:[%s2 + $0x14] sm:$0xf]
  %v3560 = vld [vmem:[%s2 + $0x18] sm:$0xf]
  %v3561 = vld [vmem:[%s2 + $0x1c] sm:$0xf]
  %v3562 = vld [vmem:[%s2 + $0x20] sm:$0xf]
  %v3563 = vld [vmem:[%s2 + $0x24] sm:$0xf]
  %v3564 = vld [vmem:[%s2 + $0x28] sm:$0xf]
  %v3565 = vld [vmem:[%s2 + $0x2c] sm:$0xf]
  %v3566 = vld [vmem:[%s2 + $0x30] sm:$0xf]
  %v3567 = vld [vmem:[%s2 + $0x34] sm:$0xf]
  %v3568 = vld [vmem:[%s2 + $0x38] sm:$0xf]
  %v3569 = vld [vmem:[%s2 + $0x3c] sm:$0xf]
  %v3570 = vld [vmem:[%s2 + $0x40] sm:$0xf]
  %v3571 = vld [vmem:[%s2 + $0x44] sm:$0xf]
  %v3572 = vld [vmem:[%s2 + $0x48] sm:$0xf]
  %v3573 = vld [vmem:[%s2 + $0x4c] sm:$0xf]
  %v3574 = vld [vmem:[%s2 + $0x50] sm:$0xf]
  %v3575 = vld [vmem:[%s2 + $0x54] sm:$0xf]
  %v3576 = vld [vmem:[%s2 + $0x58] sm:$0xf]
  %v3577 = vld [vmem:[%s2 + $0x5c] sm:$0xf]
  %v3578 = vld [vmem:[%s2 + $0x60] sm:$0xf]
  %v3579 = vld [vmem:[%s2 + $0x64] sm:$0xf]
  %v3580 = vld [vmem:[%s2 + $0x68] sm:$0xf]
  %v3581 = vld [vmem:[%s2 + $0x6c] sm:$0xf]
  %v3582 = vld [vmem:[%s2 + $0x70] sm:$0xf]
  %v3583 = vld [vmem:[%s2 + $0x74] sm:$0xf]
  %v3584 = vld [vmem:[%s2 + $0x78] sm:$0xf]
  %v3585 = vld [vmem:[%s2 + $0x7c] sm:$0xf]
  %v3586 = vld [vmem:[%s2 + $0x80] sm:$0xf]
  %v3587 = vld [vmem:[%s2 + $0x84] sm:$0xf]
  %v3588 = vld [vmem:[%s2 + $0x88] sm:$0xf]
  %v3589 = vld [vmem:[%s2 + $0x8c] sm:$0xf]
  %v3590 = vld [vmem:[%s2 + $0x90] sm:$0xf]
  %v3591 = vld [vmem:[%s2 + $0x94] sm:$0xf]
  %v3592 = vld [vmem:[%s2 + $0x98] sm:$0xf]
  %v3593 = vld [vmem:[%s2 + $0x9c] sm:$0xf]
  %v3594 = vld [vmem:[%s2 + $0xa0] sm:$0xf]
  %v3595 = vld [vmem:[%s2 + $0xa4] sm:$0xf]
  %v3596 = vld [vmem:[%s2 + $0xa8] sm:$0xf]
  %v3597 = vld [vmem:[%s2 + $0xac] sm:$0xf]
  %v3598 = vld [vmem:[%s2 + $0xb0] sm:$0xf]
  %v3599 = vld [vmem:[%s2 + $0xb4] sm:$0xf]
  %v3600 = vld [vmem:[%s2 + $0xb8] sm:$0xf]
  %v3601 = vld [vmem:[%s2 + $0xbc] sm:$0xf]
  %v3602 = vld [vmem:[%s2 + $0xc0] sm:$0xf]
  %v3603 = vld [vmem:[%s2 + $0xc4] sm:$0xf]
  %v3604 = vld [vmem:[%s2 + $0xc8] sm:$0xf]
  %v3605 = vld [vmem:[%s2 + $0xcc] sm:$0xf]
  %v3606 = vld [vmem:[%s2 + $0xd0] sm:$0xf]
  %v3607 = vld [vmem:[%s2 + $0xd4] sm:$0xf]
  %v3608 = vld [vmem:[%s2 + $0xd8] sm:$0xf]
  %v3609 = vld [vmem:[%s2 + $0xdc] sm:$0xf]
  %v3610 = vld [vmem:[%s2 + $0xe0] sm:$0xf]
  %v3611 = vld [vmem:[%s2 + $0xe4] sm:$0xf]
  %v3612 = vld [vmem:[%s2 + $0xe8] sm:$0xf]
  %v3613 = vld [vmem:[%s2 + $0xec] sm:$0xf]
  %v3614 = vld [vmem:[%s2 + $0xf0] sm:$0xf]
  %v3615 = vld [vmem:[%s2 + $0xf4] sm:$0xf]
  %v3616 = vld [vmem:[%s2 + $0xf8] sm:$0xf]
  %v3617 = vld [vmem:[%s2 + $0xfc] sm:$0xf]
  %v3618 = vld [vmem:[%s2 + $0x100] sm:$0xf]
  %v3619 = vld [vmem:[%s2 + $0x104] sm:$0xf]
  %v3620 = vld [vmem:[%s2 + $0x108] sm:$0xf]
  %v3621 = vld [vmem:[%s2 + $0x10c] sm:$0xf]
  %v3622 = vld [vmem:[%s2 + $0x110] sm:$0xf]
  %v3623 = vld [vmem:[%s2 + $0x114] sm:$0xf]
  %v3624 = vld [vmem:[%s2 + $0x118] sm:$0xf]
  %v3625 = vld [vmem:[%s2 + $0x11c] sm:$0xf]
  %v3626 = vld [vmem:[%s2 + $0x120] sm:$0xf]
  %v3627 = vld [vmem:[%s2 + $0x124] sm:$0xf]
  %v3628 = vld [vmem:[%s2 + $0x128] sm:$0xf]
  %v3629 = vld [vmem:[%s2 + $0x12c] sm:$0xf]
  %v3630 = vld [vmem:[%s2 + $0x130] sm:$0xf]
  %v3631 = vld [vmem:[%s2 + $0x134] sm:$0xf]
  %v3632 = vld [vmem:[%s2 + $0x138] sm:$0xf]
  %v3633 = vld [vmem:[%s2 + $0x13c] sm:$0xf]
  %v3634 = vld [vmem:[%s2 + $0x140] sm:$0xf]
  %v3635 = vld [vmem:[%s2 + $0x144] sm:$0xf]
  %v3636 = vld [vmem:[%s2 + $0x148] sm:$0xf]
  %v3637 = vld [vmem:[%s2 + $0x14c] sm:$0xf]
  %v3638 = vld [vmem:[%s2 + $0x150] sm:$0xf]
  %v3639 = vld [vmem:[%s2 + $0x154] sm:$0xf]
  %v3640 = vld [vmem:[%s2 + $0x158] sm:$0xf]
  %v3641 = vld [vmem:[%s2 + $0x15c] sm:$0xf]
  %v3642 = vld [vmem:[%s2 + $0x160] sm:$0xf]
  %v3643 = vld [vmem:[%s2 + $0x164] sm:$0xf]
  %v3644 = vld [vmem:[%s2 + $0x168] sm:$0xf]
  %v3645 = vld [vmem:[%s2 + $0x16c] sm:$0xf]
  %v3646 = vld [vmem:[%s2 + $0x170] sm:$0xf]
  %v3647 = vld [vmem:[%s2 + $0x174] sm:$0xf]
  %v3648 = vld [vmem:[%s2 + $0x178] sm:$0xf]
  %v3649 = vld [vmem:[%s2 + $0x17c] sm:$0xf]
  %v3650 = vld [vmem:[%s2 + $0x180] sm:$0xf]
  %v3651 = vld [vmem:[%s2 + $0x184] sm:$0xf]
  %v3652 = vld [vmem:[%s2 + $0x188] sm:$0xf]
  %v3653 = vld [vmem:[%s2 + $0x18c] sm:$0xf]
  %v3654 = vld [vmem:[%s2 + $0x190] sm:$0xf]
  %v3655 = vld [vmem:[%s2 + $0x194] sm:$0xf]
  %v3656 = vld [vmem:[%s2 + $0x198] sm:$0xf]
  %v3657 = vld [vmem:[%s2 + $0x19c] sm:$0xf]
  %v3658 = vld [vmem:[%s2 + $0x1a0] sm:$0xf]
  %v3659 = vld [vmem:[%s2 + $0x1a4] sm:$0xf]
  %v3660 = vld [vmem:[%s2 + $0x1a8] sm:$0xf]
  %v3661 = vld [vmem:[%s2 + $0x1ac] sm:$0xf]
  %v3662 = vld [vmem:[%s2 + $0x1b0] sm:$0xf]
  %v3663 = vld [vmem:[%s2 + $0x1b4] sm:$0xf]
  %v3664 = vld [vmem:[%s2 + $0x1b8] sm:$0xf]
  %v3665 = vld [vmem:[%s2 + $0x1bc] sm:$0xf]
  %v3666 = vld [vmem:[%s6 + $0x1] sm:$0x1]
  %v3667 = vlaneseq
  %v3668 = vshrl.u32 %v3667, 7
  %v3669 = vsub.s32 0, %v3668
  %v3670 = vrot.slane %v3666, %v3669
  %v3783 = vunpack.c.l.b16 %v3554
  %v3784 = vunpack.c.l.b16 %v3555
  %v3785 = vunpack.c.l.b16 %v3556
  %v3786 = vunpack.c.l.b16 %v3557
  %v3787 = vunpack.c.l.b16 %v3558
  %v3788 = vunpack.c.l.b16 %v3559
  %v3789 = vunpack.c.l.b16 %v3560
  %v3790 = vunpack.c.l.b16 %v3561
  %v3791 = vunpack.c.l.b16 %v3562
  %v3792 = vunpack.c.l.b16 %v3563
  %v3793 = vunpack.c.l.b16 %v3564
  %v3794 = vunpack.c.l.b16 %v3565
  %v3795 = vunpack.c.l.b16 %v3566
  %v3796 = vunpack.c.l.b16 %v3567
  %v3797 = vunpack.c.l.b16 %v3568
  %v3798 = vunpack.c.l.b16 %v3569
  %v3799 = vunpack.c.l.b16 %v3570
  %v3800 = vunpack.c.l.b16 %v3571
  %v3801 = vunpack.c.l.b16 %v3572
  %v3802 = vunpack.c.l.b16 %v3573
  %v3803 = vunpack.c.l.b16 %v3574
  %v3804 = vunpack.c.l.b16 %v3575
  %v3805 = vunpack.c.l.b16 %v3576
  %v3806 = vunpack.c.l.b16 %v3577
  %v3807 = vunpack.c.l.b16 %v3578
  %v3808 = vunpack.c.l.b16 %v3579
  %v3809 = vunpack.c.l.b16 %v3580
  %v3810 = vunpack.c.l.b16 %v3581
  %v3811 = vunpack.c.l.b16 %v3582
  %v3812 = vunpack.c.l.b16 %v3583
  %v3813 = vunpack.c.l.b16 %v3584
  %v3814 = vunpack.c.l.b16 %v3585
  %v3815 = vunpack.c.l.b16 %v3586
  %v3816 = vunpack.c.l.b16 %v3587
  %v3817 = vunpack.c.l.b16 %v3588
  %v3818 = vunpack.c.l.b16 %v3589
  %v3819 = vunpack.c.l.b16 %v3590
  %v3820 = vunpack.c.l.b16 %v3591
  %v3821 = vunpack.c.l.b16 %v3592
  %v3822 = vunpack.c.l.b16 %v3593
  %v3823 = vunpack.c.l.b16 %v3594
  %v3824 = vunpack.c.l.b16 %v3595
  %v3825 = vunpack.c.l.b16 %v3596
  %v3826 = vunpack.c.l.b16 %v3597
  %v3827 = vunpack.c.l.b16 %v3598
  %v3828 = vunpack.c.l.b16 %v3599
  %v3829 = vunpack.c.l.b16 %v3600
  %v3830 = vunpack.c.l.b16 %v3601
  %v3831 = vunpack.c.l.b16 %v3602
  %v3832 = vunpack.c.l.b16 %v3603
  %v3833 = vunpack.c.l.b16 %v3604
  %v3834 = vunpack.c.l.b16 %v3605
  %v3835 = vunpack.c.l.b16 %v3606
  %v3836 = vunpack.c.l.b16 %v3607
  %v3837 = vunpack.c.l.b16 %v3608
  %v3838 = vunpack.c.l.b16 %v3609
  %v3839 = vunpack.c.l.b16 %v3610
  %v3840 = vunpack.c.l.b16 %v3611
  %v3841 = vunpack.c.l.b16 %v3612
  %v3842 = vunpack.c.l.b16 %v3613
  %v3843 = vunpack.c.l.b16 %v3614
  %v3844 = vunpack.c.l.b16 %v3615
  %v3845 = vunpack.c.l.b16 %v3616
  %v3846 = vunpack.c.l.b16 %v3617
  %v3847 = vunpack.c.l.b16 %v3618
  %v3848 = vunpack.c.l.b16 %v3619
  %v3849 = vunpack.c.l.b16 %v3620
  %v3850 = vunpack.c.l.b16 %v3621
  %v3851 = vunpack.c.l.b16 %v3622
  %v3852 = vunpack.c.l.b16 %v3623
  %v3853 = vunpack.c.l.b16 %v3624
  %v3854 = vunpack.c.l.b16 %v3625
  %v3855 = vunpack.c.l.b16 %v3626
  %v3856 = vunpack.c.l.b16 %v3627
  %v3857 = vunpack.c.l.b16 %v3628
  %v3858 = vunpack.c.l.b16 %v3629
  %v3859 = vunpack.c.l.b16 %v3630
  %v3860 = vunpack.c.l.b16 %v3631
  %v3861 = vunpack.c.l.b16 %v3632
  %v3862 = vunpack.c.l.b16 %v3633
  %v3863 = vunpack.c.l.b16 %v3634
  %v3864 = vunpack.c.l.b16 %v3635
  %v3865 = vunpack.c.l.b16 %v3636
  %v3866 = vunpack.c.l.b16 %v3637
  %v3867 = vunpack.c.l.b16 %v3638
  %v3868 = vunpack.c.l.b16 %v3639
  %v3869 = vunpack.c.l.b16 %v3640
  %v3870 = vunpack.c.l.b16 %v3641
  %v3871 = vunpack.c.l.b16 %v3642
  %v3872 = vunpack.c.l.b16 %v3643
  %v3873 = vunpack.c.l.b16 %v3644
  %v3874 = vunpack.c.l.b16 %v3645
  %v3875 = vunpack.c.l.b16 %v3646
  %v3876 = vunpack.c.l.b16 %v3647
  %v3877 = vunpack.c.l.b16 %v3648
  %v3878 = vunpack.c.l.b16 %v3649
  %v3879 = vunpack.c.l.b16 %v3650
  %v3880 = vunpack.c.l.b16 %v3651
  %v3881 = vunpack.c.l.b16 %v3652
  %v3882 = vunpack.c.l.b16 %v3653
  %v3883 = vunpack.c.l.b16 %v3654
  %v3884 = vunpack.c.l.b16 %v3655
  %v3885 = vunpack.c.l.b16 %v3656
  %v3886 = vunpack.c.l.b16 %v3657
  %v3887 = vunpack.c.l.b16 %v3658
  %v3888 = vunpack.c.l.b16 %v3659
  %v3889 = vunpack.c.l.b16 %v3660
  %v3890 = vunpack.c.l.b16 %v3661
  %v3891 = vunpack.c.l.b16 %v3662
  %v3892 = vunpack.c.l.b16 %v3663
  %v3893 = vunpack.c.l.b16 %v3664
  %v3894 = vunpack.c.l.b16 %v3665
  %v3895 = vpack.c.b16 %v3784, %v3783
  %v3896 = vpack.c.b16 %v3786, %v3785
  %v3897 = vpack.c.b16 %v3788, %v3787
  %v3898 = vpack.c.b16 %v3790, %v3789
  %v3899 = vpack.c.b16 %v3792, %v3791
  %v3900 = vpack.c.b16 %v3794, %v3793
  %v3901 = vpack.c.b16 %v3796, %v3795
  %v3902 = vpack.c.b16 %v3798, %v3797
  %v3903 = vpack.c.b16 %v3800, %v3799
  %v3904 = vpack.c.b16 %v3802, %v3801
  %v3905 = vpack.c.b16 %v3804, %v3803
  %v3906 = vpack.c.b16 %v3806, %v3805
  %v3907 = vpack.c.b16 %v3808, %v3807
  %v3908 = vpack.c.b16 %v3810, %v3809
  %v3909 = vpack.c.b16 %v3812, %v3811
  %v3910 = vpack.c.b16 %v3814, %v3813
  %v3911 = vpack.c.b16 %v3816, %v3815
  %v3912 = vpack.c.b16 %v3818, %v3817
  %v3913 = vpack.c.b16 %v3820, %v3819
  %v3914 = vpack.c.b16 %v3822, %v3821
  %v3915 = vpack.c.b16 %v3824, %v3823
  %v3916 = vpack.c.b16 %v3826, %v3825
  %v3917 = vpack.c.b16 %v3828, %v3827
  %v3918 = vpack.c.b16 %v3830, %v3829
  %v3919 = vpack.c.b16 %v3832, %v3831
  %v3920 = vpack.c.b16 %v3834, %v3833
  %v3921 = vpack.c.b16 %v3836, %v3835
  %v3922 = vpack.c.b16 %v3838, %v3837
  %v3923 = vpack.c.b16 %v3840, %v3839
  %v3924 = vpack.c.b16 %v3842, %v3841
  %v3925 = vpack.c.b16 %v3844, %v3843
  %v3926 = vpack.c.b16 %v3846, %v3845
  %v3927 = vpack.c.b16 %v3848, %v3847
  %v3928 = vpack.c.b16 %v3850, %v3849
  %v3929 = vpack.c.b16 %v3852, %v3851
  %v3930 = vpack.c.b16 %v3854, %v3853
  %v3931 = vpack.c.b16 %v3856, %v3855
  %v3932 = vpack.c.b16 %v3858, %v3857
  %v3933 = vpack.c.b16 %v3860, %v3859
  %v3934 = vpack.c.b16 %v3862, %v3861
  %v3935 = vpack.c.b16 %v3864, %v3863
  %v3936 = vpack.c.b16 %v3866, %v3865
  %v3937 = vpack.c.b16 %v3868, %v3867
  %v3938 = vpack.c.b16 %v3870, %v3869
  %v3939 = vpack.c.b16 %v3872, %v3871
  %v3940 = vpack.c.b16 %v3874, %v3873
  %v3941 = vpack.c.b16 %v3876, %v3875
  %v3942 = vpack.c.b16 %v3878, %v3877
  %v3943 = vpack.c.b16 %v3880, %v3879
  %v3944 = vpack.c.b16 %v3882, %v3881
  %v3945 = vpack.c.b16 %v3884, %v3883
  %v3946 = vpack.c.b16 %v3886, %v3885
  %v3947 = vpack.c.b16 %v3888, %v3887
  %v3948 = vpack.c.b16 %v3890, %v3889
  %v3949 = vpack.c.b16 %v3892, %v3891
  %v3950 = vpack.c.b16 %v3894, %v3893
  %4007 = vmatprep.subr.bf16.mxu0 0
  %4008 = vmatpush1.bf16.msra.mxu0 %v3895
  %4009 = vmatprep.subr.bf16.mxu0 0
  %4010 = vmatpush1.bf16.msra.mxu0 %v3896
  %4011 = vmatprep.subr.bf16.mxu0 0
  %4012 = vmatpush1.bf16.msra.mxu0 %v3897
  %4013 = vmatprep.subr.bf16.mxu0 0
  %4014 = vmatpush1.bf16.msra.mxu0 %v3898
  %4015 = vmatprep.subr.bf16.mxu0 0
  %4016 = vmatpush1.bf16.msra.mxu0 %v3899
  %4017 = vmatprep.subr.bf16.mxu0 0
  %4018 = vmatpush1.bf16.msra.mxu0 %v3900
  %4019 = vmatprep.subr.bf16.mxu0 0
  %4020 = vmatpush1.bf16.msra.mxu0 %v3901
  %4021 = vmatprep.subr.bf16.mxu0 0
  %4022 = vmatpush1.bf16.msra.mxu0 %v3902
  %4023 = vmatprep.subr.bf16.mxu0 0
  %4024 = vmatpush1.bf16.msra.mxu0 %v3903
  %4025 = vmatprep.subr.bf16.mxu0 0
  %4026 = vmatpush1.bf16.msra.mxu0 %v3904
  %4027 = vmatprep.subr.bf16.mxu0 0
  %4028 = vmatpush1.bf16.msra.mxu0 %v3905
  %4029 = vmatprep.subr.bf16.mxu0 0
  %4030 = vmatpush1.bf16.msra.mxu0 %v3906
  %4031 = vmatprep.subr.bf16.mxu0 0
  %4032 = vmatpush1.bf16.msra.mxu0 %v3907
  %4033 = vmatprep.subr.bf16.mxu0 0
  %4034 = vmatpush1.bf16.msra.mxu0 %v3908
  %4035 = vmatprep.subr.bf16.mxu0 0
  %4036 = vmatpush1.bf16.msra.mxu0 %v3909
  %4037 = vmatprep.subr.bf16.mxu0 0
  %4038 = vmatpush1.bf16.msra.mxu0 %v3910
  %4039 = vmatprep.mubr.bf16.mxu0 %v3499
  %4040 = vmatmul.mubr.bf16.gmra.mrb[0].mxu0 %v3498
  %v4041 = vpop.f32.mrb[0].mxu0
  %v4042 = vadd.f32 %v3670, %v4041
  %v4043 = vpop.f32.mrb[0].mxu0
  %v4044 = vpop.f32.mrb[0].mxu0
  %v4045 = vadd.f32 %v3670, %v4044
  %v4046 = vpop.f32.mrb[0].mxu0
  %4047 = vmatprep.mubr.bf16.mxu0 %v3506
  %4048 = vmatmul.mubr.bf16.gmra.mrb[0].mxu0 %v3505
  %v4049 = vpop.f32.mrb[0].mxu0
  %v4050 = vadd.f32 %v3670, %v4049
  %v4051 = vpop.f32.mrb[0].mxu0
  %v4052 = vpop.f32.mrb[0].mxu0
  %v4053 = vadd.f32 %v3670, %v4052
  %v4054 = vpop.f32.mrb[0].mxu0
  %4055 = vmatprep.mubr.bf16.mxu0 %v3513
  %4056 = vmatmul.mubr.bf16.gmra.mrb[0].mxu0 %v3512
  %v4057 = vpop.f32.mrb[0].mxu0
  %v4058 = vadd.f32 %v3670, %v4057
  %v4059 = vpop.f32.mrb[0].mxu0
  %v4060 = vpop.f32.mrb[0].mxu0
  %v4061 = vadd.f32 %v3670, %v4060
  %v4062 = vpop.f32.mrb[0].mxu0
  %4063 = vmatprep.mubr.bf16.mxu0 %v3520
  %4064 = vmatmul.mubr.bf16.gmra.mrb[0].mxu0 %v3519
  %v4065 = vpop.f32.mrb[0].mxu0
  %v4066 = vadd.f32 %v3670, %v4065
  %v4067 = vpop.f32.mrb[0].mxu0
  %v4068 = vpop.f32.mrb[0].mxu0
  %v4069 = vadd.f32 %v3670, %v4068
  %v4070 = vpop.f32.mrb[0].mxu0
  %4071 = vmatprep.mubr.bf16.mxu0 %v3527
  %4072 = vmatmul.mubr.bf16.gmra.mrb[0].mxu0 %v3526
  %v4073 = vpop.f32.mrb[0].mxu0
  %v4074 = vadd.f32 %v3670, %v4073
  %v4075 = vpop.f32.mrb[0].mxu0
  %v4076 = vpop.f32.mrb[0].mxu0
  %v4077 = vadd.f32 %v3670, %v4076
  %v4078 = vpop.f32.mrb[0].mxu0
  %4079 = vmatprep.mubr.bf16.mxu0 %v3534
  %4080 = vmatmul.mubr.bf16.gmra.mrb[0].mxu0 %v3533
  %v4081 = vpop.f32.mrb[0].mxu0
  %v4082 = vadd.f32 %v3670, %v4081
  %v4083 = vpop.f32.mrb[0].mxu0
  %v4084 = vpop.f32.mrb[0].mxu0
  %v4085 = vadd.f32 %v3670, %v4084
  %v4086 = vpop.f32.mrb[0].mxu0
  %4087 = vmatprep.mubr.bf16.mxu0 %v3541
  %4088 = vmatmul.mubr.bf16.gmra.mrb[0].mxu0 %v3540
  %v4089 = vpop.f32.mrb[0].mxu0
  %v4090 = vadd.f32 %v3670, %v4089
  %v4091 = vpop.f32.mrb[0].mxu0
  %v4092 = vpop.f32.mrb[0].mxu0
  %v4093 = vadd.f32 %v3670, %v4092
  %v4094 = vpop.f32.mrb[0].mxu0
  %4095 = vmatprep.mubr.bf16.mxu0 %v3548
  %4096 = vmatmul.mubr.bf16.gmra.mrb[0].mxu0 %v3547
  %v4097 = vpop.f32.mrb[0].mxu0
  %v4098 = vadd.f32 %v3670, %v4097
  %v4099 = vpop.f32.mrb[0].mxu0
  %v4100 = vpop.f32.mrb[0].mxu0
  %v4101 = vadd.f32 %v3670, %v4100
  %v4102 = vpop.f32.mrb[0].mxu0
  %4103 = vdwg.mxu0
  %4104 = vmatprep.subr.bf16.mxu0 0
  %4105 = vmatpush1.bf16.msra.mxu0 %v3911
  %4106 = vmatprep.subr.bf16.mxu0 0
  %4107 = vmatpush1.bf16.msra.mxu0 %v3912
  %4108 = vmatprep.subr.bf16.mxu0 0
  %4109 = vmatpush1.bf16.msra.mxu0 %v3913
  %4110 = vmatprep.subr.bf16.mxu0 0
  %4111 = vmatpush1.bf16.msra.mxu0 %v3914
  %4112 = vmatprep.subr.bf16.mxu0 0
  %4113 = vmatpush1.bf16.msra.mxu0 %v3915
  %4114 = vmatprep.subr.bf16.mxu0 0
  %4115 = vmatpush1.bf16.msra.mxu0 %v3916
  %4116 = vmatprep.subr.bf16.mxu0 0
  %4117 = vmatpush1.bf16.msra.mxu0 %v3917
  %4118 = vmatprep.subr.bf16.mxu0 0
  %4119 = vmatpush1.bf16.msra.mxu0 %v3918
  %4120 = vmatprep.subr.bf16.mxu0 0
  %4121 = vmatpush1.bf16.msra.mxu0 %v3919
  %4122 = vmatprep.subr.bf16.mxu0 0
  %4123 = vmatpush1.bf16.msra.mxu0 %v3920
  %4124 = vmatprep.subr.bf16.mxu0 0
  %4125 = vmatpush1.bf16.msra.mxu0 %v3921
  %4126 = vmatprep.subr.bf16.mxu0 0
  %4127 = vmatpush1.bf16.msra.mxu0 %v3922
  %4128 = vmatprep.subr.bf16.mxu0 0
  %4129 = vmatpush1.bf16.msra.mxu0 %v3923
  %4130 = vmatprep.subr.bf16.mxu0 0
  %4131 = vmatpush1.bf16.msra.mxu0 %v3924
  %4132 = vmatprep.subr.bf16.mxu0 0
  %4133 = vmatpush1.bf16.msra.mxu0 %v3925
  %4134 = vmatprep.subr.bf16.mxu0 0
  %4135 = vmatpush1.bf16.msra.mxu0 %v3926
  %4136 = vmatprep.mubr.bf16.mxu0 %v3501
  %4137 = vmatmul.mubr.bf16.gmra.mrb[0].mxu0 %v3500
  %v4138 = vpop.f32.mrb[0].mxu0
  %v4139 = vadd.f32 %v4042, %v4138
  %v4140 = vpop.f32.mrb[0].mxu0
  %v4141 = vpop.f32.mrb[0].mxu0
  %v4142 = vadd.f32 %v4045, %v4141
  %v4143 = vpop.f32.mrb[0].mxu0
  %4144 = vmatprep.mubr.bf16.mxu0 %v3508
  %4145 = vmatmul.mubr.bf16.gmra.mrb[0].mxu0 %v3507
  %v4146 = vpop.f32.mrb[0].mxu0
  %v4147 = vadd.f32 %v4050, %v4146
  %v4148 = vpop.f32.mrb[0].mxu0
  %v4149 = vpop.f32.mrb[0].mxu0
  %v4150 = vadd.f32 %v4053, %v4149
  %v4151 = vpop.f32.mrb[0].mxu0
  %4152 = vmatprep.mubr.bf16.mxu0 %v3515
  %4153 = vmatmul.mubr.bf16.gmra.mrb[0].mxu0 %v3514
  %v4154 = vpop.f32.mrb[0].mxu0
  %v4155 = vadd.f32 %v4058, %v4154
  %v4156 = vpop.f32.mrb[0].mxu0
  %v4157 = vpop.f32.mrb[0].mxu0
  %v4158 = vadd.f32 %v4061, %v4157
  %v4159 = vpop.f32.mrb[0].mxu0
  %4160 = vmatprep.mubr.bf16.mxu0 %v3522
  %4161 = vmatmul.mubr.bf16.gmra.mrb[0].mxu0 %v3521
  %v4162 = vpop.f32.mrb[0].mxu0
  %v4163 = vadd.f32 %v4066, %v4162
  %v4164 = vpop.f32.mrb[0].mxu0
  %v4165 = vpop.f32.mrb[0].mxu0
  %v4166 = vadd.f32 %v4069, %v4165
  %v4167 = vpop.f32.mrb[0].mxu0
  %4168 = vmatprep.mubr.bf16.mxu0 %v3529
  %4169 = vmatmul.mubr.bf16.gmra.mrb[0].mxu0 %v3528
  %v4170 = vpop.f32.mrb[0].mxu0
  %v4171 = vadd.f32 %v4074, %v4170
  %v4172 = vpop.f32.mrb[0].mxu0
  %v4173 = vpop.f32.mrb[0].mxu0
  %v4174 = vadd.f32 %v4077, %v4173
  %v4175 = vpop.f32.mrb[0].mxu0
  %4176 = vmatprep.mubr.bf16.mxu0 %v3536
  %4177 = vmatmul.mubr.bf16.gmra.mrb[0].mxu0 %v3535
  %v4178 = vpop.f32.mrb[0].mxu0
  %v4179 = vadd.f32 %v4082, %v4178
  %v4180 = vpop.f32.mrb[0].mxu0
  %v4181 = vpop.f32.mrb[0].mxu0
  %v4182 = vadd.f32 %v4085, %v4181
  %v4183 = vpop.f32.mrb[0].mxu0
  %4184 = vmatprep.mubr.bf16.mxu0 %v3543
  %4185 = vmatmul.mubr.bf16.gmra.mrb[0].mxu0 %v3542
  %v4186 = vpop.f32.mrb[0].mxu0
  %v4187 = vadd.f32 %v4090, %v4186
  %v4188 = vpop.f32.mrb[0].mxu0
  %v4189 = vpop.f32.mrb[0].mxu0
  %v4190 = vadd.f32 %v4093, %v4189
  %v4191 = vpop.f32.mrb[0].mxu0
  %4192 = vmatprep.mubr.bf16.mxu0 %v3550
  %4193 = vmatmul.mubr.bf16.gmra.mrb[0].mxu0 %v3549
  %v4194 = vpop.f32.mrb[0].mxu0
  %v4195 = vadd.f32 %v4098, %v4194
  %v4196 = vpop.f32.mrb[0].mxu0
  %v4197 = vpop.f32.mrb[0].mxu0
  %v4198 = vadd.f32 %v4101, %v4197
  %v4199 = vpop.f32.mrb[0].mxu0
  %4200 = vdwg.mxu0
  %4201 = vmatprep.subr.bf16.mxu0 0
  %4202 = vmatpush1.bf16.msra.mxu0 %v3927
  %4203 = vmatprep.subr.bf16.mxu0 0
  %4204 = vmatpush1.bf16.msra.mxu0 %v3928
  %4205 = vmatprep.subr.bf16.mxu0 0
  %4206 = vmatpush1.bf16.msra.mxu0 %v3929
  %4207 = vmatprep.subr.bf16.mxu0 0
  %4208 = vmatpush1.bf16.msra.mxu0 %v3930
  %4209 = vmatprep.subr.bf16.mxu0 0
  %4210 = vmatpush1.bf16.msra.mxu0 %v3931
  %4211 = vmatprep.subr.bf16.mxu0 0
  %4212 = vmatpush1.bf16.msra.mxu0 %v3932
  %4213 = vmatprep.subr.bf16.mxu0 0
  %4214 = vmatpush1.bf16.msra.mxu0 %v3933
  %4215 = vmatprep.subr.bf16.mxu0 0
  %4216 = vmatpush1.bf16.msra.mxu0 %v3934
  %4217 = vmatprep.subr.bf16.mxu0 0
  %4218 = vmatpush1.bf16.msra.mxu0 %v3935
  %4219 = vmatprep.subr.bf16.mxu0 0
  %4220 = vmatpush1.bf16.msra.mxu0 %v3936
  %4221 = vmatprep.subr.bf16.mxu0 0
  %4222 = vmatpush1.bf16.msra.mxu0 %v3937
  %4223 = vmatprep.subr.bf16.mxu0 0
  %4224 = vmatpush1.bf16.msra.mxu0 %v3938
  %4225 = vmatprep.subr.bf16.mxu0 0
  %4226 = vmatpush1.bf16.msra.mxu0 %v3939
  %4227 = vmatprep.subr.bf16.mxu0 0
  %4228 = vmatpush1.bf16.msra.mxu0 %v3940
  %4229 = vmatprep.subr.bf16.mxu0 0
  %4230 = vmatpush1.bf16.msra.mxu0 %v3941
  %4231 = vmatprep.subr.bf16.mxu0 0
  %4232 = vmatpush1.bf16.msra.mxu0 %v3942
  %4233 = vmatprep.mubr.bf16.mxu0 %v3503
  %4234 = vmatmul.mubr.bf16.gmra.mrb[0].mxu0 %v3502
  %v4235 = vpop.f32.mrb[0].mxu0
  %v4236 = vadd.f32 %v4139, %v4235
  %v4237 = vpop.f32.mrb[0].mxu0
  %v4238 = vpop.f32.mrb[0].mxu0
  %v4239 = vadd.f32 %v4142, %v4238
  %v4240 = vpop.f32.mrb[0].mxu0
  %4241 = vmatprep.mubr.bf16.mxu0 %v3510
  %4242 = vmatmul.mubr.bf16.gmra.mrb[0].mxu0 %v3509
  %v4243 = vpop.f32.mrb[0].mxu0
  %v4244 = vadd.f32 %v4147, %v4243
  %v4245 = vpop.f32.mrb[0].mxu0
  %v4246 = vpop.f32.mrb[0].mxu0
  %v4247 = vadd.f32 %v4150, %v4246
  %v4248 = vpop.f32.mrb[0].mxu0
  %4249 = vmatprep.mubr.bf16.mxu0 %v3517
  %4250 = vmatmul.mubr.bf16.gmra.mrb[0].mxu0 %v3516
  %v4251 = vpop.f32.mrb[0].mxu0
  %v4252 = vadd.f32 %v4155, %v4251
  %v4253 = vpop.f32.mrb[0].mxu0
  %v4254 = vpop.f32.mrb[0].mxu0
  %v4255 = vadd.f32 %v4158, %v4254
  %v4256 = vpop.f32.mrb[0].mxu0
  %4257 = vmatprep.mubr.bf16.mxu0 %v3524
  %4258 = vmatmul.mubr.bf16.gmra.mrb[0].mxu0 %v3523
  %v4259 = vpop.f32.mrb[0].mxu0
  %v4260 = vadd.f32 %v4163, %v4259
  %v4261 = vpop.f32.mrb[0].mxu0
  %v4262 = vpop.f32.mrb[0].mxu0
  %v4263 = vadd.f32 %v4166, %v4262
  %v4264 = vpop.f32.mrb[0].mxu0
  %4265 = vmatprep.mubr.bf16.mxu0 %v3531
  %4266 = vmatmul.mubr.bf16.gmra.mrb[0].mxu0 %v3530
  %v4267 = vpop.f32.mrb[0].mxu0
  %v4268 = vadd.f32 %v4171, %v4267
  %v4269 = vpop.f32.mrb[0].mxu0
  %v4270 = vpop.f32.mrb[0].mxu0
  %v4271 = vadd.f32 %v4174, %v4270
  %v4272 = vpop.f32.mrb[0].mxu0
  %4273 = vmatprep.mubr.bf16.mxu0 %v3538
  %4274 = vmatmul.mubr.bf16.gmra.mrb[0].mxu0 %v3537
  %v4275 = vpop.f32.mrb[0].mxu0
  %v4276 = vadd.f32 %v4179, %v4275
  %v4277 = vpop.f32.mrb[0].mxu0
  %v4278 = vpop.f32.mrb[0].mxu0
  %v4279 = vadd.f32 %v4182, %v4278
  %v4280 = vpop.f32.mrb[0].mxu0
  %4281 = vmatprep.mubr.bf16.mxu0 %v3545
  %4282 = vmatmul.mubr.bf16.gmra.mrb[0].mxu0 %v3544
  %v4283 = vpop.f32.mrb[0].mxu0
  %v4284 = vadd.f32 %v4187, %v4283
  %v4285 = vpop.f32.mrb[0].mxu0
  %v4286 = vpop.f32.mrb[0].mxu0
  %v4287 = vadd.f32 %v4190, %v4286
  %v4288 = vpop.f32.mrb[0].mxu0
  %4289 = vmatprep.mubr.bf16.mxu0 %v3552
  %4290 = vmatmul.mubr.bf16.gmra.mrb[0].mxu0 %v3551
  %v4291 = vpop.f32.mrb[0].mxu0
  %v4292 = vadd.f32 %v4195, %v4291
  %v4293 = vpop.f32.mrb[0].mxu0
  %v4294 = vpop.f32.mrb[0].mxu0
  %v4295 = vadd.f32 %v4198, %v4294
  %v4296 = vpop.f32.mrb[0].mxu0
  %4297 = vdwg.mxu0
  %4298 = vmatprep.subr.bf16.mxu0 0
  %4299 = vmatpush1.bf16.msra.mxu0 %v3943
  %4300 = vmatprep.subr.bf16.mxu0 0
  %4301 = vmatpush1.bf16.msra.mxu0 %v3944
  %4302 = vmatprep.subr.bf16.mxu0 0
  %4303 = vmatpush1.bf16.msra.mxu0 %v3945
  %4304 = vmatprep.subr.bf16.mxu0 0
  %4305 = vmatpush1.bf16.msra.mxu0 %v3946
  %4306 = vmatprep.subr.bf16.mxu0 0
  %4307 = vmatpush1.bf16.msra.mxu0 %v3947
  %4308 = vmatprep.subr.bf16.mxu0 0
  %4309 = vmatpush1.bf16.msra.mxu0 %v3948
  %4310 = vmatprep.subr.bf16.mxu0 0
  %4311 = vmatpush1.bf16.msra.mxu0 %v3949
  %4312 = vmatprep.subr.bf16.mxu0 0
  %4313 = vmatpush1.bf16.msra.mxu0 %v3950
  %4314 = vmatprep.subr.bf16.mxu0 0
  %4315 = vmatpush1.bf16.msra.mxu0 0
  %4316 = vmatprep.subr.bf16.mxu0 0
  %4317 = vmatpush1.bf16.msra.mxu0 0
  %4318 = vmatprep.subr.bf16.mxu0 0
  %4319 = vmatpush1.bf16.msra.mxu0 0
  %4320 = vmatprep.subr.bf16.mxu0 0
  %4321 = vmatpush1.bf16.msra.mxu0 0
  %4322 = vmatprep.subr.bf16.mxu0 0
  %4323 = vmatpush1.bf16.msra.mxu0 0
  %4324 = vmatprep.subr.bf16.mxu0 0
  %4325 = vmatpush1.bf16.msra.mxu0 0
  %4326 = vmatprep.subr.bf16.mxu0 0
  %4327 = vmatpush1.bf16.msra.mxu0 0
  %4328 = vmatprep.subr.bf16.mxu0 0
  %4329 = vmatpush1.bf16.msra.mxu0 0
  %4330 = vmatprep.mubr.bf16.mxu0 0
  %4331 = vmatmul.mubr.bf16.gmra.mrb[0].mxu0 %v3504
  %v4332 = vpop.f32.mrb[0].mxu0
  %v4333 = vadd.f32 %v4236, %v4332
  %v4334 = vpop.f32.mrb[0].mxu0
  %v4335 = vpop.f32.mrb[0].mxu0
  %v4336 = vadd.f32 %v4239, %v4335
  %v4337 = vpop.f32.mrb[0].mxu0
  %4338 = vmatprep.mubr.bf16.mxu0 0
  %4339 = vmatmul.mubr.bf16.gmra.mrb[0].mxu0 %v3511
  %v4340 = vpop.f32.mrb[0].mxu0
  %v4341 = vadd.f32 %v4244, %v4340
  %v4342 = vpop.f32.mrb[0].mxu0
  %v4343 = vpop.f32.mrb[0].mxu0
  %v4344 = vadd.f32 %v4247, %v4343
  %v4345 = vpop.f32.mrb[0].mxu0
  %4346 = vmatprep.mubr.bf16.mxu0 0
  %4347 = vmatmul.mubr.bf16.gmra.mrb[0].mxu0 %v3518
  %v4348 = vpop.f32.mrb[0].mxu0
  %v4349 = vadd.f32 %v4252, %v4348
  %v4350 = vpop.f32.mrb[0].mxu0
  %v4351 = vpop.f32.mrb[0].mxu0
  %v4352 = vadd.f32 %v4255, %v4351
  %v4353 = vpop.f32.mrb[0].mxu0
  %4354 = vmatprep.mubr.bf16.mxu0 0
  %4355 = vmatmul.mubr.bf16.gmra.mrb[0].mxu0 %v3525
  %v4356 = vpop.f32.mrb[0].mxu0
  %v4357 = vadd.f32 %v4260, %v4356
  %v4358 = vpop.f32.mrb[0].mxu0
  %v4359 = vpop.f32.mrb[0].mxu0
  %v4360 = vadd.f32 %v4263, %v4359
  %v4361 = vpop.f32.mrb[0].mxu0
  %4362 = vmatprep.mubr.bf16.mxu0 0
  %4363 = vmatmul.mubr.bf16.gmra.mrb[0].mxu0 %v3532
  %v4364 = vpop.f32.mrb[0].mxu0
  %v4365 = vadd.f32 %v4268, %v4364
  %v4366 = vpop.f32.mrb[0].mxu0
  %v4367 = vpop.f32.mrb[0].mxu0
  %v4368 = vadd.f32 %v4271, %v4367
  %v4369 = vpop.f32.mrb[0].mxu0
  %4370 = vmatprep.mubr.bf16.mxu0 0
  %4371 = vmatmul.mubr.bf16.gmra.mrb[0].mxu0 %v3539
  %v4372 = vpop.f32.mrb[0].mxu0
  %v4373 = vadd.f32 %v4276, %v4372
  %v4374 = vpop.f32.mrb[0].mxu0
  %v4375 = vpop.f32.mrb[0].mxu0
  %v4376 = vadd.f32 %v4279, %v4375
  %v4377 = vpop.f32.mrb[0].mxu0
  %4378 = vmatprep.mubr.bf16.mxu0 0
  %4379 = vmatmul.mubr.bf16.gmra.mrb[0].mxu0 %v3546
  %v4380 = vpop.f32.mrb[0].mxu0
  %v4381 = vadd.f32 %v4284, %v4380
  %v4382 = vpop.f32.mrb[0].mxu0
  %v4383 = vpop.f32.mrb[0].mxu0
  %v4384 = vadd.f32 %v4287, %v4383
  %v4385 = vpop.f32.mrb[0].mxu0
  %4386 = vmatprep.mubr.bf16.mxu0 0
  %4387 = vmatmul.mubr.bf16.gmra.mrb[0].mxu0 %v3553
  %v4388 = vpop.f32.mrb[0].mxu0
  %v4389 = vadd.f32 %v4292, %v4388
  %v4390 = vpop.f32.mrb[0].mxu0
  %v4391 = vpop.f32.mrb[0].mxu0
  %v4392 = vadd.f32 %v4295, %v4391
  %v4393 = vpop.f32.mrb[0].mxu0
  %4394 = vdwg.mxu0
  %v4395 = vmax.f32 %v4333, 0.0
  %v4396 = vmax.f32 %v4336, 0.0
  %v4397 = vmax.f32 %v4341, 0.0
  %v4398 = vmax.f32 %v4344, 0.0
  %v4399 = vmax.f32 %v4349, 0.0
  %v4400 = vmax.f32 %v4352, 0.0
  %v4401 = vmax.f32 %v4357, 0.0
  %v4402 = vmax.f32 %v4360, 0.0
  %v4403 = vmax.f32 %v4365, 0.0
  %v4404 = vmax.f32 %v4368, 0.0
  %v4405 = vmax.f32 %v4373, 0.0
  %v4406 = vmax.f32 %v4376, 0.0
  %v4407 = vmax.f32 %v4381, 0.0
  %v4408 = vmax.f32 %v4384, 0.0
  %v4409 = vmax.f32 %v4389, 0.0
  %v4410 = vmax.f32 %v4392, 0.0
  %v4411 = vpack.c.bf16 %v4396, %v4395
  %v4412 = vpack.c.bf16 %v4398, %v4397
  %v4413 = vpack.c.bf16 %v4400, %v4399
  %v4414 = vpack.c.bf16 %v4402, %v4401
  %v4415 = vpack.c.bf16 %v4404, %v4403
  %v4416 = vpack.c.bf16 %v4406, %v4405
  %v4417 = vpack.c.bf16 %v4408, %v4407
  %v4418 = vpack.c.bf16 %v4410, %v4409
  %v4419 = vld [vmem:[%s3] sm:$0xf]
  %v4420 = vld [vmem:[%s3 + $0x4] sm:$0xf]
  %v4421 = vld [vmem:[%s3 + $0x8] sm:$0xf]
  %v4422 = vld [vmem:[%s3 + $0xc] sm:$0xf]
  %v4423 = vld [vmem:[%s3 + $0x10] sm:$0xf]
  %v4424 = vld [vmem:[%s3 + $0x14] sm:$0xf]
  %v4425 = vld [vmem:[%s3 + $0x18] sm:$0xf]
  %v4426 = vld [vmem:[%s3 + $0x1c] sm:$0xf]
  %v4427 = vld [vmem:[%s3 + $0x20] sm:$0xf]
  %v4428 = vld [vmem:[%s3 + $0x24] sm:$0xf]
  %v4429 = vld [vmem:[%s3 + $0x28] sm:$0xf]
  %v4430 = vld [vmem:[%s3 + $0x2c] sm:$0xf]
  %v4437 = vunpack.c.l.b16 %v4425
  %v4438 = vunpack.c.l.b16 %v4426
  %v4439 = vunpack.c.l.b16 %v4427
  %v4440 = vunpack.c.l.b16 %v4428
  %v4441 = vunpack.c.l.b16 %v4429
  %v4442 = vunpack.c.l.b16 %v4430
  %v4443 = vpack.c.b16 %v4438, %v4437
  %v4444 = vpack.c.b16 %v4440, %v4439
  %v4445 = vpack.c.b16 %v4442, %v4441
  %vm4449 = vcmask 392192
  %v4451 = vsel %vm4449, %v4412, 0
  %4453 = vmatprep.subr.bf16.mxu0 0
  %4454 = vmatpush1.bf16.msra.mxu0 %v4443
  %4455 = vmatprep.subr.bf16.mxu0 0
  %4456 = vmatpush1.bf16.msra.mxu0 %v4444
  %4457 = vmatprep.subr.bf16.mxu0 0
  %4458 = vmatpush1.bf16.msra.mxu0 %v4445
  %4459 = vmatprep.subr.bf16.mxu0 0
  %4460 = vmatpush1.bf16.msra.mxu0 0
  %4461 = vmatprep.subr.bf16.mxu0 0
  %4462 = vmatpush1.bf16.msra.mxu0 0
  %4463 = vmatprep.subr.bf16.mxu0 0
  %4464 = vmatpush1.bf16.msra.mxu0 0
  %4465 = vmatprep.subr.bf16.mxu0 0
  %4466 = vmatpush1.bf16.msra.mxu0 0
  %4467 = vmatprep.subr.bf16.mxu0 0
  %4468 = vmatpush1.bf16.msra.mxu0 0
  %4469 = vmatprep.subr.bf16.mxu0 0
  %4470 = vmatpush1.bf16.msra.mxu0 0
  %4471 = vmatprep.subr.bf16.mxu0 0
  %4472 = vmatpush1.bf16.msra.mxu0 0
  %4473 = vmatprep.subr.bf16.mxu0 0
  %4474 = vmatpush1.bf16.msra.mxu0 0
  %4475 = vmatprep.subr.bf16.mxu0 0
  %4476 = vmatpush1.bf16.msra.mxu0 0
  %4477 = vmatprep.subr.bf16.mxu0 0
  %4478 = vmatpush1.bf16.msra.mxu0 0
  %4479 = vmatprep.subr.bf16.mxu0 0
  %4480 = vmatpush1.bf16.msra.mxu0 0
  %4481 = vmatprep.subr.bf16.mxu0 0
  %4482 = vmatpush1.bf16.msra.mxu0 0
  %4483 = vmatprep.subr.bf16.mxu0 0
  %4484 = vmatpush1.bf16.msra.mxu0 0
  %4485 = vmatprep.mubr.bf16.mxu0 0
  %4486 = vmatmul.mubr.bf16.gmra.mrb[0].mxu0 %v4451
  %v4487 = vpop.f32.mrb[0].mxu0
  %v4488 = vadd.f32 0.0, %v4487
  %v4489 = vpop.f32.mrb[0].mxu0
  %v4490 = vpop.f32.mrb[0].mxu0
  %v4491 = vadd.f32 0.0, %v4490
  %v4492 = vpop.f32.mrb[0].mxu0
  %4493 = vdwg.mxu0
  %v4500 = vunpack.c.l.b16 %v4419
  %v4501 = vunpack.c.l.b16 %v4420
  %v4502 = vunpack.c.l.b16 %v4421
  %v4503 = vunpack.c.l.b16 %v4422
  %v4504 = vunpack.c.l.b16 %v4423
  %v4505 = vunpack.c.l.b16 %v4424
  %v4506 = vpack.c.b16 %v4501, %v4500
  %v4507 = vpack.c.b16 %v4503, %v4502
  %v4508 = vpack.c.b16 %v4505, %v4504
  %v4513 = vsel %vm4449, %v4411, 0
  %4515 = vmatprep.subr.bf16.mxu0 0
  %4516 = vmatpush1.bf16.msra.mxu0 %v4506
  %4517 = vmatprep.subr.bf16.mxu0 0
  %4518 = vmatpush1.bf16.msra.mxu0 %v4507
  %4519 = vmatprep.subr.bf16.mxu0 0
  %4520 = vmatpush1.bf16.msra.mxu0 %v4508
  %4521 = vmatprep.subr.bf16.mxu0 0
  %4522 = vmatpush1.bf16.msra.mxu0 0
  %4523 = vmatprep.subr.bf16.mxu0 0
  %4524 = vmatpush1.bf16.msra.mxu0 0
  %4525 = vmatprep.subr.bf16.mxu0 0
  %4526 = vmatpush1.bf16.msra.mxu0 0
  %4527 = vmatprep.subr.bf16.mxu0 0
  %4528 = vmatpush1.bf16.msra.mxu0 0
  %4529 = vmatprep.subr.bf16.mxu0 0
  %4530 = vmatpush1.bf16.msra.mxu0 0
  %4531 = vmatprep.subr.bf16.mxu0 0
  %4532 = vmatpush1.bf16.msra.mxu0 0
  %4533 = vmatprep.subr.bf16.mxu0 0
  %4534 = vmatpush1.bf16.msra.mxu0 0
  %4535 = vmatprep.subr.bf16.mxu0 0
  %4536 = vmatpush1.bf16.msra.mxu0 0
  %4537 = vmatprep.subr.bf16.mxu0 0
  %4538 = vmatpush1.bf16.msra.mxu0 0
  %4539 = vmatprep.subr.bf16.mxu0 0
  %4540 = vmatpush1.bf16.msra.mxu0 0
  %4541 = vmatprep.subr.bf16.mxu0 0
  %4542 = vmatpush1.bf16.msra.mxu0 0
  %4543 = vmatprep.subr.bf16.mxu0 0
  %4544 = vmatpush1.bf16.msra.mxu0 0
  %4545 = vmatprep.subr.bf16.mxu0 0
  %4546 = vmatpush1.bf16.msra.mxu0 0
  %4547 = vmatprep.mubr.bf16.mxu0 0
  %4548 = vmatmul.mubr.bf16.gmra.mrb[0].mxu0 %v4513
  %v4549 = vpop.f32.mrb[0].mxu0
  %v4550 = vadd.f32 %v4488, %v4549
  %v4551 = vpop.f32.mrb[0].mxu0
  %v4552 = vpop.f32.mrb[0].mxu0
  %v4553 = vadd.f32 %v4491, %v4552
  %v4554 = vpop.f32.mrb[0].mxu0
  %4555 = vdwg.mxu0
  %v4556 = vld [vmem:[%s3 + $0x30] sm:$0xf]
  %v4557 = vld [vmem:[%s3 + $0x34] sm:$0xf]
  %v4558 = vld [vmem:[%s3 + $0x38] sm:$0xf]
  %v4559 = vld [vmem:[%s3 + $0x3c] sm:$0xf]
  %v4560 = vld [vmem:[%s3 + $0x40] sm:$0xf]
  %v4561 = vld [vmem:[%s3 + $0x44] sm:$0xf]
  %v4568 = vunpack.c.l.b16 %v4556
  %v4569 = vunpack.c.l.b16 %v4557
  %v4570 = vunpack.c.l.b16 %v4558
  %v4571 = vunpack.c.l.b16 %v4559
  %v4572 = vunpack.c.l.b16 %v4560
  %v4573 = vunpack.c.l.b16 %v4561
  %v4574 = vpack.c.b16 %v4569, %v4568
  %v4575 = vpack.c.b16 %v4571, %v4570
  %v4576 = vpack.c.b16 %v4573, %v4572
  %v4581 = vsel %vm4449, %v4413, 0
  %4583 = vmatprep.subr.bf16.mxu0 0
  %4584 = vmatpush1.bf16.msra.mxu0 %v4574
  %4585 = vmatprep.subr.bf16.mxu0 0
  %4586 = vmatpush1.bf16.msra.mxu0 %v4575
  %4587 = vmatprep.subr.bf16.mxu0 0
  %4588 = vmatpush1.bf16.msra.mxu0 %v4576
  %4589 = vmatprep.subr.bf16.mxu0 0
  %4590 = vmatpush1.bf16.msra.mxu0 0
  %4591 = vmatprep.subr.bf16.mxu0 0
  %4592 = vmatpush1.bf16.msra.mxu0 0
  %4593 = vmatprep.subr.bf16.mxu0 0
  %4594 = vmatpush1.bf16.msra.mxu0 0
  %4595 = vmatprep.subr.bf16.mxu0 0
  %4596 = vmatpush1.bf16.msra.mxu0 0
  %4597 = vmatprep.subr.bf16.mxu0 0
  %4598 = vmatpush1.bf16.msra.mxu0 0
  %4599 = vmatprep.subr.bf16.mxu0 0
  %4600 = vmatpush1.bf16.msra.mxu0 0
  %4601 = vmatprep.subr.bf16.mxu0 0
  %4602 = vmatpush1.bf16.msra.mxu0 0
  %4603 = vmatprep.subr.bf16.mxu0 0
  %4604 = vmatpush1.bf16.msra.mxu0 0
  %4605 = vmatprep.subr.bf16.mxu0 0
  %4606 = vmatpush1.bf16.msra.mxu0 0
  %4607 = vmatprep.subr.bf16.mxu0 0
  %4608 = vmatpush1.bf16.msra.mxu0 0
  %4609 = vmatprep.subr.bf16.mxu0 0
  %4610 = vmatpush1.bf16.msra.mxu0 0
  %4611 = vmatprep.subr.bf16.mxu0 0
  %4612 = vmatpush1.bf16.msra.mxu0 0
  %4613 = vmatprep.subr.bf16.mxu0 0
  %4614 = vmatpush1.bf16.msra.mxu0 0
  %4615 = vmatprep.mubr.bf16.mxu0 0
  %4616 = vmatmul.mubr.bf16.gmra.mrb[0].mxu0 %v4581
  %v4617 = vpop.f32.mrb[0].mxu0
  %v4618 = vadd.f32 0.0, %v4617
  %v4619 = vpop.f32.mrb[0].mxu0
  %v4620 = vpop.f32.mrb[0].mxu0
  %v4621 = vadd.f32 0.0, %v4620
  %v4622 = vpop.f32.mrb[0].mxu0
  %4623 = vdwg.mxu0
  %v4624 = vadd.f32 %v4550, %v4618
  %v4625 = vadd.f32 %v4553, %v4621
  %v4626 = vld [vmem:[%s3 + $0x48] sm:$0xf]
  %v4627 = vld [vmem:[%s3 + $0x4c] sm:$0xf]
  %v4628 = vld [vmem:[%s3 + $0x50] sm:$0xf]
  %v4629 = vld [vmem:[%s3 + $0x54] sm:$0xf]
  %v4630 = vld [vmem:[%s3 + $0x58] sm:$0xf]
  %v4631 = vld [vmem:[%s3 + $0x5c] sm:$0xf]
  %v4638 = vunpack.c.l.b16 %v4626
  %v4639 = vunpack.c.l.b16 %v4627
  %v4640 = vunpack.c.l.b16 %v4628
  %v4641 = vunpack.c.l.b16 %v4629
  %v4642 = vunpack.c.l.b16 %v4630
  %v4643 = vunpack.c.l.b16 %v4631
  %v4644 = vpack.c.b16 %v4639, %v4638
  %v4645 = vpack.c.b16 %v4641, %v4640
  %v4646 = vpack.c.b16 %v4643, %v4642
  %v4651 = vsel %vm4449, %v4414, 0
  %4653 = vmatprep.subr.bf16.mxu0 0
  %4654 = vmatpush1.bf16.msra.mxu0 %v4644
  %4655 = vmatprep.subr.bf16.mxu0 0
  %4656 = vmatpush1.bf16.msra.mxu0 %v4645
  %4657 = vmatprep.subr.bf16.mxu0 0
  %4658 = vmatpush1.bf16.msra.mxu0 %v4646
  %4659 = vmatprep.subr.bf16.mxu0 0
  %4660 = vmatpush1.bf16.msra.mxu0 0
  %4661 = vmatprep.subr.bf16.mxu0 0
  %4662 = vmatpush1.bf16.msra.mxu0 0
  %4663 = vmatprep.subr.bf16.mxu0 0
  %4664 = vmatpush1.bf16.msra.mxu0 0
  %4665 = vmatprep.subr.bf16.mxu0 0
  %4666 = vmatpush1.bf16.msra.mxu0 0
  %4667 = vmatprep.subr.bf16.mxu0 0
  %4668 = vmatpush1.bf16.msra.mxu0 0
  %4669 = vmatprep.subr.bf16.mxu0 0
  %4670 = vmatpush1.bf16.msra.mxu0 0
  %4671 = vmatprep.subr.bf16.mxu0 0
  %4672 = vmatpush1.bf16.msra.mxu0 0
  %4673 = vmatprep.subr.bf16.mxu0 0
  %4674 = vmatpush1.bf16.msra.mxu0 0
  %4675 = vmatprep.subr.bf16.mxu0 0
  %4676 = vmatpush1.bf16.msra.mxu0 0
  %4677 = vmatprep.subr.bf16.mxu0 0
  %4678 = vmatpush1.bf16.msra.mxu0 0
  %4679 = vmatprep.subr.bf16.mxu0 0
  %4680 = vmatpush1.bf16.msra.mxu0 0
  %4681 = vmatprep.subr.bf16.mxu0 0
  %4682 = vmatpush1.bf16.msra.mxu0 0
  %4683 = vmatprep.subr.bf16.mxu0 0
  %4684 = vmatpush1.bf16.msra.mxu0 0
  %4685 = vmatprep.mubr.bf16.mxu0 0
  %4686 = vmatmul.mubr.bf16.gmra.mrb[0].mxu0 %v4651
  %v4687 = vpop.f32.mrb[0].mxu0
  %v4688 = vadd.f32 0.0, %v4687
  %v4689 = vpop.f32.mrb[0].mxu0
  %v4690 = vpop.f32.mrb[0].mxu0
  %v4691 = vadd.f32 0.0, %v4690
  %v4692 = vpop.f32.mrb[0].mxu0
  %4693 = vdwg.mxu0
  %v4694 = vadd.f32 %v4624, %v4688
  %v4695 = vadd.f32 %v4625, %v4691
  %v4696 = vld [vmem:[%s3 + $0x60] sm:$0xf]
  %v4697 = vld [vmem:[%s3 + $0x64] sm:$0xf]
  %v4698 = vld [vmem:[%s3 + $0x68] sm:$0xf]
  %v4699 = vld [vmem:[%s3 + $0x6c] sm:$0xf]
  %v4700 = vld [vmem:[%s3 + $0x70] sm:$0xf]
  %v4701 = vld [vmem:[%s3 + $0x74] sm:$0xf]
  %v4708 = vunpack.c.l.b16 %v4696
  %v4709 = vunpack.c.l.b16 %v4697
  %v4710 = vunpack.c.l.b16 %v4698
  %v4711 = vunpack.c.l.b16 %v4699
  %v4712 = vunpack.c.l.b16 %v4700
  %v4713 = vunpack.c.l.b16 %v4701
  %v4714 = vpack.c.b16 %v4709, %v4708
  %v4715 = vpack.c.b16 %v4711, %v4710
  %v4716 = vpack.c.b16 %v4713, %v4712
  %v4721 = vsel %vm4449, %v4415, 0
  %4723 = vmatprep.subr.bf16.mxu0 0
  %4724 = vmatpush1.bf16.msra.mxu0 %v4714
  %4725 = vmatprep.subr.bf16.mxu0 0
  %4726 = vmatpush1.bf16.msra.mxu0 %v4715
  %4727 = vmatprep.subr.bf16.mxu0 0
  %4728 = vmatpush1.bf16.msra.mxu0 %v4716
  %4729 = vmatprep.subr.bf16.mxu0 0
  %4730 = vmatpush1.bf16.msra.mxu0 0
  %4731 = vmatprep.subr.bf16.mxu0 0
  %4732 = vmatpush1.bf16.msra.mxu0 0
  %4733 = vmatprep.subr.bf16.mxu0 0
  %4734 = vmatpush1.bf16.msra.mxu0 0
  %4735 = vmatprep.subr.bf16.mxu0 0
  %4736 = vmatpush1.bf16.msra.mxu0 0
  %4737 = vmatprep.subr.bf16.mxu0 0
  %4738 = vmatpush1.bf16.msra.mxu0 0
  %4739 = vmatprep.subr.bf16.mxu0 0
  %4740 = vmatpush1.bf16.msra.mxu0 0
  %4741 = vmatprep.subr.bf16.mxu0 0
  %4742 = vmatpush1.bf16.msra.mxu0 0
  %4743 = vmatprep.subr.bf16.mxu0 0
  %4744 = vmatpush1.bf16.msra.mxu0 0
  %4745 = vmatprep.subr.bf16.mxu0 0
  %4746 = vmatpush1.bf16.msra.mxu0 0
  %4747 = vmatprep.subr.bf16.mxu0 0
  %4748 = vmatpush1.bf16.msra.mxu0 0
  %4749 = vmatprep.subr.bf16.mxu0 0
  %4750 = vmatpush1.bf16.msra.mxu0 0
  %4751 = vmatprep.subr.bf16.mxu0 0
  %4752 = vmatpush1.bf16.msra.mxu0 0
  %4753 = vmatprep.subr.bf16.mxu0 0
  %4754 = vmatpush1.bf16.msra.mxu0 0
  %4755 = vmatprep.mubr.bf16.mxu0 0
  %4756 = vmatmul.mubr.bf16.gmra.mrb[0].mxu0 %v4721
  %v4757 = vpop.f32.mrb[0].mxu0
  %v4758 = vadd.f32 0.0, %v4757
  %v4759 = vpop.f32.mrb[0].mxu0
  %v4760 = vpop.f32.mrb[0].mxu0
  %v4761 = vadd.f32 0.0, %v4760
  %v4762 = vpop.f32.mrb[0].mxu0
  %4763 = vdwg.mxu0
  %v4764 = vadd.f32 %v4694, %v4758
  %v4765 = vadd.f32 %v4695, %v4761
  %v4766 = vld [vmem:[%s3 + $0x78] sm:$0xf]
  %v4767 = vld [vmem:[%s3 + $0x7c] sm:$0xf]
  %v4768 = vld [vmem:[%s3 + $0x80] sm:$0xf]
  %v4769 = vld [vmem:[%s3 + $0x84] sm:$0xf]
  %v4770 = vld [vmem:[%s3 + $0x88] sm:$0xf]
  %v4771 = vld [vmem:[%s3 + $0x8c] sm:$0xf]
  %v4778 = vunpack.c.l.b16 %v4766
  %v4779 = vunpack.c.l.b16 %v4767
  %v4780 = vunpack.c.l.b16 %v4768
  %v4781 = vunpack.c.l.b16 %v4769
  %v4782 = vunpack.c.l.b16 %v4770
  %v4783 = vunpack.c.l.b16 %v4771
  %v4784 = vpack.c.b16 %v4779, %v4778
  %v4785 = vpack.c.b16 %v4781, %v4780
  %v4786 = vpack.c.b16 %v4783, %v4782
  %v4791 = vsel %vm4449, %v4416, 0
  %4793 = vmatprep.subr.bf16.mxu0 0
  %4794 = vmatpush1.bf16.msra.mxu0 %v4784
  %4795 = vmatprep.subr.bf16.mxu0 0
  %4796 = vmatpush1.bf16.msra.mxu0 %v4785
  %4797 = vmatprep.subr.bf16.mxu0 0
  %4798 = vmatpush1.bf16.msra.mxu0 %v4786
  %4799 = vmatprep.subr.bf16.mxu0 0
  %4800 = vmatpush1.bf16.msra.mxu0 0
  %4801 = vmatprep.subr.bf16.mxu0 0
  %4802 = vmatpush1.bf16.msra.mxu0 0
  %4803 = vmatprep.subr.bf16.mxu0 0
  %4804 = vmatpush1.bf16.msra.mxu0 0
  %4805 = vmatprep.subr.bf16.mxu0 0
  %4806 = vmatpush1.bf16.msra.mxu0 0
  %4807 = vmatprep.subr.bf16.mxu0 0
  %4808 = vmatpush1.bf16.msra.mxu0 0
  %4809 = vmatprep.subr.bf16.mxu0 0
  %4810 = vmatpush1.bf16.msra.mxu0 0
  %4811 = vmatprep.subr.bf16.mxu0 0
  %4812 = vmatpush1.bf16.msra.mxu0 0
  %4813 = vmatprep.subr.bf16.mxu0 0
  %4814 = vmatpush1.bf16.msra.mxu0 0
  %4815 = vmatprep.subr.bf16.mxu0 0
  %4816 = vmatpush1.bf16.msra.mxu0 0
  %4817 = vmatprep.subr.bf16.mxu0 0
  %4818 = vmatpush1.bf16.msra.mxu0 0
  %4819 = vmatprep.subr.bf16.mxu0 0
  %4820 = vmatpush1.bf16.msra.mxu0 0
  %4821 = vmatprep.subr.bf16.mxu0 0
  %4822 = vmatpush1.bf16.msra.mxu0 0
  %4823 = vmatprep.subr.bf16.mxu0 0
  %4824 = vmatpush1.bf16.msra.mxu0 0
  %4825 = vmatprep.mubr.bf16.mxu0 0
  %4826 = vmatmul.mubr.bf16.gmra.mrb[0].mxu0 %v4791
  %v4827 = vpop.f32.mrb[0].mxu0
  %v4828 = vadd.f32 0.0, %v4827
  %v4829 = vpop.f32.mrb[0].mxu0
  %v4830 = vpop.f32.mrb[0].mxu0
  %v4831 = vadd.f32 0.0, %v4830
  %v4832 = vpop.f32.mrb[0].mxu0
  %4833 = vdwg.mxu0
  %v4834 = vadd.f32 %v4764, %v4828
  %v4835 = vadd.f32 %v4765, %v4831
  %v4836 = vld [vmem:[%s3 + $0x90] sm:$0xf]
  %v4837 = vld [vmem:[%s3 + $0x94] sm:$0xf]
  %v4838 = vld [vmem:[%s3 + $0x98] sm:$0xf]
  %v4839 = vld [vmem:[%s3 + $0x9c] sm:$0xf]
  %v4840 = vld [vmem:[%s3 + $0xa0] sm:$0xf]
  %v4841 = vld [vmem:[%s3 + $0xa4] sm:$0xf]
  %v4848 = vunpack.c.l.b16 %v4836
  %v4849 = vunpack.c.l.b16 %v4837
  %v4850 = vunpack.c.l.b16 %v4838
  %v4851 = vunpack.c.l.b16 %v4839
  %v4852 = vunpack.c.l.b16 %v4840
  %v4853 = vunpack.c.l.b16 %v4841
  %v4854 = vpack.c.b16 %v4849, %v4848
  %v4855 = vpack.c.b16 %v4851, %v4850
  %v4856 = vpack.c.b16 %v4853, %v4852
  %v4861 = vsel %vm4449, %v4417, 0
  %4863 = vmatprep.subr.bf16.mxu0 0
  %4864 = vmatpush1.bf16.msra.mxu0 %v4854
  %4865 = vmatprep.subr.bf16.mxu0 0
  %4866 = vmatpush1.bf16.msra.mxu0 %v4855
  %4867 = vmatprep.subr.bf16.mxu0 0
  %4868 = vmatpush1.bf16.msra.mxu0 %v4856
  %4869 = vmatprep.subr.bf16.mxu0 0
  %4870 = vmatpush1.bf16.msra.mxu0 0
  %4871 = vmatprep.subr.bf16.mxu0 0
  %4872 = vmatpush1.bf16.msra.mxu0 0
  %4873 = vmatprep.subr.bf16.mxu0 0
  %4874 = vmatpush1.bf16.msra.mxu0 0
  %4875 = vmatprep.subr.bf16.mxu0 0
  %4876 = vmatpush1.bf16.msra.mxu0 0
  %4877 = vmatprep.subr.bf16.mxu0 0
  %4878 = vmatpush1.bf16.msra.mxu0 0
  %4879 = vmatprep.subr.bf16.mxu0 0
  %4880 = vmatpush1.bf16.msra.mxu0 0
  %4881 = vmatprep.subr.bf16.mxu0 0
  %4882 = vmatpush1.bf16.msra.mxu0 0
  %4883 = vmatprep.subr.bf16.mxu0 0
  %4884 = vmatpush1.bf16.msra.mxu0 0
  %4885 = vmatprep.subr.bf16.mxu0 0
  %4886 = vmatpush1.bf16.msra.mxu0 0
  %4887 = vmatprep.subr.bf16.mxu0 0
  %4888 = vmatpush1.bf16.msra.mxu0 0
  %4889 = vmatprep.subr.bf16.mxu0 0
  %4890 = vmatpush1.bf16.msra.mxu0 0
  %4891 = vmatprep.subr.bf16.mxu0 0
  %4892 = vmatpush1.bf16.msra.mxu0 0
  %4893 = vmatprep.subr.bf16.mxu0 0
  %4894 = vmatpush1.bf16.msra.mxu0 0
  %4895 = vmatprep.mubr.bf16.mxu0 0
  %4896 = vmatmul.mubr.bf16.gmra.mrb[0].mxu0 %v4861
  %v4897 = vpop.f32.mrb[0].mxu0
  %v4898 = vadd.f32 0.0, %v4897
  %v4899 = vpop.f32.mrb[0].mxu0
  %v4900 = vpop.f32.mrb[0].mxu0
  %v4901 = vadd.f32 0.0, %v4900
  %v4902 = vpop.f32.mrb[0].mxu0
  %4903 = vdwg.mxu0
  %v4904 = vadd.f32 %v4834, %v4898
  %v4905 = vadd.f32 %v4835, %v4901
  %v4906 = vld [vmem:[%s3 + $0xa8] sm:$0xf]
  %v4907 = vld [vmem:[%s3 + $0xac] sm:$0xf]
  %v4908 = vld [vmem:[%s3 + $0xb0] sm:$0xf]
  %v4909 = vld [vmem:[%s3 + $0xb4] sm:$0xf]
  %v4910 = vld [vmem:[%s3 + $0xb8] sm:$0xf]
  %v4911 = vld [vmem:[%s3 + $0xbc] sm:$0xf]
  %v4918 = vunpack.c.l.b16 %v4906
  %v4919 = vunpack.c.l.b16 %v4907
  %v4920 = vunpack.c.l.b16 %v4908
  %v4921 = vunpack.c.l.b16 %v4909
  %v4922 = vunpack.c.l.b16 %v4910
  %v4923 = vunpack.c.l.b16 %v4911
  %v4924 = vpack.c.b16 %v4919, %v4918
  %v4925 = vpack.c.b16 %v4921, %v4920
  %v4926 = vpack.c.b16 %v4923, %v4922
  %v4931 = vsel %vm4449, %v4418, 0
  %4933 = vmatprep.subr.bf16.mxu0 0
  %4934 = vmatpush1.bf16.msra.mxu0 %v4924
  %4935 = vmatprep.subr.bf16.mxu0 0
  %4936 = vmatpush1.bf16.msra.mxu0 %v4925
  %4937 = vmatprep.subr.bf16.mxu0 0
  %4938 = vmatpush1.bf16.msra.mxu0 %v4926
  %4939 = vmatprep.subr.bf16.mxu0 0
  %4940 = vmatpush1.bf16.msra.mxu0 0
  %4941 = vmatprep.subr.bf16.mxu0 0
  %4942 = vmatpush1.bf16.msra.mxu0 0
  %4943 = vmatprep.subr.bf16.mxu0 0
  %4944 = vmatpush1.bf16.msra.mxu0 0
  %4945 = vmatprep.subr.bf16.mxu0 0
  %4946 = vmatpush1.bf16.msra.mxu0 0
  %4947 = vmatprep.subr.bf16.mxu0 0
  %4948 = vmatpush1.bf16.msra.mxu0 0
  %4949 = vmatprep.subr.bf16.mxu0 0
  %4950 = vmatpush1.bf16.msra.mxu0 0
  %4951 = vmatprep.subr.bf16.mxu0 0
  %4952 = vmatpush1.bf16.msra.mxu0 0
  %4953 = vmatprep.subr.bf16.mxu0 0
  %4954 = vmatpush1.bf16.msra.mxu0 0
  %4955 = vmatprep.subr.bf16.mxu0 0
  %4956 = vmatpush1.bf16.msra.mxu0 0
  %4957 = vmatprep.subr.bf16.mxu0 0
  %4958 = vmatpush1.bf16.msra.mxu0 0
  %4959 = vmatprep.subr.bf16.mxu0 0
  %4960 = vmatpush1.bf16.msra.mxu0 0
  %4961 = vmatprep.subr.bf16.mxu0 0
  %4962 = vmatpush1.bf16.msra.mxu0 0
  %4963 = vmatprep.subr.bf16.mxu0 0
  %4964 = vmatpush1.bf16.msra.mxu0 0
  %4965 = vmatprep.mubr.bf16.mxu0 0
  %4966 = vmatmul.mubr.bf16.gmra.mrb[0].mxu0 %v4931
  %v4967 = vpop.f32.mrb[0].mxu0
  %v4968 = vadd.f32 0.0, %v4967
  %v4969 = vpop.f32.mrb[0].mxu0
  %v4970 = vpop.f32.mrb[0].mxu0
  %v4971 = vadd.f32 0.0, %v4970
  %v4972 = vpop.f32.mrb[0].mxu0
  %4973 = vdwg.mxu0
  %v4974 = vadd.f32 %v4904, %v4968
  %v4975 = vadd.f32 %v4905, %v4971
  %v4976 = vld [vmem:[%s6 + $0x2] sm:$0x1]
  %v4977 = vlaneseq
  %v4978 = vshrl.u32 %v4977, 7
  %v4979 = vsub.s32 0, %v4978
  %v4980 = vrot.slane %v4976, %v4979
  %v4981 = vadd.f32 %v4974, %v4980
  %v4982 = vadd.f32 %v4975, %v4980
  %v4983 = vmax.f32 %v4981, 0.0
  %v4984 = vmax.f32 %v4982, 0.0
  %v4985 = vpack.c.bf16 %v4984, %v4983
  %v4986 = vld [vmem:[%s4] sm:$0xf]
  %v4987 = vld [vmem:[%s4 + $0x4] sm:$0xf]
  %v4988 = vld [vmem:[%s4 + $0x8] sm:$0xf]
  %v4989 = vld [vmem:[%s4 + $0xc] sm:$0xf]
  %v4990 = vld [vmem:[%s4 + $0x10] sm:$0xf]
  %v4991 = vld [vmem:[%s4 + $0x14] sm:$0xf]
  %v4992 = vld [vmem:[%s4 + $0x18] sm:$0xf]
  %v4993 = vld [vmem:[%s4 + $0x1c] sm:$0xf]
  %v4994 = vld [vmem:[%s4 + $0x20] sm:$0xf]
  %v4995 = vld [vmem:[%s4 + $0x24] sm:$0xf]
  %v4996 = vld [vmem:[%s4 + $0x28] sm:$0xf]
  %v4997 = vld [vmem:[%s4 + $0x2c] sm:$0xf]
  %v4998 = vld [vmem:[%s4 + $0x30] sm:$0xf]
  %v4999 = vld [vmem:[%s4 + $0x34] sm:$0xf]
  %v5000 = vld [vmem:[%s4 + $0x38] sm:$0xf]
  %v5001 = vld [vmem:[%s4 + $0x3c] sm:$0xf]
  %v5002 = vld [vmem:[%s6 + $0x3] sm:$0x1]
  %v5003 = vlaneseq
  %v5004 = vshrl.u32 %v5003, 7
  %v5005 = vsub.s32 0, %v5004
  %v5006 = vrot.slane %v5002, %v5005
  %v5023 = vunpack.c.l.b16 %v4986
  %v5024 = vunpack.c.l.b16 %v4987
  %v5025 = vunpack.c.l.b16 %v4988
  %v5026 = vunpack.c.l.b16 %v4989
  %v5027 = vunpack.c.l.b16 %v4990
  %v5028 = vunpack.c.l.b16 %v4991
  %v5029 = vunpack.c.l.b16 %v4992
  %v5030 = vunpack.c.l.b16 %v4993
  %v5031 = vunpack.c.l.b16 %v4994
  %v5032 = vunpack.c.l.b16 %v4995
  %v5033 = vunpack.c.l.b16 %v4996
  %v5034 = vunpack.c.l.b16 %v4997
  %v5035 = vunpack.c.l.b16 %v4998
  %v5036 = vunpack.c.l.b16 %v4999
  %v5037 = vunpack.c.l.b16 %v5000
  %v5038 = vunpack.c.l.b16 %v5001
  %v5039 = vpack.c.b16 %v5024, %v5023
  %v5040 = vpack.c.b16 %v5026, %v5025
  %v5041 = vpack.c.b16 %v5028, %v5027
  %v5042 = vpack.c.b16 %v5030, %v5029
  %v5043 = vpack.c.b16 %v5032, %v5031
  %v5044 = vpack.c.b16 %v5034, %v5033
  %v5045 = vpack.c.b16 %v5036, %v5035
  %v5046 = vpack.c.b16 %v5038, %v5037
  %5055 = vmatprep.subr.bf16.mxu0 0
  %5056 = vmatpush1.bf16.msra.mxu0 %v5039
  %5057 = vmatprep.subr.bf16.mxu0 0
  %5058 = vmatpush1.bf16.msra.mxu0 %v5040
  %5059 = vmatprep.subr.bf16.mxu0 0
  %5060 = vmatpush1.bf16.msra.mxu0 %v5041
  %5061 = vmatprep.subr.bf16.mxu0 0
  %5062 = vmatpush1.bf16.msra.mxu0 %v5042
  %5063 = vmatprep.subr.bf16.mxu0 0
  %5064 = vmatpush1.bf16.msra.mxu0 %v5043
  %5065 = vmatprep.subr.bf16.mxu0 0
  %5066 = vmatpush1.bf16.msra.mxu0 %v5044
  %5067 = vmatprep.subr.bf16.mxu0 0
  %5068 = vmatpush1.bf16.msra.mxu0 %v5045
  %5069 = vmatprep.subr.bf16.mxu0 0
  %5070 = vmatpush1.bf16.msra.mxu0 %v5046
  %5071 = vmatprep.subr.bf16.mxu0 0
  %5072 = vmatpush1.bf16.msra.mxu0 0
  %5073 = vmatprep.subr.bf16.mxu0 0
  %5074 = vmatpush1.bf16.msra.mxu0 0
  %5075 = vmatprep.subr.bf16.mxu0 0
  %5076 = vmatpush1.bf16.msra.mxu0 0
  %5077 = vmatprep.subr.bf16.mxu0 0
  %5078 = vmatpush1.bf16.msra.mxu0 0
  %5079 = vmatprep.subr.bf16.mxu0 0
  %5080 = vmatpush1.bf16.msra.mxu0 0
  %5081 = vmatprep.subr.bf16.mxu0 0
  %5082 = vmatpush1.bf16.msra.mxu0 0
  %5083 = vmatprep.subr.bf16.mxu0 0
  %5084 = vmatpush1.bf16.msra.mxu0 0
  %5085 = vmatprep.subr.bf16.mxu0 0
  %5086 = vmatpush1.bf16.msra.mxu0 0
  %5087 = vmatprep.mubr.bf16.mxu0 0
  %5088 = vmatmul.mubr.bf16.gmra.mrb[0].mxu0 %v4985
  %v5089 = vpop.f32.mrb[0].mxu0
  %v5090 = vadd.f32 %v5006, %v5089
  %v5091 = vpop.f32.mrb[0].mxu0
  %v5092 = vpop.f32.mrb[0].mxu0
  %v5093 = vadd.f32 %v5006, %v5092
  %v5094 = vpop.f32.mrb[0].mxu0
  %5095 = vdwg.mxu0
  %v5096 = vmax.f32 %v5090, 0.0
  %v5097 = vmax.f32 %v5093, 0.0
  %v5098 = vpack.c.bf16 %v5097, %v5096
  %v5099 = vld [vmem:[%s5] sm:$0xf]
  %v5100 = vld [vmem:[%s5 + $0x4] sm:$0xf]
  %v5101 = vld [vmem:[%s5 + $0x8] sm:$0xf]
  %v5102 = vld [vmem:[%s5 + $0xc] sm:$0xf]
  %v5103 = vld [vmem:[%s5 + $0x10] sm:$0xf]
  %v5104 = vld [vmem:[%s5 + $0x14] sm:$0xf]
  %v5105 = vld [vmem:[%s5 + $0x18] sm:$0xf]
  %v5106 = vld [vmem:[%s5 + $0x1c] sm:$0xf]
  %v5107 = vld [vmem:[%s5 + $0x20] sm:$0xf]
  %v5108 = vld [vmem:[%s5 + $0x24] sm:$0xf]
  %v5109 = vld [vmem:[%s5 + $0x28] sm:$0xf]
  %v5110 = vld [vmem:[%s5 + $0x2c] sm:$0xf]
  %v5111 = vld [vmem:[%s5 + $0x30] sm:$0xf]
  %v5112 = vld [vmem:[%s5 + $0x34] sm:$0xf]
  %v5113 = vld [vmem:[%s5 + $0x38] sm:$0xf]
  %v5114 = vld [vmem:[%s5 + $0x3c] sm:$0xf]
  %v5115 = vld [vmem:[%s6 + $0x4] sm:$0x1]
  %v5116 = vlaneseq
  %v5117 = vshrl.u32 %v5116, 7
  %v5118 = vsub.s32 0, %v5117
  %v5119 = vrot.slane %v5115, %v5118
  %v5136 = vunpack.c.l.b16 %v5099
  %v5137 = vunpack.c.l.b16 %v5100
  %v5138 = vunpack.c.l.b16 %v5101
  %v5139 = vunpack.c.l.b16 %v5102
  %v5140 = vunpack.c.l.b16 %v5103
  %v5141 = vunpack.c.l.b16 %v5104
  %v5142 = vunpack.c.l.b16 %v5105
  %v5143 = vunpack.c.l.b16 %v5106
  %v5144 = vunpack.c.l.b16 %v5107
  %v5145 = vunpack.c.l.b16 %v5108
  %v5146 = vunpack.c.l.b16 %v5109
  %v5147 = vunpack.c.l.b16 %v5110
  %v5148 = vunpack.c.l.b16 %v5111
  %v5149 = vunpack.c.l.b16 %v5112
  %v5150 = vunpack.c.l.b16 %v5113
  %v5151 = vunpack.c.l.b16 %v5114
  %v5152 = vpack.c.b16 %v5137, %v5136
  %v5153 = vpack.c.b16 %v5139, %v5138
  %v5154 = vpack.c.b16 %v5141, %v5140
  %v5155 = vpack.c.b16 %v5143, %v5142
  %v5156 = vpack.c.b16 %v5145, %v5144
  %v5157 = vpack.c.b16 %v5147, %v5146
  %v5158 = vpack.c.b16 %v5149, %v5148
  %v5159 = vpack.c.b16 %v5151, %v5150
  %5168 = vmatprep.subr.bf16.mxu0 0
  %5169 = vmatpush1.bf16.msra.mxu0 %v5152
  %5170 = vmatprep.subr.bf16.mxu0 0
  %5171 = vmatpush1.bf16.msra.mxu0 %v5153
  %5172 = vmatprep.subr.bf16.mxu0 0
  %5173 = vmatpush1.bf16.msra.mxu0 %v5154
  %5174 = vmatprep.subr.bf16.mxu0 0
  %5175 = vmatpush1.bf16.msra.mxu0 %v5155
  %5176 = vmatprep.subr.bf16.mxu0 0
  %5177 = vmatpush1.bf16.msra.mxu0 %v5156
  %5178 = vmatprep.subr.bf16.mxu0 0
  %5179 = vmatpush1.bf16.msra.mxu0 %v5157
  %5180 = vmatprep.subr.bf16.mxu0 0
  %5181 = vmatpush1.bf16.msra.mxu0 %v5158
  %5182 = vmatprep.subr.bf16.mxu0 0
  %5183 = vmatpush1.bf16.msra.mxu0 %v5159
  %5184 = vmatprep.subr.bf16.mxu0 0
  %5185 = vmatpush1.bf16.msra.mxu0 0
  %5186 = vmatprep.subr.bf16.mxu0 0
  %5187 = vmatpush1.bf16.msra.mxu0 0
  %5188 = vmatprep.subr.bf16.mxu0 0
  %5189 = vmatpush1.bf16.msra.mxu0 0
  %5190 = vmatprep.subr.bf16.mxu0 0
  %5191 = vmatpush1.bf16.msra.mxu0 0
  %5192 = vmatprep.subr.bf16.mxu0 0
  %5193 = vmatpush1.bf16.msra.mxu0 0
  %5194 = vmatprep.subr.bf16.mxu0 0
  %5195 = vmatpush1.bf16.msra.mxu0 0
  %5196 = vmatprep.subr.bf16.mxu0 0
  %5197 = vmatpush1.bf16.msra.mxu0 0
  %5198 = vmatprep.subr.bf16.mxu0 0
  %5199 = vmatpush1.bf16.msra.mxu0 0
  %5200 = vmatprep.mubr.bf16.mxu0 0
  %5201 = vmatmul.mubr.bf16.gmra.mrb[0].mxu0 %v5098
  %v5202 = vpop.f32.mrb[0].mxu0
  %v5203 = vadd.f32 %v5119, %v5202
  %v5204 = vpop.f32.mrb[0].mxu0
  %v5205 = vpop.f32.mrb[0].mxu0
  %v5206 = vadd.f32 %v5119, %v5205
  %v5207 = vpop.f32.mrb[0].mxu0
  %5208 = vdwg.mxu0
  %5209 = vst [vmem:[%s7] sm:$0xff] %v5203
  %5210 = vst [vmem:[%s7 + $0x8] sm:$0xff] %v5206
  // Predicated region
  $region30: #{_cnn3dvisco_forward.1} parent=0 // pred_check
    _
  $region31: #{_cnn3dvisco_forward.1} parent=0 // pred_check_branch
    %5212 = sbr.rel (0) target = $region33
  $region32: #{_cnn3dvisco_forward.1} parent=0 // pred_region
    _
  $region33: #{_cnn3dvisco_forward.1} parent=0 // pred_fallthru
    _
  // Predicated region
  $region34: #{_cnn3dvisco_forward.1} parent=0 // pred_check
    _
  $region35: #{_cnn3dvisco_forward.1} parent=0 // pred_check_branch
    %5214 = sbr.rel (0) target = $region37
  $region36: #{_cnn3dvisco_forward.1} parent=0 // pred_region
    _
  $region37: #{_cnn3dvisco_forward.1} parent=0 // pred_fallthru
    _

</llo_original>
